<compile_context>
chip_gen: v7x
topology: tpu7x:2x2x1
jax: 0.10.0
libtpu: 0.0.40
codegen_flags: <defaults>
</compile_context>

<pallas_src>
import math

import jax
import jax.numpy as jnp
from jax.experimental import pallas as pl
from jax.experimental.pallas import tpu as pltpu

DIM = 64          # n_embd
SEQ = 6           # sequence length (fixed by mlp2: Linear(6, ...))
COND = 128        # condition_embd (text embedding dim)
NHEAD = 4
HDIM = DIM // NHEAD
HIDDEN = 256
NLAYERS = 8
EPS = 1e-5

# Weight storage dtype.  f32 matches the PyTorch module and the 1e-3 reference
# check; bf16 would halve the (one-time) weight DMA if ever HBM-bound.
WEIGHT_DTYPE = jnp.float32

# TimeEmbedding frequencies: 10000 ** linspace(0, 1, dim//2), duplicated so the
# kernel can build [sin | cos] with a lane-index select (no in-kernel concat).
FREQS = (10000.0 ** jnp.linspace(0.0, 1.0, DIM // 2)).astype(jnp.float32)
FREQS2 = jnp.concatenate([FREQS, FREQS]).reshape(1, DIM).astype(jnp.float32)


def fused_mlp_kernel(freqs_ref, t_ref, text_ref, x_ref,
                     wvp_ref, w1_ref, w2_ref, w3t_ref, w4t_ref,
                     b64_ref, b1_ref, b3c_ref, b4c_ref,
                     o_ref):
    """All 8 MLPlayers for one batch element.  grid = (B,).

    The carried activation lives in vregs as a lane-dense (SEQ, DIM) slab; the
    stacked weights are whole-stack VMEM blocks indexed with a static layer
    index, so the Python `for l` loop unrolls into straight-line code.
    """
    # ---- layer-invariant work (hoisted out of the layer loop) ----
    # TimeEmbedding: [sin(100 t / f) | cos(100 t / f)] -> (1, DIM)
    arg = (t_ref[...] * 100.0) / freqs_ref[...]               # (1,1)/(1,DIM) -> (1,DIM)
    lane = jax.lax.broadcasted_iota(jnp.int32, (1, DIM), 1)
    temb = jnp.where(lane < DIM // 2, jnp.sin(arg), jnp.cos(arg))

    text = text_ref[...]                                      # (1, COND)
    x = x_ref[...]                                            # (SEQ, DIM) carried activation

    for l in range(NLAYERS):                                  # fully unrolled
        b64 = b64_ref[l]                                      # (4, DIM): bvp, gamma, beta, b2

        xb = x + temb                                         # broadcast over SEQ

        # ---- cross-attention, algebraically folded to one matmul ----
        y = jnp.dot(text, wvp_ref[l],
                    preferred_element_type=jnp.float32) + b64[0:1]        # (1, DIM)
        x2 = xb + y                                           # residual, broadcast over SEQ

        # ---- norm2: LayerNorm over DIM, affine ----
        mu = jnp.mean(x2, axis=-1, keepdims=True)
        var = jnp.mean(jnp.square(x2 - mu), axis=-1, keepdims=True)
        xn = (x2 - mu) * jax.lax.rsqrt(var + EPS) * b64[1:2] + b64[2:3]

        # ---- mlp: Linear(64,256) -> ReLU -> Linear(256,64), residual ----
        h = jnp.dot(xn, w1_ref[l], preferred_element_type=jnp.float32) + b1_ref[l]
        h = jnp.maximum(h, 0.0)                               # (SEQ, HIDDEN)
        x3 = xn + (jnp.dot(h, w2_ref[l], preferred_element_type=jnp.float32) + b64[3:4])

        # ---- mlp2: Linear(6,256) -> ReLU -> Linear(256,6) along the seq axis,
        # computed in transposed form so the carried activation stays (SEQ, DIM)
        # and no in-kernel transpose / relayout is needed (exact algebra):
        #   next_x = W4^T @ relu(W3^T @ x3 + b3_col) + b4_col
        g = jnp.dot(w3t_ref[l], x3, preferred_element_type=jnp.float32) + b3c_ref[l]
        g = jnp.maximum(g, 0.0)                               # (HIDDEN, DIM)
        x = jnp.dot(w4t_ref[l], g, preferred_element_type=jnp.float32) + b4c_ref[l]

    o_ref[...] = x                                            # single HBM writeback


def _stack_layer_params(layer_params):
    """Stack per-layer params with a leading NLAYERS axis, applying exact
    host-side algebra: Wvp = Wv @ Wp, bvp = bv @ Wp + bp (uniform-softmax
    cross-attention fold) and pre-transposed W3/W4 for the transpose-free mlp2
    form.  Biases are stored in broadcast-ready 2-D shapes."""
    f32 = jnp.float32

    def stk(fn):
        return jnp.stack([fn(p) for p in layer_params]).astype(WEIGHT_DTYPE)

    wvp = stk(lambda p: p['wv'].astype(f32) @ p['wp'].astype(f32))        # (L, COND, DIM)
    w1 = stk(lambda p: p['w1'])                                           # (L, DIM, HIDDEN)
    w2 = stk(lambda p: p['w2'])                                           # (L, HIDDEN, DIM)
    w3t = stk(lambda p: p['w3'].T)                                        # (L, HIDDEN, SEQ)
    w4t = stk(lambda p: p['w4'].T)                                        # (L, SEQ, HIDDEN)
    b64 = stk(lambda p: jnp.stack([
        p['bv'].astype(f32) @ p['wp'].astype(f32) + p['bp'].astype(f32),  # bvp
        p['gamma'], p['beta'], p['b2']]))                                 # (L, 4, DIM)
    b1 = stk(lambda p: p['b1'].reshape(1, HIDDEN))                        # (L, 1, HIDDEN)
    b3c = stk(lambda p: p['b3'].reshape(HIDDEN, 1))                       # (L, HIDDEN, 1)
    b4c = stk(lambda p: p['b4'].reshape(SEQ, 1))                          # (L, SEQ, 1)
    # wq/bq/wk/bk are mathematically irrelevant (uniform softmax) -> not passed.
    return dict(wvp=wvp, w1=w1, w2=w2, w3t=w3t, w4t=w4t,
                b64=b64, b1=b1, b3c=b3c, b4c=b4c)


def mlp_forward(x, t, text, layer_params):
    """x: (B, DIM, SEQ) f32, t: (B,) f32, text: (B, COND) f32 -> (B, DIM, SEQ)."""
    B = x.shape[0]
    P = _stack_layer_params(layer_params)

    # Layout plumbing (once per forward): present a lane-dense (B, SEQ, DIM)
    # slab to the kernel; transpose back once at the end.
    x_btc = jnp.swapaxes(x, 1, 2).astype(jnp.float32)          # (B, SEQ, DIM)
    t3 = t.astype(jnp.float32).reshape(B, 1, 1)
    text3 = text.astype(jnp.float32).reshape(B, 1, COND)

    amap = lambda b: (b, 0, 0)        # one batch element per grid step
    wmap = lambda b: (0, 0, 0)        # whole-stack, VMEM-resident weights (fetched once)

    in_specs = [
        pl.BlockSpec((1, DIM), lambda b: (0, 0)),              # freqs2
        pl.BlockSpec((None, 1, 1), amap),                      # t        -> (1, 1)
        pl.BlockSpec((None, 1, COND), amap),                   # text     -> (1, COND)
        pl.BlockSpec((None, SEQ, DIM), amap),                  # x        -> (SEQ, DIM)
        pl.BlockSpec((NLAYERS, COND, DIM), wmap),              # Wvp stack
        pl.BlockSpec((NLAYERS, DIM, HIDDEN), wmap),            # W1 stack
        pl.BlockSpec((NLAYERS, HIDDEN, DIM), wmap),            # W2 stack
        pl.BlockSpec((NLAYERS, HIDDEN, SEQ), wmap),            # W3^T stack
        pl.BlockSpec((NLAYERS, SEQ, HIDDEN), wmap),            # W4^T stack
        pl.BlockSpec((NLAYERS, 4, DIM), wmap),                 # [bvp, gamma, beta, b2]
        pl.BlockSpec((NLAYERS, 1, HIDDEN), wmap),              # b1 (row)
        pl.BlockSpec((NLAYERS, HIDDEN, 1), wmap),              # b3 (column)
        pl.BlockSpec((NLAYERS, SEQ, 1), wmap),                 # b4 (column)
    ]
    out_spec = pl.BlockSpec((None, SEQ, DIM), amap)

    weight_bytes = 4 * sum(int(v.size) for v in P.values())
    cost = pl.CostEstimate(
        flops=int(B * NLAYERS * (2 * COND * DIM + 8 * SEQ * DIM * HIDDEN)),
        transcendentals=int(B * (DIM + NLAYERS * SEQ)),
        bytes_accessed=int(weight_bytes + 4 * (2 * B * SEQ * DIM + B * COND + B)),
    )

    out = pl.pallas_call(
        fused_mlp_kernel,
        out_shape=jax.ShapeDtypeStruct((B, SEQ, DIM), jnp.float32),
        grid=(B,),
        in_specs=in_specs,
        out_specs=out_spec,
        compiler_params=pltpu.CompilerParams(
            dimension_semantics=("parallel",)),
        cost_estimate=cost,
    )(FREQS2, t3, text3, x_btc,
      P['wvp'], P['w1'], P['w2'], P['w3t'], P['w4t'],
      P['b64'], P['b1'], P['b3c'], P['b4c'])

    return jnp.swapaxes(out, 1, 2)    # public (B, DIM, SEQ) layout


def init_layer_params(key):
    ks = jax.random.split(key, 9)
    scale = 0.02

    def lin(k, fan_in, fan_out):
        kw, kb = jax.random.split(k)
        w = jax.random.normal(kw, (fan_in, fan_out), jnp.float32) * scale
        b = jax.random.normal(kb, (fan_out,), jnp.float32) * scale
        return w, b

    wq, bq = lin(ks[0], DIM, DIM)
    wk, bk = lin(ks[1], COND, DIM)
    wv, bv = lin(ks[2], COND, DIM)
    wp, bp = lin(ks[3], DIM, DIM)
    w1, b1 = lin(ks[4], DIM, HIDDEN)
    w2, b2 = lin(ks[5], HIDDEN, DIM)
    w3, b3 = lin(ks[6], SEQ, HIDDEN)
    w4, b4 = lin(ks[7], HIDDEN, SEQ)
    return dict(wq=wq, bq=bq, wk=wk, bk=bk, wv=wv, bv=bv, wp=wp, bp=bp,
                gamma=jnp.ones((DIM,), jnp.float32),
                beta=jnp.zeros((DIM,), jnp.float32),
                w1=w1, b1=b1, w2=w2, b2=b2, w3=w3, b3=b3, w4=w4, b4=b4)


def ref_layer(x, t, text, p):
    # Pure-jnp reference mirroring the PyTorch forward exactly (full attention
    # math incl. Wq/Wk) -- also validates the in-kernel attention fold and the
    # transposed mlp2 formulation.
    B = x.shape[0]
    arg = (t[:, None] * 100.0) / FREQS[None, :]
    temb = jnp.concatenate([jnp.sin(arg), jnp.cos(arg)], axis=-1)      # (B,64)
    xb = jnp.swapaxes(x, 1, 2) + temb[:, None, :]                      # (B,6,64)
    text_emb = jnp.broadcast_to(text[:, None, :], (B, SEQ, COND))
    k = (text_emb @ p['wk'] + p['bk']).reshape(B, SEQ, NHEAD, HDIM).transpose(0, 2, 1, 3)
    q = (xb @ p['wq'] + p['bq']).reshape(B, SEQ, NHEAD, HDIM).transpose(0, 2, 1, 3)
    v = (text_emb @ p['wv'] + p['bv']).reshape(B, SEQ, NHEAD, HDIM).transpose(0, 2, 1, 3)
    att = (q @ jnp.swapaxes(k, -2, -1)) / math.sqrt(HDIM)
    att = jax.nn.softmax(att, axis=-1)
    y = (att @ v).transpose(0, 2, 1, 3).reshape(B, SEQ, DIM)
    y = y @ p['wp'] + p['bp']
    xb = xb + y
    mu = jnp.mean(xb, -1, keepdims=True)
    var = jnp.mean((xb - mu) ** 2, -1, keepdims=True)
    xn = (xb - mu) / jnp.sqrt(var + EPS) * p['gamma'] + p['beta']
    xn = xn + (jnp.maximum(xn @ p['w1'] + p['b1'], 0.0) @ p['w2'] + p['b2'])
    xp = jnp.swapaxes(xn, 1, 2)
    return jnp.maximum(xp @ p['w3'] + p['b3'], 0.0) @ p['w4'] + p['b4']


if __name__ == "__main__":
    key = jax.random.PRNGKey(0)
    kx, kt, ktxt, kp = jax.random.split(key, 4)
    B = 2
    x = jax.random.normal(kx, (B, DIM, SEQ), jnp.float32)     # input: (B, 64, 6)
    t = jax.random.uniform(kt, (B,), jnp.float32)             # diffusion timestep
    text = jax.random.normal(ktxt, (B, COND), jnp.float32)    # text conditioning

    params = [init_layer_params(k) for k in jax.random.split(kp, NLAYERS)]

    out = mlp_forward(x, t, text, params)
    out = jax.block_until_ready(out)
    assert out.shape == (B, DIM, SEQ)

    # numerical check against the pure-jnp reference (full attention math)
    ref = x
    for p in params:
        ref = ref_layer(ref, t, text, p)
    max_err = float(jnp.max(jnp.abs(out - ref)))
    assert jnp.allclose(out, ref, atol=1e-3, rtol=1e-3), max_err

    print("KERNEL_OK")
</pallas_src>

<mosaic_0001>
module attributes {stable_mosaic.version = 11 : i64} {
  func.func @fused_mlp_kernel(%arg0: i32, %arg1: memref<1x64xf32, #tpu.memory_space<vmem>>, %arg2: memref<1x1x1xf32, #tpu.memory_space<vmem>>, %arg3: memref<1x1x128xf32, #tpu.memory_space<vmem>>, %arg4: memref<1x6x64xf32, #tpu.memory_space<vmem>>, %arg5: memref<8x128x64xf32, #tpu.memory_space<vmem>>, %arg6: memref<8x64x256xf32, #tpu.memory_space<vmem>>, %arg7: memref<8x256x64xf32, #tpu.memory_space<vmem>>, %arg8: memref<8x256x6xf32, #tpu.memory_space<vmem>>, %arg9: memref<8x6x256xf32, #tpu.memory_space<vmem>>, %arg10: memref<8x4x64xf32, #tpu.memory_space<vmem>>, %arg11: memref<8x1x256xf32, #tpu.memory_space<vmem>>, %arg12: memref<8x256x1xf32, #tpu.memory_space<vmem>>, %arg13: memref<8x6x1xf32, #tpu.memory_space<vmem>>, %arg14: memref<1x6x64xf32, #tpu.memory_space<vmem>>) attributes {dimension_semantics = [#tpu.dimension_semantics<parallel>], iteration_bounds = array<i64: 2>, scalar_prefetch = 0 : i64, scratch_operands = 0 : i64, tpu.core_type = #tpu.core_type<tc>, window_params = [{pipeline_mode = #tpu.pipeline_mode<synchronous>, transform_indices = @transform_0, window_bounds = array<i64: 1, 64>}, {transform_indices = @transform_1, window_bounds = array<i64: 1, 1, 1>}, {transform_indices = @transform_2, window_bounds = array<i64: 1, 1, 128>}, {transform_indices = @transform_3, window_bounds = array<i64: 1, 6, 64>}, {pipeline_mode = #tpu.pipeline_mode<synchronous>, transform_indices = @transform_4, window_bounds = array<i64: 8, 128, 64>}, {pipeline_mode = #tpu.pipeline_mode<synchronous>, transform_indices = @transform_5, window_bounds = array<i64: 8, 64, 256>}, {pipeline_mode = #tpu.pipeline_mode<synchronous>, transform_indices = @transform_6, window_bounds = array<i64: 8, 256, 64>}, {pipeline_mode = #tpu.pipeline_mode<synchronous>, transform_indices = @transform_7, window_bounds = array<i64: 8, 256, 6>}, {pipeline_mode = #tpu.pipeline_mode<synchronous>, transform_indices = @transform_8, window_bounds = array<i64: 8, 6, 256>}, {pipeline_mode = #tpu.pipeline_mode<synchronous>, transform_indices = @transform_9, window_bounds = array<i64: 8, 4, 64>}, {pipeline_mode = #tpu.pipeline_mode<synchronous>, transform_indices = @transform_10, window_bounds = array<i64: 8, 1, 256>}, {pipeline_mode = #tpu.pipeline_mode<synchronous>, transform_indices = @transform_11, window_bounds = array<i64: 8, 256, 1>}, {pipeline_mode = #tpu.pipeline_mode<synchronous>, transform_indices = @transform_12, window_bounds = array<i64: 8, 6, 1>}, {transform_indices = @transform_13, window_bounds = array<i64: 1, 6, 64>}]} {
    %c0 = arith.constant 0 : index
    %c0_0 = arith.constant 0 : index
    %c0_1 = arith.constant 0 : index
    %0 = vector.load %arg2[%c0, %c0_0, %c0_1] : memref<1x1x1xf32, #tpu.memory_space<vmem>>, vector<1x1x1xf32>
    %1 = vector.shape_cast %0 : vector<1x1x1xf32> to vector<1x1xf32>
    %cst = arith.constant 1.000000e+02 : f32
    %2 = vector.broadcast %cst : f32 to vector<1x1xf32>
    %3 = arith.mulf %1, %2 : vector<1x1xf32>
    %c0_2 = arith.constant 0 : index
    %c0_3 = arith.constant 0 : index
    %4 = vector.load %arg1[%c0_2, %c0_3] : memref<1x64xf32, #tpu.memory_space<vmem>>, vector<1x64xf32>
    %5 = vector.broadcast %3 : vector<1x1xf32> to vector<1x64xf32>
    %6 = arith.divf %5, %4 : vector<1x64xf32>
    %7 = tpu.iota {dimensions = array<i32: 1>} : vector<1x64xi32>
    %c32_i32 = arith.constant 32 : i32
    %8 = vector.broadcast %c32_i32 : i32 to vector<1x64xi32>
    %9 = arith.cmpi slt, %7, %8 : vector<1x64xi32>
    %10 = math.sin %6 : vector<1x64xf32>
    %11 = math.cos %6 : vector<1x64xf32>
    %12 = arith.select %9, %10, %11 : vector<1x64xi1>, vector<1x64xf32>
    %c0_4 = arith.constant 0 : index
    %c0_5 = arith.constant 0 : index
    %c0_6 = arith.constant 0 : index
    %13 = vector.load %arg3[%c0_4, %c0_5, %c0_6] : memref<1x1x128xf32, #tpu.memory_space<vmem>>, vector<1x1x128xf32>
    %14 = vector.shape_cast %13 : vector<1x1x128xf32> to vector<1x128xf32>
    %c0_7 = arith.constant 0 : index
    %c0_8 = arith.constant 0 : index
    %c0_9 = arith.constant 0 : index
    %15 = vector.load %arg4[%c0_7, %c0_8, %c0_9] : memref<1x6x64xf32, #tpu.memory_space<vmem>>, vector<1x6x64xf32>
    %16 = vector.shape_cast %15 : vector<1x6x64xf32> to vector<6x64xf32>
    %c0_10 = arith.constant 0 : index
    %c0_11 = arith.constant 0 : index
    %c0_12 = arith.constant 0 : index
    %17 = vector.load %arg10[%c0_10, %c0_11, %c0_12] : memref<8x4x64xf32, #tpu.memory_space<vmem>>, vector<1x4x64xf32>
    %18 = vector.shape_cast %17 : vector<1x4x64xf32> to vector<4x64xf32>
    %19 = vector.broadcast %12 : vector<1x64xf32> to vector<6x64xf32>
    %20 = arith.addf %16, %19 : vector<6x64xf32>
    %c0_13 = arith.constant 0 : index
    %c0_14 = arith.constant 0 : index
    %c0_15 = arith.constant 0 : index
    %21 = vector.load %arg5[%c0_13, %c0_14, %c0_15] : memref<8x128x64xf32, #tpu.memory_space<vmem>>, vector<1x128x64xf32>
    %22 = vector.shape_cast %21 : vector<1x128x64xf32> to vector<128x64xf32>
    %cst_16 = arith.constant dense<0.000000e+00> : vector<1x64xf32>
    %23 = tpu.matmul %14, %22, %cst_16 {dimension_numbers = #tpu.dot_dimension_numbers<[1], [0], [0], [1], [0, 0, 1, 1], [], []>} : vector<1x128xf32>, vector<128x64xf32>, vector<1x64xf32> -> vector<1x64xf32>
    %24 = vector.extract_strided_slice %18 {offsets = [0, 0], sizes = [1, 64], strides = [1, 1]} : vector<4x64xf32> to vector<1x64xf32>
    %25 = arith.addf %23, %24 : vector<1x64xf32>
    %26 = vector.broadcast %25 : vector<1x64xf32> to vector<6x64xf32>
    %27 = arith.addf %20, %26 : vector<6x64xf32>
    %cst_17 = arith.constant dense<0.000000e+00> : vector<6xf32>
    %28 = vector.multi_reduction <add>, %27, %cst_17 [1] : vector<6x64xf32> to vector<6xf32>
    %29 = vector.shape_cast %28 : vector<6xf32> to vector<6x1xf32>
    %cst_18 = arith.constant 6.400000e+01 : f32
    %30 = vector.broadcast %cst_18 : f32 to vector<6x1xf32>
    %31 = arith.divf %29, %30 : vector<6x1xf32>
    %32 = vector.broadcast %31 : vector<6x1xf32> to vector<6x64xf32>
    %33 = arith.subf %27, %32 : vector<6x64xf32>
    %34 = arith.mulf %33, %33 : vector<6x64xf32>
    %cst_19 = arith.constant dense<0.000000e+00> : vector<6xf32>
    %35 = vector.multi_reduction <add>, %34, %cst_19 [1] : vector<6x64xf32> to vector<6xf32>
    %36 = vector.shape_cast %35 : vector<6xf32> to vector<6x1xf32>
    %cst_20 = arith.constant 6.400000e+01 : f32
    %37 = vector.broadcast %cst_20 : f32 to vector<6x1xf32>
    %38 = arith.divf %36, %37 : vector<6x1xf32>
    %39 = vector.broadcast %31 : vector<6x1xf32> to vector<6x64xf32>
    %40 = arith.subf %27, %39 : vector<6x64xf32>
    %cst_21 = arith.constant 9.99999974E-6 : f32
    %41 = vector.broadcast %cst_21 : f32 to vector<6x1xf32>
    %42 = arith.addf %38, %41 : vector<6x1xf32>
    %43 = math.rsqrt %42 : vector<6x1xf32>
    %44 = vector.broadcast %43 : vector<6x1xf32> to vector<6x64xf32>
    %45 = arith.mulf %40, %44 : vector<6x64xf32>
    %46 = vector.extract_strided_slice %18 {offsets = [1, 0], sizes = [1, 64], strides = [1, 1]} : vector<4x64xf32> to vector<1x64xf32>
    %47 = vector.broadcast %46 : vector<1x64xf32> to vector<6x64xf32>
    %48 = arith.mulf %45, %47 : vector<6x64xf32>
    %49 = vector.extract_strided_slice %18 {offsets = [2, 0], sizes = [1, 64], strides = [1, 1]} : vector<4x64xf32> to vector<1x64xf32>
    %50 = vector.broadcast %49 : vector<1x64xf32> to vector<6x64xf32>
    %51 = arith.addf %48, %50 : vector<6x64xf32>
    %c0_22 = arith.constant 0 : index
    %c0_23 = arith.constant 0 : index
    %c0_24 = arith.constant 0 : index
    %52 = vector.load %arg6[%c0_22, %c0_23, %c0_24] : memref<8x64x256xf32, #tpu.memory_space<vmem>>, vector<1x64x256xf32>
    %53 = vector.shape_cast %52 : vector<1x64x256xf32> to vector<64x256xf32>
    %cst_25 = arith.constant dense<0.000000e+00> : vector<6x256xf32>
    %54 = tpu.matmul %51, %53, %cst_25 {dimension_numbers = #tpu.dot_dimension_numbers<[1], [0], [0], [1], [0, 0, 1, 1], [], []>} : vector<6x64xf32>, vector<64x256xf32>, vector<6x256xf32> -> vector<6x256xf32>
    %c0_26 = arith.constant 0 : index
    %c0_27 = arith.constant 0 : index
    %c0_28 = arith.constant 0 : index
    %55 = vector.load %arg11[%c0_26, %c0_27, %c0_28] : memref<8x1x256xf32, #tpu.memory_space<vmem>>, vector<1x1x256xf32>
    %56 = vector.shape_cast %55 : vector<1x1x256xf32> to vector<1x256xf32>
    %57 = vector.broadcast %56 : vector<1x256xf32> to vector<6x256xf32>
    %58 = arith.addf %54, %57 : vector<6x256xf32>
    %cst_29 = arith.constant 0.000000e+00 : f32
    %59 = vector.broadcast %cst_29 : f32 to vector<6x256xf32>
    %60 = arith.maximumf %58, %59 : vector<6x256xf32>
    %c0_30 = arith.constant 0 : index
    %c0_31 = arith.constant 0 : index
    %c0_32 = arith.constant 0 : index
    %61 = vector.load %arg7[%c0_30, %c0_31, %c0_32] : memref<8x256x64xf32, #tpu.memory_space<vmem>>, vector<1x256x64xf32>
    %62 = vector.shape_cast %61 : vector<1x256x64xf32> to vector<256x64xf32>
    %cst_33 = arith.constant dense<0.000000e+00> : vector<6x64xf32>
    %63 = tpu.matmul %60, %62, %cst_33 {dimension_numbers = #tpu.dot_dimension_numbers<[1], [0], [0], [1], [0, 0, 1, 1], [], []>} : vector<6x256xf32>, vector<256x64xf32>, vector<6x64xf32> -> vector<6x64xf32>
    %64 = vector.extract_strided_slice %18 {offsets = [3, 0], sizes = [1, 64], strides = [1, 1]} : vector<4x64xf32> to vector<1x64xf32>
    %65 = vector.broadcast %64 : vector<1x64xf32> to vector<6x64xf32>
    %66 = arith.addf %63, %65 : vector<6x64xf32>
    %67 = arith.addf %51, %66 : vector<6x64xf32>
    %c0_34 = arith.constant 0 : index
    %c0_35 = arith.constant 0 : index
    %c0_36 = arith.constant 0 : index
    %68 = vector.load %arg8[%c0_34, %c0_35, %c0_36] : memref<8x256x6xf32, #tpu.memory_space<vmem>>, vector<1x256x6xf32>
    %69 = vector.shape_cast %68 : vector<1x256x6xf32> to vector<256x6xf32>
    %cst_37 = arith.constant dense<0.000000e+00> : vector<256x64xf32>
    %70 = tpu.matmul %69, %67, %cst_37 {dimension_numbers = #tpu.dot_dimension_numbers<[1], [0], [0], [1], [0, 0, 1, 1], [], []>} : vector<256x6xf32>, vector<6x64xf32>, vector<256x64xf32> -> vector<256x64xf32>
    %c0_38 = arith.constant 0 : index
    %c0_39 = arith.constant 0 : index
    %c0_40 = arith.constant 0 : index
    %71 = vector.load %arg12[%c0_38, %c0_39, %c0_40] : memref<8x256x1xf32, #tpu.memory_space<vmem>>, vector<1x256x1xf32>
    %72 = vector.shape_cast %71 : vector<1x256x1xf32> to vector<256x1xf32>
    %73 = vector.broadcast %72 : vector<256x1xf32> to vector<256x64xf32>
    %74 = arith.addf %70, %73 : vector<256x64xf32>
    %cst_41 = arith.constant 0.000000e+00 : f32
    %75 = vector.broadcast %cst_41 : f32 to vector<256x64xf32>
    %76 = arith.maximumf %74, %75 : vector<256x64xf32>
    %c0_42 = arith.constant 0 : index
    %c0_43 = arith.constant 0 : index
    %c0_44 = arith.constant 0 : index
    %77 = vector.load %arg9[%c0_42, %c0_43, %c0_44] : memref<8x6x256xf32, #tpu.memory_space<vmem>>, vector<1x6x256xf32>
    %78 = vector.shape_cast %77 : vector<1x6x256xf32> to vector<6x256xf32>
    %cst_45 = arith.constant dense<0.000000e+00> : vector<6x64xf32>
    %79 = tpu.matmul %78, %76, %cst_45 {dimension_numbers = #tpu.dot_dimension_numbers<[1], [0], [0], [1], [0, 0, 1, 1], [], []>} : vector<6x256xf32>, vector<256x64xf32>, vector<6x64xf32> -> vector<6x64xf32>
    %c0_46 = arith.constant 0 : index
    %c0_47 = arith.constant 0 : index
    %c0_48 = arith.constant 0 : index
    %80 = vector.load %arg13[%c0_46, %c0_47, %c0_48] : memref<8x6x1xf32, #tpu.memory_space<vmem>>, vector<1x6x1xf32>
    %81 = vector.shape_cast %80 : vector<1x6x1xf32> to vector<6x1xf32>
    %82 = vector.broadcast %81 : vector<6x1xf32> to vector<6x64xf32>
    %83 = arith.addf %79, %82 : vector<6x64xf32>
    %c1 = arith.constant 1 : index
    %c0_49 = arith.constant 0 : index
    %c0_50 = arith.constant 0 : index
    %84 = vector.load %arg10[%c1, %c0_49, %c0_50] : memref<8x4x64xf32, #tpu.memory_space<vmem>>, vector<1x4x64xf32>
    %85 = vector.shape_cast %84 : vector<1x4x64xf32> to vector<4x64xf32>
    %86 = vector.broadcast %12 : vector<1x64xf32> to vector<6x64xf32>
    %87 = arith.addf %83, %86 : vector<6x64xf32>
    %c1_51 = arith.constant 1 : index
    %c0_52 = arith.constant 0 : index
    %c0_53 = arith.constant 0 : index
    %88 = vector.load %arg5[%c1_51, %c0_52, %c0_53] : memref<8x128x64xf32, #tpu.memory_space<vmem>>, vector<1x128x64xf32>
    %89 = vector.shape_cast %88 : vector<1x128x64xf32> to vector<128x64xf32>
    %cst_54 = arith.constant dense<0.000000e+00> : vector<1x64xf32>
    %90 = tpu.matmul %14, %89, %cst_54 {dimension_numbers = #tpu.dot_dimension_numbers<[1], [0], [0], [1], [0, 0, 1, 1], [], []>} : vector<1x128xf32>, vector<128x64xf32>, vector<1x64xf32> -> vector<1x64xf32>
    %91 = vector.extract_strided_slice %85 {offsets = [0, 0], sizes = [1, 64], strides = [1, 1]} : vector<4x64xf32> to vector<1x64xf32>
    %92 = arith.addf %90, %91 : vector<1x64xf32>
    %93 = vector.broadcast %92 : vector<1x64xf32> to vector<6x64xf32>
    %94 = arith.addf %87, %93 : vector<6x64xf32>
    %cst_55 = arith.constant dense<0.000000e+00> : vector<6xf32>
    %95 = vector.multi_reduction <add>, %94, %cst_55 [1] : vector<6x64xf32> to vector<6xf32>
    %96 = vector.shape_cast %95 : vector<6xf32> to vector<6x1xf32>
    %cst_56 = arith.constant 6.400000e+01 : f32
    %97 = vector.broadcast %cst_56 : f32 to vector<6x1xf32>
    %98 = arith.divf %96, %97 : vector<6x1xf32>
    %99 = vector.broadcast %98 : vector<6x1xf32> to vector<6x64xf32>
    %100 = arith.subf %94, %99 : vector<6x64xf32>
    %101 = arith.mulf %100, %100 : vector<6x64xf32>
    %cst_57 = arith.constant dense<0.000000e+00> : vector<6xf32>
    %102 = vector.multi_reduction <add>, %101, %cst_57 [1] : vector<6x64xf32> to vector<6xf32>
    %103 = vector.shape_cast %102 : vector<6xf32> to vector<6x1xf32>
    %cst_58 = arith.constant 6.400000e+01 : f32
    %104 = vector.broadcast %cst_58 : f32 to vector<6x1xf32>
    %105 = arith.divf %103, %104 : vector<6x1xf32>
    %106 = vector.broadcast %98 : vector<6x1xf32> to vector<6x64xf32>
    %107 = arith.subf %94, %106 : vector<6x64xf32>
    %cst_59 = arith.constant 9.99999974E-6 : f32
    %108 = vector.broadcast %cst_59 : f32 to vector<6x1xf32>
    %109 = arith.addf %105, %108 : vector<6x1xf32>
    %110 = math.rsqrt %109 : vector<6x1xf32>
    %111 = vector.broadcast %110 : vector<6x1xf32> to vector<6x64xf32>
    %112 = arith.mulf %107, %111 : vector<6x64xf32>
    %113 = vector.extract_strided_slice %85 {offsets = [1, 0], sizes = [1, 64], strides = [1, 1]} : vector<4x64xf32> to vector<1x64xf32>
    %114 = vector.broadcast %113 : vector<1x64xf32> to vector<6x64xf32>
    %115 = arith.mulf %112, %114 : vector<6x64xf32>
    %116 = vector.extract_strided_slice %85 {offsets = [2, 0], sizes = [1, 64], strides = [1, 1]} : vector<4x64xf32> to vector<1x64xf32>
    %117 = vector.broadcast %116 : vector<1x64xf32> to vector<6x64xf32>
    %118 = arith.addf %115, %117 : vector<6x64xf32>
    %c1_60 = arith.constant 1 : index
    %c0_61 = arith.constant 0 : index
    %c0_62 = arith.constant 0 : index
    %119 = vector.load %arg6[%c1_60, %c0_61, %c0_62] : memref<8x64x256xf32, #tpu.memory_space<vmem>>, vector<1x64x256xf32>
    %120 = vector.shape_cast %119 : vector<1x64x256xf32> to vector<64x256xf32>
    %cst_63 = arith.constant dense<0.000000e+00> : vector<6x256xf32>
    %121 = tpu.matmul %118, %120, %cst_63 {dimension_numbers = #tpu.dot_dimension_numbers<[1], [0], [0], [1], [0, 0, 1, 1], [], []>} : vector<6x64xf32>, vector<64x256xf32>, vector<6x256xf32> -> vector<6x256xf32>
    %c1_64 = arith.constant 1 : index
    %c0_65 = arith.constant 0 : index
    %c0_66 = arith.constant 0 : index
    %122 = vector.load %arg11[%c1_64, %c0_65, %c0_66] : memref<8x1x256xf32, #tpu.memory_space<vmem>>, vector<1x1x256xf32>
    %123 = vector.shape_cast %122 : vector<1x1x256xf32> to vector<1x256xf32>
    %124 = vector.broadcast %123 : vector<1x256xf32> to vector<6x256xf32>
    %125 = arith.addf %121, %124 : vector<6x256xf32>
    %cst_67 = arith.constant 0.000000e+00 : f32
    %126 = vector.broadcast %cst_67 : f32 to vector<6x256xf32>
    %127 = arith.maximumf %125, %126 : vector<6x256xf32>
    %c1_68 = arith.constant 1 : index
    %c0_69 = arith.constant 0 : index
    %c0_70 = arith.constant 0 : index
    %128 = vector.load %arg7[%c1_68, %c0_69, %c0_70] : memref<8x256x64xf32, #tpu.memory_space<vmem>>, vector<1x256x64xf32>
    %129 = vector.shape_cast %128 : vector<1x256x64xf32> to vector<256x64xf32>
    %cst_71 = arith.constant dense<0.000000e+00> : vector<6x64xf32>
    %130 = tpu.matmul %127, %129, %cst_71 {dimension_numbers = #tpu.dot_dimension_numbers<[1], [0], [0], [1], [0, 0, 1, 1], [], []>} : vector<6x256xf32>, vector<256x64xf32>, vector<6x64xf32> -> vector<6x64xf32>
    %131 = vector.extract_strided_slice %85 {offsets = [3, 0], sizes = [1, 64], strides = [1, 1]} : vector<4x64xf32> to vector<1x64xf32>
    %132 = vector.broadcast %131 : vector<1x64xf32> to vector<6x64xf32>
    %133 = arith.addf %130, %132 : vector<6x64xf32>
    %134 = arith.addf %118, %133 : vector<6x64xf32>
    %c1_72 = arith.constant 1 : index
    %c0_73 = arith.constant 0 : index
    %c0_74 = arith.constant 0 : index
    %135 = vector.load %arg8[%c1_72, %c0_73, %c0_74] : memref<8x256x6xf32, #tpu.memory_space<vmem>>, vector<1x256x6xf32>
    %136 = vector.shape_cast %135 : vector<1x256x6xf32> to vector<256x6xf32>
    %cst_75 = arith.constant dense<0.000000e+00> : vector<256x64xf32>
    %137 = tpu.matmul %136, %134, %cst_75 {dimension_numbers = #tpu.dot_dimension_numbers<[1], [0], [0], [1], [0, 0, 1, 1], [], []>} : vector<256x6xf32>, vector<6x64xf32>, vector<256x64xf32> -> vector<256x64xf32>
    %c1_76 = arith.constant 1 : index
    %c0_77 = arith.constant 0 : index
    %c0_78 = arith.constant 0 : index
    %138 = vector.load %arg12[%c1_76, %c0_77, %c0_78] : memref<8x256x1xf32, #tpu.memory_space<vmem>>, vector<1x256x1xf32>
    %139 = vector.shape_cast %138 : vector<1x256x1xf32> to vector<256x1xf32>
    %140 = vector.broadcast %139 : vector<256x1xf32> to vector<256x64xf32>
    %141 = arith.addf %137, %140 : vector<256x64xf32>
    %cst_79 = arith.constant 0.000000e+00 : f32
    %142 = vector.broadcast %cst_79 : f32 to vector<256x64xf32>
    %143 = arith.maximumf %141, %142 : vector<256x64xf32>
    %c1_80 = arith.constant 1 : index
    %c0_81 = arith.constant 0 : index
    %c0_82 = arith.constant 0 : index
    %144 = vector.load %arg9[%c1_80, %c0_81, %c0_82] : memref<8x6x256xf32, #tpu.memory_space<vmem>>, vector<1x6x256xf32>
    %145 = vector.shape_cast %144 : vector<1x6x256xf32> to vector<6x256xf32>
    %cst_83 = arith.constant dense<0.000000e+00> : vector<6x64xf32>
    %146 = tpu.matmul %145, %143, %cst_83 {dimension_numbers = #tpu.dot_dimension_numbers<[1], [0], [0], [1], [0, 0, 1, 1], [], []>} : vector<6x256xf32>, vector<256x64xf32>, vector<6x64xf32> -> vector<6x64xf32>
    %c1_84 = arith.constant 1 : index
    %c0_85 = arith.constant 0 : index
    %c0_86 = arith.constant 0 : index
    %147 = vector.load %arg13[%c1_84, %c0_85, %c0_86] : memref<8x6x1xf32, #tpu.memory_space<vmem>>, vector<1x6x1xf32>
    %148 = vector.shape_cast %147 : vector<1x6x1xf32> to vector<6x1xf32>
    %149 = vector.broadcast %148 : vector<6x1xf32> to vector<6x64xf32>
    %150 = arith.addf %146, %149 : vector<6x64xf32>
    %c2 = arith.constant 2 : index
    %c0_87 = arith.constant 0 : index
    %c0_88 = arith.constant 0 : index
    %151 = vector.load %arg10[%c2, %c0_87, %c0_88] : memref<8x4x64xf32, #tpu.memory_space<vmem>>, vector<1x4x64xf32>
    %152 = vector.shape_cast %151 : vector<1x4x64xf32> to vector<4x64xf32>
    %153 = vector.broadcast %12 : vector<1x64xf32> to vector<6x64xf32>
    %154 = arith.addf %150, %153 : vector<6x64xf32>
    %c2_89 = arith.constant 2 : index
    %c0_90 = arith.constant 0 : index
    %c0_91 = arith.constant 0 : index
    %155 = vector.load %arg5[%c2_89, %c0_90, %c0_91] : memref<8x128x64xf32, #tpu.memory_space<vmem>>, vector<1x128x64xf32>
    %156 = vector.shape_cast %155 : vector<1x128x64xf32> to vector<128x64xf32>
    %cst_92 = arith.constant dense<0.000000e+00> : vector<1x64xf32>
    %157 = tpu.matmul %14, %156, %cst_92 {dimension_numbers = #tpu.dot_dimension_numbers<[1], [0], [0], [1], [0, 0, 1, 1], [], []>} : vector<1x128xf32>, vector<128x64xf32>, vector<1x64xf32> -> vector<1x64xf32>
    %158 = vector.extract_strided_slice %152 {offsets = [0, 0], sizes = [1, 64], strides = [1, 1]} : vector<4x64xf32> to vector<1x64xf32>
    %159 = arith.addf %157, %158 : vector<1x64xf32>
    %160 = vector.broadcast %159 : vector<1x64xf32> to vector<6x64xf32>
    %161 = arith.addf %154, %160 : vector<6x64xf32>
    %cst_93 = arith.constant dense<0.000000e+00> : vector<6xf32>
    %162 = vector.multi_reduction <add>, %161, %cst_93 [1] : vector<6x64xf32> to vector<6xf32>
    %163 = vector.shape_cast %162 : vector<6xf32> to vector<6x1xf32>
    %cst_94 = arith.constant 6.400000e+01 : f32
    %164 = vector.broadcast %cst_94 : f32 to vector<6x1xf32>
    %165 = arith.divf %163, %164 : vector<6x1xf32>
    %166 = vector.broadcast %165 : vector<6x1xf32> to vector<6x64xf32>
    %167 = arith.subf %161, %166 : vector<6x64xf32>
    %168 = arith.mulf %167, %167 : vector<6x64xf32>
    %cst_95 = arith.constant dense<0.000000e+00> : vector<6xf32>
    %169 = vector.multi_reduction <add>, %168, %cst_95 [1] : vector<6x64xf32> to vector<6xf32>
    %170 = vector.shape_cast %169 : vector<6xf32> to vector<6x1xf32>
    %cst_96 = arith.constant 6.400000e+01 : f32
    %171 = vector.broadcast %cst_96 : f32 to vector<6x1xf32>
    %172 = arith.divf %170, %171 : vector<6x1xf32>
    %173 = vector.broadcast %165 : vector<6x1xf32> to vector<6x64xf32>
    %174 = arith.subf %161, %173 : vector<6x64xf32>
    %cst_97 = arith.constant 9.99999974E-6 : f32
    %175 = vector.broadcast %cst_97 : f32 to vector<6x1xf32>
    %176 = arith.addf %172, %175 : vector<6x1xf32>
    %177 = math.rsqrt %176 : vector<6x1xf32>
    %178 = vector.broadcast %177 : vector<6x1xf32> to vector<6x64xf32>
    %179 = arith.mulf %174, %178 : vector<6x64xf32>
    %180 = vector.extract_strided_slice %152 {offsets = [1, 0], sizes = [1, 64], strides = [1, 1]} : vector<4x64xf32> to vector<1x64xf32>
    %181 = vector.broadcast %180 : vector<1x64xf32> to vector<6x64xf32>
    %182 = arith.mulf %179, %181 : vector<6x64xf32>
    %183 = vector.extract_strided_slice %152 {offsets = [2, 0], sizes = [1, 64], strides = [1, 1]} : vector<4x64xf32> to vector<1x64xf32>
    %184 = vector.broadcast %183 : vector<1x64xf32> to vector<6x64xf32>
    %185 = arith.addf %182, %184 : vector<6x64xf32>
    %c2_98 = arith.constant 2 : index
    %c0_99 = arith.constant 0 : index
    %c0_100 = arith.constant 0 : index
    %186 = vector.load %arg6[%c2_98, %c0_99, %c0_100] : memref<8x64x256xf32, #tpu.memory_space<vmem>>, vector<1x64x256xf32>
    %187 = vector.shape_cast %186 : vector<1x64x256xf32> to vector<64x256xf32>
    %cst_101 = arith.constant dense<0.000000e+00> : vector<6x256xf32>
    %188 = tpu.matmul %185, %187, %cst_101 {dimension_numbers = #tpu.dot_dimension_numbers<[1], [0], [0], [1], [0, 0, 1, 1], [], []>} : vector<6x64xf32>, vector<64x256xf32>, vector<6x256xf32> -> vector<6x256xf32>
    %c2_102 = arith.constant 2 : index
    %c0_103 = arith.constant 0 : index
    %c0_104 = arith.constant 0 : index
    %189 = vector.load %arg11[%c2_102, %c0_103, %c0_104] : memref<8x1x256xf32, #tpu.memory_space<vmem>>, vector<1x1x256xf32>
    %190 = vector.shape_cast %189 : vector<1x1x256xf32> to vector<1x256xf32>
    %191 = vector.broadcast %190 : vector<1x256xf32> to vector<6x256xf32>
    %192 = arith.addf %188, %191 : vector<6x256xf32>
    %cst_105 = arith.constant 0.000000e+00 : f32
    %193 = vector.broadcast %cst_105 : f32 to vector<6x256xf32>
    %194 = arith.maximumf %192, %193 : vector<6x256xf32>
    %c2_106 = arith.constant 2 : index
    %c0_107 = arith.constant 0 : index
    %c0_108 = arith.constant 0 : index
    %195 = vector.load %arg7[%c2_106, %c0_107, %c0_108] : memref<8x256x64xf32, #tpu.memory_space<vmem>>, vector<1x256x64xf32>
    %196 = vector.shape_cast %195 : vector<1x256x64xf32> to vector<256x64xf32>
    %cst_109 = arith.constant dense<0.000000e+00> : vector<6x64xf32>
    %197 = tpu.matmul %194, %196, %cst_109 {dimension_numbers = #tpu.dot_dimension_numbers<[1], [0], [0], [1], [0, 0, 1, 1], [], []>} : vector<6x256xf32>, vector<256x64xf32>, vector<6x64xf32> -> vector<6x64xf32>
    %198 = vector.extract_strided_slice %152 {offsets = [3, 0], sizes = [1, 64], strides = [1, 1]} : vector<4x64xf32> to vector<1x64xf32>
    %199 = vector.broadcast %198 : vector<1x64xf32> to vector<6x64xf32>
    %200 = arith.addf %197, %199 : vector<6x64xf32>
    %201 = arith.addf %185, %200 : vector<6x64xf32>
    %c2_110 = arith.constant 2 : index
    %c0_111 = arith.constant 0 : index
    %c0_112 = arith.constant 0 : index
    %202 = vector.load %arg8[%c2_110, %c0_111, %c0_112] : memref<8x256x6xf32, #tpu.memory_space<vmem>>, vector<1x256x6xf32>
    %203 = vector.shape_cast %202 : vector<1x256x6xf32> to vector<256x6xf32>
    %cst_113 = arith.constant dense<0.000000e+00> : vector<256x64xf32>
    %204 = tpu.matmul %203, %201, %cst_113 {dimension_numbers = #tpu.dot_dimension_numbers<[1], [0], [0], [1], [0, 0, 1, 1], [], []>} : vector<256x6xf32>, vector<6x64xf32>, vector<256x64xf32> -> vector<256x64xf32>
    %c2_114 = arith.constant 2 : index
    %c0_115 = arith.constant 0 : index
    %c0_116 = arith.constant 0 : index
    %205 = vector.load %arg12[%c2_114, %c0_115, %c0_116] : memref<8x256x1xf32, #tpu.memory_space<vmem>>, vector<1x256x1xf32>
    %206 = vector.shape_cast %205 : vector<1x256x1xf32> to vector<256x1xf32>
    %207 = vector.broadcast %206 : vector<256x1xf32> to vector<256x64xf32>
    %208 = arith.addf %204, %207 : vector<256x64xf32>
    %cst_117 = arith.constant 0.000000e+00 : f32
    %209 = vector.broadcast %cst_117 : f32 to vector<256x64xf32>
    %210 = arith.maximumf %208, %209 : vector<256x64xf32>
    %c2_118 = arith.constant 2 : index
    %c0_119 = arith.constant 0 : index
    %c0_120 = arith.constant 0 : index
    %211 = vector.load %arg9[%c2_118, %c0_119, %c0_120] : memref<8x6x256xf32, #tpu.memory_space<vmem>>, vector<1x6x256xf32>
    %212 = vector.shape_cast %211 : vector<1x6x256xf32> to vector<6x256xf32>
    %cst_121 = arith.constant dense<0.000000e+00> : vector<6x64xf32>
    %213 = tpu.matmul %212, %210, %cst_121 {dimension_numbers = #tpu.dot_dimension_numbers<[1], [0], [0], [1], [0, 0, 1, 1], [], []>} : vector<6x256xf32>, vector<256x64xf32>, vector<6x64xf32> -> vector<6x64xf32>
    %c2_122 = arith.constant 2 : index
    %c0_123 = arith.constant 0 : index
    %c0_124 = arith.constant 0 : index
    %214 = vector.load %arg13[%c2_122, %c0_123, %c0_124] : memref<8x6x1xf32, #tpu.memory_space<vmem>>, vector<1x6x1xf32>
    %215 = vector.shape_cast %214 : vector<1x6x1xf32> to vector<6x1xf32>
    %216 = vector.broadcast %215 : vector<6x1xf32> to vector<6x64xf32>
    %217 = arith.addf %213, %216 : vector<6x64xf32>
    %c3 = arith.constant 3 : index
    %c0_125 = arith.constant 0 : index
    %c0_126 = arith.constant 0 : index
    %218 = vector.load %arg10[%c3, %c0_125, %c0_126] : memref<8x4x64xf32, #tpu.memory_space<vmem>>, vector<1x4x64xf32>
    %219 = vector.shape_cast %218 : vector<1x4x64xf32> to vector<4x64xf32>
    %220 = vector.broadcast %12 : vector<1x64xf32> to vector<6x64xf32>
    %221 = arith.addf %217, %220 : vector<6x64xf32>
    %c3_127 = arith.constant 3 : index
    %c0_128 = arith.constant 0 : index
    %c0_129 = arith.constant 0 : index
    %222 = vector.load %arg5[%c3_127, %c0_128, %c0_129] : memref<8x128x64xf32, #tpu.memory_space<vmem>>, vector<1x128x64xf32>
    %223 = vector.shape_cast %222 : vector<1x128x64xf32> to vector<128x64xf32>
    %cst_130 = arith.constant dense<0.000000e+00> : vector<1x64xf32>
    %224 = tpu.matmul %14, %223, %cst_130 {dimension_numbers = #tpu.dot_dimension_numbers<[1], [0], [0], [1], [0, 0, 1, 1], [], []>} : vector<1x128xf32>, vector<128x64xf32>, vector<1x64xf32> -> vector<1x64xf32>
    %225 = vector.extract_strided_slice %219 {offsets = [0, 0], sizes = [1, 64], strides = [1, 1]} : vector<4x64xf32> to vector<1x64xf32>
    %226 = arith.addf %224, %225 : vector<1x64xf32>
    %227 = vector.broadcast %226 : vector<1x64xf32> to vector<6x64xf32>
    %228 = arith.addf %221, %227 : vector<6x64xf32>
    %cst_131 = arith.constant dense<0.000000e+00> : vector<6xf32>
    %229 = vector.multi_reduction <add>, %228, %cst_131 [1] : vector<6x64xf32> to vector<6xf32>
    %230 = vector.shape_cast %229 : vector<6xf32> to vector<6x1xf32>
    %cst_132 = arith.constant 6.400000e+01 : f32
    %231 = vector.broadcast %cst_132 : f32 to vector<6x1xf32>
    %232 = arith.divf %230, %231 : vector<6x1xf32>
    %233 = vector.broadcast %232 : vector<6x1xf32> to vector<6x64xf32>
    %234 = arith.subf %228, %233 : vector<6x64xf32>
    %235 = arith.mulf %234, %234 : vector<6x64xf32>
    %cst_133 = arith.constant dense<0.000000e+00> : vector<6xf32>
    %236 = vector.multi_reduction <add>, %235, %cst_133 [1] : vector<6x64xf32> to vector<6xf32>
    %237 = vector.shape_cast %236 : vector<6xf32> to vector<6x1xf32>
    %cst_134 = arith.constant 6.400000e+01 : f32
    %238 = vector.broadcast %cst_134 : f32 to vector<6x1xf32>
    %239 = arith.divf %237, %238 : vector<6x1xf32>
    %240 = vector.broadcast %232 : vector<6x1xf32> to vector<6x64xf32>
    %241 = arith.subf %228, %240 : vector<6x64xf32>
    %cst_135 = arith.constant 9.99999974E-6 : f32
    %242 = vector.broadcast %cst_135 : f32 to vector<6x1xf32>
    %243 = arith.addf %239, %242 : vector<6x1xf32>
    %244 = math.rsqrt %243 : vector<6x1xf32>
    %245 = vector.broadcast %244 : vector<6x1xf32> to vector<6x64xf32>
    %246 = arith.mulf %241, %245 : vector<6x64xf32>
    %247 = vector.extract_strided_slice %219 {offsets = [1, 0], sizes = [1, 64], strides = [1, 1]} : vector<4x64xf32> to vector<1x64xf32>
    %248 = vector.broadcast %247 : vector<1x64xf32> to vector<6x64xf32>
    %249 = arith.mulf %246, %248 : vector<6x64xf32>
    %250 = vector.extract_strided_slice %219 {offsets = [2, 0], sizes = [1, 64], strides = [1, 1]} : vector<4x64xf32> to vector<1x64xf32>
    %251 = vector.broadcast %250 : vector<1x64xf32> to vector<6x64xf32>
    %252 = arith.addf %249, %251 : vector<6x64xf32>
    %c3_136 = arith.constant 3 : index
    %c0_137 = arith.constant 0 : index
    %c0_138 = arith.constant 0 : index
    %253 = vector.load %arg6[%c3_136, %c0_137, %c0_138] : memref<8x64x256xf32, #tpu.memory_space<vmem>>, vector<1x64x256xf32>
    %254 = vector.shape_cast %253 : vector<1x64x256xf32> to vector<64x256xf32>
    %cst_139 = arith.constant dense<0.000000e+00> : vector<6x256xf32>
    %255 = tpu.matmul %252, %254, %cst_139 {dimension_numbers = #tpu.dot_dimension_numbers<[1], [0], [0], [1], [0, 0, 1, 1], [], []>} : vector<6x64xf32>, vector<64x256xf32>, vector<6x256xf32> -> vector<6x256xf32>
    %c3_140 = arith.constant 3 : index
    %c0_141 = arith.constant 0 : index
    %c0_142 = arith.constant 0 : index
    %256 = vector.load %arg11[%c3_140, %c0_141, %c0_142] : memref<8x1x256xf32, #tpu.memory_space<vmem>>, vector<1x1x256xf32>
    %257 = vector.shape_cast %256 : vector<1x1x256xf32> to vector<1x256xf32>
    %258 = vector.broadcast %257 : vector<1x256xf32> to vector<6x256xf32>
    %259 = arith.addf %255, %258 : vector<6x256xf32>
    %cst_143 = arith.constant 0.000000e+00 : f32
    %260 = vector.broadcast %cst_143 : f32 to vector<6x256xf32>
    %261 = arith.maximumf %259, %260 : vector<6x256xf32>
    %c3_144 = arith.constant 3 : index
    %c0_145 = arith.constant 0 : index
    %c0_146 = arith.constant 0 : index
    %262 = vector.load %arg7[%c3_144, %c0_145, %c0_146] : memref<8x256x64xf32, #tpu.memory_space<vmem>>, vector<1x256x64xf32>
    %263 = vector.shape_cast %262 : vector<1x256x64xf32> to vector<256x64xf32>
    %cst_147 = arith.constant dense<0.000000e+00> : vector<6x64xf32>
    %264 = tpu.matmul %261, %263, %cst_147 {dimension_numbers = #tpu.dot_dimension_numbers<[1], [0], [0], [1], [0, 0, 1, 1], [], []>} : vector<6x256xf32>, vector<256x64xf32>, vector<6x64xf32> -> vector<6x64xf32>
    %265 = vector.extract_strided_slice %219 {offsets = [3, 0], sizes = [1, 64], strides = [1, 1]} : vector<4x64xf32> to vector<1x64xf32>
    %266 = vector.broadcast %265 : vector<1x64xf32> to vector<6x64xf32>
    %267 = arith.addf %264, %266 : vector<6x64xf32>
    %268 = arith.addf %252, %267 : vector<6x64xf32>
    %c3_148 = arith.constant 3 : index
    %c0_149 = arith.constant 0 : index
    %c0_150 = arith.constant 0 : index
    %269 = vector.load %arg8[%c3_148, %c0_149, %c0_150] : memref<8x256x6xf32, #tpu.memory_space<vmem>>, vector<1x256x6xf32>
    %270 = vector.shape_cast %269 : vector<1x256x6xf32> to vector<256x6xf32>
    %cst_151 = arith.constant dense<0.000000e+00> : vector<256x64xf32>
    %271 = tpu.matmul %270, %268, %cst_151 {dimension_numbers = #tpu.dot_dimension_numbers<[1], [0], [0], [1], [0, 0, 1, 1], [], []>} : vector<256x6xf32>, vector<6x64xf32>, vector<256x64xf32> -> vector<256x64xf32>
    %c3_152 = arith.constant 3 : index
    %c0_153 = arith.constant 0 : index
    %c0_154 = arith.constant 0 : index
    %272 = vector.load %arg12[%c3_152, %c0_153, %c0_154] : memref<8x256x1xf32, #tpu.memory_space<vmem>>, vector<1x256x1xf32>
    %273 = vector.shape_cast %272 : vector<1x256x1xf32> to vector<256x1xf32>
    %274 = vector.broadcast %273 : vector<256x1xf32> to vector<256x64xf32>
    %275 = arith.addf %271, %274 : vector<256x64xf32>
    %cst_155 = arith.constant 0.000000e+00 : f32
    %276 = vector.broadcast %cst_155 : f32 to vector<256x64xf32>
    %277 = arith.maximumf %275, %276 : vector<256x64xf32>
    %c3_156 = arith.constant 3 : index
    %c0_157 = arith.constant 0 : index
    %c0_158 = arith.constant 0 : index
    %278 = vector.load %arg9[%c3_156, %c0_157, %c0_158] : memref<8x6x256xf32, #tpu.memory_space<vmem>>, vector<1x6x256xf32>
    %279 = vector.shape_cast %278 : vector<1x6x256xf32> to vector<6x256xf32>
    %cst_159 = arith.constant dense<0.000000e+00> : vector<6x64xf32>
    %280 = tpu.matmul %279, %277, %cst_159 {dimension_numbers = #tpu.dot_dimension_numbers<[1], [0], [0], [1], [0, 0, 1, 1], [], []>} : vector<6x256xf32>, vector<256x64xf32>, vector<6x64xf32> -> vector<6x64xf32>
    %c3_160 = arith.constant 3 : index
    %c0_161 = arith.constant 0 : index
    %c0_162 = arith.constant 0 : index
    %281 = vector.load %arg13[%c3_160, %c0_161, %c0_162] : memref<8x6x1xf32, #tpu.memory_space<vmem>>, vector<1x6x1xf32>
    %282 = vector.shape_cast %281 : vector<1x6x1xf32> to vector<6x1xf32>
    %283 = vector.broadcast %282 : vector<6x1xf32> to vector<6x64xf32>
    %284 = arith.addf %280, %283 : vector<6x64xf32>
    %c4 = arith.constant 4 : index
    %c0_163 = arith.constant 0 : index
    %c0_164 = arith.constant 0 : index
    %285 = vector.load %arg10[%c4, %c0_163, %c0_164] : memref<8x4x64xf32, #tpu.memory_space<vmem>>, vector<1x4x64xf32>
    %286 = vector.shape_cast %285 : vector<1x4x64xf32> to vector<4x64xf32>
    %287 = vector.broadcast %12 : vector<1x64xf32> to vector<6x64xf32>
    %288 = arith.addf %284, %287 : vector<6x64xf32>
    %c4_165 = arith.constant 4 : index
    %c0_166 = arith.constant 0 : index
    %c0_167 = arith.constant 0 : index
    %289 = vector.load %arg5[%c4_165, %c0_166, %c0_167] : memref<8x128x64xf32, #tpu.memory_space<vmem>>, vector<1x128x64xf32>
    %290 = vector.shape_cast %289 : vector<1x128x64xf32> to vector<128x64xf32>
    %cst_168 = arith.constant dense<0.000000e+00> : vector<1x64xf32>
    %291 = tpu.matmul %14, %290, %cst_168 {dimension_numbers = #tpu.dot_dimension_numbers<[1], [0], [0], [1], [0, 0, 1, 1], [], []>} : vector<1x128xf32>, vector<128x64xf32>, vector<1x64xf32> -> vector<1x64xf32>
    %292 = vector.extract_strided_slice %286 {offsets = [0, 0], sizes = [1, 64], strides = [1, 1]} : vector<4x64xf32> to vector<1x64xf32>
    %293 = arith.addf %291, %292 : vector<1x64xf32>
    %294 = vector.broadcast %293 : vector<1x64xf32> to vector<6x64xf32>
    %295 = arith.addf %288, %294 : vector<6x64xf32>
    %cst_169 = arith.constant dense<0.000000e+00> : vector<6xf32>
    %296 = vector.multi_reduction <add>, %295, %cst_169 [1] : vector<6x64xf32> to vector<6xf32>
    %297 = vector.shape_cast %296 : vector<6xf32> to vector<6x1xf32>
    %cst_170 = arith.constant 6.400000e+01 : f32
    %298 = vector.broadcast %cst_170 : f32 to vector<6x1xf32>
    %299 = arith.divf %297, %298 : vector<6x1xf32>
    %300 = vector.broadcast %299 : vector<6x1xf32> to vector<6x64xf32>
    %301 = arith.subf %295, %300 : vector<6x64xf32>
    %302 = arith.mulf %301, %301 : vector<6x64xf32>
    %cst_171 = arith.constant dense<0.000000e+00> : vector<6xf32>
    %303 = vector.multi_reduction <add>, %302, %cst_171 [1] : vector<6x64xf32> to vector<6xf32>
    %304 = vector.shape_cast %303 : vector<6xf32> to vector<6x1xf32>
    %cst_172 = arith.constant 6.400000e+01 : f32
    %305 = vector.broadcast %cst_172 : f32 to vector<6x1xf32>
    %306 = arith.divf %304, %305 : vector<6x1xf32>
    %307 = vector.broadcast %299 : vector<6x1xf32> to vector<6x64xf32>
    %308 = arith.subf %295, %307 : vector<6x64xf32>
    %cst_173 = arith.constant 9.99999974E-6 : f32
    %309 = vector.broadcast %cst_173 : f32 to vector<6x1xf32>
    %310 = arith.addf %306, %309 : vector<6x1xf32>
    %311 = math.rsqrt %310 : vector<6x1xf32>
    %312 = vector.broadcast %311 : vector<6x1xf32> to vector<6x64xf32>
    %313 = arith.mulf %308, %312 : vector<6x64xf32>
    %314 = vector.extract_strided_slice %286 {offsets = [1, 0], sizes = [1, 64], strides = [1, 1]} : vector<4x64xf32> to vector<1x64xf32>
    %315 = vector.broadcast %314 : vector<1x64xf32> to vector<6x64xf32>
    %316 = arith.mulf %313, %315 : vector<6x64xf32>
    %317 = vector.extract_strided_slice %286 {offsets = [2, 0], sizes = [1, 64], strides = [1, 1]} : vector<4x64xf32> to vector<1x64xf32>
    %318 = vector.broadcast %317 : vector<1x64xf32> to vector<6x64xf32>
    %319 = arith.addf %316, %318 : vector<6x64xf32>
    %c4_174 = arith.constant 4 : index
    %c0_175 = arith.constant 0 : index
    %c0_176 = arith.constant 0 : index
    %320 = vector.load %arg6[%c4_174, %c0_175, %c0_176] : memref<8x64x256xf32, #tpu.memory_space<vmem>>, vector<1x64x256xf32>
    %321 = vector.shape_cast %320 : vector<1x64x256xf32> to vector<64x256xf32>
    %cst_177 = arith.constant dense<0.000000e+00> : vector<6x256xf32>
    %322 = tpu.matmul %319, %321, %cst_177 {dimension_numbers = #tpu.dot_dimension_numbers<[1], [0], [0], [1], [0, 0, 1, 1], [], []>} : vector<6x64xf32>, vector<64x256xf32>, vector<6x256xf32> -> vector<6x256xf32>
    %c4_178 = arith.constant 4 : index
    %c0_179 = arith.constant 0 : index
    %c0_180 = arith.constant 0 : index
    %323 = vector.load %arg11[%c4_178, %c0_179, %c0_180] : memref<8x1x256xf32, #tpu.memory_space<vmem>>, vector<1x1x256xf32>
    %324 = vector.shape_cast %323 : vector<1x1x256xf32> to vector<1x256xf32>
    %325 = vector.broadcast %324 : vector<1x256xf32> to vector<6x256xf32>
    %326 = arith.addf %322, %325 : vector<6x256xf32>
    %cst_181 = arith.constant 0.000000e+00 : f32
    %327 = vector.broadcast %cst_181 : f32 to vector<6x256xf32>
    %328 = arith.maximumf %326, %327 : vector<6x256xf32>
    %c4_182 = arith.constant 4 : index
    %c0_183 = arith.constant 0 : index
    %c0_184 = arith.constant 0 : index
    %329 = vector.load %arg7[%c4_182, %c0_183, %c0_184] : memref<8x256x64xf32, #tpu.memory_space<vmem>>, vector<1x256x64xf32>
    %330 = vector.shape_cast %329 : vector<1x256x64xf32> to vector<256x64xf32>
    %cst_185 = arith.constant dense<0.000000e+00> : vector<6x64xf32>
    %331 = tpu.matmul %328, %330, %cst_185 {dimension_numbers = #tpu.dot_dimension_numbers<[1], [0], [0], [1], [0, 0, 1, 1], [], []>} : vector<6x256xf32>, vector<256x64xf32>, vector<6x64xf32> -> vector<6x64xf32>
    %332 = vector.extract_strided_slice %286 {offsets = [3, 0], sizes = [1, 64], strides = [1, 1]} : vector<4x64xf32> to vector<1x64xf32>
    %333 = vector.broadcast %332 : vector<1x64xf32> to vector<6x64xf32>
    %334 = arith.addf %331, %333 : vector<6x64xf32>
    %335 = arith.addf %319, %334 : vector<6x64xf32>
    %c4_186 = arith.constant 4 : index
    %c0_187 = arith.constant 0 : index
    %c0_188 = arith.constant 0 : index
    %336 = vector.load %arg8[%c4_186, %c0_187, %c0_188] : memref<8x256x6xf32, #tpu.memory_space<vmem>>, vector<1x256x6xf32>
    %337 = vector.shape_cast %336 : vector<1x256x6xf32> to vector<256x6xf32>
    %cst_189 = arith.constant dense<0.000000e+00> : vector<256x64xf32>
    %338 = tpu.matmul %337, %335, %cst_189 {dimension_numbers = #tpu.dot_dimension_numbers<[1], [0], [0], [1], [0, 0, 1, 1], [], []>} : vector<256x6xf32>, vector<6x64xf32>, vector<256x64xf32> -> vector<256x64xf32>
    %c4_190 = arith.constant 4 : index
    %c0_191 = arith.constant 0 : index
    %c0_192 = arith.constant 0 : index
    %339 = vector.load %arg12[%c4_190, %c0_191, %c0_192] : memref<8x256x1xf32, #tpu.memory_space<vmem>>, vector<1x256x1xf32>
    %340 = vector.shape_cast %339 : vector<1x256x1xf32> to vector<256x1xf32>
    %341 = vector.broadcast %340 : vector<256x1xf32> to vector<256x64xf32>
    %342 = arith.addf %338, %341 : vector<256x64xf32>
    %cst_193 = arith.constant 0.000000e+00 : f32
    %343 = vector.broadcast %cst_193 : f32 to vector<256x64xf32>
    %344 = arith.maximumf %342, %343 : vector<256x64xf32>
    %c4_194 = arith.constant 4 : index
    %c0_195 = arith.constant 0 : index
    %c0_196 = arith.constant 0 : index
    %345 = vector.load %arg9[%c4_194, %c0_195, %c0_196] : memref<8x6x256xf32, #tpu.memory_space<vmem>>, vector<1x6x256xf32>
    %346 = vector.shape_cast %345 : vector<1x6x256xf32> to vector<6x256xf32>
    %cst_197 = arith.constant dense<0.000000e+00> : vector<6x64xf32>
    %347 = tpu.matmul %346, %344, %cst_197 {dimension_numbers = #tpu.dot_dimension_numbers<[1], [0], [0], [1], [0, 0, 1, 1], [], []>} : vector<6x256xf32>, vector<256x64xf32>, vector<6x64xf32> -> vector<6x64xf32>
    %c4_198 = arith.constant 4 : index
    %c0_199 = arith.constant 0 : index
    %c0_200 = arith.constant 0 : index
    %348 = vector.load %arg13[%c4_198, %c0_199, %c0_200] : memref<8x6x1xf32, #tpu.memory_space<vmem>>, vector<1x6x1xf32>
    %349 = vector.shape_cast %348 : vector<1x6x1xf32> to vector<6x1xf32>
    %350 = vector.broadcast %349 : vector<6x1xf32> to vector<6x64xf32>
    %351 = arith.addf %347, %350 : vector<6x64xf32>
    %c5 = arith.constant 5 : index
    %c0_201 = arith.constant 0 : index
    %c0_202 = arith.constant 0 : index
    %352 = vector.load %arg10[%c5, %c0_201, %c0_202] : memref<8x4x64xf32, #tpu.memory_space<vmem>>, vector<1x4x64xf32>
    %353 = vector.shape_cast %352 : vector<1x4x64xf32> to vector<4x64xf32>
    %354 = vector.broadcast %12 : vector<1x64xf32> to vector<6x64xf32>
    %355 = arith.addf %351, %354 : vector<6x64xf32>
    %c5_203 = arith.constant 5 : index
    %c0_204 = arith.constant 0 : index
    %c0_205 = arith.constant 0 : index
    %356 = vector.load %arg5[%c5_203, %c0_204, %c0_205] : memref<8x128x64xf32, #tpu.memory_space<vmem>>, vector<1x128x64xf32>
    %357 = vector.shape_cast %356 : vector<1x128x64xf32> to vector<128x64xf32>
    %cst_206 = arith.constant dense<0.000000e+00> : vector<1x64xf32>
    %358 = tpu.matmul %14, %357, %cst_206 {dimension_numbers = #tpu.dot_dimension_numbers<[1], [0], [0], [1], [0, 0, 1, 1], [], []>} : vector<1x128xf32>, vector<128x64xf32>, vector<1x64xf32> -> vector<1x64xf32>
    %359 = vector.extract_strided_slice %353 {offsets = [0, 0], sizes = [1, 64], strides = [1, 1]} : vector<4x64xf32> to vector<1x64xf32>
    %360 = arith.addf %358, %359 : vector<1x64xf32>
    %361 = vector.broadcast %360 : vector<1x64xf32> to vector<6x64xf32>
    %362 = arith.addf %355, %361 : vector<6x64xf32>
    %cst_207 = arith.constant dense<0.000000e+00> : vector<6xf32>
    %363 = vector.multi_reduction <add>, %362, %cst_207 [1] : vector<6x64xf32> to vector<6xf32>
    %364 = vector.shape_cast %363 : vector<6xf32> to vector<6x1xf32>
    %cst_208 = arith.constant 6.400000e+01 : f32
    %365 = vector.broadcast %cst_208 : f32 to vector<6x1xf32>
    %366 = arith.divf %364, %365 : vector<6x1xf32>
    %367 = vector.broadcast %366 : vector<6x1xf32> to vector<6x64xf32>
    %368 = arith.subf %362, %367 : vector<6x64xf32>
    %369 = arith.mulf %368, %368 : vector<6x64xf32>
    %cst_209 = arith.constant dense<0.000000e+00> : vector<6xf32>
    %370 = vector.multi_reduction <add>, %369, %cst_209 [1] : vector<6x64xf32> to vector<6xf32>
    %371 = vector.shape_cast %370 : vector<6xf32> to vector<6x1xf32>
    %cst_210 = arith.constant 6.400000e+01 : f32
    %372 = vector.broadcast %cst_210 : f32 to vector<6x1xf32>
    %373 = arith.divf %371, %372 : vector<6x1xf32>
    %374 = vector.broadcast %366 : vector<6x1xf32> to vector<6x64xf32>
    %375 = arith.subf %362, %374 : vector<6x64xf32>
    %cst_211 = arith.constant 9.99999974E-6 : f32
    %376 = vector.broadcast %cst_211 : f32 to vector<6x1xf32>
    %377 = arith.addf %373, %376 : vector<6x1xf32>
    %378 = math.rsqrt %377 : vector<6x1xf32>
    %379 = vector.broadcast %378 : vector<6x1xf32> to vector<6x64xf32>
    %380 = arith.mulf %375, %379 : vector<6x64xf32>
    %381 = vector.extract_strided_slice %353 {offsets = [1, 0], sizes = [1, 64], strides = [1, 1]} : vector<4x64xf32> to vector<1x64xf32>
    %382 = vector.broadcast %381 : vector<1x64xf32> to vector<6x64xf32>
    %383 = arith.mulf %380, %382 : vector<6x64xf32>
    %384 = vector.extract_strided_slice %353 {offsets = [2, 0], sizes = [1, 64], strides = [1, 1]} : vector<4x64xf32> to vector<1x64xf32>
    %385 = vector.broadcast %384 : vector<1x64xf32> to vector<6x64xf32>
    %386 = arith.addf %383, %385 : vector<6x64xf32>
    %c5_212 = arith.constant 5 : index
    %c0_213 = arith.constant 0 : index
    %c0_214 = arith.constant 0 : index
    %387 = vector.load %arg6[%c5_212, %c0_213, %c0_214] : memref<8x64x256xf32, #tpu.memory_space<vmem>>, vector<1x64x256xf32>
    %388 = vector.shape_cast %387 : vector<1x64x256xf32> to vector<64x256xf32>
    %cst_215 = arith.constant dense<0.000000e+00> : vector<6x256xf32>
    %389 = tpu.matmul %386, %388, %cst_215 {dimension_numbers = #tpu.dot_dimension_numbers<[1], [0], [0], [1], [0, 0, 1, 1], [], []>} : vector<6x64xf32>, vector<64x256xf32>, vector<6x256xf32> -> vector<6x256xf32>
    %c5_216 = arith.constant 5 : index
    %c0_217 = arith.constant 0 : index
    %c0_218 = arith.constant 0 : index
    %390 = vector.load %arg11[%c5_216, %c0_217, %c0_218] : memref<8x1x256xf32, #tpu.memory_space<vmem>>, vector<1x1x256xf32>
    %391 = vector.shape_cast %390 : vector<1x1x256xf32> to vector<1x256xf32>
    %392 = vector.broadcast %391 : vector<1x256xf32> to vector<6x256xf32>
    %393 = arith.addf %389, %392 : vector<6x256xf32>
    %cst_219 = arith.constant 0.000000e+00 : f32
    %394 = vector.broadcast %cst_219 : f32 to vector<6x256xf32>
    %395 = arith.maximumf %393, %394 : vector<6x256xf32>
    %c5_220 = arith.constant 5 : index
    %c0_221 = arith.constant 0 : index
    %c0_222 = arith.constant 0 : index
    %396 = vector.load %arg7[%c5_220, %c0_221, %c0_222] : memref<8x256x64xf32, #tpu.memory_space<vmem>>, vector<1x256x64xf32>
    %397 = vector.shape_cast %396 : vector<1x256x64xf32> to vector<256x64xf32>
    %cst_223 = arith.constant dense<0.000000e+00> : vector<6x64xf32>
    %398 = tpu.matmul %395, %397, %cst_223 {dimension_numbers = #tpu.dot_dimension_numbers<[1], [0], [0], [1], [0, 0, 1, 1], [], []>} : vector<6x256xf32>, vector<256x64xf32>, vector<6x64xf32> -> vector<6x64xf32>
    %399 = vector.extract_strided_slice %353 {offsets = [3, 0], sizes = [1, 64], strides = [1, 1]} : vector<4x64xf32> to vector<1x64xf32>
    %400 = vector.broadcast %399 : vector<1x64xf32> to vector<6x64xf32>
    %401 = arith.addf %398, %400 : vector<6x64xf32>
    %402 = arith.addf %386, %401 : vector<6x64xf32>
    %c5_224 = arith.constant 5 : index
    %c0_225 = arith.constant 0 : index
    %c0_226 = arith.constant 0 : index
    %403 = vector.load %arg8[%c5_224, %c0_225, %c0_226] : memref<8x256x6xf32, #tpu.memory_space<vmem>>, vector<1x256x6xf32>
    %404 = vector.shape_cast %403 : vector<1x256x6xf32> to vector<256x6xf32>
    %cst_227 = arith.constant dense<0.000000e+00> : vector<256x64xf32>
    %405 = tpu.matmul %404, %402, %cst_227 {dimension_numbers = #tpu.dot_dimension_numbers<[1], [0], [0], [1], [0, 0, 1, 1], [], []>} : vector<256x6xf32>, vector<6x64xf32>, vector<256x64xf32> -> vector<256x64xf32>
    %c5_228 = arith.constant 5 : index
    %c0_229 = arith.constant 0 : index
    %c0_230 = arith.constant 0 : index
    %406 = vector.load %arg12[%c5_228, %c0_229, %c0_230] : memref<8x256x1xf32, #tpu.memory_space<vmem>>, vector<1x256x1xf32>
    %407 = vector.shape_cast %406 : vector<1x256x1xf32> to vector<256x1xf32>
    %408 = vector.broadcast %407 : vector<256x1xf32> to vector<256x64xf32>
    %409 = arith.addf %405, %408 : vector<256x64xf32>
    %cst_231 = arith.constant 0.000000e+00 : f32
    %410 = vector.broadcast %cst_231 : f32 to vector<256x64xf32>
    %411 = arith.maximumf %409, %410 : vector<256x64xf32>
    %c5_232 = arith.constant 5 : index
    %c0_233 = arith.constant 0 : index
    %c0_234 = arith.constant 0 : index
    %412 = vector.load %arg9[%c5_232, %c0_233, %c0_234] : memref<8x6x256xf32, #tpu.memory_space<vmem>>, vector<1x6x256xf32>
    %413 = vector.shape_cast %412 : vector<1x6x256xf32> to vector<6x256xf32>
    %cst_235 = arith.constant dense<0.000000e+00> : vector<6x64xf32>
    %414 = tpu.matmul %413, %411, %cst_235 {dimension_numbers = #tpu.dot_dimension_numbers<[1], [0], [0], [1], [0, 0, 1, 1], [], []>} : vector<6x256xf32>, vector<256x64xf32>, vector<6x64xf32> -> vector<6x64xf32>
    %c5_236 = arith.constant 5 : index
    %c0_237 = arith.constant 0 : index
    %c0_238 = arith.constant 0 : index
    %415 = vector.load %arg13[%c5_236, %c0_237, %c0_238] : memref<8x6x1xf32, #tpu.memory_space<vmem>>, vector<1x6x1xf32>
    %416 = vector.shape_cast %415 : vector<1x6x1xf32> to vector<6x1xf32>
    %417 = vector.broadcast %416 : vector<6x1xf32> to vector<6x64xf32>
    %418 = arith.addf %414, %417 : vector<6x64xf32>
    %c6 = arith.constant 6 : index
    %c0_239 = arith.constant 0 : index
    %c0_240 = arith.constant 0 : index
    %419 = vector.load %arg10[%c6, %c0_239, %c0_240] : memref<8x4x64xf32, #tpu.memory_space<vmem>>, vector<1x4x64xf32>
    %420 = vector.shape_cast %419 : vector<1x4x64xf32> to vector<4x64xf32>
    %421 = vector.broadcast %12 : vector<1x64xf32> to vector<6x64xf32>
    %422 = arith.addf %418, %421 : vector<6x64xf32>
    %c6_241 = arith.constant 6 : index
    %c0_242 = arith.constant 0 : index
    %c0_243 = arith.constant 0 : index
    %423 = vector.load %arg5[%c6_241, %c0_242, %c0_243] : memref<8x128x64xf32, #tpu.memory_space<vmem>>, vector<1x128x64xf32>
    %424 = vector.shape_cast %423 : vector<1x128x64xf32> to vector<128x64xf32>
    %cst_244 = arith.constant dense<0.000000e+00> : vector<1x64xf32>
    %425 = tpu.matmul %14, %424, %cst_244 {dimension_numbers = #tpu.dot_dimension_numbers<[1], [0], [0], [1], [0, 0, 1, 1], [], []>} : vector<1x128xf32>, vector<128x64xf32>, vector<1x64xf32> -> vector<1x64xf32>
    %426 = vector.extract_strided_slice %420 {offsets = [0, 0], sizes = [1, 64], strides = [1, 1]} : vector<4x64xf32> to vector<1x64xf32>
    %427 = arith.addf %425, %426 : vector<1x64xf32>
    %428 = vector.broadcast %427 : vector<1x64xf32> to vector<6x64xf32>
    %429 = arith.addf %422, %428 : vector<6x64xf32>
    %cst_245 = arith.constant dense<0.000000e+00> : vector<6xf32>
    %430 = vector.multi_reduction <add>, %429, %cst_245 [1] : vector<6x64xf32> to vector<6xf32>
    %431 = vector.shape_cast %430 : vector<6xf32> to vector<6x1xf32>
    %cst_246 = arith.constant 6.400000e+01 : f32
    %432 = vector.broadcast %cst_246 : f32 to vector<6x1xf32>
    %433 = arith.divf %431, %432 : vector<6x1xf32>
    %434 = vector.broadcast %433 : vector<6x1xf32> to vector<6x64xf32>
    %435 = arith.subf %429, %434 : vector<6x64xf32>
    %436 = arith.mulf %435, %435 : vector<6x64xf32>
    %cst_247 = arith.constant dense<0.000000e+00> : vector<6xf32>
    %437 = vector.multi_reduction <add>, %436, %cst_247 [1] : vector<6x64xf32> to vector<6xf32>
    %438 = vector.shape_cast %437 : vector<6xf32> to vector<6x1xf32>
    %cst_248 = arith.constant 6.400000e+01 : f32
    %439 = vector.broadcast %cst_248 : f32 to vector<6x1xf32>
    %440 = arith.divf %438, %439 : vector<6x1xf32>
    %441 = vector.broadcast %433 : vector<6x1xf32> to vector<6x64xf32>
    %442 = arith.subf %429, %441 : vector<6x64xf32>
    %cst_249 = arith.constant 9.99999974E-6 : f32
    %443 = vector.broadcast %cst_249 : f32 to vector<6x1xf32>
    %444 = arith.addf %440, %443 : vector<6x1xf32>
    %445 = math.rsqrt %444 : vector<6x1xf32>
    %446 = vector.broadcast %445 : vector<6x1xf32> to vector<6x64xf32>
    %447 = arith.mulf %442, %446 : vector<6x64xf32>
    %448 = vector.extract_strided_slice %420 {offsets = [1, 0], sizes = [1, 64], strides = [1, 1]} : vector<4x64xf32> to vector<1x64xf32>
    %449 = vector.broadcast %448 : vector<1x64xf32> to vector<6x64xf32>
    %450 = arith.mulf %447, %449 : vector<6x64xf32>
    %451 = vector.extract_strided_slice %420 {offsets = [2, 0], sizes = [1, 64], strides = [1, 1]} : vector<4x64xf32> to vector<1x64xf32>
    %452 = vector.broadcast %451 : vector<1x64xf32> to vector<6x64xf32>
    %453 = arith.addf %450, %452 : vector<6x64xf32>
    %c6_250 = arith.constant 6 : index
    %c0_251 = arith.constant 0 : index
    %c0_252 = arith.constant 0 : index
    %454 = vector.load %arg6[%c6_250, %c0_251, %c0_252] : memref<8x64x256xf32, #tpu.memory_space<vmem>>, vector<1x64x256xf32>
    %455 = vector.shape_cast %454 : vector<1x64x256xf32> to vector<64x256xf32>
    %cst_253 = arith.constant dense<0.000000e+00> : vector<6x256xf32>
    %456 = tpu.matmul %453, %455, %cst_253 {dimension_numbers = #tpu.dot_dimension_numbers<[1], [0], [0], [1], [0, 0, 1, 1], [], []>} : vector<6x64xf32>, vector<64x256xf32>, vector<6x256xf32> -> vector<6x256xf32>
    %c6_254 = arith.constant 6 : index
    %c0_255 = arith.constant 0 : index
    %c0_256 = arith.constant 0 : index
    %457 = vector.load %arg11[%c6_254, %c0_255, %c0_256] : memref<8x1x256xf32, #tpu.memory_space<vmem>>, vector<1x1x256xf32>
    %458 = vector.shape_cast %457 : vector<1x1x256xf32> to vector<1x256xf32>
    %459 = vector.broadcast %458 : vector<1x256xf32> to vector<6x256xf32>
    %460 = arith.addf %456, %459 : vector<6x256xf32>
    %cst_257 = arith.constant 0.000000e+00 : f32
    %461 = vector.broadcast %cst_257 : f32 to vector<6x256xf32>
    %462 = arith.maximumf %460, %461 : vector<6x256xf32>
    %c6_258 = arith.constant 6 : index
    %c0_259 = arith.constant 0 : index
    %c0_260 = arith.constant 0 : index
    %463 = vector.load %arg7[%c6_258, %c0_259, %c0_260] : memref<8x256x64xf32, #tpu.memory_space<vmem>>, vector<1x256x64xf32>
    %464 = vector.shape_cast %463 : vector<1x256x64xf32> to vector<256x64xf32>
    %cst_261 = arith.constant dense<0.000000e+00> : vector<6x64xf32>
    %465 = tpu.matmul %462, %464, %cst_261 {dimension_numbers = #tpu.dot_dimension_numbers<[1], [0], [0], [1], [0, 0, 1, 1], [], []>} : vector<6x256xf32>, vector<256x64xf32>, vector<6x64xf32> -> vector<6x64xf32>
    %466 = vector.extract_strided_slice %420 {offsets = [3, 0], sizes = [1, 64], strides = [1, 1]} : vector<4x64xf32> to vector<1x64xf32>
    %467 = vector.broadcast %466 : vector<1x64xf32> to vector<6x64xf32>
    %468 = arith.addf %465, %467 : vector<6x64xf32>
    %469 = arith.addf %453, %468 : vector<6x64xf32>
    %c6_262 = arith.constant 6 : index
    %c0_263 = arith.constant 0 : index
    %c0_264 = arith.constant 0 : index
    %470 = vector.load %arg8[%c6_262, %c0_263, %c0_264] : memref<8x256x6xf32, #tpu.memory_space<vmem>>, vector<1x256x6xf32>
    %471 = vector.shape_cast %470 : vector<1x256x6xf32> to vector<256x6xf32>
    %cst_265 = arith.constant dense<0.000000e+00> : vector<256x64xf32>
    %472 = tpu.matmul %471, %469, %cst_265 {dimension_numbers = #tpu.dot_dimension_numbers<[1], [0], [0], [1], [0, 0, 1, 1], [], []>} : vector<256x6xf32>, vector<6x64xf32>, vector<256x64xf32> -> vector<256x64xf32>
    %c6_266 = arith.constant 6 : index
    %c0_267 = arith.constant 0 : index
    %c0_268 = arith.constant 0 : index
    %473 = vector.load %arg12[%c6_266, %c0_267, %c0_268] : memref<8x256x1xf32, #tpu.memory_space<vmem>>, vector<1x256x1xf32>
    %474 = vector.shape_cast %473 : vector<1x256x1xf32> to vector<256x1xf32>
    %475 = vector.broadcast %474 : vector<256x1xf32> to vector<256x64xf32>
    %476 = arith.addf %472, %475 : vector<256x64xf32>
    %cst_269 = arith.constant 0.000000e+00 : f32
    %477 = vector.broadcast %cst_269 : f32 to vector<256x64xf32>
    %478 = arith.maximumf %476, %477 : vector<256x64xf32>
    %c6_270 = arith.constant 6 : index
    %c0_271 = arith.constant 0 : index
    %c0_272 = arith.constant 0 : index
    %479 = vector.load %arg9[%c6_270, %c0_271, %c0_272] : memref<8x6x256xf32, #tpu.memory_space<vmem>>, vector<1x6x256xf32>
    %480 = vector.shape_cast %479 : vector<1x6x256xf32> to vector<6x256xf32>
    %cst_273 = arith.constant dense<0.000000e+00> : vector<6x64xf32>
    %481 = tpu.matmul %480, %478, %cst_273 {dimension_numbers = #tpu.dot_dimension_numbers<[1], [0], [0], [1], [0, 0, 1, 1], [], []>} : vector<6x256xf32>, vector<256x64xf32>, vector<6x64xf32> -> vector<6x64xf32>
    %c6_274 = arith.constant 6 : index
    %c0_275 = arith.constant 0 : index
    %c0_276 = arith.constant 0 : index
    %482 = vector.load %arg13[%c6_274, %c0_275, %c0_276] : memref<8x6x1xf32, #tpu.memory_space<vmem>>, vector<1x6x1xf32>
    %483 = vector.shape_cast %482 : vector<1x6x1xf32> to vector<6x1xf32>
    %484 = vector.broadcast %483 : vector<6x1xf32> to vector<6x64xf32>
    %485 = arith.addf %481, %484 : vector<6x64xf32>
    %c7 = arith.constant 7 : index
    %c0_277 = arith.constant 0 : index
    %c0_278 = arith.constant 0 : index
    %486 = vector.load %arg10[%c7, %c0_277, %c0_278] : memref<8x4x64xf32, #tpu.memory_space<vmem>>, vector<1x4x64xf32>
    %487 = vector.shape_cast %486 : vector<1x4x64xf32> to vector<4x64xf32>
    %488 = vector.broadcast %12 : vector<1x64xf32> to vector<6x64xf32>
    %489 = arith.addf %485, %488 : vector<6x64xf32>
    %c7_279 = arith.constant 7 : index
    %c0_280 = arith.constant 0 : index
    %c0_281 = arith.constant 0 : index
    %490 = vector.load %arg5[%c7_279, %c0_280, %c0_281] : memref<8x128x64xf32, #tpu.memory_space<vmem>>, vector<1x128x64xf32>
    %491 = vector.shape_cast %490 : vector<1x128x64xf32> to vector<128x64xf32>
    %cst_282 = arith.constant dense<0.000000e+00> : vector<1x64xf32>
    %492 = tpu.matmul %14, %491, %cst_282 {dimension_numbers = #tpu.dot_dimension_numbers<[1], [0], [0], [1], [0, 0, 1, 1], [], []>} : vector<1x128xf32>, vector<128x64xf32>, vector<1x64xf32> -> vector<1x64xf32>
    %493 = vector.extract_strided_slice %487 {offsets = [0, 0], sizes = [1, 64], strides = [1, 1]} : vector<4x64xf32> to vector<1x64xf32>
    %494 = arith.addf %492, %493 : vector<1x64xf32>
    %495 = vector.broadcast %494 : vector<1x64xf32> to vector<6x64xf32>
    %496 = arith.addf %489, %495 : vector<6x64xf32>
    %cst_283 = arith.constant dense<0.000000e+00> : vector<6xf32>
    %497 = vector.multi_reduction <add>, %496, %cst_283 [1] : vector<6x64xf32> to vector<6xf32>
    %498 = vector.shape_cast %497 : vector<6xf32> to vector<6x1xf32>
    %cst_284 = arith.constant 6.400000e+01 : f32
    %499 = vector.broadcast %cst_284 : f32 to vector<6x1xf32>
    %500 = arith.divf %498, %499 : vector<6x1xf32>
    %501 = vector.broadcast %500 : vector<6x1xf32> to vector<6x64xf32>
    %502 = arith.subf %496, %501 : vector<6x64xf32>
    %503 = arith.mulf %502, %502 : vector<6x64xf32>
    %cst_285 = arith.constant dense<0.000000e+00> : vector<6xf32>
    %504 = vector.multi_reduction <add>, %503, %cst_285 [1] : vector<6x64xf32> to vector<6xf32>
    %505 = vector.shape_cast %504 : vector<6xf32> to vector<6x1xf32>
    %cst_286 = arith.constant 6.400000e+01 : f32
    %506 = vector.broadcast %cst_286 : f32 to vector<6x1xf32>
    %507 = arith.divf %505, %506 : vector<6x1xf32>
    %508 = vector.broadcast %500 : vector<6x1xf32> to vector<6x64xf32>
    %509 = arith.subf %496, %508 : vector<6x64xf32>
    %cst_287 = arith.constant 9.99999974E-6 : f32
    %510 = vector.broadcast %cst_287 : f32 to vector<6x1xf32>
    %511 = arith.addf %507, %510 : vector<6x1xf32>
    %512 = math.rsqrt %511 : vector<6x1xf32>
    %513 = vector.broadcast %512 : vector<6x1xf32> to vector<6x64xf32>
    %514 = arith.mulf %509, %513 : vector<6x64xf32>
    %515 = vector.extract_strided_slice %487 {offsets = [1, 0], sizes = [1, 64], strides = [1, 1]} : vector<4x64xf32> to vector<1x64xf32>
    %516 = vector.broadcast %515 : vector<1x64xf32> to vector<6x64xf32>
    %517 = arith.mulf %514, %516 : vector<6x64xf32>
    %518 = vector.extract_strided_slice %487 {offsets = [2, 0], sizes = [1, 64], strides = [1, 1]} : vector<4x64xf32> to vector<1x64xf32>
    %519 = vector.broadcast %518 : vector<1x64xf32> to vector<6x64xf32>
    %520 = arith.addf %517, %519 : vector<6x64xf32>
    %c7_288 = arith.constant 7 : index
    %c0_289 = arith.constant 0 : index
    %c0_290 = arith.constant 0 : index
    %521 = vector.load %arg6[%c7_288, %c0_289, %c0_290] : memref<8x64x256xf32, #tpu.memory_space<vmem>>, vector<1x64x256xf32>
    %522 = vector.shape_cast %521 : vector<1x64x256xf32> to vector<64x256xf32>
    %cst_291 = arith.constant dense<0.000000e+00> : vector<6x256xf32>
    %523 = tpu.matmul %520, %522, %cst_291 {dimension_numbers = #tpu.dot_dimension_numbers<[1], [0], [0], [1], [0, 0, 1, 1], [], []>} : vector<6x64xf32>, vector<64x256xf32>, vector<6x256xf32> -> vector<6x256xf32>
    %c7_292 = arith.constant 7 : index
    %c0_293 = arith.constant 0 : index
    %c0_294 = arith.constant 0 : index
    %524 = vector.load %arg11[%c7_292, %c0_293, %c0_294] : memref<8x1x256xf32, #tpu.memory_space<vmem>>, vector<1x1x256xf32>
    %525 = vector.shape_cast %524 : vector<1x1x256xf32> to vector<1x256xf32>
    %526 = vector.broadcast %525 : vector<1x256xf32> to vector<6x256xf32>
    %527 = arith.addf %523, %526 : vector<6x256xf32>
    %cst_295 = arith.constant 0.000000e+00 : f32
    %528 = vector.broadcast %cst_295 : f32 to vector<6x256xf32>
    %529 = arith.maximumf %527, %528 : vector<6x256xf32>
    %c7_296 = arith.constant 7 : index
    %c0_297 = arith.constant 0 : index
    %c0_298 = arith.constant 0 : index
    %530 = vector.load %arg7[%c7_296, %c0_297, %c0_298] : memref<8x256x64xf32, #tpu.memory_space<vmem>>, vector<1x256x64xf32>
    %531 = vector.shape_cast %530 : vector<1x256x64xf32> to vector<256x64xf32>
    %cst_299 = arith.constant dense<0.000000e+00> : vector<6x64xf32>
    %532 = tpu.matmul %529, %531, %cst_299 {dimension_numbers = #tpu.dot_dimension_numbers<[1], [0], [0], [1], [0, 0, 1, 1], [], []>} : vector<6x256xf32>, vector<256x64xf32>, vector<6x64xf32> -> vector<6x64xf32>
    %533 = vector.extract_strided_slice %487 {offsets = [3, 0], sizes = [1, 64], strides = [1, 1]} : vector<4x64xf32> to vector<1x64xf32>
    %534 = vector.broadcast %533 : vector<1x64xf32> to vector<6x64xf32>
    %535 = arith.addf %532, %534 : vector<6x64xf32>
    %536 = arith.addf %520, %535 : vector<6x64xf32>
    %c7_300 = arith.constant 7 : index
    %c0_301 = arith.constant 0 : index
    %c0_302 = arith.constant 0 : index
    %537 = vector.load %arg8[%c7_300, %c0_301, %c0_302] : memref<8x256x6xf32, #tpu.memory_space<vmem>>, vector<1x256x6xf32>
    %538 = vector.shape_cast %537 : vector<1x256x6xf32> to vector<256x6xf32>
    %cst_303 = arith.constant dense<0.000000e+00> : vector<256x64xf32>
    %539 = tpu.matmul %538, %536, %cst_303 {dimension_numbers = #tpu.dot_dimension_numbers<[1], [0], [0], [1], [0, 0, 1, 1], [], []>} : vector<256x6xf32>, vector<6x64xf32>, vector<256x64xf32> -> vector<256x64xf32>
    %c7_304 = arith.constant 7 : index
    %c0_305 = arith.constant 0 : index
    %c0_306 = arith.constant 0 : index
    %540 = vector.load %arg12[%c7_304, %c0_305, %c0_306] : memref<8x256x1xf32, #tpu.memory_space<vmem>>, vector<1x256x1xf32>
    %541 = vector.shape_cast %540 : vector<1x256x1xf32> to vector<256x1xf32>
    %542 = vector.broadcast %541 : vector<256x1xf32> to vector<256x64xf32>
    %543 = arith.addf %539, %542 : vector<256x64xf32>
    %cst_307 = arith.constant 0.000000e+00 : f32
    %544 = vector.broadcast %cst_307 : f32 to vector<256x64xf32>
    %545 = arith.maximumf %543, %544 : vector<256x64xf32>
    %c7_308 = arith.constant 7 : index
    %c0_309 = arith.constant 0 : index
    %c0_310 = arith.constant 0 : index
    %546 = vector.load %arg9[%c7_308, %c0_309, %c0_310] : memref<8x6x256xf32, #tpu.memory_space<vmem>>, vector<1x6x256xf32>
    %547 = vector.shape_cast %546 : vector<1x6x256xf32> to vector<6x256xf32>
    %cst_311 = arith.constant dense<0.000000e+00> : vector<6x64xf32>
    %548 = tpu.matmul %547, %545, %cst_311 {dimension_numbers = #tpu.dot_dimension_numbers<[1], [0], [0], [1], [0, 0, 1, 1], [], []>} : vector<6x256xf32>, vector<256x64xf32>, vector<6x64xf32> -> vector<6x64xf32>
    %c7_312 = arith.constant 7 : index
    %c0_313 = arith.constant 0 : index
    %c0_314 = arith.constant 0 : index
    %549 = vector.load %arg13[%c7_312, %c0_313, %c0_314] : memref<8x6x1xf32, #tpu.memory_space<vmem>>, vector<1x6x1xf32>
    %550 = vector.shape_cast %549 : vector<1x6x1xf32> to vector<6x1xf32>
    %551 = vector.broadcast %550 : vector<6x1xf32> to vector<6x64xf32>
    %552 = arith.addf %548, %551 : vector<6x64xf32>
    %c0_315 = arith.constant 0 : index
    %c0_316 = arith.constant 0 : index
    %c0_317 = arith.constant 0 : index
    %553 = vector.load %arg14[%c0_315, %c0_316, %c0_317] : memref<1x6x64xf32, #tpu.memory_space<vmem>>, vector<1x6x64xf32>
    %554 = vector.shape_cast %553 : vector<1x6x64xf32> to vector<6x64xf32>
    %555 = vector.shape_cast %552 : vector<6x64xf32> to vector<1x6x64xf32>
    tpu.vector_store %arg14[%c0_315, %c0_316, %c0_317], %555 {strides = array<i32>} : memref<1x6x64xf32, #tpu.memory_space<vmem>>, vector<1x6x64xf32>,
    return
  }
  func.func @transform_0(%arg0: i32) -> (i32, i32) {
    %c0_i32 = arith.constant 0 : i32
    %c0_i32_0 = arith.constant 0 : i32
    %c0_i32_1 = arith.constant 0 : i32
    return %c0_i32, %c0_i32_0 : i32, i32
  }
  func.func @transform_1(%arg0: i32) -> (i32, i32, i32) {
    %c0_i32 = arith.constant 0 : i32
    %c0_i32_0 = arith.constant 0 : i32
    %c0_i32_1 = arith.constant 0 : i32
    return %arg0, %c0_i32, %c0_i32_0 : i32, i32, i32
  }
  func.func @transform_2(%arg0: i32) -> (i32, i32, i32) {
    %c0_i32 = arith.constant 0 : i32
    %c0_i32_0 = arith.constant 0 : i32
    %c0_i32_1 = arith.constant 0 : i32
    return %arg0, %c0_i32, %c0_i32_0 : i32, i32, i32
  }
  func.func @transform_3(%arg0: i32) -> (i32, i32, i32) {
    %c0_i32 = arith.constant 0 : i32
    %c0_i32_0 = arith.constant 0 : i32
    %c0_i32_1 = arith.constant 0 : i32
    return %arg0, %c0_i32, %c0_i32_0 : i32, i32, i32
  }
  func.func @transform_4(%arg0: i32) -> (i32, i32, i32) {
    %c0_i32 = arith.constant 0 : i32
    %c0_i32_0 = arith.constant 0 : i32
    %c0_i32_1 = arith.constant 0 : i32
    %c0_i32_2 = arith.constant 0 : i32
    return %c0_i32, %c0_i32_0, %c0_i32_1 : i32, i32, i32
  }
  func.func @transform_5(%arg0: i32) -> (i32, i32, i32) {
    %c0_i32 = arith.constant 0 : i32
    %c0_i32_0 = arith.constant 0 : i32
    %c0_i32_1 = arith.constant 0 : i32
    %c0_i32_2 = arith.constant 0 : i32
    return %c0_i32, %c0_i32_0, %c0_i32_1 : i32, i32, i32
  }
  func.func @transform_6(%arg0: i32) -> (i32, i32, i32) {
    %c0_i32 = arith.constant 0 : i32
    %c0_i32_0 = arith.constant 0 : i32
    %c0_i32_1 = arith.constant 0 : i32
    %c0_i32_2 = arith.constant 0 : i32
    return %c0_i32, %c0_i32_0, %c0_i32_1 : i32, i32, i32
  }
  func.func @transform_7(%arg0: i32) -> (i32, i32, i32) {
    %c0_i32 = arith.constant 0 : i32
    %c0_i32_0 = arith.constant 0 : i32
    %c0_i32_1 = arith.constant 0 : i32
    %c0_i32_2 = arith.constant 0 : i32
    return %c0_i32, %c0_i32_0, %c0_i32_1 : i32, i32, i32
  }
  func.func @transform_8(%arg0: i32) -> (i32, i32, i32) {
    %c0_i32 = arith.constant 0 : i32
    %c0_i32_0 = arith.constant 0 : i32
    %c0_i32_1 = arith.constant 0 : i32
    %c0_i32_2 = arith.constant 0 : i32
    return %c0_i32, %c0_i32_0, %c0_i32_1 : i32, i32, i32
  }
  func.func @transform_9(%arg0: i32) -> (i32, i32, i32) {
    %c0_i32 = arith.constant 0 : i32
    %c0_i32_0 = arith.constant 0 : i32
    %c0_i32_1 = arith.constant 0 : i32
    %c0_i32_2 = arith.constant 0 : i32
    return %c0_i32, %c0_i32_0, %c0_i32_1 : i32, i32, i32
  }
  func.func @transform_10(%arg0: i32) -> (i32, i32, i32) {
    %c0_i32 = arith.constant 0 : i32
    %c0_i32_0 = arith.constant 0 : i32
    %c0_i32_1 = arith.constant 0 : i32
    %c0_i32_2 = arith.constant 0 : i32
    return %c0_i32, %c0_i32_0, %c0_i32_1 : i32, i32, i32
  }
  func.func @transform_11(%arg0: i32) -> (i32, i32, i32) {
    %c0_i32 = arith.constant 0 : i32
    %c0_i32_0 = arith.constant 0 : i32
    %c0_i32_1 = arith.constant 0 : i32
    %c0_i32_2 = arith.constant 0 : i32
    return %c0_i32, %c0_i32_0, %c0_i32_1 : i32, i32, i32
  }
  func.func @transform_12(%arg0: i32) -> (i32, i32, i32) {
    %c0_i32 = arith.constant 0 : i32
    %c0_i32_0 = arith.constant 0 : i32
    %c0_i32_1 = arith.constant 0 : i32
    %c0_i32_2 = arith.constant 0 : i32
    return %c0_i32, %c0_i32_0, %c0_i32_1 : i32, i32, i32
  }
  func.func @transform_13(%arg0: i32) -> (i32, i32, i32) {
    %c0_i32 = arith.constant 0 : i32
    %c0_i32_0 = arith.constant 0 : i32
    %c0_i32_1 = arith.constant 0 : i32
    return %arg0, %c0_i32, %c0_i32_0 : i32, i32, i32
  }
}

</mosaic_0001>

<llo_original>
// kernel: tpu_custom_call.1
$region0: #{tpu_custom_call.1}
  #allocation0 [shape = 'u32[]', space=smem, size = 0x4, offset = 0x4, fixed_abs, tag = 'smem constant byte address 0x4 - core index']
  #allocation1 [shape = 'u32[144,128]{1,0:T(1,128)}', space=vmem, size = 0x12000, scoped, tag = 'internal scratch']
  %s0 = inlined_call_operand.vmem [shape: f32[1,64], index: 0, kind: input, shape index: {}]
  %s1 = inlined_call_operand.vmem [shape: f32[2,1,1], index: 1, kind: input, shape index: {}]
  %s2 = inlined_call_operand.vmem [shape: f32[2,1,128], index: 2, kind: input, shape index: {}]
  %s3 = inlined_call_operand.vmem [shape: f32[2,6,64], index: 3, kind: input, shape index: {}]
  %s4 = inlined_call_operand.vmem [shape: f32[8,128,64], index: 4, kind: input, shape index: {}]
  %s5 = inlined_call_operand.vmem [shape: f32[8,64,256], index: 5, kind: input, shape index: {}]
  %s6 = inlined_call_operand.vmem [shape: f32[8,256,64], index: 6, kind: input, shape index: {}]
  %s7 = inlined_call_operand.vmem [shape: f32[8,256,6], index: 7, kind: input, shape index: {}]
  %s8 = inlined_call_operand.vmem [shape: f32[8,6,256], index: 8, kind: input, shape index: {}]
  %s9 = inlined_call_operand.vmem [shape: f32[8,4,64], index: 9, kind: input, shape index: {}]
  %s10 = inlined_call_operand.vmem [shape: f32[8,1,256], index: 10, kind: input, shape index: {}]
  %s11 = inlined_call_operand.vmem [shape: f32[8,256,1], index: 11, kind: input, shape index: {}]
  %s12 = inlined_call_operand.vmem [shape: f32[8,6,1], index: 12, kind: input, shape index: {}]
  %s13 = inlined_call_operand.vmem [shape: f32[2,6,64], index: 13, kind: output, shape index: {}]
  %s14 = sld [smem:[#allocation0]]
  $region85: #{tpu_custom_call.1} parent=0
    _
  %s16 = ssub.s32 1, %s14
  %s17 = scalar_select 0, %s16, %s14
  loop: start=0, step=1, limit=4
  $region2: #{tpu_custom_call.1} parent=0 // loop_pre_header
    _
  $region3: #{tpu_custom_call.1} parent=0 // loop_header
    %s19 = sphi 0, %s23
    %p20 = scmp.ge.s32.totalorder %s19, 4
    %s27 = sphi 0, %s27
    %s29 = sphi 0, %s27
    %s30 = sphi 0, %s29
    %s44 = sphi 0, %s30
    %s50 = sphi 0, %s52
    %s53 = sphi 0, %s50
    %s54 = sphi 0, %s53
    %s70 = sphi 0, %s54
    %s76 = sphi 0, %s78
    %s79 = sphi 0, %s76
    %s80 = sphi 0, %s79
    %s96 = sphi 0, %s80
    %s102 = sphi 0, %s104
    %s105 = sphi 0, %s102
    %s106 = sphi 0, %s105
    %s122 = sphi 0, %s106
    %s126 = sphi 0, %s126
    %s128 = sphi 0, %s126
    %s129 = sphi 0, %s128
    %s143 = sphi 0, %s129
    %s147 = sphi 0, %s147
    %s149 = sphi 0, %s147
    %s150 = sphi 0, %s149
    %s164 = sphi 0, %s150
    %s168 = sphi 0, %s168
    %s170 = sphi 0, %s168
    %s171 = sphi 0, %s170
    %s185 = sphi 0, %s171
    %s189 = sphi 0, %s189
    %s191 = sphi 0, %s189
    %s192 = sphi 0, %s191
    %s206 = sphi 0, %s192
    %s210 = sphi 0, %s210
    %s212 = sphi 0, %s210
    %s213 = sphi 0, %s212
    %s227 = sphi 0, %s213
    %s231 = sphi 0, %s231
    %s233 = sphi 0, %s231
    %s234 = sphi 0, %s233
    %s248 = sphi 0, %s234
    %s252 = sphi 0, %s252
    %s254 = sphi 0, %s252
    %s255 = sphi 0, %s254
    %s269 = sphi 0, %s255
    %s273 = sphi 0, %s273
    %s275 = sphi 0, %s273
    %s276 = sphi 0, %s275
    %s290 = sphi 0, %s276
    %s294 = sphi 0, %s294
    %s296 = sphi 0, %s294
    %s297 = sphi 0, %s296
    %s311 = sphi 0, %s297
    %s317 = sphi 0, %s319
    %s320 = sphi 0, %s317
    %s321 = sphi 0, %s320
    %s337 = sphi 0, %s321
  $region4: #{tpu_custom_call.1} parent=0 // loop_header_branch
    %22 = sbr.rel (%p20) target = $region8
  $region5: #{tpu_custom_call.1} parent=0 // loop_body
    %s24 = ssub.s32 %s19, 1
    %s25 = ssub.s32 %s19, 2
    %s26 = sadd.s32 %s19, 1
    %s28 = sadd.s32 %s27, 1
    %p31 = scmp.eq.s32.totalorder %s19, 1
    %p32 = scmp.ne.s32.totalorder %s27, %s29
    %p33 = scmp.eq.s32.totalorder %s19, 0
    %p34 = por %p32, %p33
    %p35 = scmp.ne.s32.totalorder %s27, %s29
    %p36 = scmp.eq.s32.totalorder %s24, 1
    %p37 = por %p35, %p36
    %p38 = scmp.ne.s32.totalorder %s29, %s30
    %p39 = scmp.eq.s32.totalorder %s24, 0
    %p40 = por %p38, %p39
    %p41 = scmp.ne.s32.totalorder %s29, %s30
    %p42 = scmp.eq.s32.totalorder %s25, 1
    %p43 = por %p41, %p42
    %p45 = scmp.ne.s32.totalorder %s30, %s44
    %p46 = scmp.eq.s32.totalorder %s25, 0
    %p47 = por %p45, %p46
    %s48 = ssub.s32 %s19, %s26
    %p49 = scmp.eq.s32.totalorder %s48, 0
    %s51 = sadd.s32 %s50, 1
    %s52 = scalar_select %p49, %s50, %s51
    %p55 = pneg %p49
    %p56 = scmp.eq.s32.totalorder %s19, 1
    %p57 = por %p55, %p56
    %p58 = scmp.ne.s32.totalorder %s50, %s53
    %p59 = scmp.eq.s32.totalorder %s19, 0
    %p60 = por %p58, %p59
    %p61 = scmp.ne.s32.totalorder %s50, %s53
    %p62 = scmp.eq.s32.totalorder %s24, 1
    %p63 = por %p61, %p62
    %p64 = scmp.ne.s32.totalorder %s53, %s54
    %p65 = scmp.eq.s32.totalorder %s24, 0
    %p66 = por %p64, %p65
    %p67 = scmp.ne.s32.totalorder %s53, %s54
    %p68 = scmp.eq.s32.totalorder %s25, 1
    %p69 = por %p67, %p68
    %p71 = scmp.ne.s32.totalorder %s54, %s70
    %p72 = scmp.eq.s32.totalorder %s25, 0
    %p73 = por %p71, %p72
    %s74 = ssub.s32 %s19, %s26
    %p75 = scmp.eq.s32.totalorder %s74, 0
    %s77 = sadd.s32 %s76, 1
    %s78 = scalar_select %p75, %s76, %s77
    %p81 = pneg %p75
    %p82 = scmp.eq.s32.totalorder %s19, 1
    %p83 = por %p81, %p82
    %p84 = scmp.ne.s32.totalorder %s76, %s79
    %p85 = scmp.eq.s32.totalorder %s19, 0
    %p86 = por %p84, %p85
    %p87 = scmp.ne.s32.totalorder %s76, %s79
    %p88 = scmp.eq.s32.totalorder %s24, 1
    %p89 = por %p87, %p88
    %p90 = scmp.ne.s32.totalorder %s79, %s80
    %p91 = scmp.eq.s32.totalorder %s24, 0
    %p92 = por %p90, %p91
    %p93 = scmp.ne.s32.totalorder %s79, %s80
    %p94 = scmp.eq.s32.totalorder %s25, 1
    %p95 = por %p93, %p94
    %p97 = scmp.ne.s32.totalorder %s80, %s96
    %p98 = scmp.eq.s32.totalorder %s25, 0
    %p99 = por %p97, %p98
    %s100 = ssub.s32 %s19, %s26
    %p101 = scmp.eq.s32.totalorder %s100, 0
    %s103 = sadd.s32 %s102, 1
    %s104 = scalar_select %p101, %s102, %s103
    %p107 = pneg %p101
    %p108 = scmp.eq.s32.totalorder %s19, 1
    %p109 = por %p107, %p108
    %p110 = scmp.ne.s32.totalorder %s102, %s105
    %p111 = scmp.eq.s32.totalorder %s19, 0
    %p112 = por %p110, %p111
    %p113 = scmp.ne.s32.totalorder %s102, %s105
    %p114 = scmp.eq.s32.totalorder %s24, 1
    %p115 = por %p113, %p114
    %p116 = scmp.ne.s32.totalorder %s105, %s106
    %p117 = scmp.eq.s32.totalorder %s24, 0
    %p118 = por %p116, %p117
    %p119 = scmp.ne.s32.totalorder %s105, %s106
    %p120 = scmp.eq.s32.totalorder %s25, 1
    %p121 = por %p119, %p120
    %p123 = scmp.ne.s32.totalorder %s106, %s122
    %p124 = scmp.eq.s32.totalorder %s25, 0
    %p125 = por %p123, %p124
    %s127 = sadd.s32 %s126, 1
    %p130 = scmp.eq.s32.totalorder %s19, 1
    %p131 = scmp.ne.s32.totalorder %s126, %s128
    %p132 = scmp.eq.s32.totalorder %s19, 0
    %p133 = por %p131, %p132
    %p134 = scmp.ne.s32.totalorder %s126, %s128
    %p135 = scmp.eq.s32.totalorder %s24, 1
    %p136 = por %p134, %p135
    %p137 = scmp.ne.s32.totalorder %s128, %s129
    %p138 = scmp.eq.s32.totalorder %s24, 0
    %p139 = por %p137, %p138
    %p140 = scmp.ne.s32.totalorder %s128, %s129
    %p141 = scmp.eq.s32.totalorder %s25, 1
    %p142 = por %p140, %p141
    %p144 = scmp.ne.s32.totalorder %s129, %s143
    %p145 = scmp.eq.s32.totalorder %s25, 0
    %p146 = por %p144, %p145
    %s148 = sadd.s32 %s147, 1
    %p151 = scmp.eq.s32.totalorder %s19, 1
    %p152 = scmp.ne.s32.totalorder %s147, %s149
    %p153 = scmp.eq.s32.totalorder %s19, 0
    %p154 = por %p152, %p153
    %p155 = scmp.ne.s32.totalorder %s147, %s149
    %p156 = scmp.eq.s32.totalorder %s24, 1
    %p157 = por %p155, %p156
    %p158 = scmp.ne.s32.totalorder %s149, %s150
    %p159 = scmp.eq.s32.totalorder %s24, 0
    %p160 = por %p158, %p159
    %p161 = scmp.ne.s32.totalorder %s149, %s150
    %p162 = scmp.eq.s32.totalorder %s25, 1
    %p163 = por %p161, %p162
    %p165 = scmp.ne.s32.totalorder %s150, %s164
    %p166 = scmp.eq.s32.totalorder %s25, 0
    %p167 = por %p165, %p166
    %s169 = sadd.s32 %s168, 1
    %p172 = scmp.eq.s32.totalorder %s19, 1
    %p173 = scmp.ne.s32.totalorder %s168, %s170
    %p174 = scmp.eq.s32.totalorder %s19, 0
    %p175 = por %p173, %p174
    %p176 = scmp.ne.s32.totalorder %s168, %s170
    %p177 = scmp.eq.s32.totalorder %s24, 1
    %p178 = por %p176, %p177
    %p179 = scmp.ne.s32.totalorder %s170, %s171
    %p180 = scmp.eq.s32.totalorder %s24, 0
    %p181 = por %p179, %p180
    %p182 = scmp.ne.s32.totalorder %s170, %s171
    %p183 = scmp.eq.s32.totalorder %s25, 1
    %p184 = por %p182, %p183
    %p186 = scmp.ne.s32.totalorder %s171, %s185
    %p187 = scmp.eq.s32.totalorder %s25, 0
    %p188 = por %p186, %p187
    %s190 = sadd.s32 %s189, 1
    %p193 = scmp.eq.s32.totalorder %s19, 1
    %p194 = scmp.ne.s32.totalorder %s189, %s191
    %p195 = scmp.eq.s32.totalorder %s19, 0
    %p196 = por %p194, %p195
    %p197 = scmp.ne.s32.totalorder %s189, %s191
    %p198 = scmp.eq.s32.totalorder %s24, 1
    %p199 = por %p197, %p198
    %p200 = scmp.ne.s32.totalorder %s191, %s192
    %p201 = scmp.eq.s32.totalorder %s24, 0
    %p202 = por %p200, %p201
    %p203 = scmp.ne.s32.totalorder %s191, %s192
    %p204 = scmp.eq.s32.totalorder %s25, 1
    %p205 = por %p203, %p204
    %p207 = scmp.ne.s32.totalorder %s192, %s206
    %p208 = scmp.eq.s32.totalorder %s25, 0
    %p209 = por %p207, %p208
    %s211 = sadd.s32 %s210, 1
    %p214 = scmp.eq.s32.totalorder %s19, 1
    %p215 = scmp.ne.s32.totalorder %s210, %s212
    %p216 = scmp.eq.s32.totalorder %s19, 0
    %p217 = por %p215, %p216
    %p218 = scmp.ne.s32.totalorder %s210, %s212
    %p219 = scmp.eq.s32.totalorder %s24, 1
    %p220 = por %p218, %p219
    %p221 = scmp.ne.s32.totalorder %s212, %s213
    %p222 = scmp.eq.s32.totalorder %s24, 0
    %p223 = por %p221, %p222
    %p224 = scmp.ne.s32.totalorder %s212, %s213
    %p225 = scmp.eq.s32.totalorder %s25, 1
    %p226 = por %p224, %p225
    %p228 = scmp.ne.s32.totalorder %s213, %s227
    %p229 = scmp.eq.s32.totalorder %s25, 0
    %p230 = por %p228, %p229
    %s232 = sadd.s32 %s231, 1
    %p235 = scmp.eq.s32.totalorder %s19, 1
    %p236 = scmp.ne.s32.totalorder %s231, %s233
    %p237 = scmp.eq.s32.totalorder %s19, 0
    %p238 = por %p236, %p237
    %p239 = scmp.ne.s32.totalorder %s231, %s233
    %p240 = scmp.eq.s32.totalorder %s24, 1
    %p241 = por %p239, %p240
    %p242 = scmp.ne.s32.totalorder %s233, %s234
    %p243 = scmp.eq.s32.totalorder %s24, 0
    %p244 = por %p242, %p243
    %p245 = scmp.ne.s32.totalorder %s233, %s234
    %p246 = scmp.eq.s32.totalorder %s25, 1
    %p247 = por %p245, %p246
    %p249 = scmp.ne.s32.totalorder %s234, %s248
    %p250 = scmp.eq.s32.totalorder %s25, 0
    %p251 = por %p249, %p250
    %s253 = sadd.s32 %s252, 1
    %p256 = scmp.eq.s32.totalorder %s19, 1
    %p257 = scmp.ne.s32.totalorder %s252, %s254
    %p258 = scmp.eq.s32.totalorder %s19, 0
    %p259 = por %p257, %p258
    %p260 = scmp.ne.s32.totalorder %s252, %s254
    %p261 = scmp.eq.s32.totalorder %s24, 1
    %p262 = por %p260, %p261
    %p263 = scmp.ne.s32.totalorder %s254, %s255
    %p264 = scmp.eq.s32.totalorder %s24, 0
    %p265 = por %p263, %p264
    %p266 = scmp.ne.s32.totalorder %s254, %s255
    %p267 = scmp.eq.s32.totalorder %s25, 1
    %p268 = por %p266, %p267
    %p270 = scmp.ne.s32.totalorder %s255, %s269
    %p271 = scmp.eq.s32.totalorder %s25, 0
    %p272 = por %p270, %p271
    %s274 = sadd.s32 %s273, 1
    %p277 = scmp.eq.s32.totalorder %s19, 1
    %p278 = scmp.ne.s32.totalorder %s273, %s275
    %p279 = scmp.eq.s32.totalorder %s19, 0
    %p280 = por %p278, %p279
    %p281 = scmp.ne.s32.totalorder %s273, %s275
    %p282 = scmp.eq.s32.totalorder %s24, 1
    %p283 = por %p281, %p282
    %p284 = scmp.ne.s32.totalorder %s275, %s276
    %p285 = scmp.eq.s32.totalorder %s24, 0
    %p286 = por %p284, %p285
    %p287 = scmp.ne.s32.totalorder %s275, %s276
    %p288 = scmp.eq.s32.totalorder %s25, 1
    %p289 = por %p287, %p288
    %p291 = scmp.ne.s32.totalorder %s276, %s290
    %p292 = scmp.eq.s32.totalorder %s25, 0
    %p293 = por %p291, %p292
    %s295 = sadd.s32 %s294, 1
    %p298 = scmp.eq.s32.totalorder %s19, 1
    %p299 = scmp.ne.s32.totalorder %s294, %s296
    %p300 = scmp.eq.s32.totalorder %s19, 0
    %p301 = por %p299, %p300
    %p302 = scmp.ne.s32.totalorder %s294, %s296
    %p303 = scmp.eq.s32.totalorder %s24, 1
    %p304 = por %p302, %p303
    %p305 = scmp.ne.s32.totalorder %s296, %s297
    %p306 = scmp.eq.s32.totalorder %s24, 0
    %p307 = por %p305, %p306
    %p308 = scmp.ne.s32.totalorder %s296, %s297
    %p309 = scmp.eq.s32.totalorder %s25, 1
    %p310 = por %p308, %p309
    %p312 = scmp.ne.s32.totalorder %s297, %s311
    %p313 = scmp.eq.s32.totalorder %s25, 0
    %p314 = por %p312, %p313
    %s315 = ssub.s32 %s19, %s26
    %p316 = scmp.eq.s32.totalorder %s315, 0
    %s318 = sadd.s32 %s317, 1
    %s319 = scalar_select %p316, %s317, %s318
    %p322 = pneg %p316
    %p323 = scmp.eq.s32.totalorder %s19, 1
    %p324 = por %p322, %p323
    %p325 = scmp.ne.s32.totalorder %s317, %s320
    %p326 = scmp.eq.s32.totalorder %s19, 0
    %p327 = por %p325, %p326
    %p328 = scmp.ne.s32.totalorder %s317, %s320
    %p329 = scmp.eq.s32.totalorder %s24, 1
    %p330 = por %p328, %p329
    %p331 = scmp.ne.s32.totalorder %s320, %s321
    %p332 = scmp.eq.s32.totalorder %s24, 0
    %p333 = por %p331, %p332
    %p334 = scmp.ne.s32.totalorder %s320, %s321
    %p335 = scmp.eq.s32.totalorder %s25, 1
    %p336 = por %p334, %p335
    %p338 = scmp.ne.s32.totalorder %s321, %s337
    %p339 = scmp.eq.s32.totalorder %s25, 0
    %p340 = por %p338, %p339
    %p341 = scmp.le.s32.totalorder 1, %s19
    %p342 = scmp.lt.s32.totalorder %s19, 3
    %p343 = pnand %p341, %p342
    %p344 = pneg %p343
    // Predicated region
    $region9: #{tpu_custom_call.1} parent=5 // pred_check
      _
    $region10: #{tpu_custom_call.1} parent=5 // pred_check_branch
      %346 = sbr.rel (%p343) target = $region12
    $region11: #{tpu_custom_call.1} parent=5 // pred_region
      %s347 = ssub.s32 %s19, 1
      // Predicated region
      $region13: #{tpu_custom_call.1} parent=11 // pred_check
        %p348 = pneg %p40
      $region14: #{tpu_custom_call.1} parent=11 // pred_check_branch
        %350 = sbr.rel (%p348) target = $region16
      $region15: #{tpu_custom_call.1} parent=11 // pred_region
        _
      $region16: #{tpu_custom_call.1} parent=11 // pred_fallthru
        _
      // Predicated region
      $region17: #{tpu_custom_call.1} parent=11 // pred_check
        %p351 = pneg %p139
      $region18: #{tpu_custom_call.1} parent=11 // pred_check_branch
        %353 = sbr.rel (%p351) target = $region20
      $region19: #{tpu_custom_call.1} parent=11 // pred_region
        _
      $region20: #{tpu_custom_call.1} parent=11 // pred_fallthru
        _
      // Predicated region
      $region21: #{tpu_custom_call.1} parent=11 // pred_check
        %p354 = pneg %p160
      $region22: #{tpu_custom_call.1} parent=11 // pred_check_branch
        %356 = sbr.rel (%p354) target = $region24
      $region23: #{tpu_custom_call.1} parent=11 // pred_region
        _
      $region24: #{tpu_custom_call.1} parent=11 // pred_fallthru
        _
      // Predicated region
      $region25: #{tpu_custom_call.1} parent=11 // pred_check
        %p357 = pneg %p181
      $region26: #{tpu_custom_call.1} parent=11 // pred_check_branch
        %359 = sbr.rel (%p357) target = $region28
      $region27: #{tpu_custom_call.1} parent=11 // pred_region
        _
      $region28: #{tpu_custom_call.1} parent=11 // pred_fallthru
        _
      // Predicated region
      $region29: #{tpu_custom_call.1} parent=11 // pred_check
        %p360 = pneg %p202
      $region30: #{tpu_custom_call.1} parent=11 // pred_check_branch
        %362 = sbr.rel (%p360) target = $region32
      $region31: #{tpu_custom_call.1} parent=11 // pred_region
        _
      $region32: #{tpu_custom_call.1} parent=11 // pred_fallthru
        _
      // Predicated region
      $region33: #{tpu_custom_call.1} parent=11 // pred_check
        %p363 = pneg %p223
      $region34: #{tpu_custom_call.1} parent=11 // pred_check_branch
        %365 = sbr.rel (%p363) target = $region36
      $region35: #{tpu_custom_call.1} parent=11 // pred_region
        _
      $region36: #{tpu_custom_call.1} parent=11 // pred_fallthru
        _
      // Predicated region
      $region37: #{tpu_custom_call.1} parent=11 // pred_check
        %p366 = pneg %p244
      $region38: #{tpu_custom_call.1} parent=11 // pred_check_branch
        %368 = sbr.rel (%p366) target = $region40
      $region39: #{tpu_custom_call.1} parent=11 // pred_region
        _
      $region40: #{tpu_custom_call.1} parent=11 // pred_fallthru
        _
      // Predicated region
      $region41: #{tpu_custom_call.1} parent=11 // pred_check
        %p369 = pneg %p265
      $region42: #{tpu_custom_call.1} parent=11 // pred_check_branch
        %371 = sbr.rel (%p369) target = $region44
      $region43: #{tpu_custom_call.1} parent=11 // pred_region
        _
      $region44: #{tpu_custom_call.1} parent=11 // pred_fallthru
        _
      // Predicated region
      $region45: #{tpu_custom_call.1} parent=11 // pred_check
        %p372 = pneg %p286
      $region46: #{tpu_custom_call.1} parent=11 // pred_check_branch
        %374 = sbr.rel (%p372) target = $region48
      $region47: #{tpu_custom_call.1} parent=11 // pred_region
        _
      $region48: #{tpu_custom_call.1} parent=11 // pred_fallthru
        _
      // Predicated region
      $region49: #{tpu_custom_call.1} parent=11 // pred_check
        %p375 = pneg %p307
      $region50: #{tpu_custom_call.1} parent=11 // pred_check_branch
        %377 = sbr.rel (%p375) target = $region52
      $region51: #{tpu_custom_call.1} parent=11 // pred_region
        _
      $region52: #{tpu_custom_call.1} parent=11 // pred_fallthru
        _
    $region12: #{tpu_custom_call.1} parent=5 // pred_fallthru
      _
    %p378 = scmp.lt.s32.totalorder %s19, 2
    // Predicated region
    $region53: #{tpu_custom_call.1} parent=5 // pred_check
      %p379 = pneg %p378
    $region54: #{tpu_custom_call.1} parent=5 // pred_check_branch
      %381 = sbr.rel (%p379) target = $region56
    $region55: #{tpu_custom_call.1} parent=5 // pred_region
      // Predicated region
      $region57: #{tpu_custom_call.1} parent=55 // pred_check
        %p382 = pneg %p60
      $region58: #{tpu_custom_call.1} parent=55 // pred_check_branch
        %384 = sbr.rel (%p382) target = $region60
      $region59: #{tpu_custom_call.1} parent=55 // pred_region
        %p385 = scmp.lt.s32.totalorder %s19, 1
        %s386 = scalar_select %p385, %s19, 1
        %s387 = scalar_lea.vmem %s1, %s386
      $region60: #{tpu_custom_call.1} parent=55 // pred_fallthru
        _
      // Predicated region
      $region61: #{tpu_custom_call.1} parent=55 // pred_check
        %p388 = pneg %p86
      $region62: #{tpu_custom_call.1} parent=55 // pred_check_branch
        %390 = sbr.rel (%p388) target = $region64
      $region63: #{tpu_custom_call.1} parent=55 // pred_region
        %p391 = scmp.lt.s32.totalorder %s19, 1
        %s392 = scalar_select %p391, %s19, 1
        %s393 = scalar_lea.vmem %s2, %s392
      $region64: #{tpu_custom_call.1} parent=55 // pred_fallthru
        _
      // Predicated region
      $region65: #{tpu_custom_call.1} parent=55 // pred_check
        %p394 = pneg %p112
      $region66: #{tpu_custom_call.1} parent=55 // pred_check_branch
        %396 = sbr.rel (%p394) target = $region68
      $region67: #{tpu_custom_call.1} parent=55 // pred_region
        %p397 = scmp.lt.s32.totalorder %s19, 1
        %s398 = scalar_select %p397, %s19, 1
        %s399 = smul.addr %s398, 8
        %s400 = scalar_lea.vmem %s3, %s399
      $region68: #{tpu_custom_call.1} parent=55 // pred_fallthru
        _
    $region56: #{tpu_custom_call.1} parent=5 // pred_fallthru
      _
    %p401 = scmp.le.s32.totalorder 1, %s19
    %p402 = scmp.lt.s32.totalorder %s19, 3
    %p403 = pnand %p401, %p402
    %p404 = pneg %p403
    // Predicated region
    $region69: #{tpu_custom_call.1} parent=5 // pred_check
      _
    $region70: #{tpu_custom_call.1} parent=5 // pred_check_branch
      %406 = sbr.rel (%p403) target = $region72
    $region71: #{tpu_custom_call.1} parent=5 // pred_region
      %s407 = ssub.s32 %s19, 1
      %p408 = pneg %p40
      %p409 = pneg %p37
      %p410 = scmp.lt.s32.totalorder %s24, 1
      %s411 = scalar_select %p410, %s24, 1
      %s412 = scalar_lea.vmem %s1, %s411
      %p413 = pneg %p66
      %p414 = pneg %p63
      %p415 = scmp.lt.s32.totalorder %s24, 1
      %s416 = scalar_select %p415, %s24, 1
      %s417 = scalar_lea.vmem %s2, %s416
      %p418 = pneg %p92
      %p419 = pneg %p89
      %p420 = scmp.lt.s32.totalorder %s24, 1
      %s421 = scalar_select %p420, %s24, 1
      %s422 = smul.addr %s421, 8
      %s423 = scalar_lea.vmem %s3, %s422
      %p424 = pneg %p118
      %p425 = pneg %p115
      %p426 = pneg %p139
      %p427 = pneg %p136
      %p428 = pneg %p160
      %p429 = pneg %p157
      %p430 = pneg %p181
      %p431 = pneg %p178
      %p432 = pneg %p202
      %p433 = pneg %p199
      %p434 = pneg %p223
      %p435 = pneg %p220
      %p436 = pneg %p244
      %p437 = pneg %p241
      %p438 = pneg %p265
      %p439 = pneg %p262
      %p440 = pneg %p286
      %p441 = pneg %p283
      %p442 = pneg %p307
      %p443 = pneg %p304
      %p444 = pneg %p333
      %p445 = pneg %p330
      %p446 = scmp.lt.s32.totalorder %s24, 1
      %s447 = scalar_select %p446, %s24, 1
      %s448 = smul.addr %s447, 8
      %s449 = scalar_lea.vmem %s13, %s448
      %p450 = scmp.lt.s32.totalorder %s24, 1
      %s451 = scalar_select %p450, %s24, 1
      %s452 = scalar_lea.vmem %s1, %s451
      %p453 = scmp.lt.s32.totalorder %s24, 1
      %s454 = scalar_select %p453, %s24, 1
      %s455 = scalar_lea.vmem %s2, %s454
      %p456 = scmp.lt.s32.totalorder %s24, 1
      %s457 = scalar_select %p456, %s24, 1
      %s458 = smul.addr %s457, 8
      %s459 = scalar_lea.vmem %s3, %s458
      %p460 = scmp.lt.s32.totalorder %s24, 1
      %s461 = scalar_select %p460, %s24, 1
      %s462 = smul.addr %s461, 8
      %s463 = scalar_lea.vmem %s13, %s462
      %v464 = vld [vmem:[%s452] sm:$0x1]
      %v465 = vmul.f32 %v464, 100.0
      %v466 = vld [vmem:[%s0] sm:$0x1]
      %468 = vset.pattern.permute.xlu0 0
      %469 = vperm.xlu0 %468, %v465
      %v470 = vpop.permute.xlu0 %469
      %v472 = vlaneseq
      %v473 = vshrl.u32 %v472, 7
      %v474 = vsub.s32 0, %v473
      %v475 = vrot.slane %v470, %v474
      %v476 = vrcp.pop %v466
      %v477 = vmul.f32 %v475, %v476
      %v478 = vlaneseq
      %v479 = vand.u32 %v478, 127
      %vm480 = vcmp.lt.s32.totalorder %v479, 32
      %v481 = vand.u32 2147483647, %v477
      %vm482 = vcmp.le.f32.partialorder %v481, 0.7853982
      %vm483 = vcmp.lt.s32.totalorder %v477, 0
      %v484 = vand.u32 %v477, 2139095040
      %v485 = vshrl.u32 %v484, 23
      %v486 = vsub.s32 %v485, 127
      %v487 = vand.u32 2147483647, %v477
      %v488 = vand.u32 %v487, 8388607
      %v489 = vor.u32 %v488, 8388608
      %v490 = vsub.s32 0, %v489
      %v491 = vadd.s32 %v486, 1
      %vm492 = vcmp.gt.s32.totalorder %v491, 0
      %v493 = vsel %vm492, %v491, 0
      %v494 = vshrl.u32 %v493, 5
      %v495 = vand.u32 %v493, 31
      %v496 = vsub.s32 32, %v495
      %v497 = vshrl.u32 683565275, %v496
      %v498 = vshll.u32 683565275, %v495
      %v499 = vshrl.u32 2475754826, %v496
      %v500 = vor.u32 %v498, %v499
      %v501 = vshll.u32 2475754826, %v495
      %v502 = vshrl.u32 2131351028, %v496
      %v503 = vor.u32 %v501, %v502
      %v504 = vshll.u32 2131351028, %v495
      %v505 = vshrl.u32 2102212464, %v496
      %v506 = vor.u32 %v504, %v505
      %v507 = vshll.u32 2102212464, %v495
      %v508 = vshrl.u32 920167782, %v496
      %v509 = vor.u32 %v507, %v508
      %v510 = vshll.u32 920167782, %v495
      %v511 = vshrl.u32 1326507024, %v496
      %v512 = vor.u32 %v510, %v511
      %vm513 = vcmp.lt.s32.totalorder %v494, 1
      %vm514 = vcmp.lt.s32.totalorder %v494, 2
      %vm515 = vcmp.lt.s32.totalorder %v494, 3
      %vm516 = vcmp.lt.s32.totalorder %v494, 4
      %v517 = vsel %vm513, %v497, %v500
      %v518 = vsel %vm516, %v506, 2102212464
      %v519 = vsel %vm515, %v503, %v518
      %v520 = vsel %vm514, %v517, %v519
      %v521 = vsel %vm513, %v500, %v503
      %v522 = vsel %vm516, %v509, 920167782
      %v523 = vsel %vm515, %v506, %v522
      %v524 = vsel %vm514, %v521, %v523
      %v525 = vsel %vm513, %v503, %v506
      %v526 = vsel %vm516, %v512, 1326507024
      %v527 = vsel %vm515, %v509, %v526
      %v528 = vsel %vm514, %v525, %v527
      %v529 = vshll.u32 %v489, 8
      %v530 = vmul.u32.u64.compose %v529, %v528
      %v531 = vextract.low.u32 %v530
      %v532 = vextract.high.u32 %v530
      %v533 = vmul.u32.u64.compose %v529, %v524
      %v534 = vextract.low.u32 %v533
      %v535 = vextract.high.u32 %v533
      %v536 = vmul.u32 %v529, %v520
      %v537 = vadd.s32 %v532, %v534
      %vm538 = vc.u32 %v532, %v534
      %v539 = vadd.s32 %v535, 1
      %v540 = vsel %vm538, %v539, %v535
      %v541 = vadd.s32 %v536, %v540
      %v542 = vadd.s32 %v541, 536870912
      %v543 = vshrl.u32 %v542, 30
      %v544 = vshll.u32 %v543, 30
      %v545 = vsub.s32 %v541, %v544
      %vm546 = vcmp.lt.s32.totalorder %v545, 0
      %v547 = vsub.s32 0, %v545
      %v548 = vsel %vm546, %v547, %v545
      %v549 = vclz %v548
      %v550 = vsub.s32 %v549, 2
      %vm551 = vcmp.gt.s32.totalorder 0, %v550
      %v552 = vsel %vm551, 0, %v550
      %v553 = vsub.s32 32, %v552
      %v554 = vshll.u32 %v545, %v552
      %v555 = vshrl.u32 %v537, %v553
      %v556 = vor.u32 %v554, %v555
      %v557 = vsub.s32 4294967266, %v552
      %v558 = vadd.s32 %v557, 127
      %v559 = vshll.u32 %v558, 23
      %v560 = vor.u32 4788187, %v559
      %v561 = vand.u32 2147483647, %v560
      %v563 = vcvt.s32.f32 %v556
      %v564 = vmul.f32 %v563, %v561
      %v565 = vxor.u32 %v564, 2147483648
      %v566 = vsel %vm483, %v565, %v564
      %v567 = vsub.s32 4, %v543
      %v568 = vsel %vm483, %v567, %v543
      %v569 = vsel %vm482, %v477, %v566
      %v570 = vsel %vm482, 0, %v568
      %v571 = vcosq.f32.pop %v569
      %v572 = vsinq.f32.pop %v569
      %vm573 = vweird.f32 %v477
      %v574 = vadd.s32 %v570, 3
      %v575 = vand.u32 %v574, 3
      %vm576 = vcmp.lt.s32.totalorder %v575, 2
      %vm577 = vcmp.eq.s32.totalorder %v575, 0
      %v578 = vxor.u32 %v572, 2147483648
      %v579 = vsel %vm577, %v571, %v578
      %vm580 = vcmp.eq.s32.totalorder %v575, 2
      %v581 = vxor.u32 %v571, 2147483648
      %v582 = vsel %vm580, %v581, %v572
      %v583 = vsel %vm576, %v579, %v582
      %v584 = vsel %vm573, nan, %v583
      %v585 = vand.u32 2147483647, %v477
      %vm586 = vcmp.le.f32.partialorder %v585, 0.7853982
      %vm587 = vcmp.lt.s32.totalorder %v477, 0
      %v588 = vand.u32 %v477, 2139095040
      %v589 = vshrl.u32 %v588, 23
      %v590 = vsub.s32 %v589, 127
      %v591 = vand.u32 2147483647, %v477
      %v592 = vand.u32 %v591, 8388607
      %v593 = vor.u32 %v592, 8388608
      %v594 = vsub.s32 0, %v593
      %v595 = vadd.s32 %v590, 1
      %vm596 = vcmp.gt.s32.totalorder %v595, 0
      %v597 = vsel %vm596, %v595, 0
      %v598 = vshrl.u32 %v597, 5
      %v599 = vand.u32 %v597, 31
      %v600 = vsub.s32 32, %v599
      %v601 = vshrl.u32 683565275, %v600
      %v602 = vshll.u32 683565275, %v599
      %v603 = vshrl.u32 2475754826, %v600
      %v604 = vor.u32 %v602, %v603
      %v605 = vshll.u32 2475754826, %v599
      %v606 = vshrl.u32 2131351028, %v600
      %v607 = vor.u32 %v605, %v606
      %v608 = vshll.u32 2131351028, %v599
      %v609 = vshrl.u32 2102212464, %v600
      %v610 = vor.u32 %v608, %v609
      %v611 = vshll.u32 2102212464, %v599
      %v612 = vshrl.u32 920167782, %v600
      %v613 = vor.u32 %v611, %v612
      %v614 = vshll.u32 920167782, %v599
      %v615 = vshrl.u32 1326507024, %v600
      %v616 = vor.u32 %v614, %v615
      %vm617 = vcmp.lt.s32.totalorder %v598, 1
      %vm618 = vcmp.lt.s32.totalorder %v598, 2
      %vm619 = vcmp.lt.s32.totalorder %v598, 3
      %vm620 = vcmp.lt.s32.totalorder %v598, 4
      %v621 = vsel %vm617, %v601, %v604
      %v622 = vsel %vm620, %v610, 2102212464
      %v623 = vsel %vm619, %v607, %v622
      %v624 = vsel %vm618, %v621, %v623
      %v625 = vsel %vm617, %v604, %v607
      %v626 = vsel %vm620, %v613, 920167782
      %v627 = vsel %vm619, %v610, %v626
      %v628 = vsel %vm618, %v625, %v627
      %v629 = vsel %vm617, %v607, %v610
      %v630 = vsel %vm620, %v616, 1326507024
      %v631 = vsel %vm619, %v613, %v630
      %v632 = vsel %vm618, %v629, %v631
      %v633 = vshll.u32 %v593, 8
      %v634 = vmul.u32.u64.compose %v633, %v632
      %v635 = vextract.low.u32 %v634
      %v636 = vextract.high.u32 %v634
      %v637 = vmul.u32.u64.compose %v633, %v628
      %v638 = vextract.low.u32 %v637
      %v639 = vextract.high.u32 %v637
      %v640 = vmul.u32 %v633, %v624
      %v641 = vadd.s32 %v636, %v638
      %vm642 = vc.u32 %v636, %v638
      %v643 = vadd.s32 %v639, 1
      %v644 = vsel %vm642, %v643, %v639
      %v645 = vadd.s32 %v640, %v644
      %v646 = vadd.s32 %v645, 536870912
      %v647 = vshrl.u32 %v646, 30
      %v648 = vshll.u32 %v647, 30
      %v649 = vsub.s32 %v645, %v648
      %vm650 = vcmp.lt.s32.totalorder %v649, 0
      %v651 = vsub.s32 0, %v649
      %v652 = vsel %vm650, %v651, %v649
      %v653 = vclz %v652
      %v654 = vsub.s32 %v653, 2
      %vm655 = vcmp.gt.s32.totalorder 0, %v654
      %v656 = vsel %vm655, 0, %v654
      %v657 = vsub.s32 32, %v656
      %v658 = vshll.u32 %v649, %v656
      %v659 = vshrl.u32 %v641, %v657
      %v660 = vor.u32 %v658, %v659
      %v661 = vsub.s32 4294967266, %v656
      %v662 = vadd.s32 %v661, 127
      %v663 = vshll.u32 %v662, 23
      %v664 = vor.u32 4788187, %v663
      %v665 = vand.u32 2147483647, %v664
      %v667 = vcvt.s32.f32 %v660
      %v668 = vmul.f32 %v667, %v665
      %v669 = vxor.u32 %v668, 2147483648
      %v670 = vsel %vm587, %v669, %v668
      %v671 = vsub.s32 4, %v647
      %v672 = vsel %vm587, %v671, %v647
      %v673 = vsel %vm586, %v477, %v670
      %v674 = vsel %vm586, 0, %v672
      %v675 = vcosq.f32.pop %v673
      %v676 = vsinq.f32.pop %v673
      %vm677 = vweird.f32 %v477
      %v678 = vand.u32 %v674, 3
      %vm679 = vcmp.lt.s32.totalorder %v678, 2
      %vm680 = vcmp.eq.s32.totalorder %v678, 0
      %v681 = vxor.u32 %v676, 2147483648
      %v682 = vsel %vm680, %v675, %v681
      %vm683 = vcmp.eq.s32.totalorder %v678, 2
      %v684 = vxor.u32 %v675, 2147483648
      %v685 = vsel %vm683, %v684, %v676
      %v686 = vsel %vm679, %v682, %v685
      %v687 = vsel %vm677, nan, %v686
      %v688 = vsel %vm480, %v584, %v687
      %v689 = vld [vmem:[%s455] sm:$0x1]
      %v690 = vld [vmem:[%s459] sm:$0x3f]
      %v691 = vld [vmem:[%s9] sm:$0xf]
      %v692 = vlaneseq
      %v693 = vshrl.u32 %v692, 7
      %v694 = vsub.s32 0, %v693
      %v695 = vrot.slane %v688, %v694
      %v696 = vadd.f32 %v690, %v695
      %v697 = vld [vmem:[%s4] sm:$0xff]
      %v698 = vld [vmem:[%s4 + $0x8] sm:$0xff]
      %v699 = vld [vmem:[%s4 + $0x10] sm:$0xff]
      %v700 = vld [vmem:[%s4 + $0x18] sm:$0xff]
      %v701 = vld [vmem:[%s4 + $0x20] sm:$0xff]
      %v702 = vld [vmem:[%s4 + $0x28] sm:$0xff]
      %v703 = vld [vmem:[%s4 + $0x30] sm:$0xff]
      %v704 = vld [vmem:[%s4 + $0x38] sm:$0xff]
      %v705 = vld [vmem:[%s4 + $0x40] sm:$0xff]
      %v706 = vld [vmem:[%s4 + $0x48] sm:$0xff]
      %v707 = vld [vmem:[%s4 + $0x50] sm:$0xff]
      %v708 = vld [vmem:[%s4 + $0x58] sm:$0xff]
      %v709 = vld [vmem:[%s4 + $0x60] sm:$0xff]
      %v710 = vld [vmem:[%s4 + $0x68] sm:$0xff]
      %v711 = vld [vmem:[%s4 + $0x70] sm:$0xff]
      %v712 = vld [vmem:[%s4 + $0x78] sm:$0xff]
      %713 = vmatprep.subr.mxu0 0.0
      %714 = vmatpush1.msra.mxu0 %v697
      %715 = vmatprep.subr.mxu0 0.0
      %716 = vmatpush1.msra.mxu0 %v698
      %717 = vmatprep.subr.mxu0 0.0
      %718 = vmatpush1.msra.mxu0 %v699
      %719 = vmatprep.subr.mxu0 0.0
      %720 = vmatpush1.msra.mxu0 %v700
      %721 = vmatprep.subr.mxu0 0.0
      %722 = vmatpush1.msra.mxu0 %v701
      %723 = vmatprep.subr.mxu0 0.0
      %724 = vmatpush1.msra.mxu0 %v702
      %725 = vmatprep.subr.mxu0 0.0
      %726 = vmatpush1.msra.mxu0 %v703
      %727 = vmatprep.subr.mxu0 0.0
      %728 = vmatpush1.msra.mxu0 %v704
      %729 = vmatprep.subr.mxu0 0.0
      %730 = vmatpush1.msra.mxu0 %v705
      %731 = vmatprep.subr.mxu0 0.0
      %732 = vmatpush1.msra.mxu0 %v706
      %733 = vmatprep.subr.mxu0 0.0
      %734 = vmatpush1.msra.mxu0 %v707
      %735 = vmatprep.subr.mxu0 0.0
      %736 = vmatpush1.msra.mxu0 %v708
      %737 = vmatprep.subr.mxu0 0.0
      %738 = vmatpush1.msra.mxu0 %v709
      %739 = vmatprep.subr.mxu0 0.0
      %740 = vmatpush1.msra.mxu0 %v710
      %741 = vmatprep.subr.mxu0 0.0
      %742 = vmatpush1.msra.mxu0 %v711
      %743 = vmatprep.subr.mxu0 0.0
      %744 = vmatpush1.msra.mxu0 %v712
      %745 = vmatprep.subr.mxu0 0.0
      %746 = vmatpush1.msra.mxu0 0.0
      %747 = vmatprep.subr.mxu0 0.0
      %748 = vmatpush1.msra.mxu0 0.0
      %749 = vmatprep.subr.mxu0 0.0
      %750 = vmatpush1.msra.mxu0 0.0
      %751 = vmatprep.subr.mxu0 0.0
      %752 = vmatpush1.msra.mxu0 0.0
      %753 = vmatprep.subr.mxu0 0.0
      %754 = vmatpush1.msra.mxu0 0.0
      %755 = vmatprep.subr.mxu0 0.0
      %756 = vmatpush1.msra.mxu0 0.0
      %757 = vmatprep.subr.mxu0 0.0
      %758 = vmatpush1.msra.mxu0 0.0
      %759 = vmatprep.subr.mxu0 0.0
      %760 = vmatpush1.msra.mxu0 0.0
      %761 = vmatprep.subr.mxu0 0.0
      %762 = vmatpush1.msra.mxu0 0.0
      %763 = vmatprep.subr.mxu0 0.0
      %764 = vmatpush1.msra.mxu0 0.0
      %765 = vmatprep.subr.mxu0 0.0
      %766 = vmatpush1.msra.mxu0 0.0
      %767 = vmatprep.subr.mxu0 0.0
      %768 = vmatpush1.msra.mxu0 0.0
      %769 = vmatprep.subr.mxu0 0.0
      %770 = vmatpush1.msra.mxu0 0.0
      %771 = vmatprep.subr.mxu0 0.0
      %772 = vmatpush1.msra.mxu0 0.0
      %773 = vmatprep.subr.mxu0 0.0
      %774 = vmatpush1.msra.mxu0 0.0
      %775 = vmatprep.subr.mxu0 0.0
      %776 = vmatpush1.msra.mxu0 0.0
      %777 = vmatprep.mubr.f32.mxu0 0.0
      %778 = vmatmul.mubr.f32.gmra.mrb[0].mxu0 %v689
      %v779 = vpop.f32.mrb[0].mxu0
      %v780 = vadd.f32 %v691, %v779
      %v781 = vpop.f32.mrb[0].mxu0
      %782 = vdwg.mxu0
      %v783 = vlaneseq
      %v784 = vshrl.u32 %v783, 7
      %v785 = vsub.s32 0, %v784
      %v786 = vrot.slane %v780, %v785
      %v787 = vadd.f32 %v696, %v786
      %vm788 = vcmask 521216
      %v789 = vsel %vm788, %v787, 0.0
      %790 = vadd.xlane.f32.xlu0 %v789
      %v791 = vpop.xlane.xlu0 %790
      %v792 = vrcp.pop 64.0
      %v793 = vmul.f32 %v791, %v792
      %v794 = vsub.f32 %v787, %v793
      %v795 = vmul.f32 %v794, %v794
      %v796 = vsel %vm788, %v795, 0.0
      %797 = vadd.xlane.f32.xlu0 %v796
      %v798 = vpop.xlane.xlu0 %797
      %v799 = vmul.f32 %v798, %v792
      %v800 = vadd.f32 %v799, 1e-05
      %v801 = vrsqrt.pop %v800
      %v802 = vmul.f32 %v794, %v801
      %v803 = vlaneseq
      %v804 = vshrl.u32 %v803, 7
      %v805 = vsub.s32 1, %v804
      %v806 = vrot.slane %v691, %v805
      %v807 = vmul.f32 %v802, %v806
      %v808 = vlaneseq
      %v809 = vshrl.u32 %v808, 7
      %v810 = vsub.s32 2, %v809
      %v811 = vrot.slane %v691, %v810
      %v812 = vadd.f32 %v807, %v811
      %v813 = vld [vmem:[%s5] sm:$0xff]
      %v814 = vld [vmem:[%s5 + $0x8] sm:$0xff]
      %v815 = vld [vmem:[%s5 + $0x10] sm:$0xff]
      %v816 = vld [vmem:[%s5 + $0x18] sm:$0xff]
      %v817 = vld [vmem:[%s5 + $0x20] sm:$0xff]
      %v818 = vld [vmem:[%s5 + $0x28] sm:$0xff]
      %v819 = vld [vmem:[%s5 + $0x30] sm:$0xff]
      %v820 = vld [vmem:[%s5 + $0x38] sm:$0xff]
      %v821 = vld [vmem:[%s5 + $0x40] sm:$0xff]
      %v822 = vld [vmem:[%s5 + $0x48] sm:$0xff]
      %v823 = vld [vmem:[%s5 + $0x50] sm:$0xff]
      %v824 = vld [vmem:[%s5 + $0x58] sm:$0xff]
      %v825 = vld [vmem:[%s5 + $0x60] sm:$0xff]
      %v826 = vld [vmem:[%s5 + $0x68] sm:$0xff]
      %v827 = vld [vmem:[%s5 + $0x70] sm:$0xff]
      %v828 = vld [vmem:[%s5 + $0x78] sm:$0xff]
      %v829 = vld [vmem:[%s10] sm:$0x3]
      %v831 = vlaneseq
      %v832 = vshrl.u32 %v831, 7
      %v833 = vsub.s32 0, %v832
      %v834 = vrot.slane %v829, %v833
      %v835 = vlaneseq
      %v836 = vshrl.u32 %v835, 7
      %v837 = vsub.s32 1, %v836
      %v838 = vrot.slane %v829, %v837
      %vm841 = vcmask 523264
      %v843 = vsel %vm841, %v812, 0
      %845 = vmatprep.subr.mxu0 %v814
      %846 = vmatpush1.msra.mxu0 %v813
      %847 = vmatprep.subr.mxu0 %v816
      %848 = vmatpush1.msra.mxu0 %v815
      %849 = vmatprep.subr.mxu0 %v818
      %850 = vmatpush1.msra.mxu0 %v817
      %851 = vmatprep.subr.mxu0 %v820
      %852 = vmatpush1.msra.mxu0 %v819
      %853 = vmatprep.subr.mxu0 %v822
      %854 = vmatpush1.msra.mxu0 %v821
      %855 = vmatprep.subr.mxu0 %v824
      %856 = vmatpush1.msra.mxu0 %v823
      %857 = vmatprep.subr.mxu0 %v826
      %858 = vmatpush1.msra.mxu0 %v825
      %859 = vmatprep.subr.mxu0 %v828
      %860 = vmatpush1.msra.mxu0 %v827
      %861 = vmatprep.subr.mxu0 0.0
      %862 = vmatpush1.msra.mxu0 0.0
      %863 = vmatprep.subr.mxu0 0.0
      %864 = vmatpush1.msra.mxu0 0.0
      %865 = vmatprep.subr.mxu0 0.0
      %866 = vmatpush1.msra.mxu0 0.0
      %867 = vmatprep.subr.mxu0 0.0
      %868 = vmatpush1.msra.mxu0 0.0
      %869 = vmatprep.subr.mxu0 0.0
      %870 = vmatpush1.msra.mxu0 0.0
      %871 = vmatprep.subr.mxu0 0.0
      %872 = vmatpush1.msra.mxu0 0.0
      %873 = vmatprep.subr.mxu0 0.0
      %874 = vmatpush1.msra.mxu0 0.0
      %875 = vmatprep.subr.mxu0 0.0
      %876 = vmatpush1.msra.mxu0 0.0
      %877 = vmatprep.subr.mxu0 0.0
      %878 = vmatpush1.msra.mxu0 0.0
      %879 = vmatprep.subr.mxu0 0.0
      %880 = vmatpush1.msra.mxu0 0.0
      %881 = vmatprep.subr.mxu0 0.0
      %882 = vmatpush1.msra.mxu0 0.0
      %883 = vmatprep.subr.mxu0 0.0
      %884 = vmatpush1.msra.mxu0 0.0
      %885 = vmatprep.subr.mxu0 0.0
      %886 = vmatpush1.msra.mxu0 0.0
      %887 = vmatprep.subr.mxu0 0.0
      %888 = vmatpush1.msra.mxu0 0.0
      %889 = vmatprep.subr.mxu0 0.0
      %890 = vmatpush1.msra.mxu0 0.0
      %891 = vmatprep.subr.mxu0 0.0
      %892 = vmatpush1.msra.mxu0 0.0
      %893 = vmatprep.subr.mxu0 0.0
      %894 = vmatpush1.msra.mxu0 0.0
      %895 = vmatprep.subr.mxu0 0.0
      %896 = vmatpush1.msra.mxu0 0.0
      %897 = vmatprep.subr.mxu0 0.0
      %898 = vmatpush1.msra.mxu0 0.0
      %899 = vmatprep.subr.mxu0 0.0
      %900 = vmatpush1.msra.mxu0 0.0
      %901 = vmatprep.subr.mxu0 0.0
      %902 = vmatpush1.msra.mxu0 0.0
      %903 = vmatprep.subr.mxu0 0.0
      %904 = vmatpush1.msra.mxu0 0.0
      %905 = vmatprep.subr.mxu0 0.0
      %906 = vmatpush1.msra.mxu0 0.0
      %907 = vmatprep.subr.mxu0 0.0
      %908 = vmatpush1.msra.mxu0 0.0
      %909 = vmatprep.mubr.f32.mxu0 0.0
      %910 = vmatmul.mubr.f32.gmra.mrb[0].mxu0 %v843
      %v911 = vpop.f32.mrb[0].mxu0
      %v912 = vadd.f32 %v834, %v911
      %v913 = vpop.f32.mrb[0].mxu0
      %v914 = vadd.f32 %v838, %v913
      %915 = vdwg.mxu0
      %v916 = vmax.f32 %v912, 0.0
      %v917 = vmax.f32 %v914, 0.0
      %v918 = vld [vmem:[%s6] sm:$0xff]
      %v919 = vld [vmem:[%s6 + $0x8] sm:$0xff]
      %v920 = vld [vmem:[%s6 + $0x10] sm:$0xff]
      %v921 = vld [vmem:[%s6 + $0x18] sm:$0xff]
      %v922 = vld [vmem:[%s6 + $0x20] sm:$0xff]
      %v923 = vld [vmem:[%s6 + $0x28] sm:$0xff]
      %v924 = vld [vmem:[%s6 + $0x30] sm:$0xff]
      %v925 = vld [vmem:[%s6 + $0x38] sm:$0xff]
      %v926 = vld [vmem:[%s6 + $0x40] sm:$0xff]
      %v927 = vld [vmem:[%s6 + $0x48] sm:$0xff]
      %v928 = vld [vmem:[%s6 + $0x50] sm:$0xff]
      %v929 = vld [vmem:[%s6 + $0x58] sm:$0xff]
      %v930 = vld [vmem:[%s6 + $0x60] sm:$0xff]
      %v931 = vld [vmem:[%s6 + $0x68] sm:$0xff]
      %v932 = vld [vmem:[%s6 + $0x70] sm:$0xff]
      %v933 = vld [vmem:[%s6 + $0x78] sm:$0xff]
      %v934 = vld [vmem:[%s6 + $0x80] sm:$0xff]
      %v935 = vld [vmem:[%s6 + $0x88] sm:$0xff]
      %v936 = vld [vmem:[%s6 + $0x90] sm:$0xff]
      %v937 = vld [vmem:[%s6 + $0x98] sm:$0xff]
      %v938 = vld [vmem:[%s6 + $0xa0] sm:$0xff]
      %v939 = vld [vmem:[%s6 + $0xa8] sm:$0xff]
      %v940 = vld [vmem:[%s6 + $0xb0] sm:$0xff]
      %v941 = vld [vmem:[%s6 + $0xb8] sm:$0xff]
      %v942 = vld [vmem:[%s6 + $0xc0] sm:$0xff]
      %v943 = vld [vmem:[%s6 + $0xc8] sm:$0xff]
      %v944 = vld [vmem:[%s6 + $0xd0] sm:$0xff]
      %v945 = vld [vmem:[%s6 + $0xd8] sm:$0xff]
      %v946 = vld [vmem:[%s6 + $0xe0] sm:$0xff]
      %v947 = vld [vmem:[%s6 + $0xe8] sm:$0xff]
      %v948 = vld [vmem:[%s6 + $0xf0] sm:$0xff]
      %v949 = vld [vmem:[%s6 + $0xf8] sm:$0xff]
      %v950 = vlaneseq
      %v951 = vshrl.u32 %v950, 7
      %v952 = vsub.s32 3, %v951
      %v953 = vrot.slane %v691, %v952
      %954 = vmatprep.subr.mxu0 0.0
      %955 = vmatpush1.msra.mxu0 %v918
      %956 = vmatprep.subr.mxu0 0.0
      %957 = vmatpush1.msra.mxu0 %v919
      %958 = vmatprep.subr.mxu0 0.0
      %959 = vmatpush1.msra.mxu0 %v920
      %960 = vmatprep.subr.mxu0 0.0
      %961 = vmatpush1.msra.mxu0 %v921
      %962 = vmatprep.subr.mxu0 0.0
      %963 = vmatpush1.msra.mxu0 %v922
      %964 = vmatprep.subr.mxu0 0.0
      %965 = vmatpush1.msra.mxu0 %v923
      %966 = vmatprep.subr.mxu0 0.0
      %967 = vmatpush1.msra.mxu0 %v924
      %968 = vmatprep.subr.mxu0 0.0
      %969 = vmatpush1.msra.mxu0 %v925
      %970 = vmatprep.subr.mxu0 0.0
      %971 = vmatpush1.msra.mxu0 %v926
      %972 = vmatprep.subr.mxu0 0.0
      %973 = vmatpush1.msra.mxu0 %v927
      %974 = vmatprep.subr.mxu0 0.0
      %975 = vmatpush1.msra.mxu0 %v928
      %976 = vmatprep.subr.mxu0 0.0
      %977 = vmatpush1.msra.mxu0 %v929
      %978 = vmatprep.subr.mxu0 0.0
      %979 = vmatpush1.msra.mxu0 %v930
      %980 = vmatprep.subr.mxu0 0.0
      %981 = vmatpush1.msra.mxu0 %v931
      %982 = vmatprep.subr.mxu0 0.0
      %983 = vmatpush1.msra.mxu0 %v932
      %984 = vmatprep.subr.mxu0 0.0
      %985 = vmatpush1.msra.mxu0 %v933
      %986 = vmatprep.subr.mxu0 0.0
      %987 = vmatpush1.msra.mxu0 %v934
      %988 = vmatprep.subr.mxu0 0.0
      %989 = vmatpush1.msra.mxu0 %v935
      %990 = vmatprep.subr.mxu0 0.0
      %991 = vmatpush1.msra.mxu0 %v936
      %992 = vmatprep.subr.mxu0 0.0
      %993 = vmatpush1.msra.mxu0 %v937
      %994 = vmatprep.subr.mxu0 0.0
      %995 = vmatpush1.msra.mxu0 %v938
      %996 = vmatprep.subr.mxu0 0.0
      %997 = vmatpush1.msra.mxu0 %v939
      %998 = vmatprep.subr.mxu0 0.0
      %999 = vmatpush1.msra.mxu0 %v940
      %1000 = vmatprep.subr.mxu0 0.0
      %1001 = vmatpush1.msra.mxu0 %v941
      %1002 = vmatprep.subr.mxu0 0.0
      %1003 = vmatpush1.msra.mxu0 %v942
      %1004 = vmatprep.subr.mxu0 0.0
      %1005 = vmatpush1.msra.mxu0 %v943
      %1006 = vmatprep.subr.mxu0 0.0
      %1007 = vmatpush1.msra.mxu0 %v944
      %1008 = vmatprep.subr.mxu0 0.0
      %1009 = vmatpush1.msra.mxu0 %v945
      %1010 = vmatprep.subr.mxu0 0.0
      %1011 = vmatpush1.msra.mxu0 %v946
      %1012 = vmatprep.subr.mxu0 0.0
      %1013 = vmatpush1.msra.mxu0 %v947
      %1014 = vmatprep.subr.mxu0 0.0
      %1015 = vmatpush1.msra.mxu0 %v948
      %1016 = vmatprep.subr.mxu0 0.0
      %1017 = vmatpush1.msra.mxu0 %v949
      %1018 = vmatprep.mubr.f32.mxu0 %v917
      %1019 = vmatmul.mubr.f32.gmra.mrb[0].mxu0 %v916
      %v1020 = vpop.f32.mrb[0].mxu0
      %v1021 = vadd.f32 %v953, %v1020
      %v1022 = vpop.f32.mrb[0].mxu0
      %1023 = vdwg.mxu0
      %v1024 = vadd.f32 %v812, %v1021
      %v1025 = vld [vmem:[%s7] sm:$0xff]
      %v1026 = vld [vmem:[%s7 + $0x8] sm:$0xff]
      %v1027 = vld [vmem:[%s7 + $0x10] sm:$0xff]
      %v1028 = vld [vmem:[%s7 + $0x18] sm:$0xff]
      %v1029 = vld [vmem:[%s7 + $0x20] sm:$0xff]
      %v1030 = vld [vmem:[%s7 + $0x28] sm:$0xff]
      %v1031 = vld [vmem:[%s7 + $0x30] sm:$0xff]
      %v1032 = vld [vmem:[%s7 + $0x38] sm:$0xff]
      %v1033 = vld [vmem:[%s7 + $0x40] sm:$0xff]
      %v1034 = vld [vmem:[%s7 + $0x48] sm:$0xff]
      %v1035 = vld [vmem:[%s7 + $0x50] sm:$0xff]
      %v1036 = vld [vmem:[%s7 + $0x58] sm:$0xff]
      %v1037 = vld [vmem:[%s7 + $0x60] sm:$0xff]
      %v1038 = vld [vmem:[%s7 + $0x68] sm:$0xff]
      %v1039 = vld [vmem:[%s7 + $0x70] sm:$0xff]
      %v1040 = vld [vmem:[%s7 + $0x78] sm:$0xff]
      %v1041 = vld [vmem:[%s7 + $0x80] sm:$0xff]
      %v1042 = vld [vmem:[%s7 + $0x88] sm:$0xff]
      %v1043 = vld [vmem:[%s7 + $0x90] sm:$0xff]
      %v1044 = vld [vmem:[%s7 + $0x98] sm:$0xff]
      %v1045 = vld [vmem:[%s7 + $0xa0] sm:$0xff]
      %v1046 = vld [vmem:[%s7 + $0xa8] sm:$0xff]
      %v1047 = vld [vmem:[%s7 + $0xb0] sm:$0xff]
      %v1048 = vld [vmem:[%s7 + $0xb8] sm:$0xff]
      %v1049 = vld [vmem:[%s7 + $0xc0] sm:$0xff]
      %v1050 = vld [vmem:[%s7 + $0xc8] sm:$0xff]
      %v1051 = vld [vmem:[%s7 + $0xd0] sm:$0xff]
      %v1052 = vld [vmem:[%s7 + $0xd8] sm:$0xff]
      %v1053 = vld [vmem:[%s7 + $0xe0] sm:$0xff]
      %v1054 = vld [vmem:[%s7 + $0xe8] sm:$0xff]
      %v1055 = vld [vmem:[%s7 + $0xf0] sm:$0xff]
      %v1056 = vld [vmem:[%s7 + $0xf8] sm:$0xff]
      %v1057 = vld [vmem:[%s11] sm:$0xff]
      %v1058 = vld [vmem:[%s11 + $0x8] sm:$0xff]
      %v1059 = vld [vmem:[%s11 + $0x10] sm:$0xff]
      %v1060 = vld [vmem:[%s11 + $0x18] sm:$0xff]
      %v1061 = vld [vmem:[%s11 + $0x20] sm:$0xff]
      %v1062 = vld [vmem:[%s11 + $0x28] sm:$0xff]
      %v1063 = vld [vmem:[%s11 + $0x30] sm:$0xff]
      %v1064 = vld [vmem:[%s11 + $0x38] sm:$0xff]
      %v1065 = vld [vmem:[%s11 + $0x40] sm:$0xff]
      %v1066 = vld [vmem:[%s11 + $0x48] sm:$0xff]
      %v1067 = vld [vmem:[%s11 + $0x50] sm:$0xff]
      %v1068 = vld [vmem:[%s11 + $0x58] sm:$0xff]
      %v1069 = vld [vmem:[%s11 + $0x60] sm:$0xff]
      %v1070 = vld [vmem:[%s11 + $0x68] sm:$0xff]
      %v1071 = vld [vmem:[%s11 + $0x70] sm:$0xff]
      %v1072 = vld [vmem:[%s11 + $0x78] sm:$0xff]
      %v1073 = vld [vmem:[%s11 + $0x80] sm:$0xff]
      %v1074 = vld [vmem:[%s11 + $0x88] sm:$0xff]
      %v1075 = vld [vmem:[%s11 + $0x90] sm:$0xff]
      %v1076 = vld [vmem:[%s11 + $0x98] sm:$0xff]
      %v1077 = vld [vmem:[%s11 + $0xa0] sm:$0xff]
      %v1078 = vld [vmem:[%s11 + $0xa8] sm:$0xff]
      %v1079 = vld [vmem:[%s11 + $0xb0] sm:$0xff]
      %v1080 = vld [vmem:[%s11 + $0xb8] sm:$0xff]
      %v1081 = vld [vmem:[%s11 + $0xc0] sm:$0xff]
      %v1082 = vld [vmem:[%s11 + $0xc8] sm:$0xff]
      %v1083 = vld [vmem:[%s11 + $0xd0] sm:$0xff]
      %v1084 = vld [vmem:[%s11 + $0xd8] sm:$0xff]
      %v1085 = vld [vmem:[%s11 + $0xe0] sm:$0xff]
      %v1086 = vld [vmem:[%s11 + $0xe8] sm:$0xff]
      %v1087 = vld [vmem:[%s11 + $0xf0] sm:$0xff]
      %v1088 = vld [vmem:[%s11 + $0xf8] sm:$0xff]
      %1090 = vset.pattern.permute.xlu0 0
      %1091 = vperm.xlu0 %1090, %v1057
      %v1092 = vpop.permute.xlu0 %1091
      %1095 = vset.pattern.permute.xlu0 0
      %1096 = vperm.xlu0 %1095, %v1058
      %v1097 = vpop.permute.xlu0 %1096
      %1100 = vset.pattern.permute.xlu0 0
      %1101 = vperm.xlu0 %1100, %v1059
      %v1102 = vpop.permute.xlu0 %1101
      %1105 = vset.pattern.permute.xlu0 0
      %1106 = vperm.xlu0 %1105, %v1060
      %v1107 = vpop.permute.xlu0 %1106
      %1110 = vset.pattern.permute.xlu0 0
      %1111 = vperm.xlu0 %1110, %v1061
      %v1112 = vpop.permute.xlu0 %1111
      %1115 = vset.pattern.permute.xlu0 0
      %1116 = vperm.xlu0 %1115, %v1062
      %v1117 = vpop.permute.xlu0 %1116
      %1120 = vset.pattern.permute.xlu0 0
      %1121 = vperm.xlu0 %1120, %v1063
      %v1122 = vpop.permute.xlu0 %1121
      %1125 = vset.pattern.permute.xlu0 0
      %1126 = vperm.xlu0 %1125, %v1064
      %v1127 = vpop.permute.xlu0 %1126
      %1130 = vset.pattern.permute.xlu0 0
      %1131 = vperm.xlu0 %1130, %v1065
      %v1132 = vpop.permute.xlu0 %1131
      %1135 = vset.pattern.permute.xlu0 0
      %1136 = vperm.xlu0 %1135, %v1066
      %v1137 = vpop.permute.xlu0 %1136
      %1140 = vset.pattern.permute.xlu0 0
      %1141 = vperm.xlu0 %1140, %v1067
      %v1142 = vpop.permute.xlu0 %1141
      %1145 = vset.pattern.permute.xlu0 0
      %1146 = vperm.xlu0 %1145, %v1068
      %v1147 = vpop.permute.xlu0 %1146
      %1150 = vset.pattern.permute.xlu0 0
      %1151 = vperm.xlu0 %1150, %v1069
      %v1152 = vpop.permute.xlu0 %1151
      %1155 = vset.pattern.permute.xlu0 0
      %1156 = vperm.xlu0 %1155, %v1070
      %v1157 = vpop.permute.xlu0 %1156
      %1160 = vset.pattern.permute.xlu0 0
      %1161 = vperm.xlu0 %1160, %v1071
      %v1162 = vpop.permute.xlu0 %1161
      %1165 = vset.pattern.permute.xlu0 0
      %1166 = vperm.xlu0 %1165, %v1072
      %v1167 = vpop.permute.xlu0 %1166
      %1170 = vset.pattern.permute.xlu0 0
      %1171 = vperm.xlu0 %1170, %v1073
      %v1172 = vpop.permute.xlu0 %1171
      %1175 = vset.pattern.permute.xlu0 0
      %1176 = vperm.xlu0 %1175, %v1074
      %v1177 = vpop.permute.xlu0 %1176
      %1180 = vset.pattern.permute.xlu0 0
      %1181 = vperm.xlu0 %1180, %v1075
      %v1182 = vpop.permute.xlu0 %1181
      %1185 = vset.pattern.permute.xlu0 0
      %1186 = vperm.xlu0 %1185, %v1076
      %v1187 = vpop.permute.xlu0 %1186
      %1190 = vset.pattern.permute.xlu0 0
      %1191 = vperm.xlu0 %1190, %v1077
      %v1192 = vpop.permute.xlu0 %1191
      %1195 = vset.pattern.permute.xlu0 0
      %1196 = vperm.xlu0 %1195, %v1078
      %v1197 = vpop.permute.xlu0 %1196
      %1200 = vset.pattern.permute.xlu0 0
      %1201 = vperm.xlu0 %1200, %v1079
      %v1202 = vpop.permute.xlu0 %1201
      %1205 = vset.pattern.permute.xlu0 0
      %1206 = vperm.xlu0 %1205, %v1080
      %v1207 = vpop.permute.xlu0 %1206
      %1210 = vset.pattern.permute.xlu0 0
      %1211 = vperm.xlu0 %1210, %v1081
      %v1212 = vpop.permute.xlu0 %1211
      %1215 = vset.pattern.permute.xlu0 0
      %1216 = vperm.xlu0 %1215, %v1082
      %v1217 = vpop.permute.xlu0 %1216
      %1220 = vset.pattern.permute.xlu0 0
      %1221 = vperm.xlu0 %1220, %v1083
      %v1222 = vpop.permute.xlu0 %1221
      %1225 = vset.pattern.permute.xlu0 0
      %1226 = vperm.xlu0 %1225, %v1084
      %v1227 = vpop.permute.xlu0 %1226
      %1230 = vset.pattern.permute.xlu0 0
      %1231 = vperm.xlu0 %1230, %v1085
      %v1232 = vpop.permute.xlu0 %1231
      %1235 = vset.pattern.permute.xlu0 0
      %1236 = vperm.xlu0 %1235, %v1086
      %v1237 = vpop.permute.xlu0 %1236
      %1240 = vset.pattern.permute.xlu0 0
      %1241 = vperm.xlu0 %1240, %v1087
      %v1242 = vpop.permute.xlu0 %1241
      %1245 = vset.pattern.permute.xlu0 0
      %1246 = vperm.xlu0 %1245, %v1088
      %v1247 = vpop.permute.xlu0 %1246
      %vm1249 = vcmask 48128
      %v1251 = vsel %vm1249, %v1025, 0
      %v1254 = vsel %vm1249, %v1026, 0
      %v1257 = vsel %vm1249, %v1027, 0
      %v1260 = vsel %vm1249, %v1028, 0
      %v1263 = vsel %vm1249, %v1029, 0
      %v1266 = vsel %vm1249, %v1030, 0
      %v1269 = vsel %vm1249, %v1031, 0
      %v1272 = vsel %vm1249, %v1032, 0
      %v1275 = vsel %vm1249, %v1033, 0
      %v1278 = vsel %vm1249, %v1034, 0
      %v1281 = vsel %vm1249, %v1035, 0
      %v1284 = vsel %vm1249, %v1036, 0
      %v1287 = vsel %vm1249, %v1037, 0
      %v1290 = vsel %vm1249, %v1038, 0
      %v1293 = vsel %vm1249, %v1039, 0
      %v1296 = vsel %vm1249, %v1040, 0
      %v1299 = vsel %vm1249, %v1041, 0
      %v1302 = vsel %vm1249, %v1042, 0
      %v1305 = vsel %vm1249, %v1043, 0
      %v1308 = vsel %vm1249, %v1044, 0
      %v1311 = vsel %vm1249, %v1045, 0
      %v1314 = vsel %vm1249, %v1046, 0
      %v1317 = vsel %vm1249, %v1047, 0
      %v1320 = vsel %vm1249, %v1048, 0
      %v1323 = vsel %vm1249, %v1049, 0
      %v1326 = vsel %vm1249, %v1050, 0
      %v1329 = vsel %vm1249, %v1051, 0
      %v1332 = vsel %vm1249, %v1052, 0
      %v1335 = vsel %vm1249, %v1053, 0
      %v1338 = vsel %vm1249, %v1054, 0
      %v1341 = vsel %vm1249, %v1055, 0
      %v1344 = vsel %vm1249, %v1056, 0
      %vm1346 = vcmask 1045504
      %v1348 = vsel %vm1346, %v1024, 0
      %1350 = vmatprep.subr.mxu0 0.0
      %1351 = vmatpush1.msra.mxu0 %v1348
      %1352 = vmatprep.subr.mxu0 0.0
      %1353 = vmatpush1.msra.mxu0 0.0
      %1354 = vmatprep.subr.mxu0 0.0
      %1355 = vmatpush1.msra.mxu0 0.0
      %1356 = vmatprep.subr.mxu0 0.0
      %1357 = vmatpush1.msra.mxu0 0.0
      %1358 = vmatprep.subr.mxu0 0.0
      %1359 = vmatpush1.msra.mxu0 0.0
      %1360 = vmatprep.subr.mxu0 0.0
      %1361 = vmatpush1.msra.mxu0 0.0
      %1362 = vmatprep.subr.mxu0 0.0
      %1363 = vmatpush1.msra.mxu0 0.0
      %1364 = vmatprep.subr.mxu0 0.0
      %1365 = vmatpush1.msra.mxu0 0.0
      %1366 = vmatprep.subr.mxu0 0.0
      %1367 = vmatpush1.msra.mxu0 0.0
      %1368 = vmatprep.subr.mxu0 0.0
      %1369 = vmatpush1.msra.mxu0 0.0
      %1370 = vmatprep.subr.mxu0 0.0
      %1371 = vmatpush1.msra.mxu0 0.0
      %1372 = vmatprep.subr.mxu0 0.0
      %1373 = vmatpush1.msra.mxu0 0.0
      %1374 = vmatprep.subr.mxu0 0.0
      %1375 = vmatpush1.msra.mxu0 0.0
      %1376 = vmatprep.subr.mxu0 0.0
      %1377 = vmatpush1.msra.mxu0 0.0
      %1378 = vmatprep.subr.mxu0 0.0
      %1379 = vmatpush1.msra.mxu0 0.0
      %1380 = vmatprep.subr.mxu0 0.0
      %1381 = vmatpush1.msra.mxu0 0.0
      %1382 = vmatprep.subr.mxu0 0.0
      %1383 = vmatpush1.msra.mxu0 0.0
      %1384 = vmatprep.subr.mxu0 0.0
      %1385 = vmatpush1.msra.mxu0 0.0
      %1386 = vmatprep.subr.mxu0 0.0
      %1387 = vmatpush1.msra.mxu0 0.0
      %1388 = vmatprep.subr.mxu0 0.0
      %1389 = vmatpush1.msra.mxu0 0.0
      %1390 = vmatprep.subr.mxu0 0.0
      %1391 = vmatpush1.msra.mxu0 0.0
      %1392 = vmatprep.subr.mxu0 0.0
      %1393 = vmatpush1.msra.mxu0 0.0
      %1394 = vmatprep.subr.mxu0 0.0
      %1395 = vmatpush1.msra.mxu0 0.0
      %1396 = vmatprep.subr.mxu0 0.0
      %1397 = vmatpush1.msra.mxu0 0.0
      %1398 = vmatprep.subr.mxu0 0.0
      %1399 = vmatpush1.msra.mxu0 0.0
      %1400 = vmatprep.subr.mxu0 0.0
      %1401 = vmatpush1.msra.mxu0 0.0
      %1402 = vmatprep.subr.mxu0 0.0
      %1403 = vmatpush1.msra.mxu0 0.0
      %1404 = vmatprep.subr.mxu0 0.0
      %1405 = vmatpush1.msra.mxu0 0.0
      %1406 = vmatprep.subr.mxu0 0.0
      %1407 = vmatpush1.msra.mxu0 0.0
      %1408 = vmatprep.subr.mxu0 0.0
      %1409 = vmatpush1.msra.mxu0 0.0
      %1410 = vmatprep.subr.mxu0 0.0
      %1411 = vmatpush1.msra.mxu0 0.0
      %1412 = vmatprep.subr.mxu0 0.0
      %1413 = vmatpush1.msra.mxu0 0.0
      %1414 = vmatprep.mubr.f32.mxu0 0.0
      %1415 = vmatmul.mubr.f32.gmra.mrb[0].mxu0 %v1251
      %v1416 = vpop.f32.mrb[0].mxu0
      %v1417 = vadd.f32 %v1092, %v1416
      %v1418 = vpop.f32.mrb[0].mxu0
      %1419 = vmatprep.mubr.f32.mxu0 0.0
      %1420 = vmatmul.mubr.f32.gmra.mrb[0].mxu0 %v1254
      %v1421 = vpop.f32.mrb[0].mxu0
      %v1422 = vadd.f32 %v1097, %v1421
      %v1423 = vpop.f32.mrb[0].mxu0
      %1424 = vmatprep.mubr.f32.mxu0 0.0
      %1425 = vmatmul.mubr.f32.gmra.mrb[0].mxu0 %v1257
      %v1426 = vpop.f32.mrb[0].mxu0
      %v1427 = vadd.f32 %v1102, %v1426
      %v1428 = vpop.f32.mrb[0].mxu0
      %1429 = vmatprep.mubr.f32.mxu0 0.0
      %1430 = vmatmul.mubr.f32.gmra.mrb[0].mxu0 %v1260
      %v1431 = vpop.f32.mrb[0].mxu0
      %v1432 = vadd.f32 %v1107, %v1431
      %v1433 = vpop.f32.mrb[0].mxu0
      %1434 = vmatprep.mubr.f32.mxu0 0.0
      %1435 = vmatmul.mubr.f32.gmra.mrb[0].mxu0 %v1263
      %v1436 = vpop.f32.mrb[0].mxu0
      %v1437 = vadd.f32 %v1112, %v1436
      %v1438 = vpop.f32.mrb[0].mxu0
      %1439 = vmatprep.mubr.f32.mxu0 0.0
      %1440 = vmatmul.mubr.f32.gmra.mrb[0].mxu0 %v1266
      %v1441 = vpop.f32.mrb[0].mxu0
      %v1442 = vadd.f32 %v1117, %v1441
      %v1443 = vpop.f32.mrb[0].mxu0
      %1444 = vmatprep.mubr.f32.mxu0 0.0
      %1445 = vmatmul.mubr.f32.gmra.mrb[0].mxu0 %v1269
      %v1446 = vpop.f32.mrb[0].mxu0
      %v1447 = vadd.f32 %v1122, %v1446
      %v1448 = vpop.f32.mrb[0].mxu0
      %1449 = vmatprep.mubr.f32.mxu0 0.0
      %1450 = vmatmul.mubr.f32.gmra.mrb[0].mxu0 %v1272
      %v1451 = vpop.f32.mrb[0].mxu0
      %v1452 = vadd.f32 %v1127, %v1451
      %v1453 = vpop.f32.mrb[0].mxu0
      %1454 = vmatprep.mubr.f32.mxu0 0.0
      %1455 = vmatmul.mubr.f32.gmra.mrb[0].mxu0 %v1275
      %v1456 = vpop.f32.mrb[0].mxu0
      %v1457 = vadd.f32 %v1132, %v1456
      %v1458 = vpop.f32.mrb[0].mxu0
      %1459 = vmatprep.mubr.f32.mxu0 0.0
      %1460 = vmatmul.mubr.f32.gmra.mrb[0].mxu0 %v1278
      %v1461 = vpop.f32.mrb[0].mxu0
      %v1462 = vadd.f32 %v1137, %v1461
      %v1463 = vpop.f32.mrb[0].mxu0
      %1464 = vmatprep.mubr.f32.mxu0 0.0
      %1465 = vmatmul.mubr.f32.gmra.mrb[0].mxu0 %v1281
      %v1466 = vpop.f32.mrb[0].mxu0
      %v1467 = vadd.f32 %v1142, %v1466
      %v1468 = vpop.f32.mrb[0].mxu0
      %1469 = vmatprep.mubr.f32.mxu0 0.0
      %1470 = vmatmul.mubr.f32.gmra.mrb[0].mxu0 %v1284
      %v1471 = vpop.f32.mrb[0].mxu0
      %v1472 = vadd.f32 %v1147, %v1471
      %v1473 = vpop.f32.mrb[0].mxu0
      %1474 = vmatprep.mubr.f32.mxu0 0.0
      %1475 = vmatmul.mubr.f32.gmra.mrb[0].mxu0 %v1287
      %v1476 = vpop.f32.mrb[0].mxu0
      %v1477 = vadd.f32 %v1152, %v1476
      %v1478 = vpop.f32.mrb[0].mxu0
      %1479 = vmatprep.mubr.f32.mxu0 0.0
      %1480 = vmatmul.mubr.f32.gmra.mrb[0].mxu0 %v1290
      %v1481 = vpop.f32.mrb[0].mxu0
      %v1482 = vadd.f32 %v1157, %v1481
      %v1483 = vpop.f32.mrb[0].mxu0
      %1484 = vmatprep.mubr.f32.mxu0 0.0
      %1485 = vmatmul.mubr.f32.gmra.mrb[0].mxu0 %v1293
      %v1486 = vpop.f32.mrb[0].mxu0
      %v1487 = vadd.f32 %v1162, %v1486
      %v1488 = vpop.f32.mrb[0].mxu0
      %1489 = vmatprep.mubr.f32.mxu0 0.0
      %1490 = vmatmul.mubr.f32.gmra.mrb[0].mxu0 %v1296
      %v1491 = vpop.f32.mrb[0].mxu0
      %v1492 = vadd.f32 %v1167, %v1491
      %v1493 = vpop.f32.mrb[0].mxu0
      %1494 = vmatprep.mubr.f32.mxu0 0.0
      %1495 = vmatmul.mubr.f32.gmra.mrb[0].mxu0 %v1299
      %v1496 = vpop.f32.mrb[0].mxu0
      %v1497 = vadd.f32 %v1172, %v1496
      %v1498 = vpop.f32.mrb[0].mxu0
      %1499 = vmatprep.mubr.f32.mxu0 0.0
      %1500 = vmatmul.mubr.f32.gmra.mrb[0].mxu0 %v1302
      %v1501 = vpop.f32.mrb[0].mxu0
      %v1502 = vadd.f32 %v1177, %v1501
      %v1503 = vpop.f32.mrb[0].mxu0
      %1504 = vmatprep.mubr.f32.mxu0 0.0
      %1505 = vmatmul.mubr.f32.gmra.mrb[0].mxu0 %v1305
      %v1506 = vpop.f32.mrb[0].mxu0
      %v1507 = vadd.f32 %v1182, %v1506
      %v1508 = vpop.f32.mrb[0].mxu0
      %1509 = vmatprep.mubr.f32.mxu0 0.0
      %1510 = vmatmul.mubr.f32.gmra.mrb[0].mxu0 %v1308
      %v1511 = vpop.f32.mrb[0].mxu0
      %v1512 = vadd.f32 %v1187, %v1511
      %v1513 = vpop.f32.mrb[0].mxu0
      %1514 = vmatprep.mubr.f32.mxu0 0.0
      %1515 = vmatmul.mubr.f32.gmra.mrb[0].mxu0 %v1311
      %v1516 = vpop.f32.mrb[0].mxu0
      %v1517 = vadd.f32 %v1192, %v1516
      %v1518 = vpop.f32.mrb[0].mxu0
      %1519 = vmatprep.mubr.f32.mxu0 0.0
      %1520 = vmatmul.mubr.f32.gmra.mrb[0].mxu0 %v1314
      %v1521 = vpop.f32.mrb[0].mxu0
      %v1522 = vadd.f32 %v1197, %v1521
      %v1523 = vpop.f32.mrb[0].mxu0
      %1524 = vmatprep.mubr.f32.mxu0 0.0
      %1525 = vmatmul.mubr.f32.gmra.mrb[0].mxu0 %v1317
      %v1526 = vpop.f32.mrb[0].mxu0
      %v1527 = vadd.f32 %v1202, %v1526
      %v1528 = vpop.f32.mrb[0].mxu0
      %1529 = vmatprep.mubr.f32.mxu0 0.0
      %1530 = vmatmul.mubr.f32.gmra.mrb[0].mxu0 %v1320
      %v1531 = vpop.f32.mrb[0].mxu0
      %v1532 = vadd.f32 %v1207, %v1531
      %v1533 = vpop.f32.mrb[0].mxu0
      %1534 = vmatprep.mubr.f32.mxu0 0.0
      %1535 = vmatmul.mubr.f32.gmra.mrb[0].mxu0 %v1323
      %v1536 = vpop.f32.mrb[0].mxu0
      %v1537 = vadd.f32 %v1212, %v1536
      %v1538 = vpop.f32.mrb[0].mxu0
      %1539 = vmatprep.mubr.f32.mxu0 0.0
      %1540 = vmatmul.mubr.f32.gmra.mrb[0].mxu0 %v1326
      %v1541 = vpop.f32.mrb[0].mxu0
      %v1542 = vadd.f32 %v1217, %v1541
      %v1543 = vpop.f32.mrb[0].mxu0
      %1544 = vmatprep.mubr.f32.mxu0 0.0
      %1545 = vmatmul.mubr.f32.gmra.mrb[0].mxu0 %v1329
      %v1546 = vpop.f32.mrb[0].mxu0
      %v1547 = vadd.f32 %v1222, %v1546
      %v1548 = vpop.f32.mrb[0].mxu0
      %1549 = vmatprep.mubr.f32.mxu0 0.0
      %1550 = vmatmul.mubr.f32.gmra.mrb[0].mxu0 %v1332
      %v1551 = vpop.f32.mrb[0].mxu0
      %v1552 = vadd.f32 %v1227, %v1551
      %v1553 = vpop.f32.mrb[0].mxu0
      %1554 = vmatprep.mubr.f32.mxu0 0.0
      %1555 = vmatmul.mubr.f32.gmra.mrb[0].mxu0 %v1335
      %v1556 = vpop.f32.mrb[0].mxu0
      %v1557 = vadd.f32 %v1232, %v1556
      %v1558 = vpop.f32.mrb[0].mxu0
      %1559 = vmatprep.mubr.f32.mxu0 0.0
      %1560 = vmatmul.mubr.f32.gmra.mrb[0].mxu0 %v1338
      %v1561 = vpop.f32.mrb[0].mxu0
      %v1562 = vadd.f32 %v1237, %v1561
      %v1563 = vpop.f32.mrb[0].mxu0
      %1564 = vmatprep.mubr.f32.mxu0 0.0
      %1565 = vmatmul.mubr.f32.gmra.mrb[0].mxu0 %v1341
      %v1566 = vpop.f32.mrb[0].mxu0
      %v1567 = vadd.f32 %v1242, %v1566
      %v1568 = vpop.f32.mrb[0].mxu0
      %1569 = vmatprep.mubr.f32.mxu0 0.0
      %1570 = vmatmul.mubr.f32.gmra.mrb[0].mxu0 %v1344
      %v1571 = vpop.f32.mrb[0].mxu0
      %v1572 = vadd.f32 %v1247, %v1571
      %v1573 = vpop.f32.mrb[0].mxu0
      %1574 = vdwg.mxu0
      %v1575 = vmax.f32 %v1417, 0.0
      %v1576 = vmax.f32 %v1422, 0.0
      %v1577 = vmax.f32 %v1427, 0.0
      %v1578 = vmax.f32 %v1432, 0.0
      %v1579 = vmax.f32 %v1437, 0.0
      %v1580 = vmax.f32 %v1442, 0.0
      %v1581 = vmax.f32 %v1447, 0.0
      %v1582 = vmax.f32 %v1452, 0.0
      %v1583 = vmax.f32 %v1457, 0.0
      %v1584 = vmax.f32 %v1462, 0.0
      %v1585 = vmax.f32 %v1467, 0.0
      %v1586 = vmax.f32 %v1472, 0.0
      %v1587 = vmax.f32 %v1477, 0.0
      %v1588 = vmax.f32 %v1482, 0.0
      %v1589 = vmax.f32 %v1487, 0.0
      %v1590 = vmax.f32 %v1492, 0.0
      %v1591 = vmax.f32 %v1497, 0.0
      %v1592 = vmax.f32 %v1502, 0.0
      %v1593 = vmax.f32 %v1507, 0.0
      %v1594 = vmax.f32 %v1512, 0.0
      %v1595 = vmax.f32 %v1517, 0.0
      %v1596 = vmax.f32 %v1522, 0.0
      %v1597 = vmax.f32 %v1527, 0.0
      %v1598 = vmax.f32 %v1532, 0.0
      %v1599 = vmax.f32 %v1537, 0.0
      %v1600 = vmax.f32 %v1542, 0.0
      %v1601 = vmax.f32 %v1547, 0.0
      %v1602 = vmax.f32 %v1552, 0.0
      %v1603 = vmax.f32 %v1557, 0.0
      %v1604 = vmax.f32 %v1562, 0.0
      %v1605 = vmax.f32 %v1567, 0.0
      %v1606 = vmax.f32 %v1572, 0.0
      %v1607 = vld [vmem:[%s8] sm:$0x3f]
      %v1608 = vld [vmem:[%s8 + $0x8] sm:$0x3f]
      %v1609 = vld [vmem:[%s12] sm:$0x3f]
      %1611 = vset.pattern.permute.xlu0 0
      %1612 = vperm.xlu0 %1611, %v1609
      %v1613 = vpop.permute.xlu0 %1612
      %1615 = vmatprep.subr.mxu0 0.0
      %1616 = vmatpush1.msra.mxu0 %v1575
      %1617 = vmatprep.subr.mxu0 0.0
      %1618 = vmatpush1.msra.mxu0 %v1576
      %1619 = vmatprep.subr.mxu0 0.0
      %1620 = vmatpush1.msra.mxu0 %v1577
      %1621 = vmatprep.subr.mxu0 0.0
      %1622 = vmatpush1.msra.mxu0 %v1578
      %1623 = vmatprep.subr.mxu0 0.0
      %1624 = vmatpush1.msra.mxu0 %v1579
      %1625 = vmatprep.subr.mxu0 0.0
      %1626 = vmatpush1.msra.mxu0 %v1580
      %1627 = vmatprep.subr.mxu0 0.0
      %1628 = vmatpush1.msra.mxu0 %v1581
      %1629 = vmatprep.subr.mxu0 0.0
      %1630 = vmatpush1.msra.mxu0 %v1582
      %1631 = vmatprep.subr.mxu0 0.0
      %1632 = vmatpush1.msra.mxu0 %v1583
      %1633 = vmatprep.subr.mxu0 0.0
      %1634 = vmatpush1.msra.mxu0 %v1584
      %1635 = vmatprep.subr.mxu0 0.0
      %1636 = vmatpush1.msra.mxu0 %v1585
      %1637 = vmatprep.subr.mxu0 0.0
      %1638 = vmatpush1.msra.mxu0 %v1586
      %1639 = vmatprep.subr.mxu0 0.0
      %1640 = vmatpush1.msra.mxu0 %v1587
      %1641 = vmatprep.subr.mxu0 0.0
      %1642 = vmatpush1.msra.mxu0 %v1588
      %1643 = vmatprep.subr.mxu0 0.0
      %1644 = vmatpush1.msra.mxu0 %v1589
      %1645 = vmatprep.subr.mxu0 0.0
      %1646 = vmatpush1.msra.mxu0 %v1590
      %1647 = vmatprep.subr.mxu0 0.0
      %1648 = vmatpush1.msra.mxu0 %v1591
      %1649 = vmatprep.subr.mxu0 0.0
      %1650 = vmatpush1.msra.mxu0 %v1592
      %1651 = vmatprep.subr.mxu0 0.0
      %1652 = vmatpush1.msra.mxu0 %v1593
      %1653 = vmatprep.subr.mxu0 0.0
      %1654 = vmatpush1.msra.mxu0 %v1594
      %1655 = vmatprep.subr.mxu0 0.0
      %1656 = vmatpush1.msra.mxu0 %v1595
      %1657 = vmatprep.subr.mxu0 0.0
      %1658 = vmatpush1.msra.mxu0 %v1596
      %1659 = vmatprep.subr.mxu0 0.0
      %1660 = vmatpush1.msra.mxu0 %v1597
      %1661 = vmatprep.subr.mxu0 0.0
      %1662 = vmatpush1.msra.mxu0 %v1598
      %1663 = vmatprep.subr.mxu0 0.0
      %1664 = vmatpush1.msra.mxu0 %v1599
      %1665 = vmatprep.subr.mxu0 0.0
      %1666 = vmatpush1.msra.mxu0 %v1600
      %1667 = vmatprep.subr.mxu0 0.0
      %1668 = vmatpush1.msra.mxu0 %v1601
      %1669 = vmatprep.subr.mxu0 0.0
      %1670 = vmatpush1.msra.mxu0 %v1602
      %1671 = vmatprep.subr.mxu0 0.0
      %1672 = vmatpush1.msra.mxu0 %v1603
      %1673 = vmatprep.subr.mxu0 0.0
      %1674 = vmatpush1.msra.mxu0 %v1604
      %1675 = vmatprep.subr.mxu0 0.0
      %1676 = vmatpush1.msra.mxu0 %v1605
      %1677 = vmatprep.subr.mxu0 0.0
      %1678 = vmatpush1.msra.mxu0 %v1606
      %1679 = vmatprep.mubr.f32.mxu0 %v1608
      %1680 = vmatmul.mubr.f32.gmra.mrb[0].mxu0 %v1607
      %v1681 = vpop.f32.mrb[0].mxu0
      %v1682 = vadd.f32 %v1613, %v1681
      %v1683 = vpop.f32.mrb[0].mxu0
      %1684 = vdwg.mxu0
      %s1685 = scalar_lea.vmem %s9, 4
      %v1686 = vld [vmem:[%s1685] sm:$0xf]
      %v1687 = vadd.f32 %v1682, %v695
      %s1688 = scalar_lea.vmem %s4, 128
      %v1689 = vld [vmem:[%s1688] sm:$0xff]
      %v1690 = vld [vmem:[%s1688 + $0x8] sm:$0xff]
      %v1691 = vld [vmem:[%s1688 + $0x10] sm:$0xff]
      %v1692 = vld [vmem:[%s1688 + $0x18] sm:$0xff]
      %v1693 = vld [vmem:[%s1688 + $0x20] sm:$0xff]
      %v1694 = vld [vmem:[%s1688 + $0x28] sm:$0xff]
      %v1695 = vld [vmem:[%s1688 + $0x30] sm:$0xff]
      %v1696 = vld [vmem:[%s1688 + $0x38] sm:$0xff]
      %v1697 = vld [vmem:[%s1688 + $0x40] sm:$0xff]
      %v1698 = vld [vmem:[%s1688 + $0x48] sm:$0xff]
      %v1699 = vld [vmem:[%s1688 + $0x50] sm:$0xff]
      %v1700 = vld [vmem:[%s1688 + $0x58] sm:$0xff]
      %v1701 = vld [vmem:[%s1688 + $0x60] sm:$0xff]
      %v1702 = vld [vmem:[%s1688 + $0x68] sm:$0xff]
      %v1703 = vld [vmem:[%s1688 + $0x70] sm:$0xff]
      %v1704 = vld [vmem:[%s1688 + $0x78] sm:$0xff]
      %1705 = vmatprep.subr.mxu0 0.0
      %1706 = vmatpush1.msra.mxu0 %v1689
      %1707 = vmatprep.subr.mxu0 0.0
      %1708 = vmatpush1.msra.mxu0 %v1690
      %1709 = vmatprep.subr.mxu0 0.0
      %1710 = vmatpush1.msra.mxu0 %v1691
      %1711 = vmatprep.subr.mxu0 0.0
      %1712 = vmatpush1.msra.mxu0 %v1692
      %1713 = vmatprep.subr.mxu0 0.0
      %1714 = vmatpush1.msra.mxu0 %v1693
      %1715 = vmatprep.subr.mxu0 0.0
      %1716 = vmatpush1.msra.mxu0 %v1694
      %1717 = vmatprep.subr.mxu0 0.0
      %1718 = vmatpush1.msra.mxu0 %v1695
      %1719 = vmatprep.subr.mxu0 0.0
      %1720 = vmatpush1.msra.mxu0 %v1696
      %1721 = vmatprep.subr.mxu0 0.0
      %1722 = vmatpush1.msra.mxu0 %v1697
      %1723 = vmatprep.subr.mxu0 0.0
      %1724 = vmatpush1.msra.mxu0 %v1698
      %1725 = vmatprep.subr.mxu0 0.0
      %1726 = vmatpush1.msra.mxu0 %v1699
      %1727 = vmatprep.subr.mxu0 0.0
      %1728 = vmatpush1.msra.mxu0 %v1700
      %1729 = vmatprep.subr.mxu0 0.0
      %1730 = vmatpush1.msra.mxu0 %v1701
      %1731 = vmatprep.subr.mxu0 0.0
      %1732 = vmatpush1.msra.mxu0 %v1702
      %1733 = vmatprep.subr.mxu0 0.0
      %1734 = vmatpush1.msra.mxu0 %v1703
      %1735 = vmatprep.subr.mxu0 0.0
      %1736 = vmatpush1.msra.mxu0 %v1704
      %1737 = vmatprep.subr.mxu0 0.0
      %1738 = vmatpush1.msra.mxu0 0.0
      %1739 = vmatprep.subr.mxu0 0.0
      %1740 = vmatpush1.msra.mxu0 0.0
      %1741 = vmatprep.subr.mxu0 0.0
      %1742 = vmatpush1.msra.mxu0 0.0
      %1743 = vmatprep.subr.mxu0 0.0
      %1744 = vmatpush1.msra.mxu0 0.0
      %1745 = vmatprep.subr.mxu0 0.0
      %1746 = vmatpush1.msra.mxu0 0.0
      %1747 = vmatprep.subr.mxu0 0.0
      %1748 = vmatpush1.msra.mxu0 0.0
      %1749 = vmatprep.subr.mxu0 0.0
      %1750 = vmatpush1.msra.mxu0 0.0
      %1751 = vmatprep.subr.mxu0 0.0
      %1752 = vmatpush1.msra.mxu0 0.0
      %1753 = vmatprep.subr.mxu0 0.0
      %1754 = vmatpush1.msra.mxu0 0.0
      %1755 = vmatprep.subr.mxu0 0.0
      %1756 = vmatpush1.msra.mxu0 0.0
      %1757 = vmatprep.subr.mxu0 0.0
      %1758 = vmatpush1.msra.mxu0 0.0
      %1759 = vmatprep.subr.mxu0 0.0
      %1760 = vmatpush1.msra.mxu0 0.0
      %1761 = vmatprep.subr.mxu0 0.0
      %1762 = vmatpush1.msra.mxu0 0.0
      %1763 = vmatprep.subr.mxu0 0.0
      %1764 = vmatpush1.msra.mxu0 0.0
      %1765 = vmatprep.subr.mxu0 0.0
      %1766 = vmatpush1.msra.mxu0 0.0
      %1767 = vmatprep.subr.mxu0 0.0
      %1768 = vmatpush1.msra.mxu0 0.0
      %1769 = vmatprep.mubr.f32.mxu0 0.0
      %1770 = vmatmul.mubr.f32.gmra.mrb[0].mxu0 %v689
      %v1771 = vpop.f32.mrb[0].mxu0
      %v1772 = vadd.f32 %v1686, %v1771
      %v1773 = vpop.f32.mrb[0].mxu0
      %1774 = vdwg.mxu0
      %v1775 = vlaneseq
      %v1776 = vshrl.u32 %v1775, 7
      %v1777 = vsub.s32 0, %v1776
      %v1778 = vrot.slane %v1772, %v1777
      %v1779 = vadd.f32 %v1687, %v1778
      %v1780 = vsel %vm788, %v1779, 0.0
      %1781 = vadd.xlane.f32.xlu0 %v1780
      %v1782 = vpop.xlane.xlu0 %1781
      %v1783 = vmul.f32 %v1782, %v792
      %v1784 = vsub.f32 %v1779, %v1783
      %v1785 = vmul.f32 %v1784, %v1784
      %v1786 = vsel %vm788, %v1785, 0.0
      %1787 = vadd.xlane.f32.xlu0 %v1786
      %v1788 = vpop.xlane.xlu0 %1787
      %v1789 = vmul.f32 %v1788, %v792
      %v1790 = vadd.f32 %v1789, 1e-05
      %v1791 = vrsqrt.pop %v1790
      %v1792 = vmul.f32 %v1784, %v1791
      %v1793 = vlaneseq
      %v1794 = vshrl.u32 %v1793, 7
      %v1795 = vsub.s32 1, %v1794
      %v1796 = vrot.slane %v1686, %v1795
      %v1797 = vmul.f32 %v1792, %v1796
      %v1798 = vlaneseq
      %v1799 = vshrl.u32 %v1798, 7
      %v1800 = vsub.s32 2, %v1799
      %v1801 = vrot.slane %v1686, %v1800
      %v1802 = vadd.f32 %v1797, %v1801
      %s1803 = scalar_lea.vmem %s5, 128
      %v1804 = vld [vmem:[%s1803] sm:$0xff]
      %v1805 = vld [vmem:[%s1803 + $0x8] sm:$0xff]
      %v1806 = vld [vmem:[%s1803 + $0x10] sm:$0xff]
      %v1807 = vld [vmem:[%s1803 + $0x18] sm:$0xff]
      %v1808 = vld [vmem:[%s1803 + $0x20] sm:$0xff]
      %v1809 = vld [vmem:[%s1803 + $0x28] sm:$0xff]
      %v1810 = vld [vmem:[%s1803 + $0x30] sm:$0xff]
      %v1811 = vld [vmem:[%s1803 + $0x38] sm:$0xff]
      %v1812 = vld [vmem:[%s1803 + $0x40] sm:$0xff]
      %v1813 = vld [vmem:[%s1803 + $0x48] sm:$0xff]
      %v1814 = vld [vmem:[%s1803 + $0x50] sm:$0xff]
      %v1815 = vld [vmem:[%s1803 + $0x58] sm:$0xff]
      %v1816 = vld [vmem:[%s1803 + $0x60] sm:$0xff]
      %v1817 = vld [vmem:[%s1803 + $0x68] sm:$0xff]
      %v1818 = vld [vmem:[%s1803 + $0x70] sm:$0xff]
      %v1819 = vld [vmem:[%s1803 + $0x78] sm:$0xff]
      %s1820 = scalar_lea.vmem %s10, 2
      %v1821 = vld [vmem:[%s1820] sm:$0x3]
      %v1823 = vlaneseq
      %v1824 = vshrl.u32 %v1823, 7
      %v1825 = vsub.s32 0, %v1824
      %v1826 = vrot.slane %v1821, %v1825
      %v1827 = vlaneseq
      %v1828 = vshrl.u32 %v1827, 7
      %v1829 = vsub.s32 1, %v1828
      %v1830 = vrot.slane %v1821, %v1829
      %v1834 = vsel %vm841, %v1802, 0
      %1836 = vmatprep.subr.mxu0 %v1805
      %1837 = vmatpush1.msra.mxu0 %v1804
      %1838 = vmatprep.subr.mxu0 %v1807
      %1839 = vmatpush1.msra.mxu0 %v1806
      %1840 = vmatprep.subr.mxu0 %v1809
      %1841 = vmatpush1.msra.mxu0 %v1808
      %1842 = vmatprep.subr.mxu0 %v1811
      %1843 = vmatpush1.msra.mxu0 %v1810
      %1844 = vmatprep.subr.mxu0 %v1813
      %1845 = vmatpush1.msra.mxu0 %v1812
      %1846 = vmatprep.subr.mxu0 %v1815
      %1847 = vmatpush1.msra.mxu0 %v1814
      %1848 = vmatprep.subr.mxu0 %v1817
      %1849 = vmatpush1.msra.mxu0 %v1816
      %1850 = vmatprep.subr.mxu0 %v1819
      %1851 = vmatpush1.msra.mxu0 %v1818
      %1852 = vmatprep.subr.mxu0 0.0
      %1853 = vmatpush1.msra.mxu0 0.0
      %1854 = vmatprep.subr.mxu0 0.0
      %1855 = vmatpush1.msra.mxu0 0.0
      %1856 = vmatprep.subr.mxu0 0.0
      %1857 = vmatpush1.msra.mxu0 0.0
      %1858 = vmatprep.subr.mxu0 0.0
      %1859 = vmatpush1.msra.mxu0 0.0
      %1860 = vmatprep.subr.mxu0 0.0
      %1861 = vmatpush1.msra.mxu0 0.0
      %1862 = vmatprep.subr.mxu0 0.0
      %1863 = vmatpush1.msra.mxu0 0.0
      %1864 = vmatprep.subr.mxu0 0.0
      %1865 = vmatpush1.msra.mxu0 0.0
      %1866 = vmatprep.subr.mxu0 0.0
      %1867 = vmatpush1.msra.mxu0 0.0
      %1868 = vmatprep.subr.mxu0 0.0
      %1869 = vmatpush1.msra.mxu0 0.0
      %1870 = vmatprep.subr.mxu0 0.0
      %1871 = vmatpush1.msra.mxu0 0.0
      %1872 = vmatprep.subr.mxu0 0.0
      %1873 = vmatpush1.msra.mxu0 0.0
      %1874 = vmatprep.subr.mxu0 0.0
      %1875 = vmatpush1.msra.mxu0 0.0
      %1876 = vmatprep.subr.mxu0 0.0
      %1877 = vmatpush1.msra.mxu0 0.0
      %1878 = vmatprep.subr.mxu0 0.0
      %1879 = vmatpush1.msra.mxu0 0.0
      %1880 = vmatprep.subr.mxu0 0.0
      %1881 = vmatpush1.msra.mxu0 0.0
      %1882 = vmatprep.subr.mxu0 0.0
      %1883 = vmatpush1.msra.mxu0 0.0
      %1884 = vmatprep.subr.mxu0 0.0
      %1885 = vmatpush1.msra.mxu0 0.0
      %1886 = vmatprep.subr.mxu0 0.0
      %1887 = vmatpush1.msra.mxu0 0.0
      %1888 = vmatprep.subr.mxu0 0.0
      %1889 = vmatpush1.msra.mxu0 0.0
      %1890 = vmatprep.subr.mxu0 0.0
      %1891 = vmatpush1.msra.mxu0 0.0
      %1892 = vmatprep.subr.mxu0 0.0
      %1893 = vmatpush1.msra.mxu0 0.0
      %1894 = vmatprep.subr.mxu0 0.0
      %1895 = vmatpush1.msra.mxu0 0.0
      %1896 = vmatprep.subr.mxu0 0.0
      %1897 = vmatpush1.msra.mxu0 0.0
      %1898 = vmatprep.subr.mxu0 0.0
      %1899 = vmatpush1.msra.mxu0 0.0
      %1900 = vmatprep.mubr.f32.mxu0 0.0
      %1901 = vmatmul.mubr.f32.gmra.mrb[0].mxu0 %v1834
      %v1902 = vpop.f32.mrb[0].mxu0
      %v1903 = vadd.f32 %v1826, %v1902
      %v1904 = vpop.f32.mrb[0].mxu0
      %v1905 = vadd.f32 %v1830, %v1904
      %1906 = vdwg.mxu0
      %v1907 = vmax.f32 %v1903, 0.0
      %v1908 = vmax.f32 %v1905, 0.0
      %s1909 = scalar_lea.vmem %s6, 256
      %v1910 = vld [vmem:[%s1909] sm:$0xff]
      %v1911 = vld [vmem:[%s1909 + $0x8] sm:$0xff]
      %v1912 = vld [vmem:[%s1909 + $0x10] sm:$0xff]
      %v1913 = vld [vmem:[%s1909 + $0x18] sm:$0xff]
      %v1914 = vld [vmem:[%s1909 + $0x20] sm:$0xff]
      %v1915 = vld [vmem:[%s1909 + $0x28] sm:$0xff]
      %v1916 = vld [vmem:[%s1909 + $0x30] sm:$0xff]
      %v1917 = vld [vmem:[%s1909 + $0x38] sm:$0xff]
      %v1918 = vld [vmem:[%s1909 + $0x40] sm:$0xff]
      %v1919 = vld [vmem:[%s1909 + $0x48] sm:$0xff]
      %v1920 = vld [vmem:[%s1909 + $0x50] sm:$0xff]
      %v1921 = vld [vmem:[%s1909 + $0x58] sm:$0xff]
      %v1922 = vld [vmem:[%s1909 + $0x60] sm:$0xff]
      %v1923 = vld [vmem:[%s1909 + $0x68] sm:$0xff]
      %v1924 = vld [vmem:[%s1909 + $0x70] sm:$0xff]
      %v1925 = vld [vmem:[%s1909 + $0x78] sm:$0xff]
      %v1926 = vld [vmem:[%s1909 + $0x80] sm:$0xff]
      %v1927 = vld [vmem:[%s1909 + $0x88] sm:$0xff]
      %v1928 = vld [vmem:[%s1909 + $0x90] sm:$0xff]
      %v1929 = vld [vmem:[%s1909 + $0x98] sm:$0xff]
      %v1930 = vld [vmem:[%s1909 + $0xa0] sm:$0xff]
      %v1931 = vld [vmem:[%s1909 + $0xa8] sm:$0xff]
      %v1932 = vld [vmem:[%s1909 + $0xb0] sm:$0xff]
      %v1933 = vld [vmem:[%s1909 + $0xb8] sm:$0xff]
      %v1934 = vld [vmem:[%s1909 + $0xc0] sm:$0xff]
      %v1935 = vld [vmem:[%s1909 + $0xc8] sm:$0xff]
      %v1936 = vld [vmem:[%s1909 + $0xd0] sm:$0xff]
      %v1937 = vld [vmem:[%s1909 + $0xd8] sm:$0xff]
      %v1938 = vld [vmem:[%s1909 + $0xe0] sm:$0xff]
      %v1939 = vld [vmem:[%s1909 + $0xe8] sm:$0xff]
      %v1940 = vld [vmem:[%s1909 + $0xf0] sm:$0xff]
      %v1941 = vld [vmem:[%s1909 + $0xf8] sm:$0xff]
      %v1942 = vlaneseq
      %v1943 = vshrl.u32 %v1942, 7
      %v1944 = vsub.s32 3, %v1943
      %v1945 = vrot.slane %v1686, %v1944
      %1946 = vmatprep.subr.mxu0 0.0
      %1947 = vmatpush1.msra.mxu0 %v1910
      %1948 = vmatprep.subr.mxu0 0.0
      %1949 = vmatpush1.msra.mxu0 %v1911
      %1950 = vmatprep.subr.mxu0 0.0
      %1951 = vmatpush1.msra.mxu0 %v1912
      %1952 = vmatprep.subr.mxu0 0.0
      %1953 = vmatpush1.msra.mxu0 %v1913
      %1954 = vmatprep.subr.mxu0 0.0
      %1955 = vmatpush1.msra.mxu0 %v1914
      %1956 = vmatprep.subr.mxu0 0.0
      %1957 = vmatpush1.msra.mxu0 %v1915
      %1958 = vmatprep.subr.mxu0 0.0
      %1959 = vmatpush1.msra.mxu0 %v1916
      %1960 = vmatprep.subr.mxu0 0.0
      %1961 = vmatpush1.msra.mxu0 %v1917
      %1962 = vmatprep.subr.mxu0 0.0
      %1963 = vmatpush1.msra.mxu0 %v1918
      %1964 = vmatprep.subr.mxu0 0.0
      %1965 = vmatpush1.msra.mxu0 %v1919
      %1966 = vmatprep.subr.mxu0 0.0
      %1967 = vmatpush1.msra.mxu0 %v1920
      %1968 = vmatprep.subr.mxu0 0.0
      %1969 = vmatpush1.msra.mxu0 %v1921
      %1970 = vmatprep.subr.mxu0 0.0
      %1971 = vmatpush1.msra.mxu0 %v1922
      %1972 = vmatprep.subr.mxu0 0.0
      %1973 = vmatpush1.msra.mxu0 %v1923
      %1974 = vmatprep.subr.mxu0 0.0
      %1975 = vmatpush1.msra.mxu0 %v1924
      %1976 = vmatprep.subr.mxu0 0.0
      %1977 = vmatpush1.msra.mxu0 %v1925
      %1978 = vmatprep.subr.mxu0 0.0
      %1979 = vmatpush1.msra.mxu0 %v1926
      %1980 = vmatprep.subr.mxu0 0.0
      %1981 = vmatpush1.msra.mxu0 %v1927
      %1982 = vmatprep.subr.mxu0 0.0
      %1983 = vmatpush1.msra.mxu0 %v1928
      %1984 = vmatprep.subr.mxu0 0.0
      %1985 = vmatpush1.msra.mxu0 %v1929
      %1986 = vmatprep.subr.mxu0 0.0
      %1987 = vmatpush1.msra.mxu0 %v1930
      %1988 = vmatprep.subr.mxu0 0.0
      %1989 = vmatpush1.msra.mxu0 %v1931
      %1990 = vmatprep.subr.mxu0 0.0
      %1991 = vmatpush1.msra.mxu0 %v1932
      %1992 = vmatprep.subr.mxu0 0.0
      %1993 = vmatpush1.msra.mxu0 %v1933
      %1994 = vmatprep.subr.mxu0 0.0
      %1995 = vmatpush1.msra.mxu0 %v1934
      %1996 = vmatprep.subr.mxu0 0.0
      %1997 = vmatpush1.msra.mxu0 %v1935
      %1998 = vmatprep.subr.mxu0 0.0
      %1999 = vmatpush1.msra.mxu0 %v1936
      %2000 = vmatprep.subr.mxu0 0.0
      %2001 = vmatpush1.msra.mxu0 %v1937
      %2002 = vmatprep.subr.mxu0 0.0
      %2003 = vmatpush1.msra.mxu0 %v1938
      %2004 = vmatprep.subr.mxu0 0.0
      %2005 = vmatpush1.msra.mxu0 %v1939
      %2006 = vmatprep.subr.mxu0 0.0
      %2007 = vmatpush1.msra.mxu0 %v1940
      %2008 = vmatprep.subr.mxu0 0.0
      %2009 = vmatpush1.msra.mxu0 %v1941
      %2010 = vmatprep.mubr.f32.mxu0 %v1908
      %2011 = vmatmul.mubr.f32.gmra.mrb[0].mxu0 %v1907
      %v2012 = vpop.f32.mrb[0].mxu0
      %v2013 = vadd.f32 %v1945, %v2012
      %v2014 = vpop.f32.mrb[0].mxu0
      %2015 = vdwg.mxu0
      %v2016 = vadd.f32 %v1802, %v2013
      %s2017 = scalar_lea.vmem %s7, 256
      %v2018 = vld [vmem:[%s2017] sm:$0xff]
      %v2019 = vld [vmem:[%s2017 + $0x8] sm:$0xff]
      %v2020 = vld [vmem:[%s2017 + $0x10] sm:$0xff]
      %v2021 = vld [vmem:[%s2017 + $0x18] sm:$0xff]
      %v2022 = vld [vmem:[%s2017 + $0x20] sm:$0xff]
      %v2023 = vld [vmem:[%s2017 + $0x28] sm:$0xff]
      %v2024 = vld [vmem:[%s2017 + $0x30] sm:$0xff]
      %v2025 = vld [vmem:[%s2017 + $0x38] sm:$0xff]
      %v2026 = vld [vmem:[%s2017 + $0x40] sm:$0xff]
      %v2027 = vld [vmem:[%s2017 + $0x48] sm:$0xff]
      %v2028 = vld [vmem:[%s2017 + $0x50] sm:$0xff]
      %v2029 = vld [vmem:[%s2017 + $0x58] sm:$0xff]
      %v2030 = vld [vmem:[%s2017 + $0x60] sm:$0xff]
      %v2031 = vld [vmem:[%s2017 + $0x68] sm:$0xff]
      %v2032 = vld [vmem:[%s2017 + $0x70] sm:$0xff]
      %v2033 = vld [vmem:[%s2017 + $0x78] sm:$0xff]
      %v2034 = vld [vmem:[%s2017 + $0x80] sm:$0xff]
      %v2035 = vld [vmem:[%s2017 + $0x88] sm:$0xff]
      %v2036 = vld [vmem:[%s2017 + $0x90] sm:$0xff]
      %v2037 = vld [vmem:[%s2017 + $0x98] sm:$0xff]
      %v2038 = vld [vmem:[%s2017 + $0xa0] sm:$0xff]
      %v2039 = vld [vmem:[%s2017 + $0xa8] sm:$0xff]
      %v2040 = vld [vmem:[%s2017 + $0xb0] sm:$0xff]
      %v2041 = vld [vmem:[%s2017 + $0xb8] sm:$0xff]
      %v2042 = vld [vmem:[%s2017 + $0xc0] sm:$0xff]
      %v2043 = vld [vmem:[%s2017 + $0xc8] sm:$0xff]
      %v2044 = vld [vmem:[%s2017 + $0xd0] sm:$0xff]
      %v2045 = vld [vmem:[%s2017 + $0xd8] sm:$0xff]
      %v2046 = vld [vmem:[%s2017 + $0xe0] sm:$0xff]
      %v2047 = vld [vmem:[%s2017 + $0xe8] sm:$0xff]
      %v2048 = vld [vmem:[%s2017 + $0xf0] sm:$0xff]
      %v2049 = vld [vmem:[%s2017 + $0xf8] sm:$0xff]
      %s2050 = scalar_lea.vmem %s11, 256
      %v2051 = vld [vmem:[%s2050] sm:$0xff]
      %v2052 = vld [vmem:[%s2050 + $0x8] sm:$0xff]
      %v2053 = vld [vmem:[%s2050 + $0x10] sm:$0xff]
      %v2054 = vld [vmem:[%s2050 + $0x18] sm:$0xff]
      %v2055 = vld [vmem:[%s2050 + $0x20] sm:$0xff]
      %v2056 = vld [vmem:[%s2050 + $0x28] sm:$0xff]
      %v2057 = vld [vmem:[%s2050 + $0x30] sm:$0xff]
      %v2058 = vld [vmem:[%s2050 + $0x38] sm:$0xff]
      %v2059 = vld [vmem:[%s2050 + $0x40] sm:$0xff]
      %v2060 = vld [vmem:[%s2050 + $0x48] sm:$0xff]
      %v2061 = vld [vmem:[%s2050 + $0x50] sm:$0xff]
      %v2062 = vld [vmem:[%s2050 + $0x58] sm:$0xff]
      %v2063 = vld [vmem:[%s2050 + $0x60] sm:$0xff]
      %v2064 = vld [vmem:[%s2050 + $0x68] sm:$0xff]
      %v2065 = vld [vmem:[%s2050 + $0x70] sm:$0xff]
      %v2066 = vld [vmem:[%s2050 + $0x78] sm:$0xff]
      %v2067 = vld [vmem:[%s2050 + $0x80] sm:$0xff]
      %v2068 = vld [vmem:[%s2050 + $0x88] sm:$0xff]
      %v2069 = vld [vmem:[%s2050 + $0x90] sm:$0xff]
      %v2070 = vld [vmem:[%s2050 + $0x98] sm:$0xff]
      %v2071 = vld [vmem:[%s2050 + $0xa0] sm:$0xff]
      %v2072 = vld [vmem:[%s2050 + $0xa8] sm:$0xff]
      %v2073 = vld [vmem:[%s2050 + $0xb0] sm:$0xff]
      %v2074 = vld [vmem:[%s2050 + $0xb8] sm:$0xff]
      %v2075 = vld [vmem:[%s2050 + $0xc0] sm:$0xff]
      %v2076 = vld [vmem:[%s2050 + $0xc8] sm:$0xff]
      %v2077 = vld [vmem:[%s2050 + $0xd0] sm:$0xff]
      %v2078 = vld [vmem:[%s2050 + $0xd8] sm:$0xff]
      %v2079 = vld [vmem:[%s2050 + $0xe0] sm:$0xff]
      %v2080 = vld [vmem:[%s2050 + $0xe8] sm:$0xff]
      %v2081 = vld [vmem:[%s2050 + $0xf0] sm:$0xff]
      %v2082 = vld [vmem:[%s2050 + $0xf8] sm:$0xff]
      %2084 = vset.pattern.permute.xlu0 0
      %2085 = vperm.xlu0 %2084, %v2051
      %v2086 = vpop.permute.xlu0 %2085
      %2089 = vset.pattern.permute.xlu0 0
      %2090 = vperm.xlu0 %2089, %v2052
      %v2091 = vpop.permute.xlu0 %2090
      %2094 = vset.pattern.permute.xlu0 0
      %2095 = vperm.xlu0 %2094, %v2053
      %v2096 = vpop.permute.xlu0 %2095
      %2099 = vset.pattern.permute.xlu0 0
      %2100 = vperm.xlu0 %2099, %v2054
      %v2101 = vpop.permute.xlu0 %2100
      %2104 = vset.pattern.permute.xlu0 0
      %2105 = vperm.xlu0 %2104, %v2055
      %v2106 = vpop.permute.xlu0 %2105
      %2109 = vset.pattern.permute.xlu0 0
      %2110 = vperm.xlu0 %2109, %v2056
      %v2111 = vpop.permute.xlu0 %2110
      %2114 = vset.pattern.permute.xlu0 0
      %2115 = vperm.xlu0 %2114, %v2057
      %v2116 = vpop.permute.xlu0 %2115
      %2119 = vset.pattern.permute.xlu0 0
      %2120 = vperm.xlu0 %2119, %v2058
      %v2121 = vpop.permute.xlu0 %2120
      %2124 = vset.pattern.permute.xlu0 0
      %2125 = vperm.xlu0 %2124, %v2059
      %v2126 = vpop.permute.xlu0 %2125
      %2129 = vset.pattern.permute.xlu0 0
      %2130 = vperm.xlu0 %2129, %v2060
      %v2131 = vpop.permute.xlu0 %2130
      %2134 = vset.pattern.permute.xlu0 0
      %2135 = vperm.xlu0 %2134, %v2061
      %v2136 = vpop.permute.xlu0 %2135
      %2139 = vset.pattern.permute.xlu0 0
      %2140 = vperm.xlu0 %2139, %v2062
      %v2141 = vpop.permute.xlu0 %2140
      %2144 = vset.pattern.permute.xlu0 0
      %2145 = vperm.xlu0 %2144, %v2063
      %v2146 = vpop.permute.xlu0 %2145
      %2149 = vset.pattern.permute.xlu0 0
      %2150 = vperm.xlu0 %2149, %v2064
      %v2151 = vpop.permute.xlu0 %2150
      %2154 = vset.pattern.permute.xlu0 0
      %2155 = vperm.xlu0 %2154, %v2065
      %v2156 = vpop.permute.xlu0 %2155
      %2159 = vset.pattern.permute.xlu0 0
      %2160 = vperm.xlu0 %2159, %v2066
      %v2161 = vpop.permute.xlu0 %2160
      %2164 = vset.pattern.permute.xlu0 0
      %2165 = vperm.xlu0 %2164, %v2067
      %v2166 = vpop.permute.xlu0 %2165
      %2169 = vset.pattern.permute.xlu0 0
      %2170 = vperm.xlu0 %2169, %v2068
      %v2171 = vpop.permute.xlu0 %2170
      %2174 = vset.pattern.permute.xlu0 0
      %2175 = vperm.xlu0 %2174, %v2069
      %v2176 = vpop.permute.xlu0 %2175
      %2179 = vset.pattern.permute.xlu0 0
      %2180 = vperm.xlu0 %2179, %v2070
      %v2181 = vpop.permute.xlu0 %2180
      %2184 = vset.pattern.permute.xlu0 0
      %2185 = vperm.xlu0 %2184, %v2071
      %v2186 = vpop.permute.xlu0 %2185
      %2189 = vset.pattern.permute.xlu0 0
      %2190 = vperm.xlu0 %2189, %v2072
      %v2191 = vpop.permute.xlu0 %2190
      %2194 = vset.pattern.permute.xlu0 0
      %2195 = vperm.xlu0 %2194, %v2073
      %v2196 = vpop.permute.xlu0 %2195
      %2199 = vset.pattern.permute.xlu0 0
      %2200 = vperm.xlu0 %2199, %v2074
      %v2201 = vpop.permute.xlu0 %2200
      %2204 = vset.pattern.permute.xlu0 0
      %2205 = vperm.xlu0 %2204, %v2075
      %v2206 = vpop.permute.xlu0 %2205
      %2209 = vset.pattern.permute.xlu0 0
      %2210 = vperm.xlu0 %2209, %v2076
      %v2211 = vpop.permute.xlu0 %2210
      %2214 = vset.pattern.permute.xlu0 0
      %2215 = vperm.xlu0 %2214, %v2077
      %v2216 = vpop.permute.xlu0 %2215
      %2219 = vset.pattern.permute.xlu0 0
      %2220 = vperm.xlu0 %2219, %v2078
      %v2221 = vpop.permute.xlu0 %2220
      %2224 = vset.pattern.permute.xlu0 0
      %2225 = vperm.xlu0 %2224, %v2079
      %v2226 = vpop.permute.xlu0 %2225
      %2229 = vset.pattern.permute.xlu0 0
      %2230 = vperm.xlu0 %2229, %v2080
      %v2231 = vpop.permute.xlu0 %2230
      %2234 = vset.pattern.permute.xlu0 0
      %2235 = vperm.xlu0 %2234, %v2081
      %v2236 = vpop.permute.xlu0 %2235
      %2239 = vset.pattern.permute.xlu0 0
      %2240 = vperm.xlu0 %2239, %v2082
      %v2241 = vpop.permute.xlu0 %2240
      %v2244 = vsel %vm1249, %v2018, 0
      %v2247 = vsel %vm1249, %v2019, 0
      %v2250 = vsel %vm1249, %v2020, 0
      %v2253 = vsel %vm1249, %v2021, 0
      %v2256 = vsel %vm1249, %v2022, 0
      %v2259 = vsel %vm1249, %v2023, 0
      %v2262 = vsel %vm1249, %v2024, 0
      %v2265 = vsel %vm1249, %v2025, 0
      %v2268 = vsel %vm1249, %v2026, 0
      %v2271 = vsel %vm1249, %v2027, 0
      %v2274 = vsel %vm1249, %v2028, 0
      %v2277 = vsel %vm1249, %v2029, 0
      %v2280 = vsel %vm1249, %v2030, 0
      %v2283 = vsel %vm1249, %v2031, 0
      %v2286 = vsel %vm1249, %v2032, 0
      %v2289 = vsel %vm1249, %v2033, 0
      %v2292 = vsel %vm1249, %v2034, 0
      %v2295 = vsel %vm1249, %v2035, 0
      %v2298 = vsel %vm1249, %v2036, 0
      %v2301 = vsel %vm1249, %v2037, 0
      %v2304 = vsel %vm1249, %v2038, 0
      %v2307 = vsel %vm1249, %v2039, 0
      %v2310 = vsel %vm1249, %v2040, 0
      %v2313 = vsel %vm1249, %v2041, 0
      %v2316 = vsel %vm1249, %v2042, 0
      %v2319 = vsel %vm1249, %v2043, 0
      %v2322 = vsel %vm1249, %v2044, 0
      %v2325 = vsel %vm1249, %v2045, 0
      %v2328 = vsel %vm1249, %v2046, 0
      %v2331 = vsel %vm1249, %v2047, 0
      %v2334 = vsel %vm1249, %v2048, 0
      %v2337 = vsel %vm1249, %v2049, 0
      %v2340 = vsel %vm1346, %v2016, 0
      %2342 = vmatprep.subr.mxu0 0.0
      %2343 = vmatpush1.msra.mxu0 %v2340
      %2344 = vmatprep.subr.mxu0 0.0
      %2345 = vmatpush1.msra.mxu0 0.0
      %2346 = vmatprep.subr.mxu0 0.0
      %2347 = vmatpush1.msra.mxu0 0.0
      %2348 = vmatprep.subr.mxu0 0.0
      %2349 = vmatpush1.msra.mxu0 0.0
      %2350 = vmatprep.subr.mxu0 0.0
      %2351 = vmatpush1.msra.mxu0 0.0
      %2352 = vmatprep.subr.mxu0 0.0
      %2353 = vmatpush1.msra.mxu0 0.0
      %2354 = vmatprep.subr.mxu0 0.0
      %2355 = vmatpush1.msra.mxu0 0.0
      %2356 = vmatprep.subr.mxu0 0.0
      %2357 = vmatpush1.msra.mxu0 0.0
      %2358 = vmatprep.subr.mxu0 0.0
      %2359 = vmatpush1.msra.mxu0 0.0
      %2360 = vmatprep.subr.mxu0 0.0
      %2361 = vmatpush1.msra.mxu0 0.0
      %2362 = vmatprep.subr.mxu0 0.0
      %2363 = vmatpush1.msra.mxu0 0.0
      %2364 = vmatprep.subr.mxu0 0.0
      %2365 = vmatpush1.msra.mxu0 0.0
      %2366 = vmatprep.subr.mxu0 0.0
      %2367 = vmatpush1.msra.mxu0 0.0
      %2368 = vmatprep.subr.mxu0 0.0
      %2369 = vmatpush1.msra.mxu0 0.0
      %2370 = vmatprep.subr.mxu0 0.0
      %2371 = vmatpush1.msra.mxu0 0.0
      %2372 = vmatprep.subr.mxu0 0.0
      %2373 = vmatpush1.msra.mxu0 0.0
      %2374 = vmatprep.subr.mxu0 0.0
      %2375 = vmatpush1.msra.mxu0 0.0
      %2376 = vmatprep.subr.mxu0 0.0
      %2377 = vmatpush1.msra.mxu0 0.0
      %2378 = vmatprep.subr.mxu0 0.0
      %2379 = vmatpush1.msra.mxu0 0.0
      %2380 = vmatprep.subr.mxu0 0.0
      %2381 = vmatpush1.msra.mxu0 0.0
      %2382 = vmatprep.subr.mxu0 0.0
      %2383 = vmatpush1.msra.mxu0 0.0
      %2384 = vmatprep.subr.mxu0 0.0
      %2385 = vmatpush1.msra.mxu0 0.0
      %2386 = vmatprep.subr.mxu0 0.0
      %2387 = vmatpush1.msra.mxu0 0.0
      %2388 = vmatprep.subr.mxu0 0.0
      %2389 = vmatpush1.msra.mxu0 0.0
      %2390 = vmatprep.subr.mxu0 0.0
      %2391 = vmatpush1.msra.mxu0 0.0
      %2392 = vmatprep.subr.mxu0 0.0
      %2393 = vmatpush1.msra.mxu0 0.0
      %2394 = vmatprep.subr.mxu0 0.0
      %2395 = vmatpush1.msra.mxu0 0.0
      %2396 = vmatprep.subr.mxu0 0.0
      %2397 = vmatpush1.msra.mxu0 0.0
      %2398 = vmatprep.subr.mxu0 0.0
      %2399 = vmatpush1.msra.mxu0 0.0
      %2400 = vmatprep.subr.mxu0 0.0
      %2401 = vmatpush1.msra.mxu0 0.0
      %2402 = vmatprep.subr.mxu0 0.0
      %2403 = vmatpush1.msra.mxu0 0.0
      %2404 = vmatprep.subr.mxu0 0.0
      %2405 = vmatpush1.msra.mxu0 0.0
      %2406 = vmatprep.mubr.f32.mxu0 0.0
      %2407 = vmatmul.mubr.f32.gmra.mrb[0].mxu0 %v2244
      %v2408 = vpop.f32.mrb[0].mxu0
      %v2409 = vadd.f32 %v2086, %v2408
      %v2410 = vpop.f32.mrb[0].mxu0
      %2411 = vmatprep.mubr.f32.mxu0 0.0
      %2412 = vmatmul.mubr.f32.gmra.mrb[0].mxu0 %v2247
      %v2413 = vpop.f32.mrb[0].mxu0
      %v2414 = vadd.f32 %v2091, %v2413
      %v2415 = vpop.f32.mrb[0].mxu0
      %2416 = vmatprep.mubr.f32.mxu0 0.0
      %2417 = vmatmul.mubr.f32.gmra.mrb[0].mxu0 %v2250
      %v2418 = vpop.f32.mrb[0].mxu0
      %v2419 = vadd.f32 %v2096, %v2418
      %v2420 = vpop.f32.mrb[0].mxu0
      %2421 = vmatprep.mubr.f32.mxu0 0.0
      %2422 = vmatmul.mubr.f32.gmra.mrb[0].mxu0 %v2253
      %v2423 = vpop.f32.mrb[0].mxu0
      %v2424 = vadd.f32 %v2101, %v2423
      %v2425 = vpop.f32.mrb[0].mxu0
      %2426 = vmatprep.mubr.f32.mxu0 0.0
      %2427 = vmatmul.mubr.f32.gmra.mrb[0].mxu0 %v2256
      %v2428 = vpop.f32.mrb[0].mxu0
      %v2429 = vadd.f32 %v2106, %v2428
      %v2430 = vpop.f32.mrb[0].mxu0
      %2431 = vmatprep.mubr.f32.mxu0 0.0
      %2432 = vmatmul.mubr.f32.gmra.mrb[0].mxu0 %v2259
      %v2433 = vpop.f32.mrb[0].mxu0
      %v2434 = vadd.f32 %v2111, %v2433
      %v2435 = vpop.f32.mrb[0].mxu0
      %2436 = vmatprep.mubr.f32.mxu0 0.0
      %2437 = vmatmul.mubr.f32.gmra.mrb[0].mxu0 %v2262
      %v2438 = vpop.f32.mrb[0].mxu0
      %v2439 = vadd.f32 %v2116, %v2438
      %v2440 = vpop.f32.mrb[0].mxu0
      %2441 = vmatprep.mubr.f32.mxu0 0.0
      %2442 = vmatmul.mubr.f32.gmra.mrb[0].mxu0 %v2265
      %v2443 = vpop.f32.mrb[0].mxu0
      %v2444 = vadd.f32 %v2121, %v2443
      %v2445 = vpop.f32.mrb[0].mxu0
      %2446 = vmatprep.mubr.f32.mxu0 0.0
      %2447 = vmatmul.mubr.f32.gmra.mrb[0].mxu0 %v2268
      %v2448 = vpop.f32.mrb[0].mxu0
      %v2449 = vadd.f32 %v2126, %v2448
      %v2450 = vpop.f32.mrb[0].mxu0
      %2451 = vmatprep.mubr.f32.mxu0 0.0
      %2452 = vmatmul.mubr.f32.gmra.mrb[0].mxu0 %v2271
      %v2453 = vpop.f32.mrb[0].mxu0
      %v2454 = vadd.f32 %v2131, %v2453
      %v2455 = vpop.f32.mrb[0].mxu0
      %2456 = vmatprep.mubr.f32.mxu0 0.0
      %2457 = vmatmul.mubr.f32.gmra.mrb[0].mxu0 %v2274
      %v2458 = vpop.f32.mrb[0].mxu0
      %v2459 = vadd.f32 %v2136, %v2458
      %v2460 = vpop.f32.mrb[0].mxu0
      %2461 = vmatprep.mubr.f32.mxu0 0.0
      %2462 = vmatmul.mubr.f32.gmra.mrb[0].mxu0 %v2277
      %v2463 = vpop.f32.mrb[0].mxu0
      %v2464 = vadd.f32 %v2141, %v2463
      %v2465 = vpop.f32.mrb[0].mxu0
      %2466 = vmatprep.mubr.f32.mxu0 0.0
      %2467 = vmatmul.mubr.f32.gmra.mrb[0].mxu0 %v2280
      %v2468 = vpop.f32.mrb[0].mxu0
      %v2469 = vadd.f32 %v2146, %v2468
      %v2470 = vpop.f32.mrb[0].mxu0
      %2471 = vmatprep.mubr.f32.mxu0 0.0
      %2472 = vmatmul.mubr.f32.gmra.mrb[0].mxu0 %v2283
      %v2473 = vpop.f32.mrb[0].mxu0
      %v2474 = vadd.f32 %v2151, %v2473
      %v2475 = vpop.f32.mrb[0].mxu0
      %2476 = vmatprep.mubr.f32.mxu0 0.0
      %2477 = vmatmul.mubr.f32.gmra.mrb[0].mxu0 %v2286
      %v2478 = vpop.f32.mrb[0].mxu0
      %v2479 = vadd.f32 %v2156, %v2478
      %v2480 = vpop.f32.mrb[0].mxu0
      %2481 = vmatprep.mubr.f32.mxu0 0.0
      %2482 = vmatmul.mubr.f32.gmra.mrb[0].mxu0 %v2289
      %v2483 = vpop.f32.mrb[0].mxu0
      %v2484 = vadd.f32 %v2161, %v2483
      %v2485 = vpop.f32.mrb[0].mxu0
      %2486 = vmatprep.mubr.f32.mxu0 0.0
      %2487 = vmatmul.mubr.f32.gmra.mrb[0].mxu0 %v2292
      %v2488 = vpop.f32.mrb[0].mxu0
      %v2489 = vadd.f32 %v2166, %v2488
      %v2490 = vpop.f32.mrb[0].mxu0
      %2491 = vmatprep.mubr.f32.mxu0 0.0
      %2492 = vmatmul.mubr.f32.gmra.mrb[0].mxu0 %v2295
      %v2493 = vpop.f32.mrb[0].mxu0
      %v2494 = vadd.f32 %v2171, %v2493
      %v2495 = vpop.f32.mrb[0].mxu0
      %2496 = vmatprep.mubr.f32.mxu0 0.0
      %2497 = vmatmul.mubr.f32.gmra.mrb[0].mxu0 %v2298
      %v2498 = vpop.f32.mrb[0].mxu0
      %v2499 = vadd.f32 %v2176, %v2498
      %v2500 = vpop.f32.mrb[0].mxu0
      %2501 = vmatprep.mubr.f32.mxu0 0.0
      %2502 = vmatmul.mubr.f32.gmra.mrb[0].mxu0 %v2301
      %v2503 = vpop.f32.mrb[0].mxu0
      %v2504 = vadd.f32 %v2181, %v2503
      %v2505 = vpop.f32.mrb[0].mxu0
      %2506 = vmatprep.mubr.f32.mxu0 0.0
      %2507 = vmatmul.mubr.f32.gmra.mrb[0].mxu0 %v2304
      %v2508 = vpop.f32.mrb[0].mxu0
      %v2509 = vadd.f32 %v2186, %v2508
      %v2510 = vpop.f32.mrb[0].mxu0
      %2511 = vmatprep.mubr.f32.mxu0 0.0
      %2512 = vmatmul.mubr.f32.gmra.mrb[0].mxu0 %v2307
      %v2513 = vpop.f32.mrb[0].mxu0
      %v2514 = vadd.f32 %v2191, %v2513
      %v2515 = vpop.f32.mrb[0].mxu0
      %2516 = vmatprep.mubr.f32.mxu0 0.0
      %2517 = vmatmul.mubr.f32.gmra.mrb[0].mxu0 %v2310
      %v2518 = vpop.f32.mrb[0].mxu0
      %v2519 = vadd.f32 %v2196, %v2518
      %v2520 = vpop.f32.mrb[0].mxu0
      %2521 = vmatprep.mubr.f32.mxu0 0.0
      %2522 = vmatmul.mubr.f32.gmra.mrb[0].mxu0 %v2313
      %v2523 = vpop.f32.mrb[0].mxu0
      %v2524 = vadd.f32 %v2201, %v2523
      %v2525 = vpop.f32.mrb[0].mxu0
      %2526 = vmatprep.mubr.f32.mxu0 0.0
      %2527 = vmatmul.mubr.f32.gmra.mrb[0].mxu0 %v2316
      %v2528 = vpop.f32.mrb[0].mxu0
      %v2529 = vadd.f32 %v2206, %v2528
      %v2530 = vpop.f32.mrb[0].mxu0
      %2531 = vmatprep.mubr.f32.mxu0 0.0
      %2532 = vmatmul.mubr.f32.gmra.mrb[0].mxu0 %v2319
      %v2533 = vpop.f32.mrb[0].mxu0
      %v2534 = vadd.f32 %v2211, %v2533
      %v2535 = vpop.f32.mrb[0].mxu0
      %2536 = vmatprep.mubr.f32.mxu0 0.0
      %2537 = vmatmul.mubr.f32.gmra.mrb[0].mxu0 %v2322
      %v2538 = vpop.f32.mrb[0].mxu0
      %v2539 = vadd.f32 %v2216, %v2538
      %v2540 = vpop.f32.mrb[0].mxu0
      %2541 = vmatprep.mubr.f32.mxu0 0.0
      %2542 = vmatmul.mubr.f32.gmra.mrb[0].mxu0 %v2325
      %v2543 = vpop.f32.mrb[0].mxu0
      %v2544 = vadd.f32 %v2221, %v2543
      %v2545 = vpop.f32.mrb[0].mxu0
      %2546 = vmatprep.mubr.f32.mxu0 0.0
      %2547 = vmatmul.mubr.f32.gmra.mrb[0].mxu0 %v2328
      %v2548 = vpop.f32.mrb[0].mxu0
      %v2549 = vadd.f32 %v2226, %v2548
      %v2550 = vpop.f32.mrb[0].mxu0
      %2551 = vmatprep.mubr.f32.mxu0 0.0
      %2552 = vmatmul.mubr.f32.gmra.mrb[0].mxu0 %v2331
      %v2553 = vpop.f32.mrb[0].mxu0
      %v2554 = vadd.f32 %v2231, %v2553
      %v2555 = vpop.f32.mrb[0].mxu0
      %2556 = vmatprep.mubr.f32.mxu0 0.0
      %2557 = vmatmul.mubr.f32.gmra.mrb[0].mxu0 %v2334
      %v2558 = vpop.f32.mrb[0].mxu0
      %v2559 = vadd.f32 %v2236, %v2558
      %v2560 = vpop.f32.mrb[0].mxu0
      %2561 = vmatprep.mubr.f32.mxu0 0.0
      %2562 = vmatmul.mubr.f32.gmra.mrb[0].mxu0 %v2337
      %v2563 = vpop.f32.mrb[0].mxu0
      %v2564 = vadd.f32 %v2241, %v2563
      %v2565 = vpop.f32.mrb[0].mxu0
      %2566 = vdwg.mxu0
      %v2567 = vmax.f32 %v2409, 0.0
      %v2568 = vmax.f32 %v2414, 0.0
      %v2569 = vmax.f32 %v2419, 0.0
      %v2570 = vmax.f32 %v2424, 0.0
      %v2571 = vmax.f32 %v2429, 0.0
      %v2572 = vmax.f32 %v2434, 0.0
      %v2573 = vmax.f32 %v2439, 0.0
      %v2574 = vmax.f32 %v2444, 0.0
      %v2575 = vmax.f32 %v2449, 0.0
      %v2576 = vmax.f32 %v2454, 0.0
      %v2577 = vmax.f32 %v2459, 0.0
      %v2578 = vmax.f32 %v2464, 0.0
      %v2579 = vmax.f32 %v2469, 0.0
      %v2580 = vmax.f32 %v2474, 0.0
      %v2581 = vmax.f32 %v2479, 0.0
      %v2582 = vmax.f32 %v2484, 0.0
      %v2583 = vmax.f32 %v2489, 0.0
      %v2584 = vmax.f32 %v2494, 0.0
      %v2585 = vmax.f32 %v2499, 0.0
      %v2586 = vmax.f32 %v2504, 0.0
      %v2587 = vmax.f32 %v2509, 0.0
      %v2588 = vmax.f32 %v2514, 0.0
      %v2589 = vmax.f32 %v2519, 0.0
      %v2590 = vmax.f32 %v2524, 0.0
      %v2591 = vmax.f32 %v2529, 0.0
      %v2592 = vmax.f32 %v2534, 0.0
      %v2593 = vmax.f32 %v2539, 0.0
      %v2594 = vmax.f32 %v2544, 0.0
      %v2595 = vmax.f32 %v2549, 0.0
      %v2596 = vmax.f32 %v2554, 0.0
      %v2597 = vmax.f32 %v2559, 0.0
      %v2598 = vmax.f32 %v2564, 0.0
      %s2599 = scalar_lea.vmem %s8, 16
      %v2600 = vld [vmem:[%s2599] sm:$0x3f]
      %v2601 = vld [vmem:[%s2599 + $0x8] sm:$0x3f]
      %s2602 = scalar_lea.vmem %s12, 8
      %v2603 = vld [vmem:[%s2602] sm:$0x3f]
      %2605 = vset.pattern.permute.xlu0 0
      %2606 = vperm.xlu0 %2605, %v2603
      %v2607 = vpop.permute.xlu0 %2606
      %2609 = vmatprep.subr.mxu0 0.0
      %2610 = vmatpush1.msra.mxu0 %v2567
      %2611 = vmatprep.subr.mxu0 0.0
      %2612 = vmatpush1.msra.mxu0 %v2568
      %2613 = vmatprep.subr.mxu0 0.0
      %2614 = vmatpush1.msra.mxu0 %v2569
      %2615 = vmatprep.subr.mxu0 0.0
      %2616 = vmatpush1.msra.mxu0 %v2570
      %2617 = vmatprep.subr.mxu0 0.0
      %2618 = vmatpush1.msra.mxu0 %v2571
      %2619 = vmatprep.subr.mxu0 0.0
      %2620 = vmatpush1.msra.mxu0 %v2572
      %2621 = vmatprep.subr.mxu0 0.0
      %2622 = vmatpush1.msra.mxu0 %v2573
      %2623 = vmatprep.subr.mxu0 0.0
      %2624 = vmatpush1.msra.mxu0 %v2574
      %2625 = vmatprep.subr.mxu0 0.0
      %2626 = vmatpush1.msra.mxu0 %v2575
      %2627 = vmatprep.subr.mxu0 0.0
      %2628 = vmatpush1.msra.mxu0 %v2576
      %2629 = vmatprep.subr.mxu0 0.0
      %2630 = vmatpush1.msra.mxu0 %v2577
      %2631 = vmatprep.subr.mxu0 0.0
      %2632 = vmatpush1.msra.mxu0 %v2578
      %2633 = vmatprep.subr.mxu0 0.0
      %2634 = vmatpush1.msra.mxu0 %v2579
      %2635 = vmatprep.subr.mxu0 0.0
      %2636 = vmatpush1.msra.mxu0 %v2580
      %2637 = vmatprep.subr.mxu0 0.0
      %2638 = vmatpush1.msra.mxu0 %v2581
      %2639 = vmatprep.subr.mxu0 0.0
      %2640 = vmatpush1.msra.mxu0 %v2582
      %2641 = vmatprep.subr.mxu0 0.0
      %2642 = vmatpush1.msra.mxu0 %v2583
      %2643 = vmatprep.subr.mxu0 0.0
      %2644 = vmatpush1.msra.mxu0 %v2584
      %2645 = vmatprep.subr.mxu0 0.0
      %2646 = vmatpush1.msra.mxu0 %v2585
      %2647 = vmatprep.subr.mxu0 0.0
      %2648 = vmatpush1.msra.mxu0 %v2586
      %2649 = vmatprep.subr.mxu0 0.0
      %2650 = vmatpush1.msra.mxu0 %v2587
      %2651 = vmatprep.subr.mxu0 0.0
      %2652 = vmatpush1.msra.mxu0 %v2588
      %2653 = vmatprep.subr.mxu0 0.0
      %2654 = vmatpush1.msra.mxu0 %v2589
      %2655 = vmatprep.subr.mxu0 0.0
      %2656 = vmatpush1.msra.mxu0 %v2590
      %2657 = vmatprep.subr.mxu0 0.0
      %2658 = vmatpush1.msra.mxu0 %v2591
      %2659 = vmatprep.subr.mxu0 0.0
      %2660 = vmatpush1.msra.mxu0 %v2592
      %2661 = vmatprep.subr.mxu0 0.0
      %2662 = vmatpush1.msra.mxu0 %v2593
      %2663 = vmatprep.subr.mxu0 0.0
      %2664 = vmatpush1.msra.mxu0 %v2594
      %2665 = vmatprep.subr.mxu0 0.0
      %2666 = vmatpush1.msra.mxu0 %v2595
      %2667 = vmatprep.subr.mxu0 0.0
      %2668 = vmatpush1.msra.mxu0 %v2596
      %2669 = vmatprep.subr.mxu0 0.0
      %2670 = vmatpush1.msra.mxu0 %v2597
      %2671 = vmatprep.subr.mxu0 0.0
      %2672 = vmatpush1.msra.mxu0 %v2598
      %2673 = vmatprep.mubr.f32.mxu0 %v2601
      %2674 = vmatmul.mubr.f32.gmra.mrb[0].mxu0 %v2600
      %v2675 = vpop.f32.mrb[0].mxu0
      %v2676 = vadd.f32 %v2607, %v2675
      %v2677 = vpop.f32.mrb[0].mxu0
      %2678 = vdwg.mxu0
      %s2679 = scalar_lea.vmem %s9, 8
      %v2680 = vld [vmem:[%s2679] sm:$0xf]
      %v2681 = vadd.f32 %v2676, %v695
      %s2682 = scalar_lea.vmem %s4, 256
      %v2683 = vld [vmem:[%s2682] sm:$0xff]
      %v2684 = vld [vmem:[%s2682 + $0x8] sm:$0xff]
      %v2685 = vld [vmem:[%s2682 + $0x10] sm:$0xff]
      %v2686 = vld [vmem:[%s2682 + $0x18] sm:$0xff]
      %v2687 = vld [vmem:[%s2682 + $0x20] sm:$0xff]
      %v2688 = vld [vmem:[%s2682 + $0x28] sm:$0xff]
      %v2689 = vld [vmem:[%s2682 + $0x30] sm:$0xff]
      %v2690 = vld [vmem:[%s2682 + $0x38] sm:$0xff]
      %v2691 = vld [vmem:[%s2682 + $0x40] sm:$0xff]
      %v2692 = vld [vmem:[%s2682 + $0x48] sm:$0xff]
      %v2693 = vld [vmem:[%s2682 + $0x50] sm:$0xff]
      %v2694 = vld [vmem:[%s2682 + $0x58] sm:$0xff]
      %v2695 = vld [vmem:[%s2682 + $0x60] sm:$0xff]
      %v2696 = vld [vmem:[%s2682 + $0x68] sm:$0xff]
      %v2697 = vld [vmem:[%s2682 + $0x70] sm:$0xff]
      %v2698 = vld [vmem:[%s2682 + $0x78] sm:$0xff]
      %2699 = vmatprep.subr.mxu0 0.0
      %2700 = vmatpush1.msra.mxu0 %v2683
      %2701 = vmatprep.subr.mxu0 0.0
      %2702 = vmatpush1.msra.mxu0 %v2684
      %2703 = vmatprep.subr.mxu0 0.0
      %2704 = vmatpush1.msra.mxu0 %v2685
      %2705 = vmatprep.subr.mxu0 0.0
      %2706 = vmatpush1.msra.mxu0 %v2686
      %2707 = vmatprep.subr.mxu0 0.0
      %2708 = vmatpush1.msra.mxu0 %v2687
      %2709 = vmatprep.subr.mxu0 0.0
      %2710 = vmatpush1.msra.mxu0 %v2688
      %2711 = vmatprep.subr.mxu0 0.0
      %2712 = vmatpush1.msra.mxu0 %v2689
      %2713 = vmatprep.subr.mxu0 0.0
      %2714 = vmatpush1.msra.mxu0 %v2690
      %2715 = vmatprep.subr.mxu0 0.0
      %2716 = vmatpush1.msra.mxu0 %v2691
      %2717 = vmatprep.subr.mxu0 0.0
      %2718 = vmatpush1.msra.mxu0 %v2692
      %2719 = vmatprep.subr.mxu0 0.0
      %2720 = vmatpush1.msra.mxu0 %v2693
      %2721 = vmatprep.subr.mxu0 0.0
      %2722 = vmatpush1.msra.mxu0 %v2694
      %2723 = vmatprep.subr.mxu0 0.0
      %2724 = vmatpush1.msra.mxu0 %v2695
      %2725 = vmatprep.subr.mxu0 0.0
      %2726 = vmatpush1.msra.mxu0 %v2696
      %2727 = vmatprep.subr.mxu0 0.0
      %2728 = vmatpush1.msra.mxu0 %v2697
      %2729 = vmatprep.subr.mxu0 0.0
      %2730 = vmatpush1.msra.mxu0 %v2698
      %2731 = vmatprep.subr.mxu0 0.0
      %2732 = vmatpush1.msra.mxu0 0.0
      %2733 = vmatprep.subr.mxu0 0.0
      %2734 = vmatpush1.msra.mxu0 0.0
      %2735 = vmatprep.subr.mxu0 0.0
      %2736 = vmatpush1.msra.mxu0 0.0
      %2737 = vmatprep.subr.mxu0 0.0
      %2738 = vmatpush1.msra.mxu0 0.0
      %2739 = vmatprep.subr.mxu0 0.0
      %2740 = vmatpush1.msra.mxu0 0.0
      %2741 = vmatprep.subr.mxu0 0.0
      %2742 = vmatpush1.msra.mxu0 0.0
      %2743 = vmatprep.subr.mxu0 0.0
      %2744 = vmatpush1.msra.mxu0 0.0
      %2745 = vmatprep.subr.mxu0 0.0
      %2746 = vmatpush1.msra.mxu0 0.0
      %2747 = vmatprep.subr.mxu0 0.0
      %2748 = vmatpush1.msra.mxu0 0.0
      %2749 = vmatprep.subr.mxu0 0.0
      %2750 = vmatpush1.msra.mxu0 0.0
      %2751 = vmatprep.subr.mxu0 0.0
      %2752 = vmatpush1.msra.mxu0 0.0
      %2753 = vmatprep.subr.mxu0 0.0
      %2754 = vmatpush1.msra.mxu0 0.0
      %2755 = vmatprep.subr.mxu0 0.0
      %2756 = vmatpush1.msra.mxu0 0.0
      %2757 = vmatprep.subr.mxu0 0.0
      %2758 = vmatpush1.msra.mxu0 0.0
      %2759 = vmatprep.subr.mxu0 0.0
      %2760 = vmatpush1.msra.mxu0 0.0
      %2761 = vmatprep.subr.mxu0 0.0
      %2762 = vmatpush1.msra.mxu0 0.0
      %2763 = vmatprep.mubr.f32.mxu0 0.0
      %2764 = vmatmul.mubr.f32.gmra.mrb[0].mxu0 %v689
      %v2765 = vpop.f32.mrb[0].mxu0
      %v2766 = vadd.f32 %v2680, %v2765
      %v2767 = vpop.f32.mrb[0].mxu0
      %2768 = vdwg.mxu0
      %v2769 = vlaneseq
      %v2770 = vshrl.u32 %v2769, 7
      %v2771 = vsub.s32 0, %v2770
      %v2772 = vrot.slane %v2766, %v2771
      %v2773 = vadd.f32 %v2681, %v2772
      %v2774 = vsel %vm788, %v2773, 0.0
      %2775 = vadd.xlane.f32.xlu0 %v2774
      %v2776 = vpop.xlane.xlu0 %2775
      %v2777 = vmul.f32 %v2776, %v792
      %v2778 = vsub.f32 %v2773, %v2777
      %v2779 = vmul.f32 %v2778, %v2778
      %v2780 = vsel %vm788, %v2779, 0.0
      %2781 = vadd.xlane.f32.xlu0 %v2780
      %v2782 = vpop.xlane.xlu0 %2781
      %v2783 = vmul.f32 %v2782, %v792
      %v2784 = vadd.f32 %v2783, 1e-05
      %v2785 = vrsqrt.pop %v2784
      %v2786 = vmul.f32 %v2778, %v2785
      %v2787 = vlaneseq
      %v2788 = vshrl.u32 %v2787, 7
      %v2789 = vsub.s32 1, %v2788
      %v2790 = vrot.slane %v2680, %v2789
      %v2791 = vmul.f32 %v2786, %v2790
      %v2792 = vlaneseq
      %v2793 = vshrl.u32 %v2792, 7
      %v2794 = vsub.s32 2, %v2793
      %v2795 = vrot.slane %v2680, %v2794
      %v2796 = vadd.f32 %v2791, %v2795
      %s2797 = scalar_lea.vmem %s5, 256
      %v2798 = vld [vmem:[%s2797] sm:$0xff]
      %v2799 = vld [vmem:[%s2797 + $0x8] sm:$0xff]
      %v2800 = vld [vmem:[%s2797 + $0x10] sm:$0xff]
      %v2801 = vld [vmem:[%s2797 + $0x18] sm:$0xff]
      %v2802 = vld [vmem:[%s2797 + $0x20] sm:$0xff]
      %v2803 = vld [vmem:[%s2797 + $0x28] sm:$0xff]
      %v2804 = vld [vmem:[%s2797 + $0x30] sm:$0xff]
      %v2805 = vld [vmem:[%s2797 + $0x38] sm:$0xff]
      %v2806 = vld [vmem:[%s2797 + $0x40] sm:$0xff]
      %v2807 = vld [vmem:[%s2797 + $0x48] sm:$0xff]
      %v2808 = vld [vmem:[%s2797 + $0x50] sm:$0xff]
      %v2809 = vld [vmem:[%s2797 + $0x58] sm:$0xff]
      %v2810 = vld [vmem:[%s2797 + $0x60] sm:$0xff]
      %v2811 = vld [vmem:[%s2797 + $0x68] sm:$0xff]
      %v2812 = vld [vmem:[%s2797 + $0x70] sm:$0xff]
      %v2813 = vld [vmem:[%s2797 + $0x78] sm:$0xff]
      %s2814 = scalar_lea.vmem %s10, 4
      %v2815 = vld [vmem:[%s2814] sm:$0x3]
      %v2817 = vlaneseq
      %v2818 = vshrl.u32 %v2817, 7
      %v2819 = vsub.s32 0, %v2818
      %v2820 = vrot.slane %v2815, %v2819
      %v2821 = vlaneseq
      %v2822 = vshrl.u32 %v2821, 7
      %v2823 = vsub.s32 1, %v2822
      %v2824 = vrot.slane %v2815, %v2823
      %v2828 = vsel %vm841, %v2796, 0
      %2830 = vmatprep.subr.mxu0 %v2799
      %2831 = vmatpush1.msra.mxu0 %v2798
      %2832 = vmatprep.subr.mxu0 %v2801
      %2833 = vmatpush1.msra.mxu0 %v2800
      %2834 = vmatprep.subr.mxu0 %v2803
      %2835 = vmatpush1.msra.mxu0 %v2802
      %2836 = vmatprep.subr.mxu0 %v2805
      %2837 = vmatpush1.msra.mxu0 %v2804
      %2838 = vmatprep.subr.mxu0 %v2807
      %2839 = vmatpush1.msra.mxu0 %v2806
      %2840 = vmatprep.subr.mxu0 %v2809
      %2841 = vmatpush1.msra.mxu0 %v2808
      %2842 = vmatprep.subr.mxu0 %v2811
      %2843 = vmatpush1.msra.mxu0 %v2810
      %2844 = vmatprep.subr.mxu0 %v2813
      %2845 = vmatpush1.msra.mxu0 %v2812
      %2846 = vmatprep.subr.mxu0 0.0
      %2847 = vmatpush1.msra.mxu0 0.0
      %2848 = vmatprep.subr.mxu0 0.0
      %2849 = vmatpush1.msra.mxu0 0.0
      %2850 = vmatprep.subr.mxu0 0.0
      %2851 = vmatpush1.msra.mxu0 0.0
      %2852 = vmatprep.subr.mxu0 0.0
      %2853 = vmatpush1.msra.mxu0 0.0
      %2854 = vmatprep.subr.mxu0 0.0
      %2855 = vmatpush1.msra.mxu0 0.0
      %2856 = vmatprep.subr.mxu0 0.0
      %2857 = vmatpush1.msra.mxu0 0.0
      %2858 = vmatprep.subr.mxu0 0.0
      %2859 = vmatpush1.msra.mxu0 0.0
      %2860 = vmatprep.subr.mxu0 0.0
      %2861 = vmatpush1.msra.mxu0 0.0
      %2862 = vmatprep.subr.mxu0 0.0
      %2863 = vmatpush1.msra.mxu0 0.0
      %2864 = vmatprep.subr.mxu0 0.0
      %2865 = vmatpush1.msra.mxu0 0.0
      %2866 = vmatprep.subr.mxu0 0.0
      %2867 = vmatpush1.msra.mxu0 0.0
      %2868 = vmatprep.subr.mxu0 0.0
      %2869 = vmatpush1.msra.mxu0 0.0
      %2870 = vmatprep.subr.mxu0 0.0
      %2871 = vmatpush1.msra.mxu0 0.0
      %2872 = vmatprep.subr.mxu0 0.0
      %2873 = vmatpush1.msra.mxu0 0.0
      %2874 = vmatprep.subr.mxu0 0.0
      %2875 = vmatpush1.msra.mxu0 0.0
      %2876 = vmatprep.subr.mxu0 0.0
      %2877 = vmatpush1.msra.mxu0 0.0
      %2878 = vmatprep.subr.mxu0 0.0
      %2879 = vmatpush1.msra.mxu0 0.0
      %2880 = vmatprep.subr.mxu0 0.0
      %2881 = vmatpush1.msra.mxu0 0.0
      %2882 = vmatprep.subr.mxu0 0.0
      %2883 = vmatpush1.msra.mxu0 0.0
      %2884 = vmatprep.subr.mxu0 0.0
      %2885 = vmatpush1.msra.mxu0 0.0
      %2886 = vmatprep.subr.mxu0 0.0
      %2887 = vmatpush1.msra.mxu0 0.0
      %2888 = vmatprep.subr.mxu0 0.0
      %2889 = vmatpush1.msra.mxu0 0.0
      %2890 = vmatprep.subr.mxu0 0.0
      %2891 = vmatpush1.msra.mxu0 0.0
      %2892 = vmatprep.subr.mxu0 0.0
      %2893 = vmatpush1.msra.mxu0 0.0
      %2894 = vmatprep.mubr.f32.mxu0 0.0
      %2895 = vmatmul.mubr.f32.gmra.mrb[0].mxu0 %v2828
      %v2896 = vpop.f32.mrb[0].mxu0
      %v2897 = vadd.f32 %v2820, %v2896
      %v2898 = vpop.f32.mrb[0].mxu0
      %v2899 = vadd.f32 %v2824, %v2898
      %2900 = vdwg.mxu0
      %v2901 = vmax.f32 %v2897, 0.0
      %v2902 = vmax.f32 %v2899, 0.0
      %s2903 = scalar_lea.vmem %s6, 512
      %v2904 = vld [vmem:[%s2903] sm:$0xff]
      %v2905 = vld [vmem:[%s2903 + $0x8] sm:$0xff]
      %v2906 = vld [vmem:[%s2903 + $0x10] sm:$0xff]
      %v2907 = vld [vmem:[%s2903 + $0x18] sm:$0xff]
      %v2908 = vld [vmem:[%s2903 + $0x20] sm:$0xff]
      %v2909 = vld [vmem:[%s2903 + $0x28] sm:$0xff]
      %v2910 = vld [vmem:[%s2903 + $0x30] sm:$0xff]
      %v2911 = vld [vmem:[%s2903 + $0x38] sm:$0xff]
      %v2912 = vld [vmem:[%s2903 + $0x40] sm:$0xff]
      %v2913 = vld [vmem:[%s2903 + $0x48] sm:$0xff]
      %v2914 = vld [vmem:[%s2903 + $0x50] sm:$0xff]
      %v2915 = vld [vmem:[%s2903 + $0x58] sm:$0xff]
      %v2916 = vld [vmem:[%s2903 + $0x60] sm:$0xff]
      %v2917 = vld [vmem:[%s2903 + $0x68] sm:$0xff]
      %v2918 = vld [vmem:[%s2903 + $0x70] sm:$0xff]
      %v2919 = vld [vmem:[%s2903 + $0x78] sm:$0xff]
      %v2920 = vld [vmem:[%s2903 + $0x80] sm:$0xff]
      %v2921 = vld [vmem:[%s2903 + $0x88] sm:$0xff]
      %v2922 = vld [vmem:[%s2903 + $0x90] sm:$0xff]
      %v2923 = vld [vmem:[%s2903 + $0x98] sm:$0xff]
      %v2924 = vld [vmem:[%s2903 + $0xa0] sm:$0xff]
      %v2925 = vld [vmem:[%s2903 + $0xa8] sm:$0xff]
      %v2926 = vld [vmem:[%s2903 + $0xb0] sm:$0xff]
      %v2927 = vld [vmem:[%s2903 + $0xb8] sm:$0xff]
      %v2928 = vld [vmem:[%s2903 + $0xc0] sm:$0xff]
      %v2929 = vld [vmem:[%s2903 + $0xc8] sm:$0xff]
      %v2930 = vld [vmem:[%s2903 + $0xd0] sm:$0xff]
      %v2931 = vld [vmem:[%s2903 + $0xd8] sm:$0xff]
      %v2932 = vld [vmem:[%s2903 + $0xe0] sm:$0xff]
      %v2933 = vld [vmem:[%s2903 + $0xe8] sm:$0xff]
      %v2934 = vld [vmem:[%s2903 + $0xf0] sm:$0xff]
      %v2935 = vld [vmem:[%s2903 + $0xf8] sm:$0xff]
      %v2936 = vlaneseq
      %v2937 = vshrl.u32 %v2936, 7
      %v2938 = vsub.s32 3, %v2937
      %v2939 = vrot.slane %v2680, %v2938
      %2940 = vmatprep.subr.mxu0 0.0
      %2941 = vmatpush1.msra.mxu0 %v2904
      %2942 = vmatprep.subr.mxu0 0.0
      %2943 = vmatpush1.msra.mxu0 %v2905
      %2944 = vmatprep.subr.mxu0 0.0
      %2945 = vmatpush1.msra.mxu0 %v2906
      %2946 = vmatprep.subr.mxu0 0.0
      %2947 = vmatpush1.msra.mxu0 %v2907
      %2948 = vmatprep.subr.mxu0 0.0
      %2949 = vmatpush1.msra.mxu0 %v2908
      %2950 = vmatprep.subr.mxu0 0.0
      %2951 = vmatpush1.msra.mxu0 %v2909
      %2952 = vmatprep.subr.mxu0 0.0
      %2953 = vmatpush1.msra.mxu0 %v2910
      %2954 = vmatprep.subr.mxu0 0.0
      %2955 = vmatpush1.msra.mxu0 %v2911
      %2956 = vmatprep.subr.mxu0 0.0
      %2957 = vmatpush1.msra.mxu0 %v2912
      %2958 = vmatprep.subr.mxu0 0.0
      %2959 = vmatpush1.msra.mxu0 %v2913
      %2960 = vmatprep.subr.mxu0 0.0
      %2961 = vmatpush1.msra.mxu0 %v2914
      %2962 = vmatprep.subr.mxu0 0.0
      %2963 = vmatpush1.msra.mxu0 %v2915
      %2964 = vmatprep.subr.mxu0 0.0
      %2965 = vmatpush1.msra.mxu0 %v2916
      %2966 = vmatprep.subr.mxu0 0.0
      %2967 = vmatpush1.msra.mxu0 %v2917
      %2968 = vmatprep.subr.mxu0 0.0
      %2969 = vmatpush1.msra.mxu0 %v2918
      %2970 = vmatprep.subr.mxu0 0.0
      %2971 = vmatpush1.msra.mxu0 %v2919
      %2972 = vmatprep.subr.mxu0 0.0
      %2973 = vmatpush1.msra.mxu0 %v2920
      %2974 = vmatprep.subr.mxu0 0.0
      %2975 = vmatpush1.msra.mxu0 %v2921
      %2976 = vmatprep.subr.mxu0 0.0
      %2977 = vmatpush1.msra.mxu0 %v2922
      %2978 = vmatprep.subr.mxu0 0.0
      %2979 = vmatpush1.msra.mxu0 %v2923
      %2980 = vmatprep.subr.mxu0 0.0
      %2981 = vmatpush1.msra.mxu0 %v2924
      %2982 = vmatprep.subr.mxu0 0.0
      %2983 = vmatpush1.msra.mxu0 %v2925
      %2984 = vmatprep.subr.mxu0 0.0
      %2985 = vmatpush1.msra.mxu0 %v2926
      %2986 = vmatprep.subr.mxu0 0.0
      %2987 = vmatpush1.msra.mxu0 %v2927
      %2988 = vmatprep.subr.mxu0 0.0
      %2989 = vmatpush1.msra.mxu0 %v2928
      %2990 = vmatprep.subr.mxu0 0.0
      %2991 = vmatpush1.msra.mxu0 %v2929
      %2992 = vmatprep.subr.mxu0 0.0
      %2993 = vmatpush1.msra.mxu0 %v2930
      %2994 = vmatprep.subr.mxu0 0.0
      %2995 = vmatpush1.msra.mxu0 %v2931
      %2996 = vmatprep.subr.mxu0 0.0
      %2997 = vmatpush1.msra.mxu0 %v2932
      %2998 = vmatprep.subr.mxu0 0.0
      %2999 = vmatpush1.msra.mxu0 %v2933
      %3000 = vmatprep.subr.mxu0 0.0
      %3001 = vmatpush1.msra.mxu0 %v2934
      %3002 = vmatprep.subr.mxu0 0.0
      %3003 = vmatpush1.msra.mxu0 %v2935
      %3004 = vmatprep.mubr.f32.mxu0 %v2902
      %3005 = vmatmul.mubr.f32.gmra.mrb[0].mxu0 %v2901
      %v3006 = vpop.f32.mrb[0].mxu0
      %v3007 = vadd.f32 %v2939, %v3006
      %v3008 = vpop.f32.mrb[0].mxu0
      %3009 = vdwg.mxu0
      %v3010 = vadd.f32 %v2796, %v3007
      %s3011 = scalar_lea.vmem %s7, 512
      %v3012 = vld [vmem:[%s3011] sm:$0xff]
      %v3013 = vld [vmem:[%s3011 + $0x8] sm:$0xff]
      %v3014 = vld [vmem:[%s3011 + $0x10] sm:$0xff]
      %v3015 = vld [vmem:[%s3011 + $0x18] sm:$0xff]
      %v3016 = vld [vmem:[%s3011 + $0x20] sm:$0xff]
      %v3017 = vld [vmem:[%s3011 + $0x28] sm:$0xff]
      %v3018 = vld [vmem:[%s3011 + $0x30] sm:$0xff]
      %v3019 = vld [vmem:[%s3011 + $0x38] sm:$0xff]
      %v3020 = vld [vmem:[%s3011 + $0x40] sm:$0xff]
      %v3021 = vld [vmem:[%s3011 + $0x48] sm:$0xff]
      %v3022 = vld [vmem:[%s3011 + $0x50] sm:$0xff]
      %v3023 = vld [vmem:[%s3011 + $0x58] sm:$0xff]
      %v3024 = vld [vmem:[%s3011 + $0x60] sm:$0xff]
      %v3025 = vld [vmem:[%s3011 + $0x68] sm:$0xff]
      %v3026 = vld [vmem:[%s3011 + $0x70] sm:$0xff]
      %v3027 = vld [vmem:[%s3011 + $0x78] sm:$0xff]
      %v3028 = vld [vmem:[%s3011 + $0x80] sm:$0xff]
      %v3029 = vld [vmem:[%s3011 + $0x88] sm:$0xff]
      %v3030 = vld [vmem:[%s3011 + $0x90] sm:$0xff]
      %v3031 = vld [vmem:[%s3011 + $0x98] sm:$0xff]
      %v3032 = vld [vmem:[%s3011 + $0xa0] sm:$0xff]
      %v3033 = vld [vmem:[%s3011 + $0xa8] sm:$0xff]
      %v3034 = vld [vmem:[%s3011 + $0xb0] sm:$0xff]
      %v3035 = vld [vmem:[%s3011 + $0xb8] sm:$0xff]
      %v3036 = vld [vmem:[%s3011 + $0xc0] sm:$0xff]
      %v3037 = vld [vmem:[%s3011 + $0xc8] sm:$0xff]
      %v3038 = vld [vmem:[%s3011 + $0xd0] sm:$0xff]
      %v3039 = vld [vmem:[%s3011 + $0xd8] sm:$0xff]
      %v3040 = vld [vmem:[%s3011 + $0xe0] sm:$0xff]
      %v3041 = vld [vmem:[%s3011 + $0xe8] sm:$0xff]
      %v3042 = vld [vmem:[%s3011 + $0xf0] sm:$0xff]
      %v3043 = vld [vmem:[%s3011 + $0xf8] sm:$0xff]
      %s3044 = scalar_lea.vmem %s11, 512
      %v3045 = vld [vmem:[%s3044] sm:$0xff]
      %v3046 = vld [vmem:[%s3044 + $0x8] sm:$0xff]
      %v3047 = vld [vmem:[%s3044 + $0x10] sm:$0xff]
      %v3048 = vld [vmem:[%s3044 + $0x18] sm:$0xff]
      %v3049 = vld [vmem:[%s3044 + $0x20] sm:$0xff]
      %v3050 = vld [vmem:[%s3044 + $0x28] sm:$0xff]
      %v3051 = vld [vmem:[%s3044 + $0x30] sm:$0xff]
      %v3052 = vld [vmem:[%s3044 + $0x38] sm:$0xff]
      %v3053 = vld [vmem:[%s3044 + $0x40] sm:$0xff]
      %v3054 = vld [vmem:[%s3044 + $0x48] sm:$0xff]
      %v3055 = vld [vmem:[%s3044 + $0x50] sm:$0xff]
      %v3056 = vld [vmem:[%s3044 + $0x58] sm:$0xff]
      %v3057 = vld [vmem:[%s3044 + $0x60] sm:$0xff]
      %v3058 = vld [vmem:[%s3044 + $0x68] sm:$0xff]
      %v3059 = vld [vmem:[%s3044 + $0x70] sm:$0xff]
      %v3060 = vld [vmem:[%s3044 + $0x78] sm:$0xff]
      %v3061 = vld [vmem:[%s3044 + $0x80] sm:$0xff]
      %v3062 = vld [vmem:[%s3044 + $0x88] sm:$0xff]
      %v3063 = vld [vmem:[%s3044 + $0x90] sm:$0xff]
      %v3064 = vld [vmem:[%s3044 + $0x98] sm:$0xff]
      %v3065 = vld [vmem:[%s3044 + $0xa0] sm:$0xff]
      %v3066 = vld [vmem:[%s3044 + $0xa8] sm:$0xff]
      %v3067 = vld [vmem:[%s3044 + $0xb0] sm:$0xff]
      %v3068 = vld [vmem:[%s3044 + $0xb8] sm:$0xff]
      %v3069 = vld [vmem:[%s3044 + $0xc0] sm:$0xff]
      %v3070 = vld [vmem:[%s3044 + $0xc8] sm:$0xff]
      %v3071 = vld [vmem:[%s3044 + $0xd0] sm:$0xff]
      %v3072 = vld [vmem:[%s3044 + $0xd8] sm:$0xff]
      %v3073 = vld [vmem:[%s3044 + $0xe0] sm:$0xff]
      %v3074 = vld [vmem:[%s3044 + $0xe8] sm:$0xff]
      %v3075 = vld [vmem:[%s3044 + $0xf0] sm:$0xff]
      %v3076 = vld [vmem:[%s3044 + $0xf8] sm:$0xff]
      %3078 = vset.pattern.permute.xlu0 0
      %3079 = vperm.xlu0 %3078, %v3045
      %v3080 = vpop.permute.xlu0 %3079
      %3083 = vset.pattern.permute.xlu0 0
      %3084 = vperm.xlu0 %3083, %v3046
      %v3085 = vpop.permute.xlu0 %3084
      %3088 = vset.pattern.permute.xlu0 0
      %3089 = vperm.xlu0 %3088, %v3047
      %v3090 = vpop.permute.xlu0 %3089
      %3093 = vset.pattern.permute.xlu0 0
      %3094 = vperm.xlu0 %3093, %v3048
      %v3095 = vpop.permute.xlu0 %3094
      %3098 = vset.pattern.permute.xlu0 0
      %3099 = vperm.xlu0 %3098, %v3049
      %v3100 = vpop.permute.xlu0 %3099
      %3103 = vset.pattern.permute.xlu0 0
      %3104 = vperm.xlu0 %3103, %v3050
      %v3105 = vpop.permute.xlu0 %3104
      %3108 = vset.pattern.permute.xlu0 0
      %3109 = vperm.xlu0 %3108, %v3051
      %v3110 = vpop.permute.xlu0 %3109
      %3113 = vset.pattern.permute.xlu0 0
      %3114 = vperm.xlu0 %3113, %v3052
      %v3115 = vpop.permute.xlu0 %3114
      %3118 = vset.pattern.permute.xlu0 0
      %3119 = vperm.xlu0 %3118, %v3053
      %v3120 = vpop.permute.xlu0 %3119
      %3123 = vset.pattern.permute.xlu0 0
      %3124 = vperm.xlu0 %3123, %v3054
      %v3125 = vpop.permute.xlu0 %3124
      %3128 = vset.pattern.permute.xlu0 0
      %3129 = vperm.xlu0 %3128, %v3055
      %v3130 = vpop.permute.xlu0 %3129
      %3133 = vset.pattern.permute.xlu0 0
      %3134 = vperm.xlu0 %3133, %v3056
      %v3135 = vpop.permute.xlu0 %3134
      %3138 = vset.pattern.permute.xlu0 0
      %3139 = vperm.xlu0 %3138, %v3057
      %v3140 = vpop.permute.xlu0 %3139
      %3143 = vset.pattern.permute.xlu0 0
      %3144 = vperm.xlu0 %3143, %v3058
      %v3145 = vpop.permute.xlu0 %3144
      %3148 = vset.pattern.permute.xlu0 0
      %3149 = vperm.xlu0 %3148, %v3059
      %v3150 = vpop.permute.xlu0 %3149
      %3153 = vset.pattern.permute.xlu0 0
      %3154 = vperm.xlu0 %3153, %v3060
      %v3155 = vpop.permute.xlu0 %3154
      %3158 = vset.pattern.permute.xlu0 0
      %3159 = vperm.xlu0 %3158, %v3061
      %v3160 = vpop.permute.xlu0 %3159
      %3163 = vset.pattern.permute.xlu0 0
      %3164 = vperm.xlu0 %3163, %v3062
      %v3165 = vpop.permute.xlu0 %3164
      %3168 = vset.pattern.permute.xlu0 0
      %3169 = vperm.xlu0 %3168, %v3063
      %v3170 = vpop.permute.xlu0 %3169
      %3173 = vset.pattern.permute.xlu0 0
      %3174 = vperm.xlu0 %3173, %v3064
      %v3175 = vpop.permute.xlu0 %3174
      %3178 = vset.pattern.permute.xlu0 0
      %3179 = vperm.xlu0 %3178, %v3065
      %v3180 = vpop.permute.xlu0 %3179
      %3183 = vset.pattern.permute.xlu0 0
      %3184 = vperm.xlu0 %3183, %v3066
      %v3185 = vpop.permute.xlu0 %3184
      %3188 = vset.pattern.permute.xlu0 0
      %3189 = vperm.xlu0 %3188, %v3067
      %v3190 = vpop.permute.xlu0 %3189
      %3193 = vset.pattern.permute.xlu0 0
      %3194 = vperm.xlu0 %3193, %v3068
      %v3195 = vpop.permute.xlu0 %3194
      %3198 = vset.pattern.permute.xlu0 0
      %3199 = vperm.xlu0 %3198, %v3069
      %v3200 = vpop.permute.xlu0 %3199
      %3203 = vset.pattern.permute.xlu0 0
      %3204 = vperm.xlu0 %3203, %v3070
      %v3205 = vpop.permute.xlu0 %3204
      %3208 = vset.pattern.permute.xlu0 0
      %3209 = vperm.xlu0 %3208, %v3071
      %v3210 = vpop.permute.xlu0 %3209
      %3213 = vset.pattern.permute.xlu0 0
      %3214 = vperm.xlu0 %3213, %v3072
      %v3215 = vpop.permute.xlu0 %3214
      %3218 = vset.pattern.permute.xlu0 0
      %3219 = vperm.xlu0 %3218, %v3073
      %v3220 = vpop.permute.xlu0 %3219
      %3223 = vset.pattern.permute.xlu0 0
      %3224 = vperm.xlu0 %3223, %v3074
      %v3225 = vpop.permute.xlu0 %3224
      %3228 = vset.pattern.permute.xlu0 0
      %3229 = vperm.xlu0 %3228, %v3075
      %v3230 = vpop.permute.xlu0 %3229
      %3233 = vset.pattern.permute.xlu0 0
      %3234 = vperm.xlu0 %3233, %v3076
      %v3235 = vpop.permute.xlu0 %3234
      %v3238 = vsel %vm1249, %v3012, 0
      %v3241 = vsel %vm1249, %v3013, 0
      %v3244 = vsel %vm1249, %v3014, 0
      %v3247 = vsel %vm1249, %v3015, 0
      %v3250 = vsel %vm1249, %v3016, 0
      %v3253 = vsel %vm1249, %v3017, 0
      %v3256 = vsel %vm1249, %v3018, 0
      %v3259 = vsel %vm1249, %v3019, 0
      %v3262 = vsel %vm1249, %v3020, 0
      %v3265 = vsel %vm1249, %v3021, 0
      %v3268 = vsel %vm1249, %v3022, 0
      %v3271 = vsel %vm1249, %v3023, 0
      %v3274 = vsel %vm1249, %v3024, 0
      %v3277 = vsel %vm1249, %v3025, 0
      %v3280 = vsel %vm1249, %v3026, 0
      %v3283 = vsel %vm1249, %v3027, 0
      %v3286 = vsel %vm1249, %v3028, 0
      %v3289 = vsel %vm1249, %v3029, 0
      %v3292 = vsel %vm1249, %v3030, 0
      %v3295 = vsel %vm1249, %v3031, 0
      %v3298 = vsel %vm1249, %v3032, 0
      %v3301 = vsel %vm1249, %v3033, 0
      %v3304 = vsel %vm1249, %v3034, 0
      %v3307 = vsel %vm1249, %v3035, 0
      %v3310 = vsel %vm1249, %v3036, 0
      %v3313 = vsel %vm1249, %v3037, 0
      %v3316 = vsel %vm1249, %v3038, 0
      %v3319 = vsel %vm1249, %v3039, 0
      %v3322 = vsel %vm1249, %v3040, 0
      %v3325 = vsel %vm1249, %v3041, 0
      %v3328 = vsel %vm1249, %v3042, 0
      %v3331 = vsel %vm1249, %v3043, 0
      %v3334 = vsel %vm1346, %v3010, 0
      %3336 = vmatprep.subr.mxu0 0.0
      %3337 = vmatpush1.msra.mxu0 %v3334
      %3338 = vmatprep.subr.mxu0 0.0
      %3339 = vmatpush1.msra.mxu0 0.0
      %3340 = vmatprep.subr.mxu0 0.0
      %3341 = vmatpush1.msra.mxu0 0.0
      %3342 = vmatprep.subr.mxu0 0.0
      %3343 = vmatpush1.msra.mxu0 0.0
      %3344 = vmatprep.subr.mxu0 0.0
      %3345 = vmatpush1.msra.mxu0 0.0
      %3346 = vmatprep.subr.mxu0 0.0
      %3347 = vmatpush1.msra.mxu0 0.0
      %3348 = vmatprep.subr.mxu0 0.0
      %3349 = vmatpush1.msra.mxu0 0.0
      %3350 = vmatprep.subr.mxu0 0.0
      %3351 = vmatpush1.msra.mxu0 0.0
      %3352 = vmatprep.subr.mxu0 0.0
      %3353 = vmatpush1.msra.mxu0 0.0
      %3354 = vmatprep.subr.mxu0 0.0
      %3355 = vmatpush1.msra.mxu0 0.0
      %3356 = vmatprep.subr.mxu0 0.0
      %3357 = vmatpush1.msra.mxu0 0.0
      %3358 = vmatprep.subr.mxu0 0.0
      %3359 = vmatpush1.msra.mxu0 0.0
      %3360 = vmatprep.subr.mxu0 0.0
      %3361 = vmatpush1.msra.mxu0 0.0
      %3362 = vmatprep.subr.mxu0 0.0
      %3363 = vmatpush1.msra.mxu0 0.0
      %3364 = vmatprep.subr.mxu0 0.0
      %3365 = vmatpush1.msra.mxu0 0.0
      %3366 = vmatprep.subr.mxu0 0.0
      %3367 = vmatpush1.msra.mxu0 0.0
      %3368 = vmatprep.subr.mxu0 0.0
      %3369 = vmatpush1.msra.mxu0 0.0
      %3370 = vmatprep.subr.mxu0 0.0
      %3371 = vmatpush1.msra.mxu0 0.0
      %3372 = vmatprep.subr.mxu0 0.0
      %3373 = vmatpush1.msra.mxu0 0.0
      %3374 = vmatprep.subr.mxu0 0.0
      %3375 = vmatpush1.msra.mxu0 0.0
      %3376 = vmatprep.subr.mxu0 0.0
      %3377 = vmatpush1.msra.mxu0 0.0
      %3378 = vmatprep.subr.mxu0 0.0
      %3379 = vmatpush1.msra.mxu0 0.0
      %3380 = vmatprep.subr.mxu0 0.0
      %3381 = vmatpush1.msra.mxu0 0.0
      %3382 = vmatprep.subr.mxu0 0.0
      %3383 = vmatpush1.msra.mxu0 0.0
      %3384 = vmatprep.subr.mxu0 0.0
      %3385 = vmatpush1.msra.mxu0 0.0
      %3386 = vmatprep.subr.mxu0 0.0
      %3387 = vmatpush1.msra.mxu0 0.0
      %3388 = vmatprep.subr.mxu0 0.0
      %3389 = vmatpush1.msra.mxu0 0.0
      %3390 = vmatprep.subr.mxu0 0.0
      %3391 = vmatpush1.msra.mxu0 0.0
      %3392 = vmatprep.subr.mxu0 0.0
      %3393 = vmatpush1.msra.mxu0 0.0
      %3394 = vmatprep.subr.mxu0 0.0
      %3395 = vmatpush1.msra.mxu0 0.0
      %3396 = vmatprep.subr.mxu0 0.0
      %3397 = vmatpush1.msra.mxu0 0.0
      %3398 = vmatprep.subr.mxu0 0.0
      %3399 = vmatpush1.msra.mxu0 0.0
      %3400 = vmatprep.mubr.f32.mxu0 0.0
      %3401 = vmatmul.mubr.f32.gmra.mrb[0].mxu0 %v3238
      %v3402 = vpop.f32.mrb[0].mxu0
      %v3403 = vadd.f32 %v3080, %v3402
      %v3404 = vpop.f32.mrb[0].mxu0
      %3405 = vmatprep.mubr.f32.mxu0 0.0
      %3406 = vmatmul.mubr.f32.gmra.mrb[0].mxu0 %v3241
      %v3407 = vpop.f32.mrb[0].mxu0
      %v3408 = vadd.f32 %v3085, %v3407
      %v3409 = vpop.f32.mrb[0].mxu0
      %3410 = vmatprep.mubr.f32.mxu0 0.0
      %3411 = vmatmul.mubr.f32.gmra.mrb[0].mxu0 %v3244
      %v3412 = vpop.f32.mrb[0].mxu0
      %v3413 = vadd.f32 %v3090, %v3412
      %v3414 = vpop.f32.mrb[0].mxu0
      %3415 = vmatprep.mubr.f32.mxu0 0.0
      %3416 = vmatmul.mubr.f32.gmra.mrb[0].mxu0 %v3247
      %v3417 = vpop.f32.mrb[0].mxu0
      %v3418 = vadd.f32 %v3095, %v3417
      %v3419 = vpop.f32.mrb[0].mxu0
      %3420 = vmatprep.mubr.f32.mxu0 0.0
      %3421 = vmatmul.mubr.f32.gmra.mrb[0].mxu0 %v3250
      %v3422 = vpop.f32.mrb[0].mxu0
      %v3423 = vadd.f32 %v3100, %v3422
      %v3424 = vpop.f32.mrb[0].mxu0
      %3425 = vmatprep.mubr.f32.mxu0 0.0
      %3426 = vmatmul.mubr.f32.gmra.mrb[0].mxu0 %v3253
      %v3427 = vpop.f32.mrb[0].mxu0
      %v3428 = vadd.f32 %v3105, %v3427
      %v3429 = vpop.f32.mrb[0].mxu0
      %3430 = vmatprep.mubr.f32.mxu0 0.0
      %3431 = vmatmul.mubr.f32.gmra.mrb[0].mxu0 %v3256
      %v3432 = vpop.f32.mrb[0].mxu0
      %v3433 = vadd.f32 %v3110, %v3432
      %v3434 = vpop.f32.mrb[0].mxu0
      %3435 = vmatprep.mubr.f32.mxu0 0.0
      %3436 = vmatmul.mubr.f32.gmra.mrb[0].mxu0 %v3259
      %v3437 = vpop.f32.mrb[0].mxu0
      %v3438 = vadd.f32 %v3115, %v3437
      %v3439 = vpop.f32.mrb[0].mxu0
      %3440 = vmatprep.mubr.f32.mxu0 0.0
      %3441 = vmatmul.mubr.f32.gmra.mrb[0].mxu0 %v3262
      %v3442 = vpop.f32.mrb[0].mxu0
      %v3443 = vadd.f32 %v3120, %v3442
      %v3444 = vpop.f32.mrb[0].mxu0
      %3445 = vmatprep.mubr.f32.mxu0 0.0
      %3446 = vmatmul.mubr.f32.gmra.mrb[0].mxu0 %v3265
      %v3447 = vpop.f32.mrb[0].mxu0
      %v3448 = vadd.f32 %v3125, %v3447
      %v3449 = vpop.f32.mrb[0].mxu0
      %3450 = vmatprep.mubr.f32.mxu0 0.0
      %3451 = vmatmul.mubr.f32.gmra.mrb[0].mxu0 %v3268
      %v3452 = vpop.f32.mrb[0].mxu0
      %v3453 = vadd.f32 %v3130, %v3452
      %v3454 = vpop.f32.mrb[0].mxu0
      %3455 = vmatprep.mubr.f32.mxu0 0.0
      %3456 = vmatmul.mubr.f32.gmra.mrb[0].mxu0 %v3271
      %v3457 = vpop.f32.mrb[0].mxu0
      %v3458 = vadd.f32 %v3135, %v3457
      %v3459 = vpop.f32.mrb[0].mxu0
      %3460 = vmatprep.mubr.f32.mxu0 0.0
      %3461 = vmatmul.mubr.f32.gmra.mrb[0].mxu0 %v3274
      %v3462 = vpop.f32.mrb[0].mxu0
      %v3463 = vadd.f32 %v3140, %v3462
      %v3464 = vpop.f32.mrb[0].mxu0
      %3465 = vmatprep.mubr.f32.mxu0 0.0
      %3466 = vmatmul.mubr.f32.gmra.mrb[0].mxu0 %v3277
      %v3467 = vpop.f32.mrb[0].mxu0
      %v3468 = vadd.f32 %v3145, %v3467
      %v3469 = vpop.f32.mrb[0].mxu0
      %3470 = vmatprep.mubr.f32.mxu0 0.0
      %3471 = vmatmul.mubr.f32.gmra.mrb[0].mxu0 %v3280
      %v3472 = vpop.f32.mrb[0].mxu0
      %v3473 = vadd.f32 %v3150, %v3472
      %v3474 = vpop.f32.mrb[0].mxu0
      %3475 = vmatprep.mubr.f32.mxu0 0.0
      %3476 = vmatmul.mubr.f32.gmra.mrb[0].mxu0 %v3283
      %v3477 = vpop.f32.mrb[0].mxu0
      %v3478 = vadd.f32 %v3155, %v3477
      %v3479 = vpop.f32.mrb[0].mxu0
      %3480 = vmatprep.mubr.f32.mxu0 0.0
      %3481 = vmatmul.mubr.f32.gmra.mrb[0].mxu0 %v3286
      %v3482 = vpop.f32.mrb[0].mxu0
      %v3483 = vadd.f32 %v3160, %v3482
      %v3484 = vpop.f32.mrb[0].mxu0
      %3485 = vmatprep.mubr.f32.mxu0 0.0
      %3486 = vmatmul.mubr.f32.gmra.mrb[0].mxu0 %v3289
      %v3487 = vpop.f32.mrb[0].mxu0
      %v3488 = vadd.f32 %v3165, %v3487
      %v3489 = vpop.f32.mrb[0].mxu0
      %3490 = vmatprep.mubr.f32.mxu0 0.0
      %3491 = vmatmul.mubr.f32.gmra.mrb[0].mxu0 %v3292
      %v3492 = vpop.f32.mrb[0].mxu0
      %v3493 = vadd.f32 %v3170, %v3492
      %v3494 = vpop.f32.mrb[0].mxu0
      %3495 = vmatprep.mubr.f32.mxu0 0.0
      %3496 = vmatmul.mubr.f32.gmra.mrb[0].mxu0 %v3295
      %v3497 = vpop.f32.mrb[0].mxu0
      %v3498 = vadd.f32 %v3175, %v3497
      %v3499 = vpop.f32.mrb[0].mxu0
      %3500 = vmatprep.mubr.f32.mxu0 0.0
      %3501 = vmatmul.mubr.f32.gmra.mrb[0].mxu0 %v3298
      %v3502 = vpop.f32.mrb[0].mxu0
      %v3503 = vadd.f32 %v3180, %v3502
      %v3504 = vpop.f32.mrb[0].mxu0
      %3505 = vmatprep.mubr.f32.mxu0 0.0
      %3506 = vmatmul.mubr.f32.gmra.mrb[0].mxu0 %v3301
      %v3507 = vpop.f32.mrb[0].mxu0
      %v3508 = vadd.f32 %v3185, %v3507
      %v3509 = vpop.f32.mrb[0].mxu0
      %3510 = vmatprep.mubr.f32.mxu0 0.0
      %3511 = vmatmul.mubr.f32.gmra.mrb[0].mxu0 %v3304
      %v3512 = vpop.f32.mrb[0].mxu0
      %v3513 = vadd.f32 %v3190, %v3512
      %v3514 = vpop.f32.mrb[0].mxu0
      %3515 = vmatprep.mubr.f32.mxu0 0.0
      %3516 = vmatmul.mubr.f32.gmra.mrb[0].mxu0 %v3307
      %v3517 = vpop.f32.mrb[0].mxu0
      %v3518 = vadd.f32 %v3195, %v3517
      %v3519 = vpop.f32.mrb[0].mxu0
      %3520 = vmatprep.mubr.f32.mxu0 0.0
      %3521 = vmatmul.mubr.f32.gmra.mrb[0].mxu0 %v3310
      %v3522 = vpop.f32.mrb[0].mxu0
      %v3523 = vadd.f32 %v3200, %v3522
      %v3524 = vpop.f32.mrb[0].mxu0
      %3525 = vmatprep.mubr.f32.mxu0 0.0
      %3526 = vmatmul.mubr.f32.gmra.mrb[0].mxu0 %v3313
      %v3527 = vpop.f32.mrb[0].mxu0
      %v3528 = vadd.f32 %v3205, %v3527
      %v3529 = vpop.f32.mrb[0].mxu0
      %3530 = vmatprep.mubr.f32.mxu0 0.0
      %3531 = vmatmul.mubr.f32.gmra.mrb[0].mxu0 %v3316
      %v3532 = vpop.f32.mrb[0].mxu0
      %v3533 = vadd.f32 %v3210, %v3532
      %v3534 = vpop.f32.mrb[0].mxu0
      %3535 = vmatprep.mubr.f32.mxu0 0.0
      %3536 = vmatmul.mubr.f32.gmra.mrb[0].mxu0 %v3319
      %v3537 = vpop.f32.mrb[0].mxu0
      %v3538 = vadd.f32 %v3215, %v3537
      %v3539 = vpop.f32.mrb[0].mxu0
      %3540 = vmatprep.mubr.f32.mxu0 0.0
      %3541 = vmatmul.mubr.f32.gmra.mrb[0].mxu0 %v3322
      %v3542 = vpop.f32.mrb[0].mxu0
      %v3543 = vadd.f32 %v3220, %v3542
      %v3544 = vpop.f32.mrb[0].mxu0
      %3545 = vmatprep.mubr.f32.mxu0 0.0
      %3546 = vmatmul.mubr.f32.gmra.mrb[0].mxu0 %v3325
      %v3547 = vpop.f32.mrb[0].mxu0
      %v3548 = vadd.f32 %v3225, %v3547
      %v3549 = vpop.f32.mrb[0].mxu0
      %3550 = vmatprep.mubr.f32.mxu0 0.0
      %3551 = vmatmul.mubr.f32.gmra.mrb[0].mxu0 %v3328
      %v3552 = vpop.f32.mrb[0].mxu0
      %v3553 = vadd.f32 %v3230, %v3552
      %v3554 = vpop.f32.mrb[0].mxu0
      %3555 = vmatprep.mubr.f32.mxu0 0.0
      %3556 = vmatmul.mubr.f32.gmra.mrb[0].mxu0 %v3331
      %v3557 = vpop.f32.mrb[0].mxu0
      %v3558 = vadd.f32 %v3235, %v3557
      %v3559 = vpop.f32.mrb[0].mxu0
      %3560 = vdwg.mxu0
      %v3561 = vmax.f32 %v3403, 0.0
      %v3562 = vmax.f32 %v3408, 0.0
      %v3563 = vmax.f32 %v3413, 0.0
      %v3564 = vmax.f32 %v3418, 0.0
      %v3565 = vmax.f32 %v3423, 0.0
      %v3566 = vmax.f32 %v3428, 0.0
      %v3567 = vmax.f32 %v3433, 0.0
      %v3568 = vmax.f32 %v3438, 0.0
      %v3569 = vmax.f32 %v3443, 0.0
      %v3570 = vmax.f32 %v3448, 0.0
      %v3571 = vmax.f32 %v3453, 0.0
      %v3572 = vmax.f32 %v3458, 0.0
      %v3573 = vmax.f32 %v3463, 0.0
      %v3574 = vmax.f32 %v3468, 0.0
      %v3575 = vmax.f32 %v3473, 0.0
      %v3576 = vmax.f32 %v3478, 0.0
      %v3577 = vmax.f32 %v3483, 0.0
      %v3578 = vmax.f32 %v3488, 0.0
      %v3579 = vmax.f32 %v3493, 0.0
      %v3580 = vmax.f32 %v3498, 0.0
      %v3581 = vmax.f32 %v3503, 0.0
      %v3582 = vmax.f32 %v3508, 0.0
      %v3583 = vmax.f32 %v3513, 0.0
      %v3584 = vmax.f32 %v3518, 0.0
      %v3585 = vmax.f32 %v3523, 0.0
      %v3586 = vmax.f32 %v3528, 0.0
      %v3587 = vmax.f32 %v3533, 0.0
      %v3588 = vmax.f32 %v3538, 0.0
      %v3589 = vmax.f32 %v3543, 0.0
      %v3590 = vmax.f32 %v3548, 0.0
      %v3591 = vmax.f32 %v3553, 0.0
      %v3592 = vmax.f32 %v3558, 0.0
      %s3593 = scalar_lea.vmem %s8, 32
      %v3594 = vld [vmem:[%s3593] sm:$0x3f]
      %v3595 = vld [vmem:[%s3593 + $0x8] sm:$0x3f]
      %s3596 = scalar_lea.vmem %s12, 16
      %v3597 = vld [vmem:[%s3596] sm:$0x3f]
      %3599 = vset.pattern.permute.xlu0 0
      %3600 = vperm.xlu0 %3599, %v3597
      %v3601 = vpop.permute.xlu0 %3600
      %3603 = vmatprep.subr.mxu0 0.0
      %3604 = vmatpush1.msra.mxu0 %v3561
      %3605 = vmatprep.subr.mxu0 0.0
      %3606 = vmatpush1.msra.mxu0 %v3562
      %3607 = vmatprep.subr.mxu0 0.0
      %3608 = vmatpush1.msra.mxu0 %v3563
      %3609 = vmatprep.subr.mxu0 0.0
      %3610 = vmatpush1.msra.mxu0 %v3564
      %3611 = vmatprep.subr.mxu0 0.0
      %3612 = vmatpush1.msra.mxu0 %v3565
      %3613 = vmatprep.subr.mxu0 0.0
      %3614 = vmatpush1.msra.mxu0 %v3566
      %3615 = vmatprep.subr.mxu0 0.0
      %3616 = vmatpush1.msra.mxu0 %v3567
      %3617 = vmatprep.subr.mxu0 0.0
      %3618 = vmatpush1.msra.mxu0 %v3568
      %3619 = vmatprep.subr.mxu0 0.0
      %3620 = vmatpush1.msra.mxu0 %v3569
      %3621 = vmatprep.subr.mxu0 0.0
      %3622 = vmatpush1.msra.mxu0 %v3570
      %3623 = vmatprep.subr.mxu0 0.0
      %3624 = vmatpush1.msra.mxu0 %v3571
      %3625 = vmatprep.subr.mxu0 0.0
      %3626 = vmatpush1.msra.mxu0 %v3572
      %3627 = vmatprep.subr.mxu0 0.0
      %3628 = vmatpush1.msra.mxu0 %v3573
      %3629 = vmatprep.subr.mxu0 0.0
      %3630 = vmatpush1.msra.mxu0 %v3574
      %3631 = vmatprep.subr.mxu0 0.0
      %3632 = vmatpush1.msra.mxu0 %v3575
      %3633 = vmatprep.subr.mxu0 0.0
      %3634 = vmatpush1.msra.mxu0 %v3576
      %3635 = vmatprep.subr.mxu0 0.0
      %3636 = vmatpush1.msra.mxu0 %v3577
      %3637 = vmatprep.subr.mxu0 0.0
      %3638 = vmatpush1.msra.mxu0 %v3578
      %3639 = vmatprep.subr.mxu0 0.0
      %3640 = vmatpush1.msra.mxu0 %v3579
      %3641 = vmatprep.subr.mxu0 0.0
      %3642 = vmatpush1.msra.mxu0 %v3580
      %3643 = vmatprep.subr.mxu0 0.0
      %3644 = vmatpush1.msra.mxu0 %v3581
      %3645 = vmatprep.subr.mxu0 0.0
      %3646 = vmatpush1.msra.mxu0 %v3582
      %3647 = vmatprep.subr.mxu0 0.0
      %3648 = vmatpush1.msra.mxu0 %v3583
      %3649 = vmatprep.subr.mxu0 0.0
      %3650 = vmatpush1.msra.mxu0 %v3584
      %3651 = vmatprep.subr.mxu0 0.0
      %3652 = vmatpush1.msra.mxu0 %v3585
      %3653 = vmatprep.subr.mxu0 0.0
      %3654 = vmatpush1.msra.mxu0 %v3586
      %3655 = vmatprep.subr.mxu0 0.0
      %3656 = vmatpush1.msra.mxu0 %v3587
      %3657 = vmatprep.subr.mxu0 0.0
      %3658 = vmatpush1.msra.mxu0 %v3588
      %3659 = vmatprep.subr.mxu0 0.0
      %3660 = vmatpush1.msra.mxu0 %v3589
      %3661 = vmatprep.subr.mxu0 0.0
      %3662 = vmatpush1.msra.mxu0 %v3590
      %3663 = vmatprep.subr.mxu0 0.0
      %3664 = vmatpush1.msra.mxu0 %v3591
      %3665 = vmatprep.subr.mxu0 0.0
      %3666 = vmatpush1.msra.mxu0 %v3592
      %3667 = vmatprep.mubr.f32.mxu0 %v3595
      %3668 = vmatmul.mubr.f32.gmra.mrb[0].mxu0 %v3594
      %v3669 = vpop.f32.mrb[0].mxu0
      %v3670 = vadd.f32 %v3601, %v3669
      %v3671 = vpop.f32.mrb[0].mxu0
      %3672 = vdwg.mxu0
      %s3673 = scalar_lea.vmem %s9, 12
      %v3674 = vld [vmem:[%s3673] sm:$0xf]
      %v3675 = vadd.f32 %v3670, %v695
      %s3676 = scalar_lea.vmem %s4, 384
      %v3677 = vld [vmem:[%s3676] sm:$0xff]
      %v3678 = vld [vmem:[%s3676 + $0x8] sm:$0xff]
      %v3679 = vld [vmem:[%s3676 + $0x10] sm:$0xff]
      %v3680 = vld [vmem:[%s3676 + $0x18] sm:$0xff]
      %v3681 = vld [vmem:[%s3676 + $0x20] sm:$0xff]
      %v3682 = vld [vmem:[%s3676 + $0x28] sm:$0xff]
      %v3683 = vld [vmem:[%s3676 + $0x30] sm:$0xff]
      %v3684 = vld [vmem:[%s3676 + $0x38] sm:$0xff]
      %v3685 = vld [vmem:[%s3676 + $0x40] sm:$0xff]
      %v3686 = vld [vmem:[%s3676 + $0x48] sm:$0xff]
      %v3687 = vld [vmem:[%s3676 + $0x50] sm:$0xff]
      %v3688 = vld [vmem:[%s3676 + $0x58] sm:$0xff]
      %v3689 = vld [vmem:[%s3676 + $0x60] sm:$0xff]
      %v3690 = vld [vmem:[%s3676 + $0x68] sm:$0xff]
      %v3691 = vld [vmem:[%s3676 + $0x70] sm:$0xff]
      %v3692 = vld [vmem:[%s3676 + $0x78] sm:$0xff]
      %3693 = vmatprep.subr.mxu0 0.0
      %3694 = vmatpush1.msra.mxu0 %v3677
      %3695 = vmatprep.subr.mxu0 0.0
      %3696 = vmatpush1.msra.mxu0 %v3678
      %3697 = vmatprep.subr.mxu0 0.0
      %3698 = vmatpush1.msra.mxu0 %v3679
      %3699 = vmatprep.subr.mxu0 0.0
      %3700 = vmatpush1.msra.mxu0 %v3680
      %3701 = vmatprep.subr.mxu0 0.0
      %3702 = vmatpush1.msra.mxu0 %v3681
      %3703 = vmatprep.subr.mxu0 0.0
      %3704 = vmatpush1.msra.mxu0 %v3682
      %3705 = vmatprep.subr.mxu0 0.0
      %3706 = vmatpush1.msra.mxu0 %v3683
      %3707 = vmatprep.subr.mxu0 0.0
      %3708 = vmatpush1.msra.mxu0 %v3684
      %3709 = vmatprep.subr.mxu0 0.0
      %3710 = vmatpush1.msra.mxu0 %v3685
      %3711 = vmatprep.subr.mxu0 0.0
      %3712 = vmatpush1.msra.mxu0 %v3686
      %3713 = vmatprep.subr.mxu0 0.0
      %3714 = vmatpush1.msra.mxu0 %v3687
      %3715 = vmatprep.subr.mxu0 0.0
      %3716 = vmatpush1.msra.mxu0 %v3688
      %3717 = vmatprep.subr.mxu0 0.0
      %3718 = vmatpush1.msra.mxu0 %v3689
      %3719 = vmatprep.subr.mxu0 0.0
      %3720 = vmatpush1.msra.mxu0 %v3690
      %3721 = vmatprep.subr.mxu0 0.0
      %3722 = vmatpush1.msra.mxu0 %v3691
      %3723 = vmatprep.subr.mxu0 0.0
      %3724 = vmatpush1.msra.mxu0 %v3692
      %3725 = vmatprep.subr.mxu0 0.0
      %3726 = vmatpush1.msra.mxu0 0.0
      %3727 = vmatprep.subr.mxu0 0.0
      %3728 = vmatpush1.msra.mxu0 0.0
      %3729 = vmatprep.subr.mxu0 0.0
      %3730 = vmatpush1.msra.mxu0 0.0
      %3731 = vmatprep.subr.mxu0 0.0
      %3732 = vmatpush1.msra.mxu0 0.0
      %3733 = vmatprep.subr.mxu0 0.0
      %3734 = vmatpush1.msra.mxu0 0.0
      %3735 = vmatprep.subr.mxu0 0.0
      %3736 = vmatpush1.msra.mxu0 0.0
      %3737 = vmatprep.subr.mxu0 0.0
      %3738 = vmatpush1.msra.mxu0 0.0
      %3739 = vmatprep.subr.mxu0 0.0
      %3740 = vmatpush1.msra.mxu0 0.0
      %3741 = vmatprep.subr.mxu0 0.0
      %3742 = vmatpush1.msra.mxu0 0.0
      %3743 = vmatprep.subr.mxu0 0.0
      %3744 = vmatpush1.msra.mxu0 0.0
      %3745 = vmatprep.subr.mxu0 0.0
      %3746 = vmatpush1.msra.mxu0 0.0
      %3747 = vmatprep.subr.mxu0 0.0
      %3748 = vmatpush1.msra.mxu0 0.0
      %3749 = vmatprep.subr.mxu0 0.0
      %3750 = vmatpush1.msra.mxu0 0.0
      %3751 = vmatprep.subr.mxu0 0.0
      %3752 = vmatpush1.msra.mxu0 0.0
      %3753 = vmatprep.subr.mxu0 0.0
      %3754 = vmatpush1.msra.mxu0 0.0
      %3755 = vmatprep.subr.mxu0 0.0
      %3756 = vmatpush1.msra.mxu0 0.0
      %3757 = vmatprep.mubr.f32.mxu0 0.0
      %3758 = vmatmul.mubr.f32.gmra.mrb[0].mxu0 %v689
      %v3759 = vpop.f32.mrb[0].mxu0
      %v3760 = vadd.f32 %v3674, %v3759
      %v3761 = vpop.f32.mrb[0].mxu0
      %3762 = vdwg.mxu0
      %v3763 = vlaneseq
      %v3764 = vshrl.u32 %v3763, 7
      %v3765 = vsub.s32 0, %v3764
      %v3766 = vrot.slane %v3760, %v3765
      %v3767 = vadd.f32 %v3675, %v3766
      %v3768 = vsel %vm788, %v3767, 0.0
      %3769 = vadd.xlane.f32.xlu0 %v3768
      %v3770 = vpop.xlane.xlu0 %3769
      %v3771 = vmul.f32 %v3770, %v792
      %v3772 = vsub.f32 %v3767, %v3771
      %v3773 = vmul.f32 %v3772, %v3772
      %v3774 = vsel %vm788, %v3773, 0.0
      %3775 = vadd.xlane.f32.xlu0 %v3774
      %v3776 = vpop.xlane.xlu0 %3775
      %v3777 = vmul.f32 %v3776, %v792
      %v3778 = vadd.f32 %v3777, 1e-05
      %v3779 = vrsqrt.pop %v3778
      %v3780 = vmul.f32 %v3772, %v3779
      %v3781 = vlaneseq
      %v3782 = vshrl.u32 %v3781, 7
      %v3783 = vsub.s32 1, %v3782
      %v3784 = vrot.slane %v3674, %v3783
      %v3785 = vmul.f32 %v3780, %v3784
      %v3786 = vlaneseq
      %v3787 = vshrl.u32 %v3786, 7
      %v3788 = vsub.s32 2, %v3787
      %v3789 = vrot.slane %v3674, %v3788
      %v3790 = vadd.f32 %v3785, %v3789
      %s3791 = scalar_lea.vmem %s5, 384
      %v3792 = vld [vmem:[%s3791] sm:$0xff]
      %v3793 = vld [vmem:[%s3791 + $0x8] sm:$0xff]
      %v3794 = vld [vmem:[%s3791 + $0x10] sm:$0xff]
      %v3795 = vld [vmem:[%s3791 + $0x18] sm:$0xff]
      %v3796 = vld [vmem:[%s3791 + $0x20] sm:$0xff]
      %v3797 = vld [vmem:[%s3791 + $0x28] sm:$0xff]
      %v3798 = vld [vmem:[%s3791 + $0x30] sm:$0xff]
      %v3799 = vld [vmem:[%s3791 + $0x38] sm:$0xff]
      %v3800 = vld [vmem:[%s3791 + $0x40] sm:$0xff]
      %v3801 = vld [vmem:[%s3791 + $0x48] sm:$0xff]
      %v3802 = vld [vmem:[%s3791 + $0x50] sm:$0xff]
      %v3803 = vld [vmem:[%s3791 + $0x58] sm:$0xff]
      %v3804 = vld [vmem:[%s3791 + $0x60] sm:$0xff]
      %v3805 = vld [vmem:[%s3791 + $0x68] sm:$0xff]
      %v3806 = vld [vmem:[%s3791 + $0x70] sm:$0xff]
      %v3807 = vld [vmem:[%s3791 + $0x78] sm:$0xff]
      %s3808 = scalar_lea.vmem %s10, 6
      %v3809 = vld [vmem:[%s3808] sm:$0x3]
      %v3811 = vlaneseq
      %v3812 = vshrl.u32 %v3811, 7
      %v3813 = vsub.s32 0, %v3812
      %v3814 = vrot.slane %v3809, %v3813
      %v3815 = vlaneseq
      %v3816 = vshrl.u32 %v3815, 7
      %v3817 = vsub.s32 1, %v3816
      %v3818 = vrot.slane %v3809, %v3817
      %v3822 = vsel %vm841, %v3790, 0
      %3824 = vmatprep.subr.mxu0 %v3793
      %3825 = vmatpush1.msra.mxu0 %v3792
      %3826 = vmatprep.subr.mxu0 %v3795
      %3827 = vmatpush1.msra.mxu0 %v3794
      %3828 = vmatprep.subr.mxu0 %v3797
      %3829 = vmatpush1.msra.mxu0 %v3796
      %3830 = vmatprep.subr.mxu0 %v3799
      %3831 = vmatpush1.msra.mxu0 %v3798
      %3832 = vmatprep.subr.mxu0 %v3801
      %3833 = vmatpush1.msra.mxu0 %v3800
      %3834 = vmatprep.subr.mxu0 %v3803
      %3835 = vmatpush1.msra.mxu0 %v3802
      %3836 = vmatprep.subr.mxu0 %v3805
      %3837 = vmatpush1.msra.mxu0 %v3804
      %3838 = vmatprep.subr.mxu0 %v3807
      %3839 = vmatpush1.msra.mxu0 %v3806
      %3840 = vmatprep.subr.mxu0 0.0
      %3841 = vmatpush1.msra.mxu0 0.0
      %3842 = vmatprep.subr.mxu0 0.0
      %3843 = vmatpush1.msra.mxu0 0.0
      %3844 = vmatprep.subr.mxu0 0.0
      %3845 = vmatpush1.msra.mxu0 0.0
      %3846 = vmatprep.subr.mxu0 0.0
      %3847 = vmatpush1.msra.mxu0 0.0
      %3848 = vmatprep.subr.mxu0 0.0
      %3849 = vmatpush1.msra.mxu0 0.0
      %3850 = vmatprep.subr.mxu0 0.0
      %3851 = vmatpush1.msra.mxu0 0.0
      %3852 = vmatprep.subr.mxu0 0.0
      %3853 = vmatpush1.msra.mxu0 0.0
      %3854 = vmatprep.subr.mxu0 0.0
      %3855 = vmatpush1.msra.mxu0 0.0
      %3856 = vmatprep.subr.mxu0 0.0
      %3857 = vmatpush1.msra.mxu0 0.0
      %3858 = vmatprep.subr.mxu0 0.0
      %3859 = vmatpush1.msra.mxu0 0.0
      %3860 = vmatprep.subr.mxu0 0.0
      %3861 = vmatpush1.msra.mxu0 0.0
      %3862 = vmatprep.subr.mxu0 0.0
      %3863 = vmatpush1.msra.mxu0 0.0
      %3864 = vmatprep.subr.mxu0 0.0
      %3865 = vmatpush1.msra.mxu0 0.0
      %3866 = vmatprep.subr.mxu0 0.0
      %3867 = vmatpush1.msra.mxu0 0.0
      %3868 = vmatprep.subr.mxu0 0.0
      %3869 = vmatpush1.msra.mxu0 0.0
      %3870 = vmatprep.subr.mxu0 0.0
      %3871 = vmatpush1.msra.mxu0 0.0
      %3872 = vmatprep.subr.mxu0 0.0
      %3873 = vmatpush1.msra.mxu0 0.0
      %3874 = vmatprep.subr.mxu0 0.0
      %3875 = vmatpush1.msra.mxu0 0.0
      %3876 = vmatprep.subr.mxu0 0.0
      %3877 = vmatpush1.msra.mxu0 0.0
      %3878 = vmatprep.subr.mxu0 0.0
      %3879 = vmatpush1.msra.mxu0 0.0
      %3880 = vmatprep.subr.mxu0 0.0
      %3881 = vmatpush1.msra.mxu0 0.0
      %3882 = vmatprep.subr.mxu0 0.0
      %3883 = vmatpush1.msra.mxu0 0.0
      %3884 = vmatprep.subr.mxu0 0.0
      %3885 = vmatpush1.msra.mxu0 0.0
      %3886 = vmatprep.subr.mxu0 0.0
      %3887 = vmatpush1.msra.mxu0 0.0
      %3888 = vmatprep.mubr.f32.mxu0 0.0
      %3889 = vmatmul.mubr.f32.gmra.mrb[0].mxu0 %v3822
      %v3890 = vpop.f32.mrb[0].mxu0
      %v3891 = vadd.f32 %v3814, %v3890
      %v3892 = vpop.f32.mrb[0].mxu0
      %v3893 = vadd.f32 %v3818, %v3892
      %3894 = vdwg.mxu0
      %v3895 = vmax.f32 %v3891, 0.0
      %v3896 = vmax.f32 %v3893, 0.0
      %s3897 = scalar_lea.vmem %s6, 768
      %v3898 = vld [vmem:[%s3897] sm:$0xff]
      %v3899 = vld [vmem:[%s3897 + $0x8] sm:$0xff]
      %v3900 = vld [vmem:[%s3897 + $0x10] sm:$0xff]
      %v3901 = vld [vmem:[%s3897 + $0x18] sm:$0xff]
      %v3902 = vld [vmem:[%s3897 + $0x20] sm:$0xff]
      %v3903 = vld [vmem:[%s3897 + $0x28] sm:$0xff]
      %v3904 = vld [vmem:[%s3897 + $0x30] sm:$0xff]
      %v3905 = vld [vmem:[%s3897 + $0x38] sm:$0xff]
      %v3906 = vld [vmem:[%s3897 + $0x40] sm:$0xff]
      %v3907 = vld [vmem:[%s3897 + $0x48] sm:$0xff]
      %v3908 = vld [vmem:[%s3897 + $0x50] sm:$0xff]
      %v3909 = vld [vmem:[%s3897 + $0x58] sm:$0xff]
      %v3910 = vld [vmem:[%s3897 + $0x60] sm:$0xff]
      %v3911 = vld [vmem:[%s3897 + $0x68] sm:$0xff]
      %v3912 = vld [vmem:[%s3897 + $0x70] sm:$0xff]
      %v3913 = vld [vmem:[%s3897 + $0x78] sm:$0xff]
      %v3914 = vld [vmem:[%s3897 + $0x80] sm:$0xff]
      %v3915 = vld [vmem:[%s3897 + $0x88] sm:$0xff]
      %v3916 = vld [vmem:[%s3897 + $0x90] sm:$0xff]
      %v3917 = vld [vmem:[%s3897 + $0x98] sm:$0xff]
      %v3918 = vld [vmem:[%s3897 + $0xa0] sm:$0xff]
      %v3919 = vld [vmem:[%s3897 + $0xa8] sm:$0xff]
      %v3920 = vld [vmem:[%s3897 + $0xb0] sm:$0xff]
      %v3921 = vld [vmem:[%s3897 + $0xb8] sm:$0xff]
      %v3922 = vld [vmem:[%s3897 + $0xc0] sm:$0xff]
      %v3923 = vld [vmem:[%s3897 + $0xc8] sm:$0xff]
      %v3924 = vld [vmem:[%s3897 + $0xd0] sm:$0xff]
      %v3925 = vld [vmem:[%s3897 + $0xd8] sm:$0xff]
      %v3926 = vld [vmem:[%s3897 + $0xe0] sm:$0xff]
      %v3927 = vld [vmem:[%s3897 + $0xe8] sm:$0xff]
      %v3928 = vld [vmem:[%s3897 + $0xf0] sm:$0xff]
      %v3929 = vld [vmem:[%s3897 + $0xf8] sm:$0xff]
      %v3930 = vlaneseq
      %v3931 = vshrl.u32 %v3930, 7
      %v3932 = vsub.s32 3, %v3931
      %v3933 = vrot.slane %v3674, %v3932
      %3934 = vmatprep.subr.mxu0 0.0
      %3935 = vmatpush1.msra.mxu0 %v3898
      %3936 = vmatprep.subr.mxu0 0.0
      %3937 = vmatpush1.msra.mxu0 %v3899
      %3938 = vmatprep.subr.mxu0 0.0
      %3939 = vmatpush1.msra.mxu0 %v3900
      %3940 = vmatprep.subr.mxu0 0.0
      %3941 = vmatpush1.msra.mxu0 %v3901
      %3942 = vmatprep.subr.mxu0 0.0
      %3943 = vmatpush1.msra.mxu0 %v3902
      %3944 = vmatprep.subr.mxu0 0.0
      %3945 = vmatpush1.msra.mxu0 %v3903
      %3946 = vmatprep.subr.mxu0 0.0
      %3947 = vmatpush1.msra.mxu0 %v3904
      %3948 = vmatprep.subr.mxu0 0.0
      %3949 = vmatpush1.msra.mxu0 %v3905
      %3950 = vmatprep.subr.mxu0 0.0
      %3951 = vmatpush1.msra.mxu0 %v3906
      %3952 = vmatprep.subr.mxu0 0.0
      %3953 = vmatpush1.msra.mxu0 %v3907
      %3954 = vmatprep.subr.mxu0 0.0
      %3955 = vmatpush1.msra.mxu0 %v3908
      %3956 = vmatprep.subr.mxu0 0.0
      %3957 = vmatpush1.msra.mxu0 %v3909
      %3958 = vmatprep.subr.mxu0 0.0
      %3959 = vmatpush1.msra.mxu0 %v3910
      %3960 = vmatprep.subr.mxu0 0.0
      %3961 = vmatpush1.msra.mxu0 %v3911
      %3962 = vmatprep.subr.mxu0 0.0
      %3963 = vmatpush1.msra.mxu0 %v3912
      %3964 = vmatprep.subr.mxu0 0.0
      %3965 = vmatpush1.msra.mxu0 %v3913
      %3966 = vmatprep.subr.mxu0 0.0
      %3967 = vmatpush1.msra.mxu0 %v3914
      %3968 = vmatprep.subr.mxu0 0.0
      %3969 = vmatpush1.msra.mxu0 %v3915
      %3970 = vmatprep.subr.mxu0 0.0
      %3971 = vmatpush1.msra.mxu0 %v3916
      %3972 = vmatprep.subr.mxu0 0.0
      %3973 = vmatpush1.msra.mxu0 %v3917
      %3974 = vmatprep.subr.mxu0 0.0
      %3975 = vmatpush1.msra.mxu0 %v3918
      %3976 = vmatprep.subr.mxu0 0.0
      %3977 = vmatpush1.msra.mxu0 %v3919
      %3978 = vmatprep.subr.mxu0 0.0
      %3979 = vmatpush1.msra.mxu0 %v3920
      %3980 = vmatprep.subr.mxu0 0.0
      %3981 = vmatpush1.msra.mxu0 %v3921
      %3982 = vmatprep.subr.mxu0 0.0
      %3983 = vmatpush1.msra.mxu0 %v3922
      %3984 = vmatprep.subr.mxu0 0.0
      %3985 = vmatpush1.msra.mxu0 %v3923
      %3986 = vmatprep.subr.mxu0 0.0
      %3987 = vmatpush1.msra.mxu0 %v3924
      %3988 = vmatprep.subr.mxu0 0.0
      %3989 = vmatpush1.msra.mxu0 %v3925
      %3990 = vmatprep.subr.mxu0 0.0
      %3991 = vmatpush1.msra.mxu0 %v3926
      %3992 = vmatprep.subr.mxu0 0.0
      %3993 = vmatpush1.msra.mxu0 %v3927
      %3994 = vmatprep.subr.mxu0 0.0
      %3995 = vmatpush1.msra.mxu0 %v3928
      %3996 = vmatprep.subr.mxu0 0.0
      %3997 = vmatpush1.msra.mxu0 %v3929
      %3998 = vmatprep.mubr.f32.mxu0 %v3896
      %3999 = vmatmul.mubr.f32.gmra.mrb[0].mxu0 %v3895
      %v4000 = vpop.f32.mrb[0].mxu0
      %v4001 = vadd.f32 %v3933, %v4000
      %v4002 = vpop.f32.mrb[0].mxu0
      %4003 = vdwg.mxu0
      %v4004 = vadd.f32 %v3790, %v4001
      %s4005 = scalar_lea.vmem %s7, 768
      %v4006 = vld [vmem:[%s4005] sm:$0xff]
      %v4007 = vld [vmem:[%s4005 + $0x8] sm:$0xff]
      %v4008 = vld [vmem:[%s4005 + $0x10] sm:$0xff]
      %v4009 = vld [vmem:[%s4005 + $0x18] sm:$0xff]
      %v4010 = vld [vmem:[%s4005 + $0x20] sm:$0xff]
      %v4011 = vld [vmem:[%s4005 + $0x28] sm:$0xff]
      %v4012 = vld [vmem:[%s4005 + $0x30] sm:$0xff]
      %v4013 = vld [vmem:[%s4005 + $0x38] sm:$0xff]
      %v4014 = vld [vmem:[%s4005 + $0x40] sm:$0xff]
      %v4015 = vld [vmem:[%s4005 + $0x48] sm:$0xff]
      %v4016 = vld [vmem:[%s4005 + $0x50] sm:$0xff]
      %v4017 = vld [vmem:[%s4005 + $0x58] sm:$0xff]
      %v4018 = vld [vmem:[%s4005 + $0x60] sm:$0xff]
      %v4019 = vld [vmem:[%s4005 + $0x68] sm:$0xff]
      %v4020 = vld [vmem:[%s4005 + $0x70] sm:$0xff]
      %v4021 = vld [vmem:[%s4005 + $0x78] sm:$0xff]
      %v4022 = vld [vmem:[%s4005 + $0x80] sm:$0xff]
      %v4023 = vld [vmem:[%s4005 + $0x88] sm:$0xff]
      %v4024 = vld [vmem:[%s4005 + $0x90] sm:$0xff]
      %v4025 = vld [vmem:[%s4005 + $0x98] sm:$0xff]
      %v4026 = vld [vmem:[%s4005 + $0xa0] sm:$0xff]
      %v4027 = vld [vmem:[%s4005 + $0xa8] sm:$0xff]
      %v4028 = vld [vmem:[%s4005 + $0xb0] sm:$0xff]
      %v4029 = vld [vmem:[%s4005 + $0xb8] sm:$0xff]
      %v4030 = vld [vmem:[%s4005 + $0xc0] sm:$0xff]
      %v4031 = vld [vmem:[%s4005 + $0xc8] sm:$0xff]
      %v4032 = vld [vmem:[%s4005 + $0xd0] sm:$0xff]
      %v4033 = vld [vmem:[%s4005 + $0xd8] sm:$0xff]
      %v4034 = vld [vmem:[%s4005 + $0xe0] sm:$0xff]
      %v4035 = vld [vmem:[%s4005 + $0xe8] sm:$0xff]
      %v4036 = vld [vmem:[%s4005 + $0xf0] sm:$0xff]
      %v4037 = vld [vmem:[%s4005 + $0xf8] sm:$0xff]
      %s4038 = scalar_lea.vmem %s11, 768
      %v4039 = vld [vmem:[%s4038] sm:$0xff]
      %v4040 = vld [vmem:[%s4038 + $0x8] sm:$0xff]
      %v4041 = vld [vmem:[%s4038 + $0x10] sm:$0xff]
      %v4042 = vld [vmem:[%s4038 + $0x18] sm:$0xff]
      %v4043 = vld [vmem:[%s4038 + $0x20] sm:$0xff]
      %v4044 = vld [vmem:[%s4038 + $0x28] sm:$0xff]
      %v4045 = vld [vmem:[%s4038 + $0x30] sm:$0xff]
      %v4046 = vld [vmem:[%s4038 + $0x38] sm:$0xff]
      %v4047 = vld [vmem:[%s4038 + $0x40] sm:$0xff]
      %v4048 = vld [vmem:[%s4038 + $0x48] sm:$0xff]
      %v4049 = vld [vmem:[%s4038 + $0x50] sm:$0xff]
      %v4050 = vld [vmem:[%s4038 + $0x58] sm:$0xff]
      %v4051 = vld [vmem:[%s4038 + $0x60] sm:$0xff]
      %v4052 = vld [vmem:[%s4038 + $0x68] sm:$0xff]
      %v4053 = vld [vmem:[%s4038 + $0x70] sm:$0xff]
      %v4054 = vld [vmem:[%s4038 + $0x78] sm:$0xff]
      %v4055 = vld [vmem:[%s4038 + $0x80] sm:$0xff]
      %v4056 = vld [vmem:[%s4038 + $0x88] sm:$0xff]
      %v4057 = vld [vmem:[%s4038 + $0x90] sm:$0xff]
      %v4058 = vld [vmem:[%s4038 + $0x98] sm:$0xff]
      %v4059 = vld [vmem:[%s4038 + $0xa0] sm:$0xff]
      %v4060 = vld [vmem:[%s4038 + $0xa8] sm:$0xff]
      %v4061 = vld [vmem:[%s4038 + $0xb0] sm:$0xff]
      %v4062 = vld [vmem:[%s4038 + $0xb8] sm:$0xff]
      %v4063 = vld [vmem:[%s4038 + $0xc0] sm:$0xff]
      %v4064 = vld [vmem:[%s4038 + $0xc8] sm:$0xff]
      %v4065 = vld [vmem:[%s4038 + $0xd0] sm:$0xff]
      %v4066 = vld [vmem:[%s4038 + $0xd8] sm:$0xff]
      %v4067 = vld [vmem:[%s4038 + $0xe0] sm:$0xff]
      %v4068 = vld [vmem:[%s4038 + $0xe8] sm:$0xff]
      %v4069 = vld [vmem:[%s4038 + $0xf0] sm:$0xff]
      %v4070 = vld [vmem:[%s4038 + $0xf8] sm:$0xff]
      %4072 = vset.pattern.permute.xlu0 0
      %4073 = vperm.xlu0 %4072, %v4039
      %v4074 = vpop.permute.xlu0 %4073
      %4077 = vset.pattern.permute.xlu0 0
      %4078 = vperm.xlu0 %4077, %v4040
      %v4079 = vpop.permute.xlu0 %4078
      %4082 = vset.pattern.permute.xlu0 0
      %4083 = vperm.xlu0 %4082, %v4041
      %v4084 = vpop.permute.xlu0 %4083
      %4087 = vset.pattern.permute.xlu0 0
      %4088 = vperm.xlu0 %4087, %v4042
      %v4089 = vpop.permute.xlu0 %4088
      %4092 = vset.pattern.permute.xlu0 0
      %4093 = vperm.xlu0 %4092, %v4043
      %v4094 = vpop.permute.xlu0 %4093
      %4097 = vset.pattern.permute.xlu0 0
      %4098 = vperm.xlu0 %4097, %v4044
      %v4099 = vpop.permute.xlu0 %4098
      %4102 = vset.pattern.permute.xlu0 0
      %4103 = vperm.xlu0 %4102, %v4045
      %v4104 = vpop.permute.xlu0 %4103
      %4107 = vset.pattern.permute.xlu0 0
      %4108 = vperm.xlu0 %4107, %v4046
      %v4109 = vpop.permute.xlu0 %4108
      %4112 = vset.pattern.permute.xlu0 0
      %4113 = vperm.xlu0 %4112, %v4047
      %v4114 = vpop.permute.xlu0 %4113
      %4117 = vset.pattern.permute.xlu0 0
      %4118 = vperm.xlu0 %4117, %v4048
      %v4119 = vpop.permute.xlu0 %4118
      %4122 = vset.pattern.permute.xlu0 0
      %4123 = vperm.xlu0 %4122, %v4049
      %v4124 = vpop.permute.xlu0 %4123
      %4127 = vset.pattern.permute.xlu0 0
      %4128 = vperm.xlu0 %4127, %v4050
      %v4129 = vpop.permute.xlu0 %4128
      %4132 = vset.pattern.permute.xlu0 0
      %4133 = vperm.xlu0 %4132, %v4051
      %v4134 = vpop.permute.xlu0 %4133
      %4137 = vset.pattern.permute.xlu0 0
      %4138 = vperm.xlu0 %4137, %v4052
      %v4139 = vpop.permute.xlu0 %4138
      %4142 = vset.pattern.permute.xlu0 0
      %4143 = vperm.xlu0 %4142, %v4053
      %v4144 = vpop.permute.xlu0 %4143
      %4147 = vset.pattern.permute.xlu0 0
      %4148 = vperm.xlu0 %4147, %v4054
      %v4149 = vpop.permute.xlu0 %4148
      %4152 = vset.pattern.permute.xlu0 0
      %4153 = vperm.xlu0 %4152, %v4055
      %v4154 = vpop.permute.xlu0 %4153
      %4157 = vset.pattern.permute.xlu0 0
      %4158 = vperm.xlu0 %4157, %v4056
      %v4159 = vpop.permute.xlu0 %4158
      %4162 = vset.pattern.permute.xlu0 0
      %4163 = vperm.xlu0 %4162, %v4057
      %v4164 = vpop.permute.xlu0 %4163
      %4167 = vset.pattern.permute.xlu0 0
      %4168 = vperm.xlu0 %4167, %v4058
      %v4169 = vpop.permute.xlu0 %4168
      %4172 = vset.pattern.permute.xlu0 0
      %4173 = vperm.xlu0 %4172, %v4059
      %v4174 = vpop.permute.xlu0 %4173
      %4177 = vset.pattern.permute.xlu0 0
      %4178 = vperm.xlu0 %4177, %v4060
      %v4179 = vpop.permute.xlu0 %4178
      %4182 = vset.pattern.permute.xlu0 0
      %4183 = vperm.xlu0 %4182, %v4061
      %v4184 = vpop.permute.xlu0 %4183
      %4187 = vset.pattern.permute.xlu0 0
      %4188 = vperm.xlu0 %4187, %v4062
      %v4189 = vpop.permute.xlu0 %4188
      %4192 = vset.pattern.permute.xlu0 0
      %4193 = vperm.xlu0 %4192, %v4063
      %v4194 = vpop.permute.xlu0 %4193
      %4197 = vset.pattern.permute.xlu0 0
      %4198 = vperm.xlu0 %4197, %v4064
      %v4199 = vpop.permute.xlu0 %4198
      %4202 = vset.pattern.permute.xlu0 0
      %4203 = vperm.xlu0 %4202, %v4065
      %v4204 = vpop.permute.xlu0 %4203
      %4207 = vset.pattern.permute.xlu0 0
      %4208 = vperm.xlu0 %4207, %v4066
      %v4209 = vpop.permute.xlu0 %4208
      %4212 = vset.pattern.permute.xlu0 0
      %4213 = vperm.xlu0 %4212, %v4067
      %v4214 = vpop.permute.xlu0 %4213
      %4217 = vset.pattern.permute.xlu0 0
      %4218 = vperm.xlu0 %4217, %v4068
      %v4219 = vpop.permute.xlu0 %4218
      %4222 = vset.pattern.permute.xlu0 0
      %4223 = vperm.xlu0 %4222, %v4069
      %v4224 = vpop.permute.xlu0 %4223
      %4227 = vset.pattern.permute.xlu0 0
      %4228 = vperm.xlu0 %4227, %v4070
      %v4229 = vpop.permute.xlu0 %4228
      %v4232 = vsel %vm1249, %v4006, 0
      %v4235 = vsel %vm1249, %v4007, 0
      %v4238 = vsel %vm1249, %v4008, 0
      %v4241 = vsel %vm1249, %v4009, 0
      %v4244 = vsel %vm1249, %v4010, 0
      %v4247 = vsel %vm1249, %v4011, 0
      %v4250 = vsel %vm1249, %v4012, 0
      %v4253 = vsel %vm1249, %v4013, 0
      %v4256 = vsel %vm1249, %v4014, 0
      %v4259 = vsel %vm1249, %v4015, 0
      %v4262 = vsel %vm1249, %v4016, 0
      %v4265 = vsel %vm1249, %v4017, 0
      %v4268 = vsel %vm1249, %v4018, 0
      %v4271 = vsel %vm1249, %v4019, 0
      %v4274 = vsel %vm1249, %v4020, 0
      %v4277 = vsel %vm1249, %v4021, 0
      %v4280 = vsel %vm1249, %v4022, 0
      %v4283 = vsel %vm1249, %v4023, 0
      %v4286 = vsel %vm1249, %v4024, 0
      %v4289 = vsel %vm1249, %v4025, 0
      %v4292 = vsel %vm1249, %v4026, 0
      %v4295 = vsel %vm1249, %v4027, 0
      %v4298 = vsel %vm1249, %v4028, 0
      %v4301 = vsel %vm1249, %v4029, 0
      %v4304 = vsel %vm1249, %v4030, 0
      %v4307 = vsel %vm1249, %v4031, 0
      %v4310 = vsel %vm1249, %v4032, 0
      %v4313 = vsel %vm1249, %v4033, 0
      %v4316 = vsel %vm1249, %v4034, 0
      %v4319 = vsel %vm1249, %v4035, 0
      %v4322 = vsel %vm1249, %v4036, 0
      %v4325 = vsel %vm1249, %v4037, 0
      %v4328 = vsel %vm1346, %v4004, 0
      %4330 = vmatprep.subr.mxu0 0.0
      %4331 = vmatpush1.msra.mxu0 %v4328
      %4332 = vmatprep.subr.mxu0 0.0
      %4333 = vmatpush1.msra.mxu0 0.0
      %4334 = vmatprep.subr.mxu0 0.0
      %4335 = vmatpush1.msra.mxu0 0.0
      %4336 = vmatprep.subr.mxu0 0.0
      %4337 = vmatpush1.msra.mxu0 0.0
      %4338 = vmatprep.subr.mxu0 0.0
      %4339 = vmatpush1.msra.mxu0 0.0
      %4340 = vmatprep.subr.mxu0 0.0
      %4341 = vmatpush1.msra.mxu0 0.0
      %4342 = vmatprep.subr.mxu0 0.0
      %4343 = vmatpush1.msra.mxu0 0.0
      %4344 = vmatprep.subr.mxu0 0.0
      %4345 = vmatpush1.msra.mxu0 0.0
      %4346 = vmatprep.subr.mxu0 0.0
      %4347 = vmatpush1.msra.mxu0 0.0
      %4348 = vmatprep.subr.mxu0 0.0
      %4349 = vmatpush1.msra.mxu0 0.0
      %4350 = vmatprep.subr.mxu0 0.0
      %4351 = vmatpush1.msra.mxu0 0.0
      %4352 = vmatprep.subr.mxu0 0.0
      %4353 = vmatpush1.msra.mxu0 0.0
      %4354 = vmatprep.subr.mxu0 0.0
      %4355 = vmatpush1.msra.mxu0 0.0
      %4356 = vmatprep.subr.mxu0 0.0
      %4357 = vmatpush1.msra.mxu0 0.0
      %4358 = vmatprep.subr.mxu0 0.0
      %4359 = vmatpush1.msra.mxu0 0.0
      %4360 = vmatprep.subr.mxu0 0.0
      %4361 = vmatpush1.msra.mxu0 0.0
      %4362 = vmatprep.subr.mxu0 0.0
      %4363 = vmatpush1.msra.mxu0 0.0
      %4364 = vmatprep.subr.mxu0 0.0
      %4365 = vmatpush1.msra.mxu0 0.0
      %4366 = vmatprep.subr.mxu0 0.0
      %4367 = vmatpush1.msra.mxu0 0.0
      %4368 = vmatprep.subr.mxu0 0.0
      %4369 = vmatpush1.msra.mxu0 0.0
      %4370 = vmatprep.subr.mxu0 0.0
      %4371 = vmatpush1.msra.mxu0 0.0
      %4372 = vmatprep.subr.mxu0 0.0
      %4373 = vmatpush1.msra.mxu0 0.0
      %4374 = vmatprep.subr.mxu0 0.0
      %4375 = vmatpush1.msra.mxu0 0.0
      %4376 = vmatprep.subr.mxu0 0.0
      %4377 = vmatpush1.msra.mxu0 0.0
      %4378 = vmatprep.subr.mxu0 0.0
      %4379 = vmatpush1.msra.mxu0 0.0
      %4380 = vmatprep.subr.mxu0 0.0
      %4381 = vmatpush1.msra.mxu0 0.0
      %4382 = vmatprep.subr.mxu0 0.0
      %4383 = vmatpush1.msra.mxu0 0.0
      %4384 = vmatprep.subr.mxu0 0.0
      %4385 = vmatpush1.msra.mxu0 0.0
      %4386 = vmatprep.subr.mxu0 0.0
      %4387 = vmatpush1.msra.mxu0 0.0
      %4388 = vmatprep.subr.mxu0 0.0
      %4389 = vmatpush1.msra.mxu0 0.0
      %4390 = vmatprep.subr.mxu0 0.0
      %4391 = vmatpush1.msra.mxu0 0.0
      %4392 = vmatprep.subr.mxu0 0.0
      %4393 = vmatpush1.msra.mxu0 0.0
      %4394 = vmatprep.mubr.f32.mxu0 0.0
      %4395 = vmatmul.mubr.f32.gmra.mrb[0].mxu0 %v4232
      %v4396 = vpop.f32.mrb[0].mxu0
      %v4397 = vadd.f32 %v4074, %v4396
      %v4398 = vpop.f32.mrb[0].mxu0
      %4399 = vmatprep.mubr.f32.mxu0 0.0
      %4400 = vmatmul.mubr.f32.gmra.mrb[0].mxu0 %v4235
      %v4401 = vpop.f32.mrb[0].mxu0
      %v4402 = vadd.f32 %v4079, %v4401
      %v4403 = vpop.f32.mrb[0].mxu0
      %4404 = vmatprep.mubr.f32.mxu0 0.0
      %4405 = vmatmul.mubr.f32.gmra.mrb[0].mxu0 %v4238
      %v4406 = vpop.f32.mrb[0].mxu0
      %v4407 = vadd.f32 %v4084, %v4406
      %v4408 = vpop.f32.mrb[0].mxu0
      %4409 = vmatprep.mubr.f32.mxu0 0.0
      %4410 = vmatmul.mubr.f32.gmra.mrb[0].mxu0 %v4241
      %v4411 = vpop.f32.mrb[0].mxu0
      %v4412 = vadd.f32 %v4089, %v4411
      %v4413 = vpop.f32.mrb[0].mxu0
      %4414 = vmatprep.mubr.f32.mxu0 0.0
      %4415 = vmatmul.mubr.f32.gmra.mrb[0].mxu0 %v4244
      %v4416 = vpop.f32.mrb[0].mxu0
      %v4417 = vadd.f32 %v4094, %v4416
      %v4418 = vpop.f32.mrb[0].mxu0
      %4419 = vmatprep.mubr.f32.mxu0 0.0
      %4420 = vmatmul.mubr.f32.gmra.mrb[0].mxu0 %v4247
      %v4421 = vpop.f32.mrb[0].mxu0
      %v4422 = vadd.f32 %v4099, %v4421
      %v4423 = vpop.f32.mrb[0].mxu0
      %4424 = vmatprep.mubr.f32.mxu0 0.0
      %4425 = vmatmul.mubr.f32.gmra.mrb[0].mxu0 %v4250
      %v4426 = vpop.f32.mrb[0].mxu0
      %v4427 = vadd.f32 %v4104, %v4426
      %v4428 = vpop.f32.mrb[0].mxu0
      %4429 = vmatprep.mubr.f32.mxu0 0.0
      %4430 = vmatmul.mubr.f32.gmra.mrb[0].mxu0 %v4253
      %v4431 = vpop.f32.mrb[0].mxu0
      %v4432 = vadd.f32 %v4109, %v4431
      %v4433 = vpop.f32.mrb[0].mxu0
      %4434 = vmatprep.mubr.f32.mxu0 0.0
      %4435 = vmatmul.mubr.f32.gmra.mrb[0].mxu0 %v4256
      %v4436 = vpop.f32.mrb[0].mxu0
      %v4437 = vadd.f32 %v4114, %v4436
      %v4438 = vpop.f32.mrb[0].mxu0
      %4439 = vmatprep.mubr.f32.mxu0 0.0
      %4440 = vmatmul.mubr.f32.gmra.mrb[0].mxu0 %v4259
      %v4441 = vpop.f32.mrb[0].mxu0
      %v4442 = vadd.f32 %v4119, %v4441
      %v4443 = vpop.f32.mrb[0].mxu0
      %4444 = vmatprep.mubr.f32.mxu0 0.0
      %4445 = vmatmul.mubr.f32.gmra.mrb[0].mxu0 %v4262
      %v4446 = vpop.f32.mrb[0].mxu0
      %v4447 = vadd.f32 %v4124, %v4446
      %v4448 = vpop.f32.mrb[0].mxu0
      %4449 = vmatprep.mubr.f32.mxu0 0.0
      %4450 = vmatmul.mubr.f32.gmra.mrb[0].mxu0 %v4265
      %v4451 = vpop.f32.mrb[0].mxu0
      %v4452 = vadd.f32 %v4129, %v4451
      %v4453 = vpop.f32.mrb[0].mxu0
      %4454 = vmatprep.mubr.f32.mxu0 0.0
      %4455 = vmatmul.mubr.f32.gmra.mrb[0].mxu0 %v4268
      %v4456 = vpop.f32.mrb[0].mxu0
      %v4457 = vadd.f32 %v4134, %v4456
      %v4458 = vpop.f32.mrb[0].mxu0
      %4459 = vmatprep.mubr.f32.mxu0 0.0
      %4460 = vmatmul.mubr.f32.gmra.mrb[0].mxu0 %v4271
      %v4461 = vpop.f32.mrb[0].mxu0
      %v4462 = vadd.f32 %v4139, %v4461
      %v4463 = vpop.f32.mrb[0].mxu0
      %4464 = vmatprep.mubr.f32.mxu0 0.0
      %4465 = vmatmul.mubr.f32.gmra.mrb[0].mxu0 %v4274
      %v4466 = vpop.f32.mrb[0].mxu0
      %v4467 = vadd.f32 %v4144, %v4466
      %v4468 = vpop.f32.mrb[0].mxu0
      %4469 = vmatprep.mubr.f32.mxu0 0.0
      %4470 = vmatmul.mubr.f32.gmra.mrb[0].mxu0 %v4277
      %v4471 = vpop.f32.mrb[0].mxu0
      %v4472 = vadd.f32 %v4149, %v4471
      %v4473 = vpop.f32.mrb[0].mxu0
      %4474 = vmatprep.mubr.f32.mxu0 0.0
      %4475 = vmatmul.mubr.f32.gmra.mrb[0].mxu0 %v4280
      %v4476 = vpop.f32.mrb[0].mxu0
      %v4477 = vadd.f32 %v4154, %v4476
      %v4478 = vpop.f32.mrb[0].mxu0
      %4479 = vmatprep.mubr.f32.mxu0 0.0
      %4480 = vmatmul.mubr.f32.gmra.mrb[0].mxu0 %v4283
      %v4481 = vpop.f32.mrb[0].mxu0
      %v4482 = vadd.f32 %v4159, %v4481
      %v4483 = vpop.f32.mrb[0].mxu0
      %4484 = vmatprep.mubr.f32.mxu0 0.0
      %4485 = vmatmul.mubr.f32.gmra.mrb[0].mxu0 %v4286
      %v4486 = vpop.f32.mrb[0].mxu0
      %v4487 = vadd.f32 %v4164, %v4486
      %v4488 = vpop.f32.mrb[0].mxu0
      %4489 = vmatprep.mubr.f32.mxu0 0.0
      %4490 = vmatmul.mubr.f32.gmra.mrb[0].mxu0 %v4289
      %v4491 = vpop.f32.mrb[0].mxu0
      %v4492 = vadd.f32 %v4169, %v4491
      %v4493 = vpop.f32.mrb[0].mxu0
      %4494 = vmatprep.mubr.f32.mxu0 0.0
      %4495 = vmatmul.mubr.f32.gmra.mrb[0].mxu0 %v4292
      %v4496 = vpop.f32.mrb[0].mxu0
      %v4497 = vadd.f32 %v4174, %v4496
      %v4498 = vpop.f32.mrb[0].mxu0
      %4499 = vmatprep.mubr.f32.mxu0 0.0
      %4500 = vmatmul.mubr.f32.gmra.mrb[0].mxu0 %v4295
      %v4501 = vpop.f32.mrb[0].mxu0
      %v4502 = vadd.f32 %v4179, %v4501
      %v4503 = vpop.f32.mrb[0].mxu0
      %4504 = vmatprep.mubr.f32.mxu0 0.0
      %4505 = vmatmul.mubr.f32.gmra.mrb[0].mxu0 %v4298
      %v4506 = vpop.f32.mrb[0].mxu0
      %v4507 = vadd.f32 %v4184, %v4506
      %v4508 = vpop.f32.mrb[0].mxu0
      %4509 = vmatprep.mubr.f32.mxu0 0.0
      %4510 = vmatmul.mubr.f32.gmra.mrb[0].mxu0 %v4301
      %v4511 = vpop.f32.mrb[0].mxu0
      %v4512 = vadd.f32 %v4189, %v4511
      %v4513 = vpop.f32.mrb[0].mxu0
      %4514 = vmatprep.mubr.f32.mxu0 0.0
      %4515 = vmatmul.mubr.f32.gmra.mrb[0].mxu0 %v4304
      %v4516 = vpop.f32.mrb[0].mxu0
      %v4517 = vadd.f32 %v4194, %v4516
      %v4518 = vpop.f32.mrb[0].mxu0
      %4519 = vmatprep.mubr.f32.mxu0 0.0
      %4520 = vmatmul.mubr.f32.gmra.mrb[0].mxu0 %v4307
      %v4521 = vpop.f32.mrb[0].mxu0
      %v4522 = vadd.f32 %v4199, %v4521
      %v4523 = vpop.f32.mrb[0].mxu0
      %4524 = vmatprep.mubr.f32.mxu0 0.0
      %4525 = vmatmul.mubr.f32.gmra.mrb[0].mxu0 %v4310
      %v4526 = vpop.f32.mrb[0].mxu0
      %v4527 = vadd.f32 %v4204, %v4526
      %v4528 = vpop.f32.mrb[0].mxu0
      %4529 = vmatprep.mubr.f32.mxu0 0.0
      %4530 = vmatmul.mubr.f32.gmra.mrb[0].mxu0 %v4313
      %v4531 = vpop.f32.mrb[0].mxu0
      %v4532 = vadd.f32 %v4209, %v4531
      %v4533 = vpop.f32.mrb[0].mxu0
      %4534 = vmatprep.mubr.f32.mxu0 0.0
      %4535 = vmatmul.mubr.f32.gmra.mrb[0].mxu0 %v4316
      %v4536 = vpop.f32.mrb[0].mxu0
      %v4537 = vadd.f32 %v4214, %v4536
      %v4538 = vpop.f32.mrb[0].mxu0
      %4539 = vmatprep.mubr.f32.mxu0 0.0
      %4540 = vmatmul.mubr.f32.gmra.mrb[0].mxu0 %v4319
      %v4541 = vpop.f32.mrb[0].mxu0
      %v4542 = vadd.f32 %v4219, %v4541
      %v4543 = vpop.f32.mrb[0].mxu0
      %4544 = vmatprep.mubr.f32.mxu0 0.0
      %4545 = vmatmul.mubr.f32.gmra.mrb[0].mxu0 %v4322
      %v4546 = vpop.f32.mrb[0].mxu0
      %v4547 = vadd.f32 %v4224, %v4546
      %v4548 = vpop.f32.mrb[0].mxu0
      %4549 = vmatprep.mubr.f32.mxu0 0.0
      %4550 = vmatmul.mubr.f32.gmra.mrb[0].mxu0 %v4325
      %v4551 = vpop.f32.mrb[0].mxu0
      %v4552 = vadd.f32 %v4229, %v4551
      %v4553 = vpop.f32.mrb[0].mxu0
      %4554 = vdwg.mxu0
      %v4555 = vmax.f32 %v4397, 0.0
      %v4556 = vmax.f32 %v4402, 0.0
      %v4557 = vmax.f32 %v4407, 0.0
      %v4558 = vmax.f32 %v4412, 0.0
      %v4559 = vmax.f32 %v4417, 0.0
      %v4560 = vmax.f32 %v4422, 0.0
      %v4561 = vmax.f32 %v4427, 0.0
      %v4562 = vmax.f32 %v4432, 0.0
      %v4563 = vmax.f32 %v4437, 0.0
      %v4564 = vmax.f32 %v4442, 0.0
      %v4565 = vmax.f32 %v4447, 0.0
      %v4566 = vmax.f32 %v4452, 0.0
      %v4567 = vmax.f32 %v4457, 0.0
      %v4568 = vmax.f32 %v4462, 0.0
      %v4569 = vmax.f32 %v4467, 0.0
      %v4570 = vmax.f32 %v4472, 0.0
      %v4571 = vmax.f32 %v4477, 0.0
      %v4572 = vmax.f32 %v4482, 0.0
      %v4573 = vmax.f32 %v4487, 0.0
      %v4574 = vmax.f32 %v4492, 0.0
      %v4575 = vmax.f32 %v4497, 0.0
      %v4576 = vmax.f32 %v4502, 0.0
      %v4577 = vmax.f32 %v4507, 0.0
      %v4578 = vmax.f32 %v4512, 0.0
      %v4579 = vmax.f32 %v4517, 0.0
      %v4580 = vmax.f32 %v4522, 0.0
      %v4581 = vmax.f32 %v4527, 0.0
      %v4582 = vmax.f32 %v4532, 0.0
      %v4583 = vmax.f32 %v4537, 0.0
      %v4584 = vmax.f32 %v4542, 0.0
      %v4585 = vmax.f32 %v4547, 0.0
      %v4586 = vmax.f32 %v4552, 0.0
      %s4587 = scalar_lea.vmem %s8, 48
      %v4588 = vld [vmem:[%s4587] sm:$0x3f]
      %v4589 = vld [vmem:[%s4587 + $0x8] sm:$0x3f]
      %s4590 = scalar_lea.vmem %s12, 24
      %v4591 = vld [vmem:[%s4590] sm:$0x3f]
      %4593 = vset.pattern.permute.xlu0 0
      %4594 = vperm.xlu0 %4593, %v4591
      %v4595 = vpop.permute.xlu0 %4594
      %4597 = vmatprep.subr.mxu0 0.0
      %4598 = vmatpush1.msra.mxu0 %v4555
      %4599 = vmatprep.subr.mxu0 0.0
      %4600 = vmatpush1.msra.mxu0 %v4556
      %4601 = vmatprep.subr.mxu0 0.0
      %4602 = vmatpush1.msra.mxu0 %v4557
      %4603 = vmatprep.subr.mxu0 0.0
      %4604 = vmatpush1.msra.mxu0 %v4558
      %4605 = vmatprep.subr.mxu0 0.0
      %4606 = vmatpush1.msra.mxu0 %v4559
      %4607 = vmatprep.subr.mxu0 0.0
      %4608 = vmatpush1.msra.mxu0 %v4560
      %4609 = vmatprep.subr.mxu0 0.0
      %4610 = vmatpush1.msra.mxu0 %v4561
      %4611 = vmatprep.subr.mxu0 0.0
      %4612 = vmatpush1.msra.mxu0 %v4562
      %4613 = vmatprep.subr.mxu0 0.0
      %4614 = vmatpush1.msra.mxu0 %v4563
      %4615 = vmatprep.subr.mxu0 0.0
      %4616 = vmatpush1.msra.mxu0 %v4564
      %4617 = vmatprep.subr.mxu0 0.0
      %4618 = vmatpush1.msra.mxu0 %v4565
      %4619 = vmatprep.subr.mxu0 0.0
      %4620 = vmatpush1.msra.mxu0 %v4566
      %4621 = vmatprep.subr.mxu0 0.0
      %4622 = vmatpush1.msra.mxu0 %v4567
      %4623 = vmatprep.subr.mxu0 0.0
      %4624 = vmatpush1.msra.mxu0 %v4568
      %4625 = vmatprep.subr.mxu0 0.0
      %4626 = vmatpush1.msra.mxu0 %v4569
      %4627 = vmatprep.subr.mxu0 0.0
      %4628 = vmatpush1.msra.mxu0 %v4570
      %4629 = vmatprep.subr.mxu0 0.0
      %4630 = vmatpush1.msra.mxu0 %v4571
      %4631 = vmatprep.subr.mxu0 0.0
      %4632 = vmatpush1.msra.mxu0 %v4572
      %4633 = vmatprep.subr.mxu0 0.0
      %4634 = vmatpush1.msra.mxu0 %v4573
      %4635 = vmatprep.subr.mxu0 0.0
      %4636 = vmatpush1.msra.mxu0 %v4574
      %4637 = vmatprep.subr.mxu0 0.0
      %4638 = vmatpush1.msra.mxu0 %v4575
      %4639 = vmatprep.subr.mxu0 0.0
      %4640 = vmatpush1.msra.mxu0 %v4576
      %4641 = vmatprep.subr.mxu0 0.0
      %4642 = vmatpush1.msra.mxu0 %v4577
      %4643 = vmatprep.subr.mxu0 0.0
      %4644 = vmatpush1.msra.mxu0 %v4578
      %4645 = vmatprep.subr.mxu0 0.0
      %4646 = vmatpush1.msra.mxu0 %v4579
      %4647 = vmatprep.subr.mxu0 0.0
      %4648 = vmatpush1.msra.mxu0 %v4580
      %4649 = vmatprep.subr.mxu0 0.0
      %4650 = vmatpush1.msra.mxu0 %v4581
      %4651 = vmatprep.subr.mxu0 0.0
      %4652 = vmatpush1.msra.mxu0 %v4582
      %4653 = vmatprep.subr.mxu0 0.0
      %4654 = vmatpush1.msra.mxu0 %v4583
      %4655 = vmatprep.subr.mxu0 0.0
      %4656 = vmatpush1.msra.mxu0 %v4584
      %4657 = vmatprep.subr.mxu0 0.0
      %4658 = vmatpush1.msra.mxu0 %v4585
      %4659 = vmatprep.subr.mxu0 0.0
      %4660 = vmatpush1.msra.mxu0 %v4586
      %4661 = vmatprep.mubr.f32.mxu0 %v4589
      %4662 = vmatmul.mubr.f32.gmra.mrb[0].mxu0 %v4588
      %v4663 = vpop.f32.mrb[0].mxu0
      %v4664 = vadd.f32 %v4595, %v4663
      %v4665 = vpop.f32.mrb[0].mxu0
      %4666 = vdwg.mxu0
      %s4667 = scalar_lea.vmem %s9, 16
      %v4668 = vld [vmem:[%s4667] sm:$0xf]
      %v4669 = vadd.f32 %v4664, %v695
      %s4670 = scalar_lea.vmem %s4, 512
      %v4671 = vld [vmem:[%s4670] sm:$0xff]
      %v4672 = vld [vmem:[%s4670 + $0x8] sm:$0xff]
      %v4673 = vld [vmem:[%s4670 + $0x10] sm:$0xff]
      %v4674 = vld [vmem:[%s4670 + $0x18] sm:$0xff]
      %v4675 = vld [vmem:[%s4670 + $0x20] sm:$0xff]
      %v4676 = vld [vmem:[%s4670 + $0x28] sm:$0xff]
      %v4677 = vld [vmem:[%s4670 + $0x30] sm:$0xff]
      %v4678 = vld [vmem:[%s4670 + $0x38] sm:$0xff]
      %v4679 = vld [vmem:[%s4670 + $0x40] sm:$0xff]
      %v4680 = vld [vmem:[%s4670 + $0x48] sm:$0xff]
      %v4681 = vld [vmem:[%s4670 + $0x50] sm:$0xff]
      %v4682 = vld [vmem:[%s4670 + $0x58] sm:$0xff]
      %v4683 = vld [vmem:[%s4670 + $0x60] sm:$0xff]
      %v4684 = vld [vmem:[%s4670 + $0x68] sm:$0xff]
      %v4685 = vld [vmem:[%s4670 + $0x70] sm:$0xff]
      %v4686 = vld [vmem:[%s4670 + $0x78] sm:$0xff]
      %4687 = vmatprep.subr.mxu0 0.0
      %4688 = vmatpush1.msra.mxu0 %v4671
      %4689 = vmatprep.subr.mxu0 0.0
      %4690 = vmatpush1.msra.mxu0 %v4672
      %4691 = vmatprep.subr.mxu0 0.0
      %4692 = vmatpush1.msra.mxu0 %v4673
      %4693 = vmatprep.subr.mxu0 0.0
      %4694 = vmatpush1.msra.mxu0 %v4674
      %4695 = vmatprep.subr.mxu0 0.0
      %4696 = vmatpush1.msra.mxu0 %v4675
      %4697 = vmatprep.subr.mxu0 0.0
      %4698 = vmatpush1.msra.mxu0 %v4676
      %4699 = vmatprep.subr.mxu0 0.0
      %4700 = vmatpush1.msra.mxu0 %v4677
      %4701 = vmatprep.subr.mxu0 0.0
      %4702 = vmatpush1.msra.mxu0 %v4678
      %4703 = vmatprep.subr.mxu0 0.0
      %4704 = vmatpush1.msra.mxu0 %v4679
      %4705 = vmatprep.subr.mxu0 0.0
      %4706 = vmatpush1.msra.mxu0 %v4680
      %4707 = vmatprep.subr.mxu0 0.0
      %4708 = vmatpush1.msra.mxu0 %v4681
      %4709 = vmatprep.subr.mxu0 0.0
      %4710 = vmatpush1.msra.mxu0 %v4682
      %4711 = vmatprep.subr.mxu0 0.0
      %4712 = vmatpush1.msra.mxu0 %v4683
      %4713 = vmatprep.subr.mxu0 0.0
      %4714 = vmatpush1.msra.mxu0 %v4684
      %4715 = vmatprep.subr.mxu0 0.0
      %4716 = vmatpush1.msra.mxu0 %v4685
      %4717 = vmatprep.subr.mxu0 0.0
      %4718 = vmatpush1.msra.mxu0 %v4686
      %4719 = vmatprep.subr.mxu0 0.0
      %4720 = vmatpush1.msra.mxu0 0.0
      %4721 = vmatprep.subr.mxu0 0.0
      %4722 = vmatpush1.msra.mxu0 0.0
      %4723 = vmatprep.subr.mxu0 0.0
      %4724 = vmatpush1.msra.mxu0 0.0
      %4725 = vmatprep.subr.mxu0 0.0
      %4726 = vmatpush1.msra.mxu0 0.0
      %4727 = vmatprep.subr.mxu0 0.0
      %4728 = vmatpush1.msra.mxu0 0.0
      %4729 = vmatprep.subr.mxu0 0.0
      %4730 = vmatpush1.msra.mxu0 0.0
      %4731 = vmatprep.subr.mxu0 0.0
      %4732 = vmatpush1.msra.mxu0 0.0
      %4733 = vmatprep.subr.mxu0 0.0
      %4734 = vmatpush1.msra.mxu0 0.0
      %4735 = vmatprep.subr.mxu0 0.0
      %4736 = vmatpush1.msra.mxu0 0.0
      %4737 = vmatprep.subr.mxu0 0.0
      %4738 = vmatpush1.msra.mxu0 0.0
      %4739 = vmatprep.subr.mxu0 0.0
      %4740 = vmatpush1.msra.mxu0 0.0
      %4741 = vmatprep.subr.mxu0 0.0
      %4742 = vmatpush1.msra.mxu0 0.0
      %4743 = vmatprep.subr.mxu0 0.0
      %4744 = vmatpush1.msra.mxu0 0.0
      %4745 = vmatprep.subr.mxu0 0.0
      %4746 = vmatpush1.msra.mxu0 0.0
      %4747 = vmatprep.subr.mxu0 0.0
      %4748 = vmatpush1.msra.mxu0 0.0
      %4749 = vmatprep.subr.mxu0 0.0
      %4750 = vmatpush1.msra.mxu0 0.0
      %4751 = vmatprep.mubr.f32.mxu0 0.0
      %4752 = vmatmul.mubr.f32.gmra.mrb[0].mxu0 %v689
      %v4753 = vpop.f32.mrb[0].mxu0
      %v4754 = vadd.f32 %v4668, %v4753
      %v4755 = vpop.f32.mrb[0].mxu0
      %4756 = vdwg.mxu0
      %v4757 = vlaneseq
      %v4758 = vshrl.u32 %v4757, 7
      %v4759 = vsub.s32 0, %v4758
      %v4760 = vrot.slane %v4754, %v4759
      %v4761 = vadd.f32 %v4669, %v4760
      %v4762 = vsel %vm788, %v4761, 0.0
      %4763 = vadd.xlane.f32.xlu0 %v4762
      %v4764 = vpop.xlane.xlu0 %4763
      %v4765 = vmul.f32 %v4764, %v792
      %v4766 = vsub.f32 %v4761, %v4765
      %v4767 = vmul.f32 %v4766, %v4766
      %v4768 = vsel %vm788, %v4767, 0.0
      %4769 = vadd.xlane.f32.xlu0 %v4768
      %v4770 = vpop.xlane.xlu0 %4769
      %v4771 = vmul.f32 %v4770, %v792
      %v4772 = vadd.f32 %v4771, 1e-05
      %v4773 = vrsqrt.pop %v4772
      %v4774 = vmul.f32 %v4766, %v4773
      %v4775 = vlaneseq
      %v4776 = vshrl.u32 %v4775, 7
      %v4777 = vsub.s32 1, %v4776
      %v4778 = vrot.slane %v4668, %v4777
      %v4779 = vmul.f32 %v4774, %v4778
      %v4780 = vlaneseq
      %v4781 = vshrl.u32 %v4780, 7
      %v4782 = vsub.s32 2, %v4781
      %v4783 = vrot.slane %v4668, %v4782
      %v4784 = vadd.f32 %v4779, %v4783
      %s4785 = scalar_lea.vmem %s5, 512
      %v4786 = vld [vmem:[%s4785] sm:$0xff]
      %v4787 = vld [vmem:[%s4785 + $0x8] sm:$0xff]
      %v4788 = vld [vmem:[%s4785 + $0x10] sm:$0xff]
      %v4789 = vld [vmem:[%s4785 + $0x18] sm:$0xff]
      %v4790 = vld [vmem:[%s4785 + $0x20] sm:$0xff]
      %v4791 = vld [vmem:[%s4785 + $0x28] sm:$0xff]
      %v4792 = vld [vmem:[%s4785 + $0x30] sm:$0xff]
      %v4793 = vld [vmem:[%s4785 + $0x38] sm:$0xff]
      %v4794 = vld [vmem:[%s4785 + $0x40] sm:$0xff]
      %v4795 = vld [vmem:[%s4785 + $0x48] sm:$0xff]
      %v4796 = vld [vmem:[%s4785 + $0x50] sm:$0xff]
      %v4797 = vld [vmem:[%s4785 + $0x58] sm:$0xff]
      %v4798 = vld [vmem:[%s4785 + $0x60] sm:$0xff]
      %v4799 = vld [vmem:[%s4785 + $0x68] sm:$0xff]
      %v4800 = vld [vmem:[%s4785 + $0x70] sm:$0xff]
      %v4801 = vld [vmem:[%s4785 + $0x78] sm:$0xff]
      %s4802 = scalar_lea.vmem %s10, 8
      %v4803 = vld [vmem:[%s4802] sm:$0x3]
      %v4805 = vlaneseq
      %v4806 = vshrl.u32 %v4805, 7
      %v4807 = vsub.s32 0, %v4806
      %v4808 = vrot.slane %v4803, %v4807
      %v4809 = vlaneseq
      %v4810 = vshrl.u32 %v4809, 7
      %v4811 = vsub.s32 1, %v4810
      %v4812 = vrot.slane %v4803, %v4811
      %v4816 = vsel %vm841, %v4784, 0
      %4818 = vmatprep.subr.mxu0 %v4787
      %4819 = vmatpush1.msra.mxu0 %v4786
      %4820 = vmatprep.subr.mxu0 %v4789
      %4821 = vmatpush1.msra.mxu0 %v4788
      %4822 = vmatprep.subr.mxu0 %v4791
      %4823 = vmatpush1.msra.mxu0 %v4790
      %4824 = vmatprep.subr.mxu0 %v4793
      %4825 = vmatpush1.msra.mxu0 %v4792
      %4826 = vmatprep.subr.mxu0 %v4795
      %4827 = vmatpush1.msra.mxu0 %v4794
      %4828 = vmatprep.subr.mxu0 %v4797
      %4829 = vmatpush1.msra.mxu0 %v4796
      %4830 = vmatprep.subr.mxu0 %v4799
      %4831 = vmatpush1.msra.mxu0 %v4798
      %4832 = vmatprep.subr.mxu0 %v4801
      %4833 = vmatpush1.msra.mxu0 %v4800
      %4834 = vmatprep.subr.mxu0 0.0
      %4835 = vmatpush1.msra.mxu0 0.0
      %4836 = vmatprep.subr.mxu0 0.0
      %4837 = vmatpush1.msra.mxu0 0.0
      %4838 = vmatprep.subr.mxu0 0.0
      %4839 = vmatpush1.msra.mxu0 0.0
      %4840 = vmatprep.subr.mxu0 0.0
      %4841 = vmatpush1.msra.mxu0 0.0
      %4842 = vmatprep.subr.mxu0 0.0
      %4843 = vmatpush1.msra.mxu0 0.0
      %4844 = vmatprep.subr.mxu0 0.0
      %4845 = vmatpush1.msra.mxu0 0.0
      %4846 = vmatprep.subr.mxu0 0.0
      %4847 = vmatpush1.msra.mxu0 0.0
      %4848 = vmatprep.subr.mxu0 0.0
      %4849 = vmatpush1.msra.mxu0 0.0
      %4850 = vmatprep.subr.mxu0 0.0
      %4851 = vmatpush1.msra.mxu0 0.0
      %4852 = vmatprep.subr.mxu0 0.0
      %4853 = vmatpush1.msra.mxu0 0.0
      %4854 = vmatprep.subr.mxu0 0.0
      %4855 = vmatpush1.msra.mxu0 0.0
      %4856 = vmatprep.subr.mxu0 0.0
      %4857 = vmatpush1.msra.mxu0 0.0
      %4858 = vmatprep.subr.mxu0 0.0
      %4859 = vmatpush1.msra.mxu0 0.0
      %4860 = vmatprep.subr.mxu0 0.0
      %4861 = vmatpush1.msra.mxu0 0.0
      %4862 = vmatprep.subr.mxu0 0.0
      %4863 = vmatpush1.msra.mxu0 0.0
      %4864 = vmatprep.subr.mxu0 0.0
      %4865 = vmatpush1.msra.mxu0 0.0
      %4866 = vmatprep.subr.mxu0 0.0
      %4867 = vmatpush1.msra.mxu0 0.0
      %4868 = vmatprep.subr.mxu0 0.0
      %4869 = vmatpush1.msra.mxu0 0.0
      %4870 = vmatprep.subr.mxu0 0.0
      %4871 = vmatpush1.msra.mxu0 0.0
      %4872 = vmatprep.subr.mxu0 0.0
      %4873 = vmatpush1.msra.mxu0 0.0
      %4874 = vmatprep.subr.mxu0 0.0
      %4875 = vmatpush1.msra.mxu0 0.0
      %4876 = vmatprep.subr.mxu0 0.0
      %4877 = vmatpush1.msra.mxu0 0.0
      %4878 = vmatprep.subr.mxu0 0.0
      %4879 = vmatpush1.msra.mxu0 0.0
      %4880 = vmatprep.subr.mxu0 0.0
      %4881 = vmatpush1.msra.mxu0 0.0
      %4882 = vmatprep.mubr.f32.mxu0 0.0
      %4883 = vmatmul.mubr.f32.gmra.mrb[0].mxu0 %v4816
      %v4884 = vpop.f32.mrb[0].mxu0
      %v4885 = vadd.f32 %v4808, %v4884
      %v4886 = vpop.f32.mrb[0].mxu0
      %v4887 = vadd.f32 %v4812, %v4886
      %4888 = vdwg.mxu0
      %v4889 = vmax.f32 %v4885, 0.0
      %v4890 = vmax.f32 %v4887, 0.0
      %s4891 = scalar_lea.vmem %s6, 1024
      %v4892 = vld [vmem:[%s4891] sm:$0xff]
      %v4893 = vld [vmem:[%s4891 + $0x8] sm:$0xff]
      %v4894 = vld [vmem:[%s4891 + $0x10] sm:$0xff]
      %v4895 = vld [vmem:[%s4891 + $0x18] sm:$0xff]
      %v4896 = vld [vmem:[%s4891 + $0x20] sm:$0xff]
      %v4897 = vld [vmem:[%s4891 + $0x28] sm:$0xff]
      %v4898 = vld [vmem:[%s4891 + $0x30] sm:$0xff]
      %v4899 = vld [vmem:[%s4891 + $0x38] sm:$0xff]
      %v4900 = vld [vmem:[%s4891 + $0x40] sm:$0xff]
      %v4901 = vld [vmem:[%s4891 + $0x48] sm:$0xff]
      %v4902 = vld [vmem:[%s4891 + $0x50] sm:$0xff]
      %v4903 = vld [vmem:[%s4891 + $0x58] sm:$0xff]
      %v4904 = vld [vmem:[%s4891 + $0x60] sm:$0xff]
      %v4905 = vld [vmem:[%s4891 + $0x68] sm:$0xff]
      %v4906 = vld [vmem:[%s4891 + $0x70] sm:$0xff]
      %v4907 = vld [vmem:[%s4891 + $0x78] sm:$0xff]
      %v4908 = vld [vmem:[%s4891 + $0x80] sm:$0xff]
      %v4909 = vld [vmem:[%s4891 + $0x88] sm:$0xff]
      %v4910 = vld [vmem:[%s4891 + $0x90] sm:$0xff]
      %v4911 = vld [vmem:[%s4891 + $0x98] sm:$0xff]
      %v4912 = vld [vmem:[%s4891 + $0xa0] sm:$0xff]
      %v4913 = vld [vmem:[%s4891 + $0xa8] sm:$0xff]
      %v4914 = vld [vmem:[%s4891 + $0xb0] sm:$0xff]
      %v4915 = vld [vmem:[%s4891 + $0xb8] sm:$0xff]
      %v4916 = vld [vmem:[%s4891 + $0xc0] sm:$0xff]
      %v4917 = vld [vmem:[%s4891 + $0xc8] sm:$0xff]
      %v4918 = vld [vmem:[%s4891 + $0xd0] sm:$0xff]
      %v4919 = vld [vmem:[%s4891 + $0xd8] sm:$0xff]
      %v4920 = vld [vmem:[%s4891 + $0xe0] sm:$0xff]
      %v4921 = vld [vmem:[%s4891 + $0xe8] sm:$0xff]
      %v4922 = vld [vmem:[%s4891 + $0xf0] sm:$0xff]
      %v4923 = vld [vmem:[%s4891 + $0xf8] sm:$0xff]
      %v4924 = vlaneseq
      %v4925 = vshrl.u32 %v4924, 7
      %v4926 = vsub.s32 3, %v4925
      %v4927 = vrot.slane %v4668, %v4926
      %4928 = vmatprep.subr.mxu0 0.0
      %4929 = vmatpush1.msra.mxu0 %v4892
      %4930 = vmatprep.subr.mxu0 0.0
      %4931 = vmatpush1.msra.mxu0 %v4893
      %4932 = vmatprep.subr.mxu0 0.0
      %4933 = vmatpush1.msra.mxu0 %v4894
      %4934 = vmatprep.subr.mxu0 0.0
      %4935 = vmatpush1.msra.mxu0 %v4895
      %4936 = vmatprep.subr.mxu0 0.0
      %4937 = vmatpush1.msra.mxu0 %v4896
      %4938 = vmatprep.subr.mxu0 0.0
      %4939 = vmatpush1.msra.mxu0 %v4897
      %4940 = vmatprep.subr.mxu0 0.0
      %4941 = vmatpush1.msra.mxu0 %v4898
      %4942 = vmatprep.subr.mxu0 0.0
      %4943 = vmatpush1.msra.mxu0 %v4899
      %4944 = vmatprep.subr.mxu0 0.0
      %4945 = vmatpush1.msra.mxu0 %v4900
      %4946 = vmatprep.subr.mxu0 0.0
      %4947 = vmatpush1.msra.mxu0 %v4901
      %4948 = vmatprep.subr.mxu0 0.0
      %4949 = vmatpush1.msra.mxu0 %v4902
      %4950 = vmatprep.subr.mxu0 0.0
      %4951 = vmatpush1.msra.mxu0 %v4903
      %4952 = vmatprep.subr.mxu0 0.0
      %4953 = vmatpush1.msra.mxu0 %v4904
      %4954 = vmatprep.subr.mxu0 0.0
      %4955 = vmatpush1.msra.mxu0 %v4905
      %4956 = vmatprep.subr.mxu0 0.0
      %4957 = vmatpush1.msra.mxu0 %v4906
      %4958 = vmatprep.subr.mxu0 0.0
      %4959 = vmatpush1.msra.mxu0 %v4907
      %4960 = vmatprep.subr.mxu0 0.0
      %4961 = vmatpush1.msra.mxu0 %v4908
      %4962 = vmatprep.subr.mxu0 0.0
      %4963 = vmatpush1.msra.mxu0 %v4909
      %4964 = vmatprep.subr.mxu0 0.0
      %4965 = vmatpush1.msra.mxu0 %v4910
      %4966 = vmatprep.subr.mxu0 0.0
      %4967 = vmatpush1.msra.mxu0 %v4911
      %4968 = vmatprep.subr.mxu0 0.0
      %4969 = vmatpush1.msra.mxu0 %v4912
      %4970 = vmatprep.subr.mxu0 0.0
      %4971 = vmatpush1.msra.mxu0 %v4913
      %4972 = vmatprep.subr.mxu0 0.0
      %4973 = vmatpush1.msra.mxu0 %v4914
      %4974 = vmatprep.subr.mxu0 0.0
      %4975 = vmatpush1.msra.mxu0 %v4915
      %4976 = vmatprep.subr.mxu0 0.0
      %4977 = vmatpush1.msra.mxu0 %v4916
      %4978 = vmatprep.subr.mxu0 0.0
      %4979 = vmatpush1.msra.mxu0 %v4917
      %4980 = vmatprep.subr.mxu0 0.0
      %4981 = vmatpush1.msra.mxu0 %v4918
      %4982 = vmatprep.subr.mxu0 0.0
      %4983 = vmatpush1.msra.mxu0 %v4919
      %4984 = vmatprep.subr.mxu0 0.0
      %4985 = vmatpush1.msra.mxu0 %v4920
      %4986 = vmatprep.subr.mxu0 0.0
      %4987 = vmatpush1.msra.mxu0 %v4921
      %4988 = vmatprep.subr.mxu0 0.0
      %4989 = vmatpush1.msra.mxu0 %v4922
      %4990 = vmatprep.subr.mxu0 0.0
      %4991 = vmatpush1.msra.mxu0 %v4923
      %4992 = vmatprep.mubr.f32.mxu0 %v4890
      %4993 = vmatmul.mubr.f32.gmra.mrb[0].mxu0 %v4889
      %v4994 = vpop.f32.mrb[0].mxu0
      %v4995 = vadd.f32 %v4927, %v4994
      %v4996 = vpop.f32.mrb[0].mxu0
      %4997 = vdwg.mxu0
      %v4998 = vadd.f32 %v4784, %v4995
      %s4999 = scalar_lea.vmem %s7, 1024
      %v5000 = vld [vmem:[%s4999] sm:$0xff]
      %v5001 = vld [vmem:[%s4999 + $0x8] sm:$0xff]
      %v5002 = vld [vmem:[%s4999 + $0x10] sm:$0xff]
      %v5003 = vld [vmem:[%s4999 + $0x18] sm:$0xff]
      %v5004 = vld [vmem:[%s4999 + $0x20] sm:$0xff]
      %v5005 = vld [vmem:[%s4999 + $0x28] sm:$0xff]
      %v5006 = vld [vmem:[%s4999 + $0x30] sm:$0xff]
      %v5007 = vld [vmem:[%s4999 + $0x38] sm:$0xff]
      %v5008 = vld [vmem:[%s4999 + $0x40] sm:$0xff]
      %v5009 = vld [vmem:[%s4999 + $0x48] sm:$0xff]
      %v5010 = vld [vmem:[%s4999 + $0x50] sm:$0xff]
      %v5011 = vld [vmem:[%s4999 + $0x58] sm:$0xff]
      %v5012 = vld [vmem:[%s4999 + $0x60] sm:$0xff]
      %v5013 = vld [vmem:[%s4999 + $0x68] sm:$0xff]
      %v5014 = vld [vmem:[%s4999 + $0x70] sm:$0xff]
      %v5015 = vld [vmem:[%s4999 + $0x78] sm:$0xff]
      %v5016 = vld [vmem:[%s4999 + $0x80] sm:$0xff]
      %v5017 = vld [vmem:[%s4999 + $0x88] sm:$0xff]
      %v5018 = vld [vmem:[%s4999 + $0x90] sm:$0xff]
      %v5019 = vld [vmem:[%s4999 + $0x98] sm:$0xff]
      %v5020 = vld [vmem:[%s4999 + $0xa0] sm:$0xff]
      %v5021 = vld [vmem:[%s4999 + $0xa8] sm:$0xff]
      %v5022 = vld [vmem:[%s4999 + $0xb0] sm:$0xff]
      %v5023 = vld [vmem:[%s4999 + $0xb8] sm:$0xff]
      %v5024 = vld [vmem:[%s4999 + $0xc0] sm:$0xff]
      %v5025 = vld [vmem:[%s4999 + $0xc8] sm:$0xff]
      %v5026 = vld [vmem:[%s4999 + $0xd0] sm:$0xff]
      %v5027 = vld [vmem:[%s4999 + $0xd8] sm:$0xff]
      %v5028 = vld [vmem:[%s4999 + $0xe0] sm:$0xff]
      %v5029 = vld [vmem:[%s4999 + $0xe8] sm:$0xff]
      %v5030 = vld [vmem:[%s4999 + $0xf0] sm:$0xff]
      %v5031 = vld [vmem:[%s4999 + $0xf8] sm:$0xff]
      %s5032 = scalar_lea.vmem %s11, 1024
      %v5033 = vld [vmem:[%s5032] sm:$0xff]
      %v5034 = vld [vmem:[%s5032 + $0x8] sm:$0xff]
      %v5035 = vld [vmem:[%s5032 + $0x10] sm:$0xff]
      %v5036 = vld [vmem:[%s5032 + $0x18] sm:$0xff]
      %v5037 = vld [vmem:[%s5032 + $0x20] sm:$0xff]
      %v5038 = vld [vmem:[%s5032 + $0x28] sm:$0xff]
      %v5039 = vld [vmem:[%s5032 + $0x30] sm:$0xff]
      %v5040 = vld [vmem:[%s5032 + $0x38] sm:$0xff]
      %v5041 = vld [vmem:[%s5032 + $0x40] sm:$0xff]
      %v5042 = vld [vmem:[%s5032 + $0x48] sm:$0xff]
      %v5043 = vld [vmem:[%s5032 + $0x50] sm:$0xff]
      %v5044 = vld [vmem:[%s5032 + $0x58] sm:$0xff]
      %v5045 = vld [vmem:[%s5032 + $0x60] sm:$0xff]
      %v5046 = vld [vmem:[%s5032 + $0x68] sm:$0xff]
      %v5047 = vld [vmem:[%s5032 + $0x70] sm:$0xff]
      %v5048 = vld [vmem:[%s5032 + $0x78] sm:$0xff]
      %v5049 = vld [vmem:[%s5032 + $0x80] sm:$0xff]
      %v5050 = vld [vmem:[%s5032 + $0x88] sm:$0xff]
      %v5051 = vld [vmem:[%s5032 + $0x90] sm:$0xff]
      %v5052 = vld [vmem:[%s5032 + $0x98] sm:$0xff]
      %v5053 = vld [vmem:[%s5032 + $0xa0] sm:$0xff]
      %v5054 = vld [vmem:[%s5032 + $0xa8] sm:$0xff]
      %v5055 = vld [vmem:[%s5032 + $0xb0] sm:$0xff]
      %v5056 = vld [vmem:[%s5032 + $0xb8] sm:$0xff]
      %v5057 = vld [vmem:[%s5032 + $0xc0] sm:$0xff]
      %v5058 = vld [vmem:[%s5032 + $0xc8] sm:$0xff]
      %v5059 = vld [vmem:[%s5032 + $0xd0] sm:$0xff]
      %v5060 = vld [vmem:[%s5032 + $0xd8] sm:$0xff]
      %v5061 = vld [vmem:[%s5032 + $0xe0] sm:$0xff]
      %v5062 = vld [vmem:[%s5032 + $0xe8] sm:$0xff]
      %v5063 = vld [vmem:[%s5032 + $0xf0] sm:$0xff]
      %v5064 = vld [vmem:[%s5032 + $0xf8] sm:$0xff]
      %5066 = vset.pattern.permute.xlu0 0
      %5067 = vperm.xlu0 %5066, %v5033
      %v5068 = vpop.permute.xlu0 %5067
      %5071 = vset.pattern.permute.xlu0 0
      %5072 = vperm.xlu0 %5071, %v5034
      %v5073 = vpop.permute.xlu0 %5072
      %5076 = vset.pattern.permute.xlu0 0
      %5077 = vperm.xlu0 %5076, %v5035
      %v5078 = vpop.permute.xlu0 %5077
      %5081 = vset.pattern.permute.xlu0 0
      %5082 = vperm.xlu0 %5081, %v5036
      %v5083 = vpop.permute.xlu0 %5082
      %5086 = vset.pattern.permute.xlu0 0
      %5087 = vperm.xlu0 %5086, %v5037
      %v5088 = vpop.permute.xlu0 %5087
      %5091 = vset.pattern.permute.xlu0 0
      %5092 = vperm.xlu0 %5091, %v5038
      %v5093 = vpop.permute.xlu0 %5092
      %5096 = vset.pattern.permute.xlu0 0
      %5097 = vperm.xlu0 %5096, %v5039
      %v5098 = vpop.permute.xlu0 %5097
      %5101 = vset.pattern.permute.xlu0 0
      %5102 = vperm.xlu0 %5101, %v5040
      %v5103 = vpop.permute.xlu0 %5102
      %5106 = vset.pattern.permute.xlu0 0
      %5107 = vperm.xlu0 %5106, %v5041
      %v5108 = vpop.permute.xlu0 %5107
      %5111 = vset.pattern.permute.xlu0 0
      %5112 = vperm.xlu0 %5111, %v5042
      %v5113 = vpop.permute.xlu0 %5112
      %5116 = vset.pattern.permute.xlu0 0
      %5117 = vperm.xlu0 %5116, %v5043
      %v5118 = vpop.permute.xlu0 %5117
      %5121 = vset.pattern.permute.xlu0 0
      %5122 = vperm.xlu0 %5121, %v5044
      %v5123 = vpop.permute.xlu0 %5122
      %5126 = vset.pattern.permute.xlu0 0
      %5127 = vperm.xlu0 %5126, %v5045
      %v5128 = vpop.permute.xlu0 %5127
      %5131 = vset.pattern.permute.xlu0 0
      %5132 = vperm.xlu0 %5131, %v5046
      %v5133 = vpop.permute.xlu0 %5132
      %5136 = vset.pattern.permute.xlu0 0
      %5137 = vperm.xlu0 %5136, %v5047
      %v5138 = vpop.permute.xlu0 %5137
      %5141 = vset.pattern.permute.xlu0 0
      %5142 = vperm.xlu0 %5141, %v5048
      %v5143 = vpop.permute.xlu0 %5142
      %5146 = vset.pattern.permute.xlu0 0
      %5147 = vperm.xlu0 %5146, %v5049
      %v5148 = vpop.permute.xlu0 %5147
      %5151 = vset.pattern.permute.xlu0 0
      %5152 = vperm.xlu0 %5151, %v5050
      %v5153 = vpop.permute.xlu0 %5152
      %5156 = vset.pattern.permute.xlu0 0
      %5157 = vperm.xlu0 %5156, %v5051
      %v5158 = vpop.permute.xlu0 %5157
      %5161 = vset.pattern.permute.xlu0 0
      %5162 = vperm.xlu0 %5161, %v5052
      %v5163 = vpop.permute.xlu0 %5162
      %5166 = vset.pattern.permute.xlu0 0
      %5167 = vperm.xlu0 %5166, %v5053
      %v5168 = vpop.permute.xlu0 %5167
      %5171 = vset.pattern.permute.xlu0 0
      %5172 = vperm.xlu0 %5171, %v5054
      %v5173 = vpop.permute.xlu0 %5172
      %5176 = vset.pattern.permute.xlu0 0
      %5177 = vperm.xlu0 %5176, %v5055
      %v5178 = vpop.permute.xlu0 %5177
      %5181 = vset.pattern.permute.xlu0 0
      %5182 = vperm.xlu0 %5181, %v5056
      %v5183 = vpop.permute.xlu0 %5182
      %5186 = vset.pattern.permute.xlu0 0
      %5187 = vperm.xlu0 %5186, %v5057
      %v5188 = vpop.permute.xlu0 %5187
      %5191 = vset.pattern.permute.xlu0 0
      %5192 = vperm.xlu0 %5191, %v5058
      %v5193 = vpop.permute.xlu0 %5192
      %5196 = vset.pattern.permute.xlu0 0
      %5197 = vperm.xlu0 %5196, %v5059
      %v5198 = vpop.permute.xlu0 %5197
      %5201 = vset.pattern.permute.xlu0 0
      %5202 = vperm.xlu0 %5201, %v5060
      %v5203 = vpop.permute.xlu0 %5202
      %5206 = vset.pattern.permute.xlu0 0
      %5207 = vperm.xlu0 %5206, %v5061
      %v5208 = vpop.permute.xlu0 %5207
      %5211 = vset.pattern.permute.xlu0 0
      %5212 = vperm.xlu0 %5211, %v5062
      %v5213 = vpop.permute.xlu0 %5212
      %5216 = vset.pattern.permute.xlu0 0
      %5217 = vperm.xlu0 %5216, %v5063
      %v5218 = vpop.permute.xlu0 %5217
      %5221 = vset.pattern.permute.xlu0 0
      %5222 = vperm.xlu0 %5221, %v5064
      %v5223 = vpop.permute.xlu0 %5222
      %v5226 = vsel %vm1249, %v5000, 0
      %v5229 = vsel %vm1249, %v5001, 0
      %v5232 = vsel %vm1249, %v5002, 0
      %v5235 = vsel %vm1249, %v5003, 0
      %v5238 = vsel %vm1249, %v5004, 0
      %v5241 = vsel %vm1249, %v5005, 0
      %v5244 = vsel %vm1249, %v5006, 0
      %v5247 = vsel %vm1249, %v5007, 0
      %v5250 = vsel %vm1249, %v5008, 0
      %v5253 = vsel %vm1249, %v5009, 0
      %v5256 = vsel %vm1249, %v5010, 0
      %v5259 = vsel %vm1249, %v5011, 0
      %v5262 = vsel %vm1249, %v5012, 0
      %v5265 = vsel %vm1249, %v5013, 0
      %v5268 = vsel %vm1249, %v5014, 0
      %v5271 = vsel %vm1249, %v5015, 0
      %v5274 = vsel %vm1249, %v5016, 0
      %v5277 = vsel %vm1249, %v5017, 0
      %v5280 = vsel %vm1249, %v5018, 0
      %v5283 = vsel %vm1249, %v5019, 0
      %v5286 = vsel %vm1249, %v5020, 0
      %v5289 = vsel %vm1249, %v5021, 0
      %v5292 = vsel %vm1249, %v5022, 0
      %v5295 = vsel %vm1249, %v5023, 0
      %v5298 = vsel %vm1249, %v5024, 0
      %v5301 = vsel %vm1249, %v5025, 0
      %v5304 = vsel %vm1249, %v5026, 0
      %v5307 = vsel %vm1249, %v5027, 0
      %v5310 = vsel %vm1249, %v5028, 0
      %v5313 = vsel %vm1249, %v5029, 0
      %v5316 = vsel %vm1249, %v5030, 0
      %v5319 = vsel %vm1249, %v5031, 0
      %v5322 = vsel %vm1346, %v4998, 0
      %5324 = vmatprep.subr.mxu0 0.0
      %5325 = vmatpush1.msra.mxu0 %v5322
      %5326 = vmatprep.subr.mxu0 0.0
      %5327 = vmatpush1.msra.mxu0 0.0
      %5328 = vmatprep.subr.mxu0 0.0
      %5329 = vmatpush1.msra.mxu0 0.0
      %5330 = vmatprep.subr.mxu0 0.0
      %5331 = vmatpush1.msra.mxu0 0.0
      %5332 = vmatprep.subr.mxu0 0.0
      %5333 = vmatpush1.msra.mxu0 0.0
      %5334 = vmatprep.subr.mxu0 0.0
      %5335 = vmatpush1.msra.mxu0 0.0
      %5336 = vmatprep.subr.mxu0 0.0
      %5337 = vmatpush1.msra.mxu0 0.0
      %5338 = vmatprep.subr.mxu0 0.0
      %5339 = vmatpush1.msra.mxu0 0.0
      %5340 = vmatprep.subr.mxu0 0.0
      %5341 = vmatpush1.msra.mxu0 0.0
      %5342 = vmatprep.subr.mxu0 0.0
      %5343 = vmatpush1.msra.mxu0 0.0
      %5344 = vmatprep.subr.mxu0 0.0
      %5345 = vmatpush1.msra.mxu0 0.0
      %5346 = vmatprep.subr.mxu0 0.0
      %5347 = vmatpush1.msra.mxu0 0.0
      %5348 = vmatprep.subr.mxu0 0.0
      %5349 = vmatpush1.msra.mxu0 0.0
      %5350 = vmatprep.subr.mxu0 0.0
      %5351 = vmatpush1.msra.mxu0 0.0
      %5352 = vmatprep.subr.mxu0 0.0
      %5353 = vmatpush1.msra.mxu0 0.0
      %5354 = vmatprep.subr.mxu0 0.0
      %5355 = vmatpush1.msra.mxu0 0.0
      %5356 = vmatprep.subr.mxu0 0.0
      %5357 = vmatpush1.msra.mxu0 0.0
      %5358 = vmatprep.subr.mxu0 0.0
      %5359 = vmatpush1.msra.mxu0 0.0
      %5360 = vmatprep.subr.mxu0 0.0
      %5361 = vmatpush1.msra.mxu0 0.0
      %5362 = vmatprep.subr.mxu0 0.0
      %5363 = vmatpush1.msra.mxu0 0.0
      %5364 = vmatprep.subr.mxu0 0.0
      %5365 = vmatpush1.msra.mxu0 0.0
      %5366 = vmatprep.subr.mxu0 0.0
      %5367 = vmatpush1.msra.mxu0 0.0
      %5368 = vmatprep.subr.mxu0 0.0
      %5369 = vmatpush1.msra.mxu0 0.0
      %5370 = vmatprep.subr.mxu0 0.0
      %5371 = vmatpush1.msra.mxu0 0.0
      %5372 = vmatprep.subr.mxu0 0.0
      %5373 = vmatpush1.msra.mxu0 0.0
      %5374 = vmatprep.subr.mxu0 0.0
      %5375 = vmatpush1.msra.mxu0 0.0
      %5376 = vmatprep.subr.mxu0 0.0
      %5377 = vmatpush1.msra.mxu0 0.0
      %5378 = vmatprep.subr.mxu0 0.0
      %5379 = vmatpush1.msra.mxu0 0.0
      %5380 = vmatprep.subr.mxu0 0.0
      %5381 = vmatpush1.msra.mxu0 0.0
      %5382 = vmatprep.subr.mxu0 0.0
      %5383 = vmatpush1.msra.mxu0 0.0
      %5384 = vmatprep.subr.mxu0 0.0
      %5385 = vmatpush1.msra.mxu0 0.0
      %5386 = vmatprep.subr.mxu0 0.0
      %5387 = vmatpush1.msra.mxu0 0.0
      %5388 = vmatprep.mubr.f32.mxu0 0.0
      %5389 = vmatmul.mubr.f32.gmra.mrb[0].mxu0 %v5226
      %v5390 = vpop.f32.mrb[0].mxu0
      %v5391 = vadd.f32 %v5068, %v5390
      %v5392 = vpop.f32.mrb[0].mxu0
      %5393 = vmatprep.mubr.f32.mxu0 0.0
      %5394 = vmatmul.mubr.f32.gmra.mrb[0].mxu0 %v5229
      %v5395 = vpop.f32.mrb[0].mxu0
      %v5396 = vadd.f32 %v5073, %v5395
      %v5397 = vpop.f32.mrb[0].mxu0
      %5398 = vmatprep.mubr.f32.mxu0 0.0
      %5399 = vmatmul.mubr.f32.gmra.mrb[0].mxu0 %v5232
      %v5400 = vpop.f32.mrb[0].mxu0
      %v5401 = vadd.f32 %v5078, %v5400
      %v5402 = vpop.f32.mrb[0].mxu0
      %5403 = vmatprep.mubr.f32.mxu0 0.0
      %5404 = vmatmul.mubr.f32.gmra.mrb[0].mxu0 %v5235
      %v5405 = vpop.f32.mrb[0].mxu0
      %v5406 = vadd.f32 %v5083, %v5405
      %v5407 = vpop.f32.mrb[0].mxu0
      %5408 = vmatprep.mubr.f32.mxu0 0.0
      %5409 = vmatmul.mubr.f32.gmra.mrb[0].mxu0 %v5238
      %v5410 = vpop.f32.mrb[0].mxu0
      %v5411 = vadd.f32 %v5088, %v5410
      %v5412 = vpop.f32.mrb[0].mxu0
      %5413 = vmatprep.mubr.f32.mxu0 0.0
      %5414 = vmatmul.mubr.f32.gmra.mrb[0].mxu0 %v5241
      %v5415 = vpop.f32.mrb[0].mxu0
      %v5416 = vadd.f32 %v5093, %v5415
      %v5417 = vpop.f32.mrb[0].mxu0
      %5418 = vmatprep.mubr.f32.mxu0 0.0
      %5419 = vmatmul.mubr.f32.gmra.mrb[0].mxu0 %v5244
      %v5420 = vpop.f32.mrb[0].mxu0
      %v5421 = vadd.f32 %v5098, %v5420
      %v5422 = vpop.f32.mrb[0].mxu0
      %5423 = vmatprep.mubr.f32.mxu0 0.0
      %5424 = vmatmul.mubr.f32.gmra.mrb[0].mxu0 %v5247
      %v5425 = vpop.f32.mrb[0].mxu0
      %v5426 = vadd.f32 %v5103, %v5425
      %v5427 = vpop.f32.mrb[0].mxu0
      %5428 = vmatprep.mubr.f32.mxu0 0.0
      %5429 = vmatmul.mubr.f32.gmra.mrb[0].mxu0 %v5250
      %v5430 = vpop.f32.mrb[0].mxu0
      %v5431 = vadd.f32 %v5108, %v5430
      %v5432 = vpop.f32.mrb[0].mxu0
      %5433 = vmatprep.mubr.f32.mxu0 0.0
      %5434 = vmatmul.mubr.f32.gmra.mrb[0].mxu0 %v5253
      %v5435 = vpop.f32.mrb[0].mxu0
      %v5436 = vadd.f32 %v5113, %v5435
      %v5437 = vpop.f32.mrb[0].mxu0
      %5438 = vmatprep.mubr.f32.mxu0 0.0
      %5439 = vmatmul.mubr.f32.gmra.mrb[0].mxu0 %v5256
      %v5440 = vpop.f32.mrb[0].mxu0
      %v5441 = vadd.f32 %v5118, %v5440
      %v5442 = vpop.f32.mrb[0].mxu0
      %5443 = vmatprep.mubr.f32.mxu0 0.0
      %5444 = vmatmul.mubr.f32.gmra.mrb[0].mxu0 %v5259
      %v5445 = vpop.f32.mrb[0].mxu0
      %v5446 = vadd.f32 %v5123, %v5445
      %v5447 = vpop.f32.mrb[0].mxu0
      %5448 = vmatprep.mubr.f32.mxu0 0.0
      %5449 = vmatmul.mubr.f32.gmra.mrb[0].mxu0 %v5262
      %v5450 = vpop.f32.mrb[0].mxu0
      %v5451 = vadd.f32 %v5128, %v5450
      %v5452 = vpop.f32.mrb[0].mxu0
      %5453 = vmatprep.mubr.f32.mxu0 0.0
      %5454 = vmatmul.mubr.f32.gmra.mrb[0].mxu0 %v5265
      %v5455 = vpop.f32.mrb[0].mxu0
      %v5456 = vadd.f32 %v5133, %v5455
      %v5457 = vpop.f32.mrb[0].mxu0
      %5458 = vmatprep.mubr.f32.mxu0 0.0
      %5459 = vmatmul.mubr.f32.gmra.mrb[0].mxu0 %v5268
      %v5460 = vpop.f32.mrb[0].mxu0
      %v5461 = vadd.f32 %v5138, %v5460
      %v5462 = vpop.f32.mrb[0].mxu0
      %5463 = vmatprep.mubr.f32.mxu0 0.0
      %5464 = vmatmul.mubr.f32.gmra.mrb[0].mxu0 %v5271
      %v5465 = vpop.f32.mrb[0].mxu0
      %v5466 = vadd.f32 %v5143, %v5465
      %v5467 = vpop.f32.mrb[0].mxu0
      %5468 = vmatprep.mubr.f32.mxu0 0.0
      %5469 = vmatmul.mubr.f32.gmra.mrb[0].mxu0 %v5274
      %v5470 = vpop.f32.mrb[0].mxu0
      %v5471 = vadd.f32 %v5148, %v5470
      %v5472 = vpop.f32.mrb[0].mxu0
      %5473 = vmatprep.mubr.f32.mxu0 0.0
      %5474 = vmatmul.mubr.f32.gmra.mrb[0].mxu0 %v5277
      %v5475 = vpop.f32.mrb[0].mxu0
      %v5476 = vadd.f32 %v5153, %v5475
      %v5477 = vpop.f32.mrb[0].mxu0
      %5478 = vmatprep.mubr.f32.mxu0 0.0
      %5479 = vmatmul.mubr.f32.gmra.mrb[0].mxu0 %v5280
      %v5480 = vpop.f32.mrb[0].mxu0
      %v5481 = vadd.f32 %v5158, %v5480
      %v5482 = vpop.f32.mrb[0].mxu0
      %5483 = vmatprep.mubr.f32.mxu0 0.0
      %5484 = vmatmul.mubr.f32.gmra.mrb[0].mxu0 %v5283
      %v5485 = vpop.f32.mrb[0].mxu0
      %v5486 = vadd.f32 %v5163, %v5485
      %v5487 = vpop.f32.mrb[0].mxu0
      %5488 = vmatprep.mubr.f32.mxu0 0.0
      %5489 = vmatmul.mubr.f32.gmra.mrb[0].mxu0 %v5286
      %v5490 = vpop.f32.mrb[0].mxu0
      %v5491 = vadd.f32 %v5168, %v5490
      %v5492 = vpop.f32.mrb[0].mxu0
      %5493 = vmatprep.mubr.f32.mxu0 0.0
      %5494 = vmatmul.mubr.f32.gmra.mrb[0].mxu0 %v5289
      %v5495 = vpop.f32.mrb[0].mxu0
      %v5496 = vadd.f32 %v5173, %v5495
      %v5497 = vpop.f32.mrb[0].mxu0
      %5498 = vmatprep.mubr.f32.mxu0 0.0
      %5499 = vmatmul.mubr.f32.gmra.mrb[0].mxu0 %v5292
      %v5500 = vpop.f32.mrb[0].mxu0
      %v5501 = vadd.f32 %v5178, %v5500
      %v5502 = vpop.f32.mrb[0].mxu0
      %5503 = vmatprep.mubr.f32.mxu0 0.0
      %5504 = vmatmul.mubr.f32.gmra.mrb[0].mxu0 %v5295
      %v5505 = vpop.f32.mrb[0].mxu0
      %v5506 = vadd.f32 %v5183, %v5505
      %v5507 = vpop.f32.mrb[0].mxu0
      %5508 = vmatprep.mubr.f32.mxu0 0.0
      %5509 = vmatmul.mubr.f32.gmra.mrb[0].mxu0 %v5298
      %v5510 = vpop.f32.mrb[0].mxu0
      %v5511 = vadd.f32 %v5188, %v5510
      %v5512 = vpop.f32.mrb[0].mxu0
      %5513 = vmatprep.mubr.f32.mxu0 0.0
      %5514 = vmatmul.mubr.f32.gmra.mrb[0].mxu0 %v5301
      %v5515 = vpop.f32.mrb[0].mxu0
      %v5516 = vadd.f32 %v5193, %v5515
      %v5517 = vpop.f32.mrb[0].mxu0
      %5518 = vmatprep.mubr.f32.mxu0 0.0
      %5519 = vmatmul.mubr.f32.gmra.mrb[0].mxu0 %v5304
      %v5520 = vpop.f32.mrb[0].mxu0
      %v5521 = vadd.f32 %v5198, %v5520
      %v5522 = vpop.f32.mrb[0].mxu0
      %5523 = vmatprep.mubr.f32.mxu0 0.0
      %5524 = vmatmul.mubr.f32.gmra.mrb[0].mxu0 %v5307
      %v5525 = vpop.f32.mrb[0].mxu0
      %v5526 = vadd.f32 %v5203, %v5525
      %v5527 = vpop.f32.mrb[0].mxu0
      %5528 = vmatprep.mubr.f32.mxu0 0.0
      %5529 = vmatmul.mubr.f32.gmra.mrb[0].mxu0 %v5310
      %v5530 = vpop.f32.mrb[0].mxu0
      %v5531 = vadd.f32 %v5208, %v5530
      %v5532 = vpop.f32.mrb[0].mxu0
      %5533 = vmatprep.mubr.f32.mxu0 0.0
      %5534 = vmatmul.mubr.f32.gmra.mrb[0].mxu0 %v5313
      %v5535 = vpop.f32.mrb[0].mxu0
      %v5536 = vadd.f32 %v5213, %v5535
      %v5537 = vpop.f32.mrb[0].mxu0
      %5538 = vmatprep.mubr.f32.mxu0 0.0
      %5539 = vmatmul.mubr.f32.gmra.mrb[0].mxu0 %v5316
      %v5540 = vpop.f32.mrb[0].mxu0
      %v5541 = vadd.f32 %v5218, %v5540
      %v5542 = vpop.f32.mrb[0].mxu0
      %5543 = vmatprep.mubr.f32.mxu0 0.0
      %5544 = vmatmul.mubr.f32.gmra.mrb[0].mxu0 %v5319
      %v5545 = vpop.f32.mrb[0].mxu0
      %v5546 = vadd.f32 %v5223, %v5545
      %v5547 = vpop.f32.mrb[0].mxu0
      %5548 = vdwg.mxu0
      %v5549 = vmax.f32 %v5391, 0.0
      %v5550 = vmax.f32 %v5396, 0.0
      %v5551 = vmax.f32 %v5401, 0.0
      %v5552 = vmax.f32 %v5406, 0.0
      %v5553 = vmax.f32 %v5411, 0.0
      %v5554 = vmax.f32 %v5416, 0.0
      %v5555 = vmax.f32 %v5421, 0.0
      %v5556 = vmax.f32 %v5426, 0.0
      %v5557 = vmax.f32 %v5431, 0.0
      %v5558 = vmax.f32 %v5436, 0.0
      %v5559 = vmax.f32 %v5441, 0.0
      %v5560 = vmax.f32 %v5446, 0.0
      %v5561 = vmax.f32 %v5451, 0.0
      %v5562 = vmax.f32 %v5456, 0.0
      %v5563 = vmax.f32 %v5461, 0.0
      %v5564 = vmax.f32 %v5466, 0.0
      %v5565 = vmax.f32 %v5471, 0.0
      %v5566 = vmax.f32 %v5476, 0.0
      %v5567 = vmax.f32 %v5481, 0.0
      %v5568 = vmax.f32 %v5486, 0.0
      %v5569 = vmax.f32 %v5491, 0.0
      %v5570 = vmax.f32 %v5496, 0.0
      %v5571 = vmax.f32 %v5501, 0.0
      %v5572 = vmax.f32 %v5506, 0.0
      %v5573 = vmax.f32 %v5511, 0.0
      %v5574 = vmax.f32 %v5516, 0.0
      %v5575 = vmax.f32 %v5521, 0.0
      %v5576 = vmax.f32 %v5526, 0.0
      %v5577 = vmax.f32 %v5531, 0.0
      %v5578 = vmax.f32 %v5536, 0.0
      %v5579 = vmax.f32 %v5541, 0.0
      %v5580 = vmax.f32 %v5546, 0.0
      %s5581 = scalar_lea.vmem %s8, 64
      %v5582 = vld [vmem:[%s5581] sm:$0x3f]
      %v5583 = vld [vmem:[%s5581 + $0x8] sm:$0x3f]
      %s5584 = scalar_lea.vmem %s12, 32
      %v5585 = vld [vmem:[%s5584] sm:$0x3f]
      %5587 = vset.pattern.permute.xlu0 0
      %5588 = vperm.xlu0 %5587, %v5585
      %v5589 = vpop.permute.xlu0 %5588
      %5591 = vmatprep.subr.mxu0 0.0
      %5592 = vmatpush1.msra.mxu0 %v5549
      %5593 = vmatprep.subr.mxu0 0.0
      %5594 = vmatpush1.msra.mxu0 %v5550
      %5595 = vmatprep.subr.mxu0 0.0
      %5596 = vmatpush1.msra.mxu0 %v5551
      %5597 = vmatprep.subr.mxu0 0.0
      %5598 = vmatpush1.msra.mxu0 %v5552
      %5599 = vmatprep.subr.mxu0 0.0
      %5600 = vmatpush1.msra.mxu0 %v5553
      %5601 = vmatprep.subr.mxu0 0.0
      %5602 = vmatpush1.msra.mxu0 %v5554
      %5603 = vmatprep.subr.mxu0 0.0
      %5604 = vmatpush1.msra.mxu0 %v5555
      %5605 = vmatprep.subr.mxu0 0.0
      %5606 = vmatpush1.msra.mxu0 %v5556
      %5607 = vmatprep.subr.mxu0 0.0
      %5608 = vmatpush1.msra.mxu0 %v5557
      %5609 = vmatprep.subr.mxu0 0.0
      %5610 = vmatpush1.msra.mxu0 %v5558
      %5611 = vmatprep.subr.mxu0 0.0
      %5612 = vmatpush1.msra.mxu0 %v5559
      %5613 = vmatprep.subr.mxu0 0.0
      %5614 = vmatpush1.msra.mxu0 %v5560
      %5615 = vmatprep.subr.mxu0 0.0
      %5616 = vmatpush1.msra.mxu0 %v5561
      %5617 = vmatprep.subr.mxu0 0.0
      %5618 = vmatpush1.msra.mxu0 %v5562
      %5619 = vmatprep.subr.mxu0 0.0
      %5620 = vmatpush1.msra.mxu0 %v5563
      %5621 = vmatprep.subr.mxu0 0.0
      %5622 = vmatpush1.msra.mxu0 %v5564
      %5623 = vmatprep.subr.mxu0 0.0
      %5624 = vmatpush1.msra.mxu0 %v5565
      %5625 = vmatprep.subr.mxu0 0.0
      %5626 = vmatpush1.msra.mxu0 %v5566
      %5627 = vmatprep.subr.mxu0 0.0
      %5628 = vmatpush1.msra.mxu0 %v5567
      %5629 = vmatprep.subr.mxu0 0.0
      %5630 = vmatpush1.msra.mxu0 %v5568
      %5631 = vmatprep.subr.mxu0 0.0
      %5632 = vmatpush1.msra.mxu0 %v5569
      %5633 = vmatprep.subr.mxu0 0.0
      %5634 = vmatpush1.msra.mxu0 %v5570
      %5635 = vmatprep.subr.mxu0 0.0
      %5636 = vmatpush1.msra.mxu0 %v5571
      %5637 = vmatprep.subr.mxu0 0.0
      %5638 = vmatpush1.msra.mxu0 %v5572
      %5639 = vmatprep.subr.mxu0 0.0
      %5640 = vmatpush1.msra.mxu0 %v5573
      %5641 = vmatprep.subr.mxu0 0.0
      %5642 = vmatpush1.msra.mxu0 %v5574
      %5643 = vmatprep.subr.mxu0 0.0
      %5644 = vmatpush1.msra.mxu0 %v5575
      %5645 = vmatprep.subr.mxu0 0.0
      %5646 = vmatpush1.msra.mxu0 %v5576
      %5647 = vmatprep.subr.mxu0 0.0
      %5648 = vmatpush1.msra.mxu0 %v5577
      %5649 = vmatprep.subr.mxu0 0.0
      %5650 = vmatpush1.msra.mxu0 %v5578
      %5651 = vmatprep.subr.mxu0 0.0
      %5652 = vmatpush1.msra.mxu0 %v5579
      %5653 = vmatprep.subr.mxu0 0.0
      %5654 = vmatpush1.msra.mxu0 %v5580
      %5655 = vmatprep.mubr.f32.mxu0 %v5583
      %5656 = vmatmul.mubr.f32.gmra.mrb[0].mxu0 %v5582
      %v5657 = vpop.f32.mrb[0].mxu0
      %v5658 = vadd.f32 %v5589, %v5657
      %v5659 = vpop.f32.mrb[0].mxu0
      %5660 = vdwg.mxu0
      %s5661 = scalar_lea.vmem %s9, 20
      %v5662 = vld [vmem:[%s5661] sm:$0xf]
      %v5663 = vadd.f32 %v5658, %v695
      %s5664 = scalar_lea.vmem %s4, 640
      %v5665 = vld [vmem:[%s5664] sm:$0xff]
      %v5666 = vld [vmem:[%s5664 + $0x8] sm:$0xff]
      %v5667 = vld [vmem:[%s5664 + $0x10] sm:$0xff]
      %v5668 = vld [vmem:[%s5664 + $0x18] sm:$0xff]
      %v5669 = vld [vmem:[%s5664 + $0x20] sm:$0xff]
      %v5670 = vld [vmem:[%s5664 + $0x28] sm:$0xff]
      %v5671 = vld [vmem:[%s5664 + $0x30] sm:$0xff]
      %v5672 = vld [vmem:[%s5664 + $0x38] sm:$0xff]
      %v5673 = vld [vmem:[%s5664 + $0x40] sm:$0xff]
      %v5674 = vld [vmem:[%s5664 + $0x48] sm:$0xff]
      %v5675 = vld [vmem:[%s5664 + $0x50] sm:$0xff]
      %v5676 = vld [vmem:[%s5664 + $0x58] sm:$0xff]
      %v5677 = vld [vmem:[%s5664 + $0x60] sm:$0xff]
      %v5678 = vld [vmem:[%s5664 + $0x68] sm:$0xff]
      %v5679 = vld [vmem:[%s5664 + $0x70] sm:$0xff]
      %v5680 = vld [vmem:[%s5664 + $0x78] sm:$0xff]
      %5681 = vmatprep.subr.mxu0 0.0
      %5682 = vmatpush1.msra.mxu0 %v5665
      %5683 = vmatprep.subr.mxu0 0.0
      %5684 = vmatpush1.msra.mxu0 %v5666
      %5685 = vmatprep.subr.mxu0 0.0
      %5686 = vmatpush1.msra.mxu0 %v5667
      %5687 = vmatprep.subr.mxu0 0.0
      %5688 = vmatpush1.msra.mxu0 %v5668
      %5689 = vmatprep.subr.mxu0 0.0
      %5690 = vmatpush1.msra.mxu0 %v5669
      %5691 = vmatprep.subr.mxu0 0.0
      %5692 = vmatpush1.msra.mxu0 %v5670
      %5693 = vmatprep.subr.mxu0 0.0
      %5694 = vmatpush1.msra.mxu0 %v5671
      %5695 = vmatprep.subr.mxu0 0.0
      %5696 = vmatpush1.msra.mxu0 %v5672
      %5697 = vmatprep.subr.mxu0 0.0
      %5698 = vmatpush1.msra.mxu0 %v5673
      %5699 = vmatprep.subr.mxu0 0.0
      %5700 = vmatpush1.msra.mxu0 %v5674
      %5701 = vmatprep.subr.mxu0 0.0
      %5702 = vmatpush1.msra.mxu0 %v5675
      %5703 = vmatprep.subr.mxu0 0.0
      %5704 = vmatpush1.msra.mxu0 %v5676
      %5705 = vmatprep.subr.mxu0 0.0
      %5706 = vmatpush1.msra.mxu0 %v5677
      %5707 = vmatprep.subr.mxu0 0.0
      %5708 = vmatpush1.msra.mxu0 %v5678
      %5709 = vmatprep.subr.mxu0 0.0
      %5710 = vmatpush1.msra.mxu0 %v5679
      %5711 = vmatprep.subr.mxu0 0.0
      %5712 = vmatpush1.msra.mxu0 %v5680
      %5713 = vmatprep.subr.mxu0 0.0
      %5714 = vmatpush1.msra.mxu0 0.0
      %5715 = vmatprep.subr.mxu0 0.0
      %5716 = vmatpush1.msra.mxu0 0.0
      %5717 = vmatprep.subr.mxu0 0.0
      %5718 = vmatpush1.msra.mxu0 0.0
      %5719 = vmatprep.subr.mxu0 0.0
      %5720 = vmatpush1.msra.mxu0 0.0
      %5721 = vmatprep.subr.mxu0 0.0
      %5722 = vmatpush1.msra.mxu0 0.0
      %5723 = vmatprep.subr.mxu0 0.0
      %5724 = vmatpush1.msra.mxu0 0.0
      %5725 = vmatprep.subr.mxu0 0.0
      %5726 = vmatpush1.msra.mxu0 0.0
      %5727 = vmatprep.subr.mxu0 0.0
      %5728 = vmatpush1.msra.mxu0 0.0
      %5729 = vmatprep.subr.mxu0 0.0
      %5730 = vmatpush1.msra.mxu0 0.0
      %5731 = vmatprep.subr.mxu0 0.0
      %5732 = vmatpush1.msra.mxu0 0.0
      %5733 = vmatprep.subr.mxu0 0.0
      %5734 = vmatpush1.msra.mxu0 0.0
      %5735 = vmatprep.subr.mxu0 0.0
      %5736 = vmatpush1.msra.mxu0 0.0
      %5737 = vmatprep.subr.mxu0 0.0
      %5738 = vmatpush1.msra.mxu0 0.0
      %5739 = vmatprep.subr.mxu0 0.0
      %5740 = vmatpush1.msra.mxu0 0.0
      %5741 = vmatprep.subr.mxu0 0.0
      %5742 = vmatpush1.msra.mxu0 0.0
      %5743 = vmatprep.subr.mxu0 0.0
      %5744 = vmatpush1.msra.mxu0 0.0
      %5745 = vmatprep.mubr.f32.mxu0 0.0
      %5746 = vmatmul.mubr.f32.gmra.mrb[0].mxu0 %v689
      %v5747 = vpop.f32.mrb[0].mxu0
      %v5748 = vadd.f32 %v5662, %v5747
      %v5749 = vpop.f32.mrb[0].mxu0
      %5750 = vdwg.mxu0
      %v5751 = vlaneseq
      %v5752 = vshrl.u32 %v5751, 7
      %v5753 = vsub.s32 0, %v5752
      %v5754 = vrot.slane %v5748, %v5753
      %v5755 = vadd.f32 %v5663, %v5754
      %v5756 = vsel %vm788, %v5755, 0.0
      %5757 = vadd.xlane.f32.xlu0 %v5756
      %v5758 = vpop.xlane.xlu0 %5757
      %v5759 = vmul.f32 %v5758, %v792
      %v5760 = vsub.f32 %v5755, %v5759
      %v5761 = vmul.f32 %v5760, %v5760
      %v5762 = vsel %vm788, %v5761, 0.0
      %5763 = vadd.xlane.f32.xlu0 %v5762
      %v5764 = vpop.xlane.xlu0 %5763
      %v5765 = vmul.f32 %v5764, %v792
      %v5766 = vadd.f32 %v5765, 1e-05
      %v5767 = vrsqrt.pop %v5766
      %v5768 = vmul.f32 %v5760, %v5767
      %v5769 = vlaneseq
      %v5770 = vshrl.u32 %v5769, 7
      %v5771 = vsub.s32 1, %v5770
      %v5772 = vrot.slane %v5662, %v5771
      %v5773 = vmul.f32 %v5768, %v5772
      %v5774 = vlaneseq
      %v5775 = vshrl.u32 %v5774, 7
      %v5776 = vsub.s32 2, %v5775
      %v5777 = vrot.slane %v5662, %v5776
      %v5778 = vadd.f32 %v5773, %v5777
      %s5779 = scalar_lea.vmem %s5, 640
      %v5780 = vld [vmem:[%s5779] sm:$0xff]
      %v5781 = vld [vmem:[%s5779 + $0x8] sm:$0xff]
      %v5782 = vld [vmem:[%s5779 + $0x10] sm:$0xff]
      %v5783 = vld [vmem:[%s5779 + $0x18] sm:$0xff]
      %v5784 = vld [vmem:[%s5779 + $0x20] sm:$0xff]
      %v5785 = vld [vmem:[%s5779 + $0x28] sm:$0xff]
      %v5786 = vld [vmem:[%s5779 + $0x30] sm:$0xff]
      %v5787 = vld [vmem:[%s5779 + $0x38] sm:$0xff]
      %v5788 = vld [vmem:[%s5779 + $0x40] sm:$0xff]
      %v5789 = vld [vmem:[%s5779 + $0x48] sm:$0xff]
      %v5790 = vld [vmem:[%s5779 + $0x50] sm:$0xff]
      %v5791 = vld [vmem:[%s5779 + $0x58] sm:$0xff]
      %v5792 = vld [vmem:[%s5779 + $0x60] sm:$0xff]
      %v5793 = vld [vmem:[%s5779 + $0x68] sm:$0xff]
      %v5794 = vld [vmem:[%s5779 + $0x70] sm:$0xff]
      %v5795 = vld [vmem:[%s5779 + $0x78] sm:$0xff]
      %s5796 = scalar_lea.vmem %s10, 10
      %v5797 = vld [vmem:[%s5796] sm:$0x3]
      %v5799 = vlaneseq
      %v5800 = vshrl.u32 %v5799, 7
      %v5801 = vsub.s32 0, %v5800
      %v5802 = vrot.slane %v5797, %v5801
      %v5803 = vlaneseq
      %v5804 = vshrl.u32 %v5803, 7
      %v5805 = vsub.s32 1, %v5804
      %v5806 = vrot.slane %v5797, %v5805
      %v5810 = vsel %vm841, %v5778, 0
      %5812 = vmatprep.subr.mxu0 %v5781
      %5813 = vmatpush1.msra.mxu0 %v5780
      %5814 = vmatprep.subr.mxu0 %v5783
      %5815 = vmatpush1.msra.mxu0 %v5782
      %5816 = vmatprep.subr.mxu0 %v5785
      %5817 = vmatpush1.msra.mxu0 %v5784
      %5818 = vmatprep.subr.mxu0 %v5787
      %5819 = vmatpush1.msra.mxu0 %v5786
      %5820 = vmatprep.subr.mxu0 %v5789
      %5821 = vmatpush1.msra.mxu0 %v5788
      %5822 = vmatprep.subr.mxu0 %v5791
      %5823 = vmatpush1.msra.mxu0 %v5790
      %5824 = vmatprep.subr.mxu0 %v5793
      %5825 = vmatpush1.msra.mxu0 %v5792
      %5826 = vmatprep.subr.mxu0 %v5795
      %5827 = vmatpush1.msra.mxu0 %v5794
      %5828 = vmatprep.subr.mxu0 0.0
      %5829 = vmatpush1.msra.mxu0 0.0
      %5830 = vmatprep.subr.mxu0 0.0
      %5831 = vmatpush1.msra.mxu0 0.0
      %5832 = vmatprep.subr.mxu0 0.0
      %5833 = vmatpush1.msra.mxu0 0.0
      %5834 = vmatprep.subr.mxu0 0.0
      %5835 = vmatpush1.msra.mxu0 0.0
      %5836 = vmatprep.subr.mxu0 0.0
      %5837 = vmatpush1.msra.mxu0 0.0
      %5838 = vmatprep.subr.mxu0 0.0
      %5839 = vmatpush1.msra.mxu0 0.0
      %5840 = vmatprep.subr.mxu0 0.0
      %5841 = vmatpush1.msra.mxu0 0.0
      %5842 = vmatprep.subr.mxu0 0.0
      %5843 = vmatpush1.msra.mxu0 0.0
      %5844 = vmatprep.subr.mxu0 0.0
      %5845 = vmatpush1.msra.mxu0 0.0
      %5846 = vmatprep.subr.mxu0 0.0
      %5847 = vmatpush1.msra.mxu0 0.0
      %5848 = vmatprep.subr.mxu0 0.0
      %5849 = vmatpush1.msra.mxu0 0.0
      %5850 = vmatprep.subr.mxu0 0.0
      %5851 = vmatpush1.msra.mxu0 0.0
      %5852 = vmatprep.subr.mxu0 0.0
      %5853 = vmatpush1.msra.mxu0 0.0
      %5854 = vmatprep.subr.mxu0 0.0
      %5855 = vmatpush1.msra.mxu0 0.0
      %5856 = vmatprep.subr.mxu0 0.0
      %5857 = vmatpush1.msra.mxu0 0.0
      %5858 = vmatprep.subr.mxu0 0.0
      %5859 = vmatpush1.msra.mxu0 0.0
      %5860 = vmatprep.subr.mxu0 0.0
      %5861 = vmatpush1.msra.mxu0 0.0
      %5862 = vmatprep.subr.mxu0 0.0
      %5863 = vmatpush1.msra.mxu0 0.0
      %5864 = vmatprep.subr.mxu0 0.0
      %5865 = vmatpush1.msra.mxu0 0.0
      %5866 = vmatprep.subr.mxu0 0.0
      %5867 = vmatpush1.msra.mxu0 0.0
      %5868 = vmatprep.subr.mxu0 0.0
      %5869 = vmatpush1.msra.mxu0 0.0
      %5870 = vmatprep.subr.mxu0 0.0
      %5871 = vmatpush1.msra.mxu0 0.0
      %5872 = vmatprep.subr.mxu0 0.0
      %5873 = vmatpush1.msra.mxu0 0.0
      %5874 = vmatprep.subr.mxu0 0.0
      %5875 = vmatpush1.msra.mxu0 0.0
      %5876 = vmatprep.mubr.f32.mxu0 0.0
      %5877 = vmatmul.mubr.f32.gmra.mrb[0].mxu0 %v5810
      %v5878 = vpop.f32.mrb[0].mxu0
      %v5879 = vadd.f32 %v5802, %v5878
      %v5880 = vpop.f32.mrb[0].mxu0
      %v5881 = vadd.f32 %v5806, %v5880
      %5882 = vdwg.mxu0
      %v5883 = vmax.f32 %v5879, 0.0
      %v5884 = vmax.f32 %v5881, 0.0
      %s5885 = scalar_lea.vmem %s6, 1280
      %v5886 = vld [vmem:[%s5885] sm:$0xff]
      %v5887 = vld [vmem:[%s5885 + $0x8] sm:$0xff]
      %v5888 = vld [vmem:[%s5885 + $0x10] sm:$0xff]
      %v5889 = vld [vmem:[%s5885 + $0x18] sm:$0xff]
      %v5890 = vld [vmem:[%s5885 + $0x20] sm:$0xff]
      %v5891 = vld [vmem:[%s5885 + $0x28] sm:$0xff]
      %v5892 = vld [vmem:[%s5885 + $0x30] sm:$0xff]
      %v5893 = vld [vmem:[%s5885 + $0x38] sm:$0xff]
      %v5894 = vld [vmem:[%s5885 + $0x40] sm:$0xff]
      %v5895 = vld [vmem:[%s5885 + $0x48] sm:$0xff]
      %v5896 = vld [vmem:[%s5885 + $0x50] sm:$0xff]
      %v5897 = vld [vmem:[%s5885 + $0x58] sm:$0xff]
      %v5898 = vld [vmem:[%s5885 + $0x60] sm:$0xff]
      %v5899 = vld [vmem:[%s5885 + $0x68] sm:$0xff]
      %v5900 = vld [vmem:[%s5885 + $0x70] sm:$0xff]
      %v5901 = vld [vmem:[%s5885 + $0x78] sm:$0xff]
      %v5902 = vld [vmem:[%s5885 + $0x80] sm:$0xff]
      %v5903 = vld [vmem:[%s5885 + $0x88] sm:$0xff]
      %v5904 = vld [vmem:[%s5885 + $0x90] sm:$0xff]
      %v5905 = vld [vmem:[%s5885 + $0x98] sm:$0xff]
      %v5906 = vld [vmem:[%s5885 + $0xa0] sm:$0xff]
      %v5907 = vld [vmem:[%s5885 + $0xa8] sm:$0xff]
      %v5908 = vld [vmem:[%s5885 + $0xb0] sm:$0xff]
      %v5909 = vld [vmem:[%s5885 + $0xb8] sm:$0xff]
      %v5910 = vld [vmem:[%s5885 + $0xc0] sm:$0xff]
      %v5911 = vld [vmem:[%s5885 + $0xc8] sm:$0xff]
      %v5912 = vld [vmem:[%s5885 + $0xd0] sm:$0xff]
      %v5913 = vld [vmem:[%s5885 + $0xd8] sm:$0xff]
      %v5914 = vld [vmem:[%s5885 + $0xe0] sm:$0xff]
      %v5915 = vld [vmem:[%s5885 + $0xe8] sm:$0xff]
      %v5916 = vld [vmem:[%s5885 + $0xf0] sm:$0xff]
      %v5917 = vld [vmem:[%s5885 + $0xf8] sm:$0xff]
      %v5918 = vlaneseq
      %v5919 = vshrl.u32 %v5918, 7
      %v5920 = vsub.s32 3, %v5919
      %v5921 = vrot.slane %v5662, %v5920
      %5922 = vmatprep.subr.mxu0 0.0
      %5923 = vmatpush1.msra.mxu0 %v5886
      %5924 = vmatprep.subr.mxu0 0.0
      %5925 = vmatpush1.msra.mxu0 %v5887
      %5926 = vmatprep.subr.mxu0 0.0
      %5927 = vmatpush1.msra.mxu0 %v5888
      %5928 = vmatprep.subr.mxu0 0.0
      %5929 = vmatpush1.msra.mxu0 %v5889
      %5930 = vmatprep.subr.mxu0 0.0
      %5931 = vmatpush1.msra.mxu0 %v5890
      %5932 = vmatprep.subr.mxu0 0.0
      %5933 = vmatpush1.msra.mxu0 %v5891
      %5934 = vmatprep.subr.mxu0 0.0
      %5935 = vmatpush1.msra.mxu0 %v5892
      %5936 = vmatprep.subr.mxu0 0.0
      %5937 = vmatpush1.msra.mxu0 %v5893
      %5938 = vmatprep.subr.mxu0 0.0
      %5939 = vmatpush1.msra.mxu0 %v5894
      %5940 = vmatprep.subr.mxu0 0.0
      %5941 = vmatpush1.msra.mxu0 %v5895
      %5942 = vmatprep.subr.mxu0 0.0
      %5943 = vmatpush1.msra.mxu0 %v5896
      %5944 = vmatprep.subr.mxu0 0.0
      %5945 = vmatpush1.msra.mxu0 %v5897
      %5946 = vmatprep.subr.mxu0 0.0
      %5947 = vmatpush1.msra.mxu0 %v5898
      %5948 = vmatprep.subr.mxu0 0.0
      %5949 = vmatpush1.msra.mxu0 %v5899
      %5950 = vmatprep.subr.mxu0 0.0
      %5951 = vmatpush1.msra.mxu0 %v5900
      %5952 = vmatprep.subr.mxu0 0.0
      %5953 = vmatpush1.msra.mxu0 %v5901
      %5954 = vmatprep.subr.mxu0 0.0
      %5955 = vmatpush1.msra.mxu0 %v5902
      %5956 = vmatprep.subr.mxu0 0.0
      %5957 = vmatpush1.msra.mxu0 %v5903
      %5958 = vmatprep.subr.mxu0 0.0
      %5959 = vmatpush1.msra.mxu0 %v5904
      %5960 = vmatprep.subr.mxu0 0.0
      %5961 = vmatpush1.msra.mxu0 %v5905
      %5962 = vmatprep.subr.mxu0 0.0
      %5963 = vmatpush1.msra.mxu0 %v5906
      %5964 = vmatprep.subr.mxu0 0.0
      %5965 = vmatpush1.msra.mxu0 %v5907
      %5966 = vmatprep.subr.mxu0 0.0
      %5967 = vmatpush1.msra.mxu0 %v5908
      %5968 = vmatprep.subr.mxu0 0.0
      %5969 = vmatpush1.msra.mxu0 %v5909
      %5970 = vmatprep.subr.mxu0 0.0
      %5971 = vmatpush1.msra.mxu0 %v5910
      %5972 = vmatprep.subr.mxu0 0.0
      %5973 = vmatpush1.msra.mxu0 %v5911
      %5974 = vmatprep.subr.mxu0 0.0
      %5975 = vmatpush1.msra.mxu0 %v5912
      %5976 = vmatprep.subr.mxu0 0.0
      %5977 = vmatpush1.msra.mxu0 %v5913
      %5978 = vmatprep.subr.mxu0 0.0
      %5979 = vmatpush1.msra.mxu0 %v5914
      %5980 = vmatprep.subr.mxu0 0.0
      %5981 = vmatpush1.msra.mxu0 %v5915
      %5982 = vmatprep.subr.mxu0 0.0
      %5983 = vmatpush1.msra.mxu0 %v5916
      %5984 = vmatprep.subr.mxu0 0.0
      %5985 = vmatpush1.msra.mxu0 %v5917
      %5986 = vmatprep.mubr.f32.mxu0 %v5884
      %5987 = vmatmul.mubr.f32.gmra.mrb[0].mxu0 %v5883
      %v5988 = vpop.f32.mrb[0].mxu0
      %v5989 = vadd.f32 %v5921, %v5988
      %v5990 = vpop.f32.mrb[0].mxu0
      %5991 = vdwg.mxu0
      %v5992 = vadd.f32 %v5778, %v5989
      %s5993 = scalar_lea.vmem %s7, 1280
      %v5994 = vld [vmem:[%s5993] sm:$0xff]
      %v5995 = vld [vmem:[%s5993 + $0x8] sm:$0xff]
      %v5996 = vld [vmem:[%s5993 + $0x10] sm:$0xff]
      %v5997 = vld [vmem:[%s5993 + $0x18] sm:$0xff]
      %v5998 = vld [vmem:[%s5993 + $0x20] sm:$0xff]
      %v5999 = vld [vmem:[%s5993 + $0x28] sm:$0xff]
      %v6000 = vld [vmem:[%s5993 + $0x30] sm:$0xff]
      %v6001 = vld [vmem:[%s5993 + $0x38] sm:$0xff]
      %v6002 = vld [vmem:[%s5993 + $0x40] sm:$0xff]
      %v6003 = vld [vmem:[%s5993 + $0x48] sm:$0xff]
      %v6004 = vld [vmem:[%s5993 + $0x50] sm:$0xff]
      %v6005 = vld [vmem:[%s5993 + $0x58] sm:$0xff]
      %v6006 = vld [vmem:[%s5993 + $0x60] sm:$0xff]
      %v6007 = vld [vmem:[%s5993 + $0x68] sm:$0xff]
      %v6008 = vld [vmem:[%s5993 + $0x70] sm:$0xff]
      %v6009 = vld [vmem:[%s5993 + $0x78] sm:$0xff]
      %v6010 = vld [vmem:[%s5993 + $0x80] sm:$0xff]
      %v6011 = vld [vmem:[%s5993 + $0x88] sm:$0xff]
      %v6012 = vld [vmem:[%s5993 + $0x90] sm:$0xff]
      %v6013 = vld [vmem:[%s5993 + $0x98] sm:$0xff]
      %v6014 = vld [vmem:[%s5993 + $0xa0] sm:$0xff]
      %v6015 = vld [vmem:[%s5993 + $0xa8] sm:$0xff]
      %v6016 = vld [vmem:[%s5993 + $0xb0] sm:$0xff]
      %v6017 = vld [vmem:[%s5993 + $0xb8] sm:$0xff]
      %v6018 = vld [vmem:[%s5993 + $0xc0] sm:$0xff]
      %v6019 = vld [vmem:[%s5993 + $0xc8] sm:$0xff]
      %v6020 = vld [vmem:[%s5993 + $0xd0] sm:$0xff]
      %v6021 = vld [vmem:[%s5993 + $0xd8] sm:$0xff]
      %v6022 = vld [vmem:[%s5993 + $0xe0] sm:$0xff]
      %v6023 = vld [vmem:[%s5993 + $0xe8] sm:$0xff]
      %v6024 = vld [vmem:[%s5993 + $0xf0] sm:$0xff]
      %v6025 = vld [vmem:[%s5993 + $0xf8] sm:$0xff]
      %s6026 = scalar_lea.vmem %s11, 1280
      %v6027 = vld [vmem:[%s6026] sm:$0xff]
      %v6028 = vld [vmem:[%s6026 + $0x8] sm:$0xff]
      %v6029 = vld [vmem:[%s6026 + $0x10] sm:$0xff]
      %v6030 = vld [vmem:[%s6026 + $0x18] sm:$0xff]
      %v6031 = vld [vmem:[%s6026 + $0x20] sm:$0xff]
      %v6032 = vld [vmem:[%s6026 + $0x28] sm:$0xff]
      %v6033 = vld [vmem:[%s6026 + $0x30] sm:$0xff]
      %v6034 = vld [vmem:[%s6026 + $0x38] sm:$0xff]
      %v6035 = vld [vmem:[%s6026 + $0x40] sm:$0xff]
      %v6036 = vld [vmem:[%s6026 + $0x48] sm:$0xff]
      %v6037 = vld [vmem:[%s6026 + $0x50] sm:$0xff]
      %v6038 = vld [vmem:[%s6026 + $0x58] sm:$0xff]
      %v6039 = vld [vmem:[%s6026 + $0x60] sm:$0xff]
      %v6040 = vld [vmem:[%s6026 + $0x68] sm:$0xff]
      %v6041 = vld [vmem:[%s6026 + $0x70] sm:$0xff]
      %v6042 = vld [vmem:[%s6026 + $0x78] sm:$0xff]
      %v6043 = vld [vmem:[%s6026 + $0x80] sm:$0xff]
      %v6044 = vld [vmem:[%s6026 + $0x88] sm:$0xff]
      %v6045 = vld [vmem:[%s6026 + $0x90] sm:$0xff]
      %v6046 = vld [vmem:[%s6026 + $0x98] sm:$0xff]
      %v6047 = vld [vmem:[%s6026 + $0xa0] sm:$0xff]
      %v6048 = vld [vmem:[%s6026 + $0xa8] sm:$0xff]
      %v6049 = vld [vmem:[%s6026 + $0xb0] sm:$0xff]
      %v6050 = vld [vmem:[%s6026 + $0xb8] sm:$0xff]
      %v6051 = vld [vmem:[%s6026 + $0xc0] sm:$0xff]
      %v6052 = vld [vmem:[%s6026 + $0xc8] sm:$0xff]
      %v6053 = vld [vmem:[%s6026 + $0xd0] sm:$0xff]
      %v6054 = vld [vmem:[%s6026 + $0xd8] sm:$0xff]
      %v6055 = vld [vmem:[%s6026 + $0xe0] sm:$0xff]
      %v6056 = vld [vmem:[%s6026 + $0xe8] sm:$0xff]
      %v6057 = vld [vmem:[%s6026 + $0xf0] sm:$0xff]
      %v6058 = vld [vmem:[%s6026 + $0xf8] sm:$0xff]
      %6060 = vset.pattern.permute.xlu0 0
      %6061 = vperm.xlu0 %6060, %v6027
      %v6062 = vpop.permute.xlu0 %6061
      %6065 = vset.pattern.permute.xlu0 0
      %6066 = vperm.xlu0 %6065, %v6028
      %v6067 = vpop.permute.xlu0 %6066
      %6070 = vset.pattern.permute.xlu0 0
      %6071 = vperm.xlu0 %6070, %v6029
      %v6072 = vpop.permute.xlu0 %6071
      %6075 = vset.pattern.permute.xlu0 0
      %6076 = vperm.xlu0 %6075, %v6030
      %v6077 = vpop.permute.xlu0 %6076
      %6080 = vset.pattern.permute.xlu0 0
      %6081 = vperm.xlu0 %6080, %v6031
      %v6082 = vpop.permute.xlu0 %6081
      %6085 = vset.pattern.permute.xlu0 0
      %6086 = vperm.xlu0 %6085, %v6032
      %v6087 = vpop.permute.xlu0 %6086
      %6090 = vset.pattern.permute.xlu0 0
      %6091 = vperm.xlu0 %6090, %v6033
      %v6092 = vpop.permute.xlu0 %6091
      %6095 = vset.pattern.permute.xlu0 0
      %6096 = vperm.xlu0 %6095, %v6034
      %v6097 = vpop.permute.xlu0 %6096
      %6100 = vset.pattern.permute.xlu0 0
      %6101 = vperm.xlu0 %6100, %v6035
      %v6102 = vpop.permute.xlu0 %6101
      %6105 = vset.pattern.permute.xlu0 0
      %6106 = vperm.xlu0 %6105, %v6036
      %v6107 = vpop.permute.xlu0 %6106
      %6110 = vset.pattern.permute.xlu0 0
      %6111 = vperm.xlu0 %6110, %v6037
      %v6112 = vpop.permute.xlu0 %6111
      %6115 = vset.pattern.permute.xlu0 0
      %6116 = vperm.xlu0 %6115, %v6038
      %v6117 = vpop.permute.xlu0 %6116
      %6120 = vset.pattern.permute.xlu0 0
      %6121 = vperm.xlu0 %6120, %v6039
      %v6122 = vpop.permute.xlu0 %6121
      %6125 = vset.pattern.permute.xlu0 0
      %6126 = vperm.xlu0 %6125, %v6040
      %v6127 = vpop.permute.xlu0 %6126
      %6130 = vset.pattern.permute.xlu0 0
      %6131 = vperm.xlu0 %6130, %v6041
      %v6132 = vpop.permute.xlu0 %6131
      %6135 = vset.pattern.permute.xlu0 0
      %6136 = vperm.xlu0 %6135, %v6042
      %v6137 = vpop.permute.xlu0 %6136
      %6140 = vset.pattern.permute.xlu0 0
      %6141 = vperm.xlu0 %6140, %v6043
      %v6142 = vpop.permute.xlu0 %6141
      %6145 = vset.pattern.permute.xlu0 0
      %6146 = vperm.xlu0 %6145, %v6044
      %v6147 = vpop.permute.xlu0 %6146
      %6150 = vset.pattern.permute.xlu0 0
      %6151 = vperm.xlu0 %6150, %v6045
      %v6152 = vpop.permute.xlu0 %6151
      %6155 = vset.pattern.permute.xlu0 0
      %6156 = vperm.xlu0 %6155, %v6046
      %v6157 = vpop.permute.xlu0 %6156
      %6160 = vset.pattern.permute.xlu0 0
      %6161 = vperm.xlu0 %6160, %v6047
      %v6162 = vpop.permute.xlu0 %6161
      %6165 = vset.pattern.permute.xlu0 0
      %6166 = vperm.xlu0 %6165, %v6048
      %v6167 = vpop.permute.xlu0 %6166
      %6170 = vset.pattern.permute.xlu0 0
      %6171 = vperm.xlu0 %6170, %v6049
      %v6172 = vpop.permute.xlu0 %6171
      %6175 = vset.pattern.permute.xlu0 0
      %6176 = vperm.xlu0 %6175, %v6050
      %v6177 = vpop.permute.xlu0 %6176
      %6180 = vset.pattern.permute.xlu0 0
      %6181 = vperm.xlu0 %6180, %v6051
      %v6182 = vpop.permute.xlu0 %6181
      %6185 = vset.pattern.permute.xlu0 0
      %6186 = vperm.xlu0 %6185, %v6052
      %v6187 = vpop.permute.xlu0 %6186
      %6190 = vset.pattern.permute.xlu0 0
      %6191 = vperm.xlu0 %6190, %v6053
      %v6192 = vpop.permute.xlu0 %6191
      %6195 = vset.pattern.permute.xlu0 0
      %6196 = vperm.xlu0 %6195, %v6054
      %v6197 = vpop.permute.xlu0 %6196
      %6200 = vset.pattern.permute.xlu0 0
      %6201 = vperm.xlu0 %6200, %v6055
      %v6202 = vpop.permute.xlu0 %6201
      %6205 = vset.pattern.permute.xlu0 0
      %6206 = vperm.xlu0 %6205, %v6056
      %v6207 = vpop.permute.xlu0 %6206
      %6210 = vset.pattern.permute.xlu0 0
      %6211 = vperm.xlu0 %6210, %v6057
      %v6212 = vpop.permute.xlu0 %6211
      %6215 = vset.pattern.permute.xlu0 0
      %6216 = vperm.xlu0 %6215, %v6058
      %v6217 = vpop.permute.xlu0 %6216
      %v6220 = vsel %vm1249, %v5994, 0
      %v6223 = vsel %vm1249, %v5995, 0
      %v6226 = vsel %vm1249, %v5996, 0
      %v6229 = vsel %vm1249, %v5997, 0
      %v6232 = vsel %vm1249, %v5998, 0
      %v6235 = vsel %vm1249, %v5999, 0
      %v6238 = vsel %vm1249, %v6000, 0
      %v6241 = vsel %vm1249, %v6001, 0
      %v6244 = vsel %vm1249, %v6002, 0
      %v6247 = vsel %vm1249, %v6003, 0
      %v6250 = vsel %vm1249, %v6004, 0
      %v6253 = vsel %vm1249, %v6005, 0
      %v6256 = vsel %vm1249, %v6006, 0
      %v6259 = vsel %vm1249, %v6007, 0
      %v6262 = vsel %vm1249, %v6008, 0
      %v6265 = vsel %vm1249, %v6009, 0
      %v6268 = vsel %vm1249, %v6010, 0
      %v6271 = vsel %vm1249, %v6011, 0
      %v6274 = vsel %vm1249, %v6012, 0
      %v6277 = vsel %vm1249, %v6013, 0
      %v6280 = vsel %vm1249, %v6014, 0
      %v6283 = vsel %vm1249, %v6015, 0
      %v6286 = vsel %vm1249, %v6016, 0
      %v6289 = vsel %vm1249, %v6017, 0
      %v6292 = vsel %vm1249, %v6018, 0
      %v6295 = vsel %vm1249, %v6019, 0
      %v6298 = vsel %vm1249, %v6020, 0
      %v6301 = vsel %vm1249, %v6021, 0
      %v6304 = vsel %vm1249, %v6022, 0
      %v6307 = vsel %vm1249, %v6023, 0
      %v6310 = vsel %vm1249, %v6024, 0
      %v6313 = vsel %vm1249, %v6025, 0
      %v6316 = vsel %vm1346, %v5992, 0
      %6318 = vmatprep.subr.mxu0 0.0
      %6319 = vmatpush1.msra.mxu0 %v6316
      %6320 = vmatprep.subr.mxu0 0.0
      %6321 = vmatpush1.msra.mxu0 0.0
      %6322 = vmatprep.subr.mxu0 0.0
      %6323 = vmatpush1.msra.mxu0 0.0
      %6324 = vmatprep.subr.mxu0 0.0
      %6325 = vmatpush1.msra.mxu0 0.0
      %6326 = vmatprep.subr.mxu0 0.0
      %6327 = vmatpush1.msra.mxu0 0.0
      %6328 = vmatprep.subr.mxu0 0.0
      %6329 = vmatpush1.msra.mxu0 0.0
      %6330 = vmatprep.subr.mxu0 0.0
      %6331 = vmatpush1.msra.mxu0 0.0
      %6332 = vmatprep.subr.mxu0 0.0
      %6333 = vmatpush1.msra.mxu0 0.0
      %6334 = vmatprep.subr.mxu0 0.0
      %6335 = vmatpush1.msra.mxu0 0.0
      %6336 = vmatprep.subr.mxu0 0.0
      %6337 = vmatpush1.msra.mxu0 0.0
      %6338 = vmatprep.subr.mxu0 0.0
      %6339 = vmatpush1.msra.mxu0 0.0
      %6340 = vmatprep.subr.mxu0 0.0
      %6341 = vmatpush1.msra.mxu0 0.0
      %6342 = vmatprep.subr.mxu0 0.0
      %6343 = vmatpush1.msra.mxu0 0.0
      %6344 = vmatprep.subr.mxu0 0.0
      %6345 = vmatpush1.msra.mxu0 0.0
      %6346 = vmatprep.subr.mxu0 0.0
      %6347 = vmatpush1.msra.mxu0 0.0
      %6348 = vmatprep.subr.mxu0 0.0
      %6349 = vmatpush1.msra.mxu0 0.0
      %6350 = vmatprep.subr.mxu0 0.0
      %6351 = vmatpush1.msra.mxu0 0.0
      %6352 = vmatprep.subr.mxu0 0.0
      %6353 = vmatpush1.msra.mxu0 0.0
      %6354 = vmatprep.subr.mxu0 0.0
      %6355 = vmatpush1.msra.mxu0 0.0
      %6356 = vmatprep.subr.mxu0 0.0
      %6357 = vmatpush1.msra.mxu0 0.0
      %6358 = vmatprep.subr.mxu0 0.0
      %6359 = vmatpush1.msra.mxu0 0.0
      %6360 = vmatprep.subr.mxu0 0.0
      %6361 = vmatpush1.msra.mxu0 0.0
      %6362 = vmatprep.subr.mxu0 0.0
      %6363 = vmatpush1.msra.mxu0 0.0
      %6364 = vmatprep.subr.mxu0 0.0
      %6365 = vmatpush1.msra.mxu0 0.0
      %6366 = vmatprep.subr.mxu0 0.0
      %6367 = vmatpush1.msra.mxu0 0.0
      %6368 = vmatprep.subr.mxu0 0.0
      %6369 = vmatpush1.msra.mxu0 0.0
      %6370 = vmatprep.subr.mxu0 0.0
      %6371 = vmatpush1.msra.mxu0 0.0
      %6372 = vmatprep.subr.mxu0 0.0
      %6373 = vmatpush1.msra.mxu0 0.0
      %6374 = vmatprep.subr.mxu0 0.0
      %6375 = vmatpush1.msra.mxu0 0.0
      %6376 = vmatprep.subr.mxu0 0.0
      %6377 = vmatpush1.msra.mxu0 0.0
      %6378 = vmatprep.subr.mxu0 0.0
      %6379 = vmatpush1.msra.mxu0 0.0
      %6380 = vmatprep.subr.mxu0 0.0
      %6381 = vmatpush1.msra.mxu0 0.0
      %6382 = vmatprep.mubr.f32.mxu0 0.0
      %6383 = vmatmul.mubr.f32.gmra.mrb[0].mxu0 %v6220
      %v6384 = vpop.f32.mrb[0].mxu0
      %v6385 = vadd.f32 %v6062, %v6384
      %v6386 = vpop.f32.mrb[0].mxu0
      %6387 = vmatprep.mubr.f32.mxu0 0.0
      %6388 = vmatmul.mubr.f32.gmra.mrb[0].mxu0 %v6223
      %v6389 = vpop.f32.mrb[0].mxu0
      %v6390 = vadd.f32 %v6067, %v6389
      %v6391 = vpop.f32.mrb[0].mxu0
      %6392 = vmatprep.mubr.f32.mxu0 0.0
      %6393 = vmatmul.mubr.f32.gmra.mrb[0].mxu0 %v6226
      %v6394 = vpop.f32.mrb[0].mxu0
      %v6395 = vadd.f32 %v6072, %v6394
      %v6396 = vpop.f32.mrb[0].mxu0
      %6397 = vmatprep.mubr.f32.mxu0 0.0
      %6398 = vmatmul.mubr.f32.gmra.mrb[0].mxu0 %v6229
      %v6399 = vpop.f32.mrb[0].mxu0
      %v6400 = vadd.f32 %v6077, %v6399
      %v6401 = vpop.f32.mrb[0].mxu0
      %6402 = vmatprep.mubr.f32.mxu0 0.0
      %6403 = vmatmul.mubr.f32.gmra.mrb[0].mxu0 %v6232
      %v6404 = vpop.f32.mrb[0].mxu0
      %v6405 = vadd.f32 %v6082, %v6404
      %v6406 = vpop.f32.mrb[0].mxu0
      %6407 = vmatprep.mubr.f32.mxu0 0.0
      %6408 = vmatmul.mubr.f32.gmra.mrb[0].mxu0 %v6235
      %v6409 = vpop.f32.mrb[0].mxu0
      %v6410 = vadd.f32 %v6087, %v6409
      %v6411 = vpop.f32.mrb[0].mxu0
      %6412 = vmatprep.mubr.f32.mxu0 0.0
      %6413 = vmatmul.mubr.f32.gmra.mrb[0].mxu0 %v6238
      %v6414 = vpop.f32.mrb[0].mxu0
      %v6415 = vadd.f32 %v6092, %v6414
      %v6416 = vpop.f32.mrb[0].mxu0
      %6417 = vmatprep.mubr.f32.mxu0 0.0
      %6418 = vmatmul.mubr.f32.gmra.mrb[0].mxu0 %v6241
      %v6419 = vpop.f32.mrb[0].mxu0
      %v6420 = vadd.f32 %v6097, %v6419
      %v6421 = vpop.f32.mrb[0].mxu0
      %6422 = vmatprep.mubr.f32.mxu0 0.0
      %6423 = vmatmul.mubr.f32.gmra.mrb[0].mxu0 %v6244
      %v6424 = vpop.f32.mrb[0].mxu0
      %v6425 = vadd.f32 %v6102, %v6424
      %v6426 = vpop.f32.mrb[0].mxu0
      %6427 = vmatprep.mubr.f32.mxu0 0.0
      %6428 = vmatmul.mubr.f32.gmra.mrb[0].mxu0 %v6247
      %v6429 = vpop.f32.mrb[0].mxu0
      %v6430 = vadd.f32 %v6107, %v6429
      %v6431 = vpop.f32.mrb[0].mxu0
      %6432 = vmatprep.mubr.f32.mxu0 0.0
      %6433 = vmatmul.mubr.f32.gmra.mrb[0].mxu0 %v6250
      %v6434 = vpop.f32.mrb[0].mxu0
      %v6435 = vadd.f32 %v6112, %v6434
      %v6436 = vpop.f32.mrb[0].mxu0
      %6437 = vmatprep.mubr.f32.mxu0 0.0
      %6438 = vmatmul.mubr.f32.gmra.mrb[0].mxu0 %v6253
      %v6439 = vpop.f32.mrb[0].mxu0
      %v6440 = vadd.f32 %v6117, %v6439
      %v6441 = vpop.f32.mrb[0].mxu0
      %6442 = vmatprep.mubr.f32.mxu0 0.0
      %6443 = vmatmul.mubr.f32.gmra.mrb[0].mxu0 %v6256
      %v6444 = vpop.f32.mrb[0].mxu0
      %v6445 = vadd.f32 %v6122, %v6444
      %v6446 = vpop.f32.mrb[0].mxu0
      %6447 = vmatprep.mubr.f32.mxu0 0.0
      %6448 = vmatmul.mubr.f32.gmra.mrb[0].mxu0 %v6259
      %v6449 = vpop.f32.mrb[0].mxu0
      %v6450 = vadd.f32 %v6127, %v6449
      %v6451 = vpop.f32.mrb[0].mxu0
      %6452 = vmatprep.mubr.f32.mxu0 0.0
      %6453 = vmatmul.mubr.f32.gmra.mrb[0].mxu0 %v6262
      %v6454 = vpop.f32.mrb[0].mxu0
      %v6455 = vadd.f32 %v6132, %v6454
      %v6456 = vpop.f32.mrb[0].mxu0
      %6457 = vmatprep.mubr.f32.mxu0 0.0
      %6458 = vmatmul.mubr.f32.gmra.mrb[0].mxu0 %v6265
      %v6459 = vpop.f32.mrb[0].mxu0
      %v6460 = vadd.f32 %v6137, %v6459
      %v6461 = vpop.f32.mrb[0].mxu0
      %6462 = vmatprep.mubr.f32.mxu0 0.0
      %6463 = vmatmul.mubr.f32.gmra.mrb[0].mxu0 %v6268
      %v6464 = vpop.f32.mrb[0].mxu0
      %v6465 = vadd.f32 %v6142, %v6464
      %v6466 = vpop.f32.mrb[0].mxu0
      %6467 = vmatprep.mubr.f32.mxu0 0.0
      %6468 = vmatmul.mubr.f32.gmra.mrb[0].mxu0 %v6271
      %v6469 = vpop.f32.mrb[0].mxu0
      %v6470 = vadd.f32 %v6147, %v6469
      %v6471 = vpop.f32.mrb[0].mxu0
      %6472 = vmatprep.mubr.f32.mxu0 0.0
      %6473 = vmatmul.mubr.f32.gmra.mrb[0].mxu0 %v6274
      %v6474 = vpop.f32.mrb[0].mxu0
      %v6475 = vadd.f32 %v6152, %v6474
      %v6476 = vpop.f32.mrb[0].mxu0
      %6477 = vmatprep.mubr.f32.mxu0 0.0
      %6478 = vmatmul.mubr.f32.gmra.mrb[0].mxu0 %v6277
      %v6479 = vpop.f32.mrb[0].mxu0
      %v6480 = vadd.f32 %v6157, %v6479
      %v6481 = vpop.f32.mrb[0].mxu0
      %6482 = vmatprep.mubr.f32.mxu0 0.0
      %6483 = vmatmul.mubr.f32.gmra.mrb[0].mxu0 %v6280
      %v6484 = vpop.f32.mrb[0].mxu0
      %v6485 = vadd.f32 %v6162, %v6484
      %v6486 = vpop.f32.mrb[0].mxu0
      %6487 = vmatprep.mubr.f32.mxu0 0.0
      %6488 = vmatmul.mubr.f32.gmra.mrb[0].mxu0 %v6283
      %v6489 = vpop.f32.mrb[0].mxu0
      %v6490 = vadd.f32 %v6167, %v6489
      %v6491 = vpop.f32.mrb[0].mxu0
      %6492 = vmatprep.mubr.f32.mxu0 0.0
      %6493 = vmatmul.mubr.f32.gmra.mrb[0].mxu0 %v6286
      %v6494 = vpop.f32.mrb[0].mxu0
      %v6495 = vadd.f32 %v6172, %v6494
      %v6496 = vpop.f32.mrb[0].mxu0
      %6497 = vmatprep.mubr.f32.mxu0 0.0
      %6498 = vmatmul.mubr.f32.gmra.mrb[0].mxu0 %v6289
      %v6499 = vpop.f32.mrb[0].mxu0
      %v6500 = vadd.f32 %v6177, %v6499
      %v6501 = vpop.f32.mrb[0].mxu0
      %6502 = vmatprep.mubr.f32.mxu0 0.0
      %6503 = vmatmul.mubr.f32.gmra.mrb[0].mxu0 %v6292
      %v6504 = vpop.f32.mrb[0].mxu0
      %v6505 = vadd.f32 %v6182, %v6504
      %v6506 = vpop.f32.mrb[0].mxu0
      %6507 = vmatprep.mubr.f32.mxu0 0.0
      %6508 = vmatmul.mubr.f32.gmra.mrb[0].mxu0 %v6295
      %v6509 = vpop.f32.mrb[0].mxu0
      %v6510 = vadd.f32 %v6187, %v6509
      %v6511 = vpop.f32.mrb[0].mxu0
      %6512 = vmatprep.mubr.f32.mxu0 0.0
      %6513 = vmatmul.mubr.f32.gmra.mrb[0].mxu0 %v6298
      %v6514 = vpop.f32.mrb[0].mxu0
      %v6515 = vadd.f32 %v6192, %v6514
      %v6516 = vpop.f32.mrb[0].mxu0
      %6517 = vmatprep.mubr.f32.mxu0 0.0
      %6518 = vmatmul.mubr.f32.gmra.mrb[0].mxu0 %v6301
      %v6519 = vpop.f32.mrb[0].mxu0
      %v6520 = vadd.f32 %v6197, %v6519
      %v6521 = vpop.f32.mrb[0].mxu0
      %6522 = vmatprep.mubr.f32.mxu0 0.0
      %6523 = vmatmul.mubr.f32.gmra.mrb[0].mxu0 %v6304
      %v6524 = vpop.f32.mrb[0].mxu0
      %v6525 = vadd.f32 %v6202, %v6524
      %v6526 = vpop.f32.mrb[0].mxu0
      %6527 = vmatprep.mubr.f32.mxu0 0.0
      %6528 = vmatmul.mubr.f32.gmra.mrb[0].mxu0 %v6307
      %v6529 = vpop.f32.mrb[0].mxu0
      %v6530 = vadd.f32 %v6207, %v6529
      %v6531 = vpop.f32.mrb[0].mxu0
      %6532 = vmatprep.mubr.f32.mxu0 0.0
      %6533 = vmatmul.mubr.f32.gmra.mrb[0].mxu0 %v6310
      %v6534 = vpop.f32.mrb[0].mxu0
      %v6535 = vadd.f32 %v6212, %v6534
      %v6536 = vpop.f32.mrb[0].mxu0
      %6537 = vmatprep.mubr.f32.mxu0 0.0
      %6538 = vmatmul.mubr.f32.gmra.mrb[0].mxu0 %v6313
      %v6539 = vpop.f32.mrb[0].mxu0
      %v6540 = vadd.f32 %v6217, %v6539
      %v6541 = vpop.f32.mrb[0].mxu0
      %6542 = vdwg.mxu0
      %v6543 = vmax.f32 %v6385, 0.0
      %v6544 = vmax.f32 %v6390, 0.0
      %v6545 = vmax.f32 %v6395, 0.0
      %v6546 = vmax.f32 %v6400, 0.0
      %v6547 = vmax.f32 %v6405, 0.0
      %v6548 = vmax.f32 %v6410, 0.0
      %v6549 = vmax.f32 %v6415, 0.0
      %v6550 = vmax.f32 %v6420, 0.0
      %v6551 = vmax.f32 %v6425, 0.0
      %v6552 = vmax.f32 %v6430, 0.0
      %v6553 = vmax.f32 %v6435, 0.0
      %v6554 = vmax.f32 %v6440, 0.0
      %v6555 = vmax.f32 %v6445, 0.0
      %v6556 = vmax.f32 %v6450, 0.0
      %v6557 = vmax.f32 %v6455, 0.0
      %v6558 = vmax.f32 %v6460, 0.0
      %v6559 = vmax.f32 %v6465, 0.0
      %v6560 = vmax.f32 %v6470, 0.0
      %v6561 = vmax.f32 %v6475, 0.0
      %v6562 = vmax.f32 %v6480, 0.0
      %v6563 = vmax.f32 %v6485, 0.0
      %v6564 = vmax.f32 %v6490, 0.0
      %v6565 = vmax.f32 %v6495, 0.0
      %v6566 = vmax.f32 %v6500, 0.0
      %v6567 = vmax.f32 %v6505, 0.0
      %v6568 = vmax.f32 %v6510, 0.0
      %v6569 = vmax.f32 %v6515, 0.0
      %v6570 = vmax.f32 %v6520, 0.0
      %v6571 = vmax.f32 %v6525, 0.0
      %v6572 = vmax.f32 %v6530, 0.0
      %v6573 = vmax.f32 %v6535, 0.0
      %v6574 = vmax.f32 %v6540, 0.0
      %s6575 = scalar_lea.vmem %s8, 80
      %v6576 = vld [vmem:[%s6575] sm:$0x3f]
      %v6577 = vld [vmem:[%s6575 + $0x8] sm:$0x3f]
      %s6578 = scalar_lea.vmem %s12, 40
      %v6579 = vld [vmem:[%s6578] sm:$0x3f]
      %6581 = vset.pattern.permute.xlu0 0
      %6582 = vperm.xlu0 %6581, %v6579
      %v6583 = vpop.permute.xlu0 %6582
      %6585 = vmatprep.subr.mxu0 0.0
      %6586 = vmatpush1.msra.mxu0 %v6543
      %6587 = vmatprep.subr.mxu0 0.0
      %6588 = vmatpush1.msra.mxu0 %v6544
      %6589 = vmatprep.subr.mxu0 0.0
      %6590 = vmatpush1.msra.mxu0 %v6545
      %6591 = vmatprep.subr.mxu0 0.0
      %6592 = vmatpush1.msra.mxu0 %v6546
      %6593 = vmatprep.subr.mxu0 0.0
      %6594 = vmatpush1.msra.mxu0 %v6547
      %6595 = vmatprep.subr.mxu0 0.0
      %6596 = vmatpush1.msra.mxu0 %v6548
      %6597 = vmatprep.subr.mxu0 0.0
      %6598 = vmatpush1.msra.mxu0 %v6549
      %6599 = vmatprep.subr.mxu0 0.0
      %6600 = vmatpush1.msra.mxu0 %v6550
      %6601 = vmatprep.subr.mxu0 0.0
      %6602 = vmatpush1.msra.mxu0 %v6551
      %6603 = vmatprep.subr.mxu0 0.0
      %6604 = vmatpush1.msra.mxu0 %v6552
      %6605 = vmatprep.subr.mxu0 0.0
      %6606 = vmatpush1.msra.mxu0 %v6553
      %6607 = vmatprep.subr.mxu0 0.0
      %6608 = vmatpush1.msra.mxu0 %v6554
      %6609 = vmatprep.subr.mxu0 0.0
      %6610 = vmatpush1.msra.mxu0 %v6555
      %6611 = vmatprep.subr.mxu0 0.0
      %6612 = vmatpush1.msra.mxu0 %v6556
      %6613 = vmatprep.subr.mxu0 0.0
      %6614 = vmatpush1.msra.mxu0 %v6557
      %6615 = vmatprep.subr.mxu0 0.0
      %6616 = vmatpush1.msra.mxu0 %v6558
      %6617 = vmatprep.subr.mxu0 0.0
      %6618 = vmatpush1.msra.mxu0 %v6559
      %6619 = vmatprep.subr.mxu0 0.0
      %6620 = vmatpush1.msra.mxu0 %v6560
      %6621 = vmatprep.subr.mxu0 0.0
      %6622 = vmatpush1.msra.mxu0 %v6561
      %6623 = vmatprep.subr.mxu0 0.0
      %6624 = vmatpush1.msra.mxu0 %v6562
      %6625 = vmatprep.subr.mxu0 0.0
      %6626 = vmatpush1.msra.mxu0 %v6563
      %6627 = vmatprep.subr.mxu0 0.0
      %6628 = vmatpush1.msra.mxu0 %v6564
      %6629 = vmatprep.subr.mxu0 0.0
      %6630 = vmatpush1.msra.mxu0 %v6565
      %6631 = vmatprep.subr.mxu0 0.0
      %6632 = vmatpush1.msra.mxu0 %v6566
      %6633 = vmatprep.subr.mxu0 0.0
      %6634 = vmatpush1.msra.mxu0 %v6567
      %6635 = vmatprep.subr.mxu0 0.0
      %6636 = vmatpush1.msra.mxu0 %v6568
      %6637 = vmatprep.subr.mxu0 0.0
      %6638 = vmatpush1.msra.mxu0 %v6569
      %6639 = vmatprep.subr.mxu0 0.0
      %6640 = vmatpush1.msra.mxu0 %v6570
      %6641 = vmatprep.subr.mxu0 0.0
      %6642 = vmatpush1.msra.mxu0 %v6571
      %6643 = vmatprep.subr.mxu0 0.0
      %6644 = vmatpush1.msra.mxu0 %v6572
      %6645 = vmatprep.subr.mxu0 0.0
      %6646 = vmatpush1.msra.mxu0 %v6573
      %6647 = vmatprep.subr.mxu0 0.0
      %6648 = vmatpush1.msra.mxu0 %v6574
      %6649 = vmatprep.mubr.f32.mxu0 %v6577
      %6650 = vmatmul.mubr.f32.gmra.mrb[0].mxu0 %v6576
      %v6651 = vpop.f32.mrb[0].mxu0
      %v6652 = vadd.f32 %v6583, %v6651
      %v6653 = vpop.f32.mrb[0].mxu0
      %6654 = vdwg.mxu0
      %s6655 = scalar_lea.vmem %s9, 24
      %v6656 = vld [vmem:[%s6655] sm:$0xf]
      %v6657 = vadd.f32 %v6652, %v695
      %s6658 = scalar_lea.vmem %s4, 768
      %v6659 = vld [vmem:[%s6658] sm:$0xff]
      %v6660 = vld [vmem:[%s6658 + $0x8] sm:$0xff]
      %v6661 = vld [vmem:[%s6658 + $0x10] sm:$0xff]
      %v6662 = vld [vmem:[%s6658 + $0x18] sm:$0xff]
      %v6663 = vld [vmem:[%s6658 + $0x20] sm:$0xff]
      %v6664 = vld [vmem:[%s6658 + $0x28] sm:$0xff]
      %v6665 = vld [vmem:[%s6658 + $0x30] sm:$0xff]
      %v6666 = vld [vmem:[%s6658 + $0x38] sm:$0xff]
      %v6667 = vld [vmem:[%s6658 + $0x40] sm:$0xff]
      %v6668 = vld [vmem:[%s6658 + $0x48] sm:$0xff]
      %v6669 = vld [vmem:[%s6658 + $0x50] sm:$0xff]
      %v6670 = vld [vmem:[%s6658 + $0x58] sm:$0xff]
      %v6671 = vld [vmem:[%s6658 + $0x60] sm:$0xff]
      %v6672 = vld [vmem:[%s6658 + $0x68] sm:$0xff]
      %v6673 = vld [vmem:[%s6658 + $0x70] sm:$0xff]
      %v6674 = vld [vmem:[%s6658 + $0x78] sm:$0xff]
      %6675 = vmatprep.subr.mxu0 0.0
      %6676 = vmatpush1.msra.mxu0 %v6659
      %6677 = vmatprep.subr.mxu0 0.0
      %6678 = vmatpush1.msra.mxu0 %v6660
      %6679 = vmatprep.subr.mxu0 0.0
      %6680 = vmatpush1.msra.mxu0 %v6661
      %6681 = vmatprep.subr.mxu0 0.0
      %6682 = vmatpush1.msra.mxu0 %v6662
      %6683 = vmatprep.subr.mxu0 0.0
      %6684 = vmatpush1.msra.mxu0 %v6663
      %6685 = vmatprep.subr.mxu0 0.0
      %6686 = vmatpush1.msra.mxu0 %v6664
      %6687 = vmatprep.subr.mxu0 0.0
      %6688 = vmatpush1.msra.mxu0 %v6665
      %6689 = vmatprep.subr.mxu0 0.0
      %6690 = vmatpush1.msra.mxu0 %v6666
      %6691 = vmatprep.subr.mxu0 0.0
      %6692 = vmatpush1.msra.mxu0 %v6667
      %6693 = vmatprep.subr.mxu0 0.0
      %6694 = vmatpush1.msra.mxu0 %v6668
      %6695 = vmatprep.subr.mxu0 0.0
      %6696 = vmatpush1.msra.mxu0 %v6669
      %6697 = vmatprep.subr.mxu0 0.0
      %6698 = vmatpush1.msra.mxu0 %v6670
      %6699 = vmatprep.subr.mxu0 0.0
      %6700 = vmatpush1.msra.mxu0 %v6671
      %6701 = vmatprep.subr.mxu0 0.0
      %6702 = vmatpush1.msra.mxu0 %v6672
      %6703 = vmatprep.subr.mxu0 0.0
      %6704 = vmatpush1.msra.mxu0 %v6673
      %6705 = vmatprep.subr.mxu0 0.0
      %6706 = vmatpush1.msra.mxu0 %v6674
      %6707 = vmatprep.subr.mxu0 0.0
      %6708 = vmatpush1.msra.mxu0 0.0
      %6709 = vmatprep.subr.mxu0 0.0
      %6710 = vmatpush1.msra.mxu0 0.0
      %6711 = vmatprep.subr.mxu0 0.0
      %6712 = vmatpush1.msra.mxu0 0.0
      %6713 = vmatprep.subr.mxu0 0.0
      %6714 = vmatpush1.msra.mxu0 0.0
      %6715 = vmatprep.subr.mxu0 0.0
      %6716 = vmatpush1.msra.mxu0 0.0
      %6717 = vmatprep.subr.mxu0 0.0
      %6718 = vmatpush1.msra.mxu0 0.0
      %6719 = vmatprep.subr.mxu0 0.0
      %6720 = vmatpush1.msra.mxu0 0.0
      %6721 = vmatprep.subr.mxu0 0.0
      %6722 = vmatpush1.msra.mxu0 0.0
      %6723 = vmatprep.subr.mxu0 0.0
      %6724 = vmatpush1.msra.mxu0 0.0
      %6725 = vmatprep.subr.mxu0 0.0
      %6726 = vmatpush1.msra.mxu0 0.0
      %6727 = vmatprep.subr.mxu0 0.0
      %6728 = vmatpush1.msra.mxu0 0.0
      %6729 = vmatprep.subr.mxu0 0.0
      %6730 = vmatpush1.msra.mxu0 0.0
      %6731 = vmatprep.subr.mxu0 0.0
      %6732 = vmatpush1.msra.mxu0 0.0
      %6733 = vmatprep.subr.mxu0 0.0
      %6734 = vmatpush1.msra.mxu0 0.0
      %6735 = vmatprep.subr.mxu0 0.0
      %6736 = vmatpush1.msra.mxu0 0.0
      %6737 = vmatprep.subr.mxu0 0.0
      %6738 = vmatpush1.msra.mxu0 0.0
      %6739 = vmatprep.mubr.f32.mxu0 0.0
      %6740 = vmatmul.mubr.f32.gmra.mrb[0].mxu0 %v689
      %v6741 = vpop.f32.mrb[0].mxu0
      %v6742 = vadd.f32 %v6656, %v6741
      %v6743 = vpop.f32.mrb[0].mxu0
      %6744 = vdwg.mxu0
      %v6745 = vlaneseq
      %v6746 = vshrl.u32 %v6745, 7
      %v6747 = vsub.s32 0, %v6746
      %v6748 = vrot.slane %v6742, %v6747
      %v6749 = vadd.f32 %v6657, %v6748
      %v6750 = vsel %vm788, %v6749, 0.0
      %6751 = vadd.xlane.f32.xlu0 %v6750
      %v6752 = vpop.xlane.xlu0 %6751
      %v6753 = vmul.f32 %v6752, %v792
      %v6754 = vsub.f32 %v6749, %v6753
      %v6755 = vmul.f32 %v6754, %v6754
      %v6756 = vsel %vm788, %v6755, 0.0
      %6757 = vadd.xlane.f32.xlu0 %v6756
      %v6758 = vpop.xlane.xlu0 %6757
      %v6759 = vmul.f32 %v6758, %v792
      %v6760 = vadd.f32 %v6759, 1e-05
      %v6761 = vrsqrt.pop %v6760
      %v6762 = vmul.f32 %v6754, %v6761
      %v6763 = vlaneseq
      %v6764 = vshrl.u32 %v6763, 7
      %v6765 = vsub.s32 1, %v6764
      %v6766 = vrot.slane %v6656, %v6765
      %v6767 = vmul.f32 %v6762, %v6766
      %v6768 = vlaneseq
      %v6769 = vshrl.u32 %v6768, 7
      %v6770 = vsub.s32 2, %v6769
      %v6771 = vrot.slane %v6656, %v6770
      %v6772 = vadd.f32 %v6767, %v6771
      %s6773 = scalar_lea.vmem %s5, 768
      %v6774 = vld [vmem:[%s6773] sm:$0xff]
      %v6775 = vld [vmem:[%s6773 + $0x8] sm:$0xff]
      %v6776 = vld [vmem:[%s6773 + $0x10] sm:$0xff]
      %v6777 = vld [vmem:[%s6773 + $0x18] sm:$0xff]
      %v6778 = vld [vmem:[%s6773 + $0x20] sm:$0xff]
      %v6779 = vld [vmem:[%s6773 + $0x28] sm:$0xff]
      %v6780 = vld [vmem:[%s6773 + $0x30] sm:$0xff]
      %v6781 = vld [vmem:[%s6773 + $0x38] sm:$0xff]
      %v6782 = vld [vmem:[%s6773 + $0x40] sm:$0xff]
      %v6783 = vld [vmem:[%s6773 + $0x48] sm:$0xff]
      %v6784 = vld [vmem:[%s6773 + $0x50] sm:$0xff]
      %v6785 = vld [vmem:[%s6773 + $0x58] sm:$0xff]
      %v6786 = vld [vmem:[%s6773 + $0x60] sm:$0xff]
      %v6787 = vld [vmem:[%s6773 + $0x68] sm:$0xff]
      %v6788 = vld [vmem:[%s6773 + $0x70] sm:$0xff]
      %v6789 = vld [vmem:[%s6773 + $0x78] sm:$0xff]
      %s6790 = scalar_lea.vmem %s10, 12
      %v6791 = vld [vmem:[%s6790] sm:$0x3]
      %v6793 = vlaneseq
      %v6794 = vshrl.u32 %v6793, 7
      %v6795 = vsub.s32 0, %v6794
      %v6796 = vrot.slane %v6791, %v6795
      %v6797 = vlaneseq
      %v6798 = vshrl.u32 %v6797, 7
      %v6799 = vsub.s32 1, %v6798
      %v6800 = vrot.slane %v6791, %v6799
      %v6804 = vsel %vm841, %v6772, 0
      %6806 = vmatprep.subr.mxu0 %v6775
      %6807 = vmatpush1.msra.mxu0 %v6774
      %6808 = vmatprep.subr.mxu0 %v6777
      %6809 = vmatpush1.msra.mxu0 %v6776
      %6810 = vmatprep.subr.mxu0 %v6779
      %6811 = vmatpush1.msra.mxu0 %v6778
      %6812 = vmatprep.subr.mxu0 %v6781
      %6813 = vmatpush1.msra.mxu0 %v6780
      %6814 = vmatprep.subr.mxu0 %v6783
      %6815 = vmatpush1.msra.mxu0 %v6782
      %6816 = vmatprep.subr.mxu0 %v6785
      %6817 = vmatpush1.msra.mxu0 %v6784
      %6818 = vmatprep.subr.mxu0 %v6787
      %6819 = vmatpush1.msra.mxu0 %v6786
      %6820 = vmatprep.subr.mxu0 %v6789
      %6821 = vmatpush1.msra.mxu0 %v6788
      %6822 = vmatprep.subr.mxu0 0.0
      %6823 = vmatpush1.msra.mxu0 0.0
      %6824 = vmatprep.subr.mxu0 0.0
      %6825 = vmatpush1.msra.mxu0 0.0
      %6826 = vmatprep.subr.mxu0 0.0
      %6827 = vmatpush1.msra.mxu0 0.0
      %6828 = vmatprep.subr.mxu0 0.0
      %6829 = vmatpush1.msra.mxu0 0.0
      %6830 = vmatprep.subr.mxu0 0.0
      %6831 = vmatpush1.msra.mxu0 0.0
      %6832 = vmatprep.subr.mxu0 0.0
      %6833 = vmatpush1.msra.mxu0 0.0
      %6834 = vmatprep.subr.mxu0 0.0
      %6835 = vmatpush1.msra.mxu0 0.0
      %6836 = vmatprep.subr.mxu0 0.0
      %6837 = vmatpush1.msra.mxu0 0.0
      %6838 = vmatprep.subr.mxu0 0.0
      %6839 = vmatpush1.msra.mxu0 0.0
      %6840 = vmatprep.subr.mxu0 0.0
      %6841 = vmatpush1.msra.mxu0 0.0
      %6842 = vmatprep.subr.mxu0 0.0
      %6843 = vmatpush1.msra.mxu0 0.0
      %6844 = vmatprep.subr.mxu0 0.0
      %6845 = vmatpush1.msra.mxu0 0.0
      %6846 = vmatprep.subr.mxu0 0.0
      %6847 = vmatpush1.msra.mxu0 0.0
      %6848 = vmatprep.subr.mxu0 0.0
      %6849 = vmatpush1.msra.mxu0 0.0
      %6850 = vmatprep.subr.mxu0 0.0
      %6851 = vmatpush1.msra.mxu0 0.0
      %6852 = vmatprep.subr.mxu0 0.0
      %6853 = vmatpush1.msra.mxu0 0.0
      %6854 = vmatprep.subr.mxu0 0.0
      %6855 = vmatpush1.msra.mxu0 0.0
      %6856 = vmatprep.subr.mxu0 0.0
      %6857 = vmatpush1.msra.mxu0 0.0
      %6858 = vmatprep.subr.mxu0 0.0
      %6859 = vmatpush1.msra.mxu0 0.0
      %6860 = vmatprep.subr.mxu0 0.0
      %6861 = vmatpush1.msra.mxu0 0.0
      %6862 = vmatprep.subr.mxu0 0.0
      %6863 = vmatpush1.msra.mxu0 0.0
      %6864 = vmatprep.subr.mxu0 0.0
      %6865 = vmatpush1.msra.mxu0 0.0
      %6866 = vmatprep.subr.mxu0 0.0
      %6867 = vmatpush1.msra.mxu0 0.0
      %6868 = vmatprep.subr.mxu0 0.0
      %6869 = vmatpush1.msra.mxu0 0.0
      %6870 = vmatprep.mubr.f32.mxu0 0.0
      %6871 = vmatmul.mubr.f32.gmra.mrb[0].mxu0 %v6804
      %v6872 = vpop.f32.mrb[0].mxu0
      %v6873 = vadd.f32 %v6796, %v6872
      %v6874 = vpop.f32.mrb[0].mxu0
      %v6875 = vadd.f32 %v6800, %v6874
      %6876 = vdwg.mxu0
      %v6877 = vmax.f32 %v6873, 0.0
      %v6878 = vmax.f32 %v6875, 0.0
      %s6879 = scalar_lea.vmem %s6, 1536
      %v6880 = vld [vmem:[%s6879] sm:$0xff]
      %v6881 = vld [vmem:[%s6879 + $0x8] sm:$0xff]
      %v6882 = vld [vmem:[%s6879 + $0x10] sm:$0xff]
      %v6883 = vld [vmem:[%s6879 + $0x18] sm:$0xff]
      %v6884 = vld [vmem:[%s6879 + $0x20] sm:$0xff]
      %v6885 = vld [vmem:[%s6879 + $0x28] sm:$0xff]
      %v6886 = vld [vmem:[%s6879 + $0x30] sm:$0xff]
      %v6887 = vld [vmem:[%s6879 + $0x38] sm:$0xff]
      %v6888 = vld [vmem:[%s6879 + $0x40] sm:$0xff]
      %v6889 = vld [vmem:[%s6879 + $0x48] sm:$0xff]
      %v6890 = vld [vmem:[%s6879 + $0x50] sm:$0xff]
      %v6891 = vld [vmem:[%s6879 + $0x58] sm:$0xff]
      %v6892 = vld [vmem:[%s6879 + $0x60] sm:$0xff]
      %v6893 = vld [vmem:[%s6879 + $0x68] sm:$0xff]
      %v6894 = vld [vmem:[%s6879 + $0x70] sm:$0xff]
      %v6895 = vld [vmem:[%s6879 + $0x78] sm:$0xff]
      %v6896 = vld [vmem:[%s6879 + $0x80] sm:$0xff]
      %v6897 = vld [vmem:[%s6879 + $0x88] sm:$0xff]
      %v6898 = vld [vmem:[%s6879 + $0x90] sm:$0xff]
      %v6899 = vld [vmem:[%s6879 + $0x98] sm:$0xff]
      %v6900 = vld [vmem:[%s6879 + $0xa0] sm:$0xff]
      %v6901 = vld [vmem:[%s6879 + $0xa8] sm:$0xff]
      %v6902 = vld [vmem:[%s6879 + $0xb0] sm:$0xff]
      %v6903 = vld [vmem:[%s6879 + $0xb8] sm:$0xff]
      %v6904 = vld [vmem:[%s6879 + $0xc0] sm:$0xff]
      %v6905 = vld [vmem:[%s6879 + $0xc8] sm:$0xff]
      %v6906 = vld [vmem:[%s6879 + $0xd0] sm:$0xff]
      %v6907 = vld [vmem:[%s6879 + $0xd8] sm:$0xff]
      %v6908 = vld [vmem:[%s6879 + $0xe0] sm:$0xff]
      %v6909 = vld [vmem:[%s6879 + $0xe8] sm:$0xff]
      %v6910 = vld [vmem:[%s6879 + $0xf0] sm:$0xff]
      %v6911 = vld [vmem:[%s6879 + $0xf8] sm:$0xff]
      %v6912 = vlaneseq
      %v6913 = vshrl.u32 %v6912, 7
      %v6914 = vsub.s32 3, %v6913
      %v6915 = vrot.slane %v6656, %v6914
      %6916 = vmatprep.subr.mxu0 0.0
      %6917 = vmatpush1.msra.mxu0 %v6880
      %6918 = vmatprep.subr.mxu0 0.0
      %6919 = vmatpush1.msra.mxu0 %v6881
      %6920 = vmatprep.subr.mxu0 0.0
      %6921 = vmatpush1.msra.mxu0 %v6882
      %6922 = vmatprep.subr.mxu0 0.0
      %6923 = vmatpush1.msra.mxu0 %v6883
      %6924 = vmatprep.subr.mxu0 0.0
      %6925 = vmatpush1.msra.mxu0 %v6884
      %6926 = vmatprep.subr.mxu0 0.0
      %6927 = vmatpush1.msra.mxu0 %v6885
      %6928 = vmatprep.subr.mxu0 0.0
      %6929 = vmatpush1.msra.mxu0 %v6886
      %6930 = vmatprep.subr.mxu0 0.0
      %6931 = vmatpush1.msra.mxu0 %v6887
      %6932 = vmatprep.subr.mxu0 0.0
      %6933 = vmatpush1.msra.mxu0 %v6888
      %6934 = vmatprep.subr.mxu0 0.0
      %6935 = vmatpush1.msra.mxu0 %v6889
      %6936 = vmatprep.subr.mxu0 0.0
      %6937 = vmatpush1.msra.mxu0 %v6890
      %6938 = vmatprep.subr.mxu0 0.0
      %6939 = vmatpush1.msra.mxu0 %v6891
      %6940 = vmatprep.subr.mxu0 0.0
      %6941 = vmatpush1.msra.mxu0 %v6892
      %6942 = vmatprep.subr.mxu0 0.0
      %6943 = vmatpush1.msra.mxu0 %v6893
      %6944 = vmatprep.subr.mxu0 0.0
      %6945 = vmatpush1.msra.mxu0 %v6894
      %6946 = vmatprep.subr.mxu0 0.0
      %6947 = vmatpush1.msra.mxu0 %v6895
      %6948 = vmatprep.subr.mxu0 0.0
      %6949 = vmatpush1.msra.mxu0 %v6896
      %6950 = vmatprep.subr.mxu0 0.0
      %6951 = vmatpush1.msra.mxu0 %v6897
      %6952 = vmatprep.subr.mxu0 0.0
      %6953 = vmatpush1.msra.mxu0 %v6898
      %6954 = vmatprep.subr.mxu0 0.0
      %6955 = vmatpush1.msra.mxu0 %v6899
      %6956 = vmatprep.subr.mxu0 0.0
      %6957 = vmatpush1.msra.mxu0 %v6900
      %6958 = vmatprep.subr.mxu0 0.0
      %6959 = vmatpush1.msra.mxu0 %v6901
      %6960 = vmatprep.subr.mxu0 0.0
      %6961 = vmatpush1.msra.mxu0 %v6902
      %6962 = vmatprep.subr.mxu0 0.0
      %6963 = vmatpush1.msra.mxu0 %v6903
      %6964 = vmatprep.subr.mxu0 0.0
      %6965 = vmatpush1.msra.mxu0 %v6904
      %6966 = vmatprep.subr.mxu0 0.0
      %6967 = vmatpush1.msra.mxu0 %v6905
      %6968 = vmatprep.subr.mxu0 0.0
      %6969 = vmatpush1.msra.mxu0 %v6906
      %6970 = vmatprep.subr.mxu0 0.0
      %6971 = vmatpush1.msra.mxu0 %v6907
      %6972 = vmatprep.subr.mxu0 0.0
      %6973 = vmatpush1.msra.mxu0 %v6908
      %6974 = vmatprep.subr.mxu0 0.0
      %6975 = vmatpush1.msra.mxu0 %v6909
      %6976 = vmatprep.subr.mxu0 0.0
      %6977 = vmatpush1.msra.mxu0 %v6910
      %6978 = vmatprep.subr.mxu0 0.0
      %6979 = vmatpush1.msra.mxu0 %v6911
      %6980 = vmatprep.mubr.f32.mxu0 %v6878
      %6981 = vmatmul.mubr.f32.gmra.mrb[0].mxu0 %v6877
      %v6982 = vpop.f32.mrb[0].mxu0
      %v6983 = vadd.f32 %v6915, %v6982
      %v6984 = vpop.f32.mrb[0].mxu0
      %6985 = vdwg.mxu0
      %v6986 = vadd.f32 %v6772, %v6983
      %s6987 = scalar_lea.vmem %s7, 1536
      %v6988 = vld [vmem:[%s6987] sm:$0xff]
      %v6989 = vld [vmem:[%s6987 + $0x8] sm:$0xff]
      %v6990 = vld [vmem:[%s6987 + $0x10] sm:$0xff]
      %v6991 = vld [vmem:[%s6987 + $0x18] sm:$0xff]
      %v6992 = vld [vmem:[%s6987 + $0x20] sm:$0xff]
      %v6993 = vld [vmem:[%s6987 + $0x28] sm:$0xff]
      %v6994 = vld [vmem:[%s6987 + $0x30] sm:$0xff]
      %v6995 = vld [vmem:[%s6987 + $0x38] sm:$0xff]
      %v6996 = vld [vmem:[%s6987 + $0x40] sm:$0xff]
      %v6997 = vld [vmem:[%s6987 + $0x48] sm:$0xff]
      %v6998 = vld [vmem:[%s6987 + $0x50] sm:$0xff]
      %v6999 = vld [vmem:[%s6987 + $0x58] sm:$0xff]
      %v7000 = vld [vmem:[%s6987 + $0x60] sm:$0xff]
      %v7001 = vld [vmem:[%s6987 + $0x68] sm:$0xff]
      %v7002 = vld [vmem:[%s6987 + $0x70] sm:$0xff]
      %v7003 = vld [vmem:[%s6987 + $0x78] sm:$0xff]
      %v7004 = vld [vmem:[%s6987 + $0x80] sm:$0xff]
      %v7005 = vld [vmem:[%s6987 + $0x88] sm:$0xff]
      %v7006 = vld [vmem:[%s6987 + $0x90] sm:$0xff]
      %v7007 = vld [vmem:[%s6987 + $0x98] sm:$0xff]
      %v7008 = vld [vmem:[%s6987 + $0xa0] sm:$0xff]
      %v7009 = vld [vmem:[%s6987 + $0xa8] sm:$0xff]
      %v7010 = vld [vmem:[%s6987 + $0xb0] sm:$0xff]
      %v7011 = vld [vmem:[%s6987 + $0xb8] sm:$0xff]
      %v7012 = vld [vmem:[%s6987 + $0xc0] sm:$0xff]
      %v7013 = vld [vmem:[%s6987 + $0xc8] sm:$0xff]
      %v7014 = vld [vmem:[%s6987 + $0xd0] sm:$0xff]
      %v7015 = vld [vmem:[%s6987 + $0xd8] sm:$0xff]
      %v7016 = vld [vmem:[%s6987 + $0xe0] sm:$0xff]
      %v7017 = vld [vmem:[%s6987 + $0xe8] sm:$0xff]
      %v7018 = vld [vmem:[%s6987 + $0xf0] sm:$0xff]
      %v7019 = vld [vmem:[%s6987 + $0xf8] sm:$0xff]
      %s7020 = scalar_lea.vmem %s11, 1536
      %v7021 = vld [vmem:[%s7020] sm:$0xff]
      %v7022 = vld [vmem:[%s7020 + $0x8] sm:$0xff]
      %v7023 = vld [vmem:[%s7020 + $0x10] sm:$0xff]
      %v7024 = vld [vmem:[%s7020 + $0x18] sm:$0xff]
      %v7025 = vld [vmem:[%s7020 + $0x20] sm:$0xff]
      %v7026 = vld [vmem:[%s7020 + $0x28] sm:$0xff]
      %v7027 = vld [vmem:[%s7020 + $0x30] sm:$0xff]
      %v7028 = vld [vmem:[%s7020 + $0x38] sm:$0xff]
      %v7029 = vld [vmem:[%s7020 + $0x40] sm:$0xff]
      %v7030 = vld [vmem:[%s7020 + $0x48] sm:$0xff]
      %v7031 = vld [vmem:[%s7020 + $0x50] sm:$0xff]
      %v7032 = vld [vmem:[%s7020 + $0x58] sm:$0xff]
      %v7033 = vld [vmem:[%s7020 + $0x60] sm:$0xff]
      %v7034 = vld [vmem:[%s7020 + $0x68] sm:$0xff]
      %v7035 = vld [vmem:[%s7020 + $0x70] sm:$0xff]
      %v7036 = vld [vmem:[%s7020 + $0x78] sm:$0xff]
      %v7037 = vld [vmem:[%s7020 + $0x80] sm:$0xff]
      %v7038 = vld [vmem:[%s7020 + $0x88] sm:$0xff]
      %v7039 = vld [vmem:[%s7020 + $0x90] sm:$0xff]
      %v7040 = vld [vmem:[%s7020 + $0x98] sm:$0xff]
      %v7041 = vld [vmem:[%s7020 + $0xa0] sm:$0xff]
      %v7042 = vld [vmem:[%s7020 + $0xa8] sm:$0xff]
      %v7043 = vld [vmem:[%s7020 + $0xb0] sm:$0xff]
      %v7044 = vld [vmem:[%s7020 + $0xb8] sm:$0xff]
      %v7045 = vld [vmem:[%s7020 + $0xc0] sm:$0xff]
      %v7046 = vld [vmem:[%s7020 + $0xc8] sm:$0xff]
      %v7047 = vld [vmem:[%s7020 + $0xd0] sm:$0xff]
      %v7048 = vld [vmem:[%s7020 + $0xd8] sm:$0xff]
      %v7049 = vld [vmem:[%s7020 + $0xe0] sm:$0xff]
      %v7050 = vld [vmem:[%s7020 + $0xe8] sm:$0xff]
      %v7051 = vld [vmem:[%s7020 + $0xf0] sm:$0xff]
      %v7052 = vld [vmem:[%s7020 + $0xf8] sm:$0xff]
      %7054 = vset.pattern.permute.xlu0 0
      %7055 = vperm.xlu0 %7054, %v7021
      %v7056 = vpop.permute.xlu0 %7055
      %7059 = vset.pattern.permute.xlu0 0
      %7060 = vperm.xlu0 %7059, %v7022
      %v7061 = vpop.permute.xlu0 %7060
      %7064 = vset.pattern.permute.xlu0 0
      %7065 = vperm.xlu0 %7064, %v7023
      %v7066 = vpop.permute.xlu0 %7065
      %7069 = vset.pattern.permute.xlu0 0
      %7070 = vperm.xlu0 %7069, %v7024
      %v7071 = vpop.permute.xlu0 %7070
      %7074 = vset.pattern.permute.xlu0 0
      %7075 = vperm.xlu0 %7074, %v7025
      %v7076 = vpop.permute.xlu0 %7075
      %7079 = vset.pattern.permute.xlu0 0
      %7080 = vperm.xlu0 %7079, %v7026
      %v7081 = vpop.permute.xlu0 %7080
      %7084 = vset.pattern.permute.xlu0 0
      %7085 = vperm.xlu0 %7084, %v7027
      %v7086 = vpop.permute.xlu0 %7085
      %7089 = vset.pattern.permute.xlu0 0
      %7090 = vperm.xlu0 %7089, %v7028
      %v7091 = vpop.permute.xlu0 %7090
      %7094 = vset.pattern.permute.xlu0 0
      %7095 = vperm.xlu0 %7094, %v7029
      %v7096 = vpop.permute.xlu0 %7095
      %7099 = vset.pattern.permute.xlu0 0
      %7100 = vperm.xlu0 %7099, %v7030
      %v7101 = vpop.permute.xlu0 %7100
      %7104 = vset.pattern.permute.xlu0 0
      %7105 = vperm.xlu0 %7104, %v7031
      %v7106 = vpop.permute.xlu0 %7105
      %7109 = vset.pattern.permute.xlu0 0
      %7110 = vperm.xlu0 %7109, %v7032
      %v7111 = vpop.permute.xlu0 %7110
      %7114 = vset.pattern.permute.xlu0 0
      %7115 = vperm.xlu0 %7114, %v7033
      %v7116 = vpop.permute.xlu0 %7115
      %7119 = vset.pattern.permute.xlu0 0
      %7120 = vperm.xlu0 %7119, %v7034
      %v7121 = vpop.permute.xlu0 %7120
      %7124 = vset.pattern.permute.xlu0 0
      %7125 = vperm.xlu0 %7124, %v7035
      %v7126 = vpop.permute.xlu0 %7125
      %7129 = vset.pattern.permute.xlu0 0
      %7130 = vperm.xlu0 %7129, %v7036
      %v7131 = vpop.permute.xlu0 %7130
      %7134 = vset.pattern.permute.xlu0 0
      %7135 = vperm.xlu0 %7134, %v7037
      %v7136 = vpop.permute.xlu0 %7135
      %7139 = vset.pattern.permute.xlu0 0
      %7140 = vperm.xlu0 %7139, %v7038
      %v7141 = vpop.permute.xlu0 %7140
      %7144 = vset.pattern.permute.xlu0 0
      %7145 = vperm.xlu0 %7144, %v7039
      %v7146 = vpop.permute.xlu0 %7145
      %7149 = vset.pattern.permute.xlu0 0
      %7150 = vperm.xlu0 %7149, %v7040
      %v7151 = vpop.permute.xlu0 %7150
      %7154 = vset.pattern.permute.xlu0 0
      %7155 = vperm.xlu0 %7154, %v7041
      %v7156 = vpop.permute.xlu0 %7155
      %7159 = vset.pattern.permute.xlu0 0
      %7160 = vperm.xlu0 %7159, %v7042
      %v7161 = vpop.permute.xlu0 %7160
      %7164 = vset.pattern.permute.xlu0 0
      %7165 = vperm.xlu0 %7164, %v7043
      %v7166 = vpop.permute.xlu0 %7165
      %7169 = vset.pattern.permute.xlu0 0
      %7170 = vperm.xlu0 %7169, %v7044
      %v7171 = vpop.permute.xlu0 %7170
      %7174 = vset.pattern.permute.xlu0 0
      %7175 = vperm.xlu0 %7174, %v7045
      %v7176 = vpop.permute.xlu0 %7175
      %7179 = vset.pattern.permute.xlu0 0
      %7180 = vperm.xlu0 %7179, %v7046
      %v7181 = vpop.permute.xlu0 %7180
      %7184 = vset.pattern.permute.xlu0 0
      %7185 = vperm.xlu0 %7184, %v7047
      %v7186 = vpop.permute.xlu0 %7185
      %7189 = vset.pattern.permute.xlu0 0
      %7190 = vperm.xlu0 %7189, %v7048
      %v7191 = vpop.permute.xlu0 %7190
      %7194 = vset.pattern.permute.xlu0 0
      %7195 = vperm.xlu0 %7194, %v7049
      %v7196 = vpop.permute.xlu0 %7195
      %7199 = vset.pattern.permute.xlu0 0
      %7200 = vperm.xlu0 %7199, %v7050
      %v7201 = vpop.permute.xlu0 %7200
      %7204 = vset.pattern.permute.xlu0 0
      %7205 = vperm.xlu0 %7204, %v7051
      %v7206 = vpop.permute.xlu0 %7205
      %7209 = vset.pattern.permute.xlu0 0
      %7210 = vperm.xlu0 %7209, %v7052
      %v7211 = vpop.permute.xlu0 %7210
      %v7214 = vsel %vm1249, %v6988, 0
      %v7217 = vsel %vm1249, %v6989, 0
      %v7220 = vsel %vm1249, %v6990, 0
      %v7223 = vsel %vm1249, %v6991, 0
      %v7226 = vsel %vm1249, %v6992, 0
      %v7229 = vsel %vm1249, %v6993, 0
      %v7232 = vsel %vm1249, %v6994, 0
      %v7235 = vsel %vm1249, %v6995, 0
      %v7238 = vsel %vm1249, %v6996, 0
      %v7241 = vsel %vm1249, %v6997, 0
      %v7244 = vsel %vm1249, %v6998, 0
      %v7247 = vsel %vm1249, %v6999, 0
      %v7250 = vsel %vm1249, %v7000, 0
      %v7253 = vsel %vm1249, %v7001, 0
      %v7256 = vsel %vm1249, %v7002, 0
      %v7259 = vsel %vm1249, %v7003, 0
      %v7262 = vsel %vm1249, %v7004, 0
      %v7265 = vsel %vm1249, %v7005, 0
      %v7268 = vsel %vm1249, %v7006, 0
      %v7271 = vsel %vm1249, %v7007, 0
      %v7274 = vsel %vm1249, %v7008, 0
      %v7277 = vsel %vm1249, %v7009, 0
      %v7280 = vsel %vm1249, %v7010, 0
      %v7283 = vsel %vm1249, %v7011, 0
      %v7286 = vsel %vm1249, %v7012, 0
      %v7289 = vsel %vm1249, %v7013, 0
      %v7292 = vsel %vm1249, %v7014, 0
      %v7295 = vsel %vm1249, %v7015, 0
      %v7298 = vsel %vm1249, %v7016, 0
      %v7301 = vsel %vm1249, %v7017, 0
      %v7304 = vsel %vm1249, %v7018, 0
      %v7307 = vsel %vm1249, %v7019, 0
      %v7310 = vsel %vm1346, %v6986, 0
      %7312 = vmatprep.subr.mxu0 0.0
      %7313 = vmatpush1.msra.mxu0 %v7310
      %7314 = vmatprep.subr.mxu0 0.0
      %7315 = vmatpush1.msra.mxu0 0.0
      %7316 = vmatprep.subr.mxu0 0.0
      %7317 = vmatpush1.msra.mxu0 0.0
      %7318 = vmatprep.subr.mxu0 0.0
      %7319 = vmatpush1.msra.mxu0 0.0
      %7320 = vmatprep.subr.mxu0 0.0
      %7321 = vmatpush1.msra.mxu0 0.0
      %7322 = vmatprep.subr.mxu0 0.0
      %7323 = vmatpush1.msra.mxu0 0.0
      %7324 = vmatprep.subr.mxu0 0.0
      %7325 = vmatpush1.msra.mxu0 0.0
      %7326 = vmatprep.subr.mxu0 0.0
      %7327 = vmatpush1.msra.mxu0 0.0
      %7328 = vmatprep.subr.mxu0 0.0
      %7329 = vmatpush1.msra.mxu0 0.0
      %7330 = vmatprep.subr.mxu0 0.0
      %7331 = vmatpush1.msra.mxu0 0.0
      %7332 = vmatprep.subr.mxu0 0.0
      %7333 = vmatpush1.msra.mxu0 0.0
      %7334 = vmatprep.subr.mxu0 0.0
      %7335 = vmatpush1.msra.mxu0 0.0
      %7336 = vmatprep.subr.mxu0 0.0
      %7337 = vmatpush1.msra.mxu0 0.0
      %7338 = vmatprep.subr.mxu0 0.0
      %7339 = vmatpush1.msra.mxu0 0.0
      %7340 = vmatprep.subr.mxu0 0.0
      %7341 = vmatpush1.msra.mxu0 0.0
      %7342 = vmatprep.subr.mxu0 0.0
      %7343 = vmatpush1.msra.mxu0 0.0
      %7344 = vmatprep.subr.mxu0 0.0
      %7345 = vmatpush1.msra.mxu0 0.0
      %7346 = vmatprep.subr.mxu0 0.0
      %7347 = vmatpush1.msra.mxu0 0.0
      %7348 = vmatprep.subr.mxu0 0.0
      %7349 = vmatpush1.msra.mxu0 0.0
      %7350 = vmatprep.subr.mxu0 0.0
      %7351 = vmatpush1.msra.mxu0 0.0
      %7352 = vmatprep.subr.mxu0 0.0
      %7353 = vmatpush1.msra.mxu0 0.0
      %7354 = vmatprep.subr.mxu0 0.0
      %7355 = vmatpush1.msra.mxu0 0.0
      %7356 = vmatprep.subr.mxu0 0.0
      %7357 = vmatpush1.msra.mxu0 0.0
      %7358 = vmatprep.subr.mxu0 0.0
      %7359 = vmatpush1.msra.mxu0 0.0
      %7360 = vmatprep.subr.mxu0 0.0
      %7361 = vmatpush1.msra.mxu0 0.0
      %7362 = vmatprep.subr.mxu0 0.0
      %7363 = vmatpush1.msra.mxu0 0.0
      %7364 = vmatprep.subr.mxu0 0.0
      %7365 = vmatpush1.msra.mxu0 0.0
      %7366 = vmatprep.subr.mxu0 0.0
      %7367 = vmatpush1.msra.mxu0 0.0
      %7368 = vmatprep.subr.mxu0 0.0
      %7369 = vmatpush1.msra.mxu0 0.0
      %7370 = vmatprep.subr.mxu0 0.0
      %7371 = vmatpush1.msra.mxu0 0.0
      %7372 = vmatprep.subr.mxu0 0.0
      %7373 = vmatpush1.msra.mxu0 0.0
      %7374 = vmatprep.subr.mxu0 0.0
      %7375 = vmatpush1.msra.mxu0 0.0
      %7376 = vmatprep.mubr.f32.mxu0 0.0
      %7377 = vmatmul.mubr.f32.gmra.mrb[0].mxu0 %v7214
      %v7378 = vpop.f32.mrb[0].mxu0
      %v7379 = vadd.f32 %v7056, %v7378
      %v7380 = vpop.f32.mrb[0].mxu0
      %7381 = vmatprep.mubr.f32.mxu0 0.0
      %7382 = vmatmul.mubr.f32.gmra.mrb[0].mxu0 %v7217
      %v7383 = vpop.f32.mrb[0].mxu0
      %v7384 = vadd.f32 %v7061, %v7383
      %v7385 = vpop.f32.mrb[0].mxu0
      %7386 = vmatprep.mubr.f32.mxu0 0.0
      %7387 = vmatmul.mubr.f32.gmra.mrb[0].mxu0 %v7220
      %v7388 = vpop.f32.mrb[0].mxu0
      %v7389 = vadd.f32 %v7066, %v7388
      %v7390 = vpop.f32.mrb[0].mxu0
      %7391 = vmatprep.mubr.f32.mxu0 0.0
      %7392 = vmatmul.mubr.f32.gmra.mrb[0].mxu0 %v7223
      %v7393 = vpop.f32.mrb[0].mxu0
      %v7394 = vadd.f32 %v7071, %v7393
      %v7395 = vpop.f32.mrb[0].mxu0
      %7396 = vmatprep.mubr.f32.mxu0 0.0
      %7397 = vmatmul.mubr.f32.gmra.mrb[0].mxu0 %v7226
      %v7398 = vpop.f32.mrb[0].mxu0
      %v7399 = vadd.f32 %v7076, %v7398
      %v7400 = vpop.f32.mrb[0].mxu0
      %7401 = vmatprep.mubr.f32.mxu0 0.0
      %7402 = vmatmul.mubr.f32.gmra.mrb[0].mxu0 %v7229
      %v7403 = vpop.f32.mrb[0].mxu0
      %v7404 = vadd.f32 %v7081, %v7403
      %v7405 = vpop.f32.mrb[0].mxu0
      %7406 = vmatprep.mubr.f32.mxu0 0.0
      %7407 = vmatmul.mubr.f32.gmra.mrb[0].mxu0 %v7232
      %v7408 = vpop.f32.mrb[0].mxu0
      %v7409 = vadd.f32 %v7086, %v7408
      %v7410 = vpop.f32.mrb[0].mxu0
      %7411 = vmatprep.mubr.f32.mxu0 0.0
      %7412 = vmatmul.mubr.f32.gmra.mrb[0].mxu0 %v7235
      %v7413 = vpop.f32.mrb[0].mxu0
      %v7414 = vadd.f32 %v7091, %v7413
      %v7415 = vpop.f32.mrb[0].mxu0
      %7416 = vmatprep.mubr.f32.mxu0 0.0
      %7417 = vmatmul.mubr.f32.gmra.mrb[0].mxu0 %v7238
      %v7418 = vpop.f32.mrb[0].mxu0
      %v7419 = vadd.f32 %v7096, %v7418
      %v7420 = vpop.f32.mrb[0].mxu0
      %7421 = vmatprep.mubr.f32.mxu0 0.0
      %7422 = vmatmul.mubr.f32.gmra.mrb[0].mxu0 %v7241
      %v7423 = vpop.f32.mrb[0].mxu0
      %v7424 = vadd.f32 %v7101, %v7423
      %v7425 = vpop.f32.mrb[0].mxu0
      %7426 = vmatprep.mubr.f32.mxu0 0.0
      %7427 = vmatmul.mubr.f32.gmra.mrb[0].mxu0 %v7244
      %v7428 = vpop.f32.mrb[0].mxu0
      %v7429 = vadd.f32 %v7106, %v7428
      %v7430 = vpop.f32.mrb[0].mxu0
      %7431 = vmatprep.mubr.f32.mxu0 0.0
      %7432 = vmatmul.mubr.f32.gmra.mrb[0].mxu0 %v7247
      %v7433 = vpop.f32.mrb[0].mxu0
      %v7434 = vadd.f32 %v7111, %v7433
      %v7435 = vpop.f32.mrb[0].mxu0
      %7436 = vmatprep.mubr.f32.mxu0 0.0
      %7437 = vmatmul.mubr.f32.gmra.mrb[0].mxu0 %v7250
      %v7438 = vpop.f32.mrb[0].mxu0
      %v7439 = vadd.f32 %v7116, %v7438
      %v7440 = vpop.f32.mrb[0].mxu0
      %7441 = vmatprep.mubr.f32.mxu0 0.0
      %7442 = vmatmul.mubr.f32.gmra.mrb[0].mxu0 %v7253
      %v7443 = vpop.f32.mrb[0].mxu0
      %v7444 = vadd.f32 %v7121, %v7443
      %v7445 = vpop.f32.mrb[0].mxu0
      %7446 = vmatprep.mubr.f32.mxu0 0.0
      %7447 = vmatmul.mubr.f32.gmra.mrb[0].mxu0 %v7256
      %v7448 = vpop.f32.mrb[0].mxu0
      %v7449 = vadd.f32 %v7126, %v7448
      %v7450 = vpop.f32.mrb[0].mxu0
      %7451 = vmatprep.mubr.f32.mxu0 0.0
      %7452 = vmatmul.mubr.f32.gmra.mrb[0].mxu0 %v7259
      %v7453 = vpop.f32.mrb[0].mxu0
      %v7454 = vadd.f32 %v7131, %v7453
      %v7455 = vpop.f32.mrb[0].mxu0
      %7456 = vmatprep.mubr.f32.mxu0 0.0
      %7457 = vmatmul.mubr.f32.gmra.mrb[0].mxu0 %v7262
      %v7458 = vpop.f32.mrb[0].mxu0
      %v7459 = vadd.f32 %v7136, %v7458
      %v7460 = vpop.f32.mrb[0].mxu0
      %7461 = vmatprep.mubr.f32.mxu0 0.0
      %7462 = vmatmul.mubr.f32.gmra.mrb[0].mxu0 %v7265
      %v7463 = vpop.f32.mrb[0].mxu0
      %v7464 = vadd.f32 %v7141, %v7463
      %v7465 = vpop.f32.mrb[0].mxu0
      %7466 = vmatprep.mubr.f32.mxu0 0.0
      %7467 = vmatmul.mubr.f32.gmra.mrb[0].mxu0 %v7268
      %v7468 = vpop.f32.mrb[0].mxu0
      %v7469 = vadd.f32 %v7146, %v7468
      %v7470 = vpop.f32.mrb[0].mxu0
      %7471 = vmatprep.mubr.f32.mxu0 0.0
      %7472 = vmatmul.mubr.f32.gmra.mrb[0].mxu0 %v7271
      %v7473 = vpop.f32.mrb[0].mxu0
      %v7474 = vadd.f32 %v7151, %v7473
      %v7475 = vpop.f32.mrb[0].mxu0
      %7476 = vmatprep.mubr.f32.mxu0 0.0
      %7477 = vmatmul.mubr.f32.gmra.mrb[0].mxu0 %v7274
      %v7478 = vpop.f32.mrb[0].mxu0
      %v7479 = vadd.f32 %v7156, %v7478
      %v7480 = vpop.f32.mrb[0].mxu0
      %7481 = vmatprep.mubr.f32.mxu0 0.0
      %7482 = vmatmul.mubr.f32.gmra.mrb[0].mxu0 %v7277
      %v7483 = vpop.f32.mrb[0].mxu0
      %v7484 = vadd.f32 %v7161, %v7483
      %v7485 = vpop.f32.mrb[0].mxu0
      %7486 = vmatprep.mubr.f32.mxu0 0.0
      %7487 = vmatmul.mubr.f32.gmra.mrb[0].mxu0 %v7280
      %v7488 = vpop.f32.mrb[0].mxu0
      %v7489 = vadd.f32 %v7166, %v7488
      %v7490 = vpop.f32.mrb[0].mxu0
      %7491 = vmatprep.mubr.f32.mxu0 0.0
      %7492 = vmatmul.mubr.f32.gmra.mrb[0].mxu0 %v7283
      %v7493 = vpop.f32.mrb[0].mxu0
      %v7494 = vadd.f32 %v7171, %v7493
      %v7495 = vpop.f32.mrb[0].mxu0
      %7496 = vmatprep.mubr.f32.mxu0 0.0
      %7497 = vmatmul.mubr.f32.gmra.mrb[0].mxu0 %v7286
      %v7498 = vpop.f32.mrb[0].mxu0
      %v7499 = vadd.f32 %v7176, %v7498
      %v7500 = vpop.f32.mrb[0].mxu0
      %7501 = vmatprep.mubr.f32.mxu0 0.0
      %7502 = vmatmul.mubr.f32.gmra.mrb[0].mxu0 %v7289
      %v7503 = vpop.f32.mrb[0].mxu0
      %v7504 = vadd.f32 %v7181, %v7503
      %v7505 = vpop.f32.mrb[0].mxu0
      %7506 = vmatprep.mubr.f32.mxu0 0.0
      %7507 = vmatmul.mubr.f32.gmra.mrb[0].mxu0 %v7292
      %v7508 = vpop.f32.mrb[0].mxu0
      %v7509 = vadd.f32 %v7186, %v7508
      %v7510 = vpop.f32.mrb[0].mxu0
      %7511 = vmatprep.mubr.f32.mxu0 0.0
      %7512 = vmatmul.mubr.f32.gmra.mrb[0].mxu0 %v7295
      %v7513 = vpop.f32.mrb[0].mxu0
      %v7514 = vadd.f32 %v7191, %v7513
      %v7515 = vpop.f32.mrb[0].mxu0
      %7516 = vmatprep.mubr.f32.mxu0 0.0
      %7517 = vmatmul.mubr.f32.gmra.mrb[0].mxu0 %v7298
      %v7518 = vpop.f32.mrb[0].mxu0
      %v7519 = vadd.f32 %v7196, %v7518
      %v7520 = vpop.f32.mrb[0].mxu0
      %7521 = vmatprep.mubr.f32.mxu0 0.0
      %7522 = vmatmul.mubr.f32.gmra.mrb[0].mxu0 %v7301
      %v7523 = vpop.f32.mrb[0].mxu0
      %v7524 = vadd.f32 %v7201, %v7523
      %v7525 = vpop.f32.mrb[0].mxu0
      %7526 = vmatprep.mubr.f32.mxu0 0.0
      %7527 = vmatmul.mubr.f32.gmra.mrb[0].mxu0 %v7304
      %v7528 = vpop.f32.mrb[0].mxu0
      %v7529 = vadd.f32 %v7206, %v7528
      %v7530 = vpop.f32.mrb[0].mxu0
      %7531 = vmatprep.mubr.f32.mxu0 0.0
      %7532 = vmatmul.mubr.f32.gmra.mrb[0].mxu0 %v7307
      %v7533 = vpop.f32.mrb[0].mxu0
      %v7534 = vadd.f32 %v7211, %v7533
      %v7535 = vpop.f32.mrb[0].mxu0
      %7536 = vdwg.mxu0
      %v7537 = vmax.f32 %v7379, 0.0
      %v7538 = vmax.f32 %v7384, 0.0
      %v7539 = vmax.f32 %v7389, 0.0
      %v7540 = vmax.f32 %v7394, 0.0
      %v7541 = vmax.f32 %v7399, 0.0
      %v7542 = vmax.f32 %v7404, 0.0
      %v7543 = vmax.f32 %v7409, 0.0
      %v7544 = vmax.f32 %v7414, 0.0
      %v7545 = vmax.f32 %v7419, 0.0
      %v7546 = vmax.f32 %v7424, 0.0
      %v7547 = vmax.f32 %v7429, 0.0
      %v7548 = vmax.f32 %v7434, 0.0
      %v7549 = vmax.f32 %v7439, 0.0
      %v7550 = vmax.f32 %v7444, 0.0
      %v7551 = vmax.f32 %v7449, 0.0
      %v7552 = vmax.f32 %v7454, 0.0
      %v7553 = vmax.f32 %v7459, 0.0
      %v7554 = vmax.f32 %v7464, 0.0
      %v7555 = vmax.f32 %v7469, 0.0
      %v7556 = vmax.f32 %v7474, 0.0
      %v7557 = vmax.f32 %v7479, 0.0
      %v7558 = vmax.f32 %v7484, 0.0
      %v7559 = vmax.f32 %v7489, 0.0
      %v7560 = vmax.f32 %v7494, 0.0
      %v7561 = vmax.f32 %v7499, 0.0
      %v7562 = vmax.f32 %v7504, 0.0
      %v7563 = vmax.f32 %v7509, 0.0
      %v7564 = vmax.f32 %v7514, 0.0
      %v7565 = vmax.f32 %v7519, 0.0
      %v7566 = vmax.f32 %v7524, 0.0
      %v7567 = vmax.f32 %v7529, 0.0
      %v7568 = vmax.f32 %v7534, 0.0
      %s7569 = scalar_lea.vmem %s8, 96
      %v7570 = vld [vmem:[%s7569] sm:$0x3f]
      %v7571 = vld [vmem:[%s7569 + $0x8] sm:$0x3f]
      %s7572 = scalar_lea.vmem %s12, 48
      %v7573 = vld [vmem:[%s7572] sm:$0x3f]
      %7575 = vset.pattern.permute.xlu0 0
      %7576 = vperm.xlu0 %7575, %v7573
      %v7577 = vpop.permute.xlu0 %7576
      %7579 = vmatprep.subr.mxu0 0.0
      %7580 = vmatpush1.msra.mxu0 %v7537
      %7581 = vmatprep.subr.mxu0 0.0
      %7582 = vmatpush1.msra.mxu0 %v7538
      %7583 = vmatprep.subr.mxu0 0.0
      %7584 = vmatpush1.msra.mxu0 %v7539
      %7585 = vmatprep.subr.mxu0 0.0
      %7586 = vmatpush1.msra.mxu0 %v7540
      %7587 = vmatprep.subr.mxu0 0.0
      %7588 = vmatpush1.msra.mxu0 %v7541
      %7589 = vmatprep.subr.mxu0 0.0
      %7590 = vmatpush1.msra.mxu0 %v7542
      %7591 = vmatprep.subr.mxu0 0.0
      %7592 = vmatpush1.msra.mxu0 %v7543
      %7593 = vmatprep.subr.mxu0 0.0
      %7594 = vmatpush1.msra.mxu0 %v7544
      %7595 = vmatprep.subr.mxu0 0.0
      %7596 = vmatpush1.msra.mxu0 %v7545
      %7597 = vmatprep.subr.mxu0 0.0
      %7598 = vmatpush1.msra.mxu0 %v7546
      %7599 = vmatprep.subr.mxu0 0.0
      %7600 = vmatpush1.msra.mxu0 %v7547
      %7601 = vmatprep.subr.mxu0 0.0
      %7602 = vmatpush1.msra.mxu0 %v7548
      %7603 = vmatprep.subr.mxu0 0.0
      %7604 = vmatpush1.msra.mxu0 %v7549
      %7605 = vmatprep.subr.mxu0 0.0
      %7606 = vmatpush1.msra.mxu0 %v7550
      %7607 = vmatprep.subr.mxu0 0.0
      %7608 = vmatpush1.msra.mxu0 %v7551
      %7609 = vmatprep.subr.mxu0 0.0
      %7610 = vmatpush1.msra.mxu0 %v7552
      %7611 = vmatprep.subr.mxu0 0.0
      %7612 = vmatpush1.msra.mxu0 %v7553
      %7613 = vmatprep.subr.mxu0 0.0
      %7614 = vmatpush1.msra.mxu0 %v7554
      %7615 = vmatprep.subr.mxu0 0.0
      %7616 = vmatpush1.msra.mxu0 %v7555
      %7617 = vmatprep.subr.mxu0 0.0
      %7618 = vmatpush1.msra.mxu0 %v7556
      %7619 = vmatprep.subr.mxu0 0.0
      %7620 = vmatpush1.msra.mxu0 %v7557
      %7621 = vmatprep.subr.mxu0 0.0
      %7622 = vmatpush1.msra.mxu0 %v7558
      %7623 = vmatprep.subr.mxu0 0.0
      %7624 = vmatpush1.msra.mxu0 %v7559
      %7625 = vmatprep.subr.mxu0 0.0
      %7626 = vmatpush1.msra.mxu0 %v7560
      %7627 = vmatprep.subr.mxu0 0.0
      %7628 = vmatpush1.msra.mxu0 %v7561
      %7629 = vmatprep.subr.mxu0 0.0
      %7630 = vmatpush1.msra.mxu0 %v7562
      %7631 = vmatprep.subr.mxu0 0.0
      %7632 = vmatpush1.msra.mxu0 %v7563
      %7633 = vmatprep.subr.mxu0 0.0
      %7634 = vmatpush1.msra.mxu0 %v7564
      %7635 = vmatprep.subr.mxu0 0.0
      %7636 = vmatpush1.msra.mxu0 %v7565
      %7637 = vmatprep.subr.mxu0 0.0
      %7638 = vmatpush1.msra.mxu0 %v7566
      %7639 = vmatprep.subr.mxu0 0.0
      %7640 = vmatpush1.msra.mxu0 %v7567
      %7641 = vmatprep.subr.mxu0 0.0
      %7642 = vmatpush1.msra.mxu0 %v7568
      %7643 = vmatprep.mubr.f32.mxu0 %v7571
      %7644 = vmatmul.mubr.f32.gmra.mrb[0].mxu0 %v7570
      %v7645 = vpop.f32.mrb[0].mxu0
      %v7646 = vadd.f32 %v7577, %v7645
      %v7647 = vpop.f32.mrb[0].mxu0
      %7648 = vdwg.mxu0
      %s7649 = scalar_lea.vmem %s9, 28
      %v7650 = vld [vmem:[%s7649] sm:$0xf]
      %v7651 = vadd.f32 %v7646, %v695
      %s7652 = scalar_lea.vmem %s4, 896
      %v7653 = vld [vmem:[%s7652] sm:$0xff]
      %v7654 = vld [vmem:[%s7652 + $0x8] sm:$0xff]
      %v7655 = vld [vmem:[%s7652 + $0x10] sm:$0xff]
      %v7656 = vld [vmem:[%s7652 + $0x18] sm:$0xff]
      %v7657 = vld [vmem:[%s7652 + $0x20] sm:$0xff]
      %v7658 = vld [vmem:[%s7652 + $0x28] sm:$0xff]
      %v7659 = vld [vmem:[%s7652 + $0x30] sm:$0xff]
      %v7660 = vld [vmem:[%s7652 + $0x38] sm:$0xff]
      %v7661 = vld [vmem:[%s7652 + $0x40] sm:$0xff]
      %v7662 = vld [vmem:[%s7652 + $0x48] sm:$0xff]
      %v7663 = vld [vmem:[%s7652 + $0x50] sm:$0xff]
      %v7664 = vld [vmem:[%s7652 + $0x58] sm:$0xff]
      %v7665 = vld [vmem:[%s7652 + $0x60] sm:$0xff]
      %v7666 = vld [vmem:[%s7652 + $0x68] sm:$0xff]
      %v7667 = vld [vmem:[%s7652 + $0x70] sm:$0xff]
      %v7668 = vld [vmem:[%s7652 + $0x78] sm:$0xff]
      %7669 = vmatprep.subr.mxu0 0.0
      %7670 = vmatpush1.msra.mxu0 %v7653
      %7671 = vmatprep.subr.mxu0 0.0
      %7672 = vmatpush1.msra.mxu0 %v7654
      %7673 = vmatprep.subr.mxu0 0.0
      %7674 = vmatpush1.msra.mxu0 %v7655
      %7675 = vmatprep.subr.mxu0 0.0
      %7676 = vmatpush1.msra.mxu0 %v7656
      %7677 = vmatprep.subr.mxu0 0.0
      %7678 = vmatpush1.msra.mxu0 %v7657
      %7679 = vmatprep.subr.mxu0 0.0
      %7680 = vmatpush1.msra.mxu0 %v7658
      %7681 = vmatprep.subr.mxu0 0.0
      %7682 = vmatpush1.msra.mxu0 %v7659
      %7683 = vmatprep.subr.mxu0 0.0
      %7684 = vmatpush1.msra.mxu0 %v7660
      %7685 = vmatprep.subr.mxu0 0.0
      %7686 = vmatpush1.msra.mxu0 %v7661
      %7687 = vmatprep.subr.mxu0 0.0
      %7688 = vmatpush1.msra.mxu0 %v7662
      %7689 = vmatprep.subr.mxu0 0.0
      %7690 = vmatpush1.msra.mxu0 %v7663
      %7691 = vmatprep.subr.mxu0 0.0
      %7692 = vmatpush1.msra.mxu0 %v7664
      %7693 = vmatprep.subr.mxu0 0.0
      %7694 = vmatpush1.msra.mxu0 %v7665
      %7695 = vmatprep.subr.mxu0 0.0
      %7696 = vmatpush1.msra.mxu0 %v7666
      %7697 = vmatprep.subr.mxu0 0.0
      %7698 = vmatpush1.msra.mxu0 %v7667
      %7699 = vmatprep.subr.mxu0 0.0
      %7700 = vmatpush1.msra.mxu0 %v7668
      %7701 = vmatprep.subr.mxu0 0.0
      %7702 = vmatpush1.msra.mxu0 0.0
      %7703 = vmatprep.subr.mxu0 0.0
      %7704 = vmatpush1.msra.mxu0 0.0
      %7705 = vmatprep.subr.mxu0 0.0
      %7706 = vmatpush1.msra.mxu0 0.0
      %7707 = vmatprep.subr.mxu0 0.0
      %7708 = vmatpush1.msra.mxu0 0.0
      %7709 = vmatprep.subr.mxu0 0.0
      %7710 = vmatpush1.msra.mxu0 0.0
      %7711 = vmatprep.subr.mxu0 0.0
      %7712 = vmatpush1.msra.mxu0 0.0
      %7713 = vmatprep.subr.mxu0 0.0
      %7714 = vmatpush1.msra.mxu0 0.0
      %7715 = vmatprep.subr.mxu0 0.0
      %7716 = vmatpush1.msra.mxu0 0.0
      %7717 = vmatprep.subr.mxu0 0.0
      %7718 = vmatpush1.msra.mxu0 0.0
      %7719 = vmatprep.subr.mxu0 0.0
      %7720 = vmatpush1.msra.mxu0 0.0
      %7721 = vmatprep.subr.mxu0 0.0
      %7722 = vmatpush1.msra.mxu0 0.0
      %7723 = vmatprep.subr.mxu0 0.0
      %7724 = vmatpush1.msra.mxu0 0.0
      %7725 = vmatprep.subr.mxu0 0.0
      %7726 = vmatpush1.msra.mxu0 0.0
      %7727 = vmatprep.subr.mxu0 0.0
      %7728 = vmatpush1.msra.mxu0 0.0
      %7729 = vmatprep.subr.mxu0 0.0
      %7730 = vmatpush1.msra.mxu0 0.0
      %7731 = vmatprep.subr.mxu0 0.0
      %7732 = vmatpush1.msra.mxu0 0.0
      %7733 = vmatprep.mubr.f32.mxu0 0.0
      %7734 = vmatmul.mubr.f32.gmra.mrb[0].mxu0 %v689
      %v7735 = vpop.f32.mrb[0].mxu0
      %v7736 = vadd.f32 %v7650, %v7735
      %v7737 = vpop.f32.mrb[0].mxu0
      %7738 = vdwg.mxu0
      %v7739 = vlaneseq
      %v7740 = vshrl.u32 %v7739, 7
      %v7741 = vsub.s32 0, %v7740
      %v7742 = vrot.slane %v7736, %v7741
      %v7743 = vadd.f32 %v7651, %v7742
      %v7744 = vsel %vm788, %v7743, 0.0
      %7745 = vadd.xlane.f32.xlu0 %v7744
      %v7746 = vpop.xlane.xlu0 %7745
      %v7747 = vmul.f32 %v7746, %v792
      %v7748 = vsub.f32 %v7743, %v7747
      %v7749 = vmul.f32 %v7748, %v7748
      %v7750 = vsel %vm788, %v7749, 0.0
      %7751 = vadd.xlane.f32.xlu0 %v7750
      %v7752 = vpop.xlane.xlu0 %7751
      %v7753 = vmul.f32 %v7752, %v792
      %v7754 = vadd.f32 %v7753, 1e-05
      %v7755 = vrsqrt.pop %v7754
      %v7756 = vmul.f32 %v7748, %v7755
      %v7757 = vlaneseq
      %v7758 = vshrl.u32 %v7757, 7
      %v7759 = vsub.s32 1, %v7758
      %v7760 = vrot.slane %v7650, %v7759
      %v7761 = vmul.f32 %v7756, %v7760
      %v7762 = vlaneseq
      %v7763 = vshrl.u32 %v7762, 7
      %v7764 = vsub.s32 2, %v7763
      %v7765 = vrot.slane %v7650, %v7764
      %v7766 = vadd.f32 %v7761, %v7765
      %s7767 = scalar_lea.vmem %s5, 896
      %v7768 = vld [vmem:[%s7767] sm:$0xff]
      %v7769 = vld [vmem:[%s7767 + $0x8] sm:$0xff]
      %v7770 = vld [vmem:[%s7767 + $0x10] sm:$0xff]
      %v7771 = vld [vmem:[%s7767 + $0x18] sm:$0xff]
      %v7772 = vld [vmem:[%s7767 + $0x20] sm:$0xff]
      %v7773 = vld [vmem:[%s7767 + $0x28] sm:$0xff]
      %v7774 = vld [vmem:[%s7767 + $0x30] sm:$0xff]
      %v7775 = vld [vmem:[%s7767 + $0x38] sm:$0xff]
      %v7776 = vld [vmem:[%s7767 + $0x40] sm:$0xff]
      %v7777 = vld [vmem:[%s7767 + $0x48] sm:$0xff]
      %v7778 = vld [vmem:[%s7767 + $0x50] sm:$0xff]
      %v7779 = vld [vmem:[%s7767 + $0x58] sm:$0xff]
      %v7780 = vld [vmem:[%s7767 + $0x60] sm:$0xff]
      %v7781 = vld [vmem:[%s7767 + $0x68] sm:$0xff]
      %v7782 = vld [vmem:[%s7767 + $0x70] sm:$0xff]
      %v7783 = vld [vmem:[%s7767 + $0x78] sm:$0xff]
      %s7784 = scalar_lea.vmem %s10, 14
      %v7785 = vld [vmem:[%s7784] sm:$0x3]
      %v7787 = vlaneseq
      %v7788 = vshrl.u32 %v7787, 7
      %v7789 = vsub.s32 0, %v7788
      %v7790 = vrot.slane %v7785, %v7789
      %v7791 = vlaneseq
      %v7792 = vshrl.u32 %v7791, 7
      %v7793 = vsub.s32 1, %v7792
      %v7794 = vrot.slane %v7785, %v7793
      %v7798 = vsel %vm841, %v7766, 0
      %7800 = vmatprep.subr.mxu0 %v7769
      %7801 = vmatpush1.msra.mxu0 %v7768
      %7802 = vmatprep.subr.mxu0 %v7771
      %7803 = vmatpush1.msra.mxu0 %v7770
      %7804 = vmatprep.subr.mxu0 %v7773
      %7805 = vmatpush1.msra.mxu0 %v7772
      %7806 = vmatprep.subr.mxu0 %v7775
      %7807 = vmatpush1.msra.mxu0 %v7774
      %7808 = vmatprep.subr.mxu0 %v7777
      %7809 = vmatpush1.msra.mxu0 %v7776
      %7810 = vmatprep.subr.mxu0 %v7779
      %7811 = vmatpush1.msra.mxu0 %v7778
      %7812 = vmatprep.subr.mxu0 %v7781
      %7813 = vmatpush1.msra.mxu0 %v7780
      %7814 = vmatprep.subr.mxu0 %v7783
      %7815 = vmatpush1.msra.mxu0 %v7782
      %7816 = vmatprep.subr.mxu0 0.0
      %7817 = vmatpush1.msra.mxu0 0.0
      %7818 = vmatprep.subr.mxu0 0.0
      %7819 = vmatpush1.msra.mxu0 0.0
      %7820 = vmatprep.subr.mxu0 0.0
      %7821 = vmatpush1.msra.mxu0 0.0
      %7822 = vmatprep.subr.mxu0 0.0
      %7823 = vmatpush1.msra.mxu0 0.0
      %7824 = vmatprep.subr.mxu0 0.0
      %7825 = vmatpush1.msra.mxu0 0.0
      %7826 = vmatprep.subr.mxu0 0.0
      %7827 = vmatpush1.msra.mxu0 0.0
      %7828 = vmatprep.subr.mxu0 0.0
      %7829 = vmatpush1.msra.mxu0 0.0
      %7830 = vmatprep.subr.mxu0 0.0
      %7831 = vmatpush1.msra.mxu0 0.0
      %7832 = vmatprep.subr.mxu0 0.0
      %7833 = vmatpush1.msra.mxu0 0.0
      %7834 = vmatprep.subr.mxu0 0.0
      %7835 = vmatpush1.msra.mxu0 0.0
      %7836 = vmatprep.subr.mxu0 0.0
      %7837 = vmatpush1.msra.mxu0 0.0
      %7838 = vmatprep.subr.mxu0 0.0
      %7839 = vmatpush1.msra.mxu0 0.0
      %7840 = vmatprep.subr.mxu0 0.0
      %7841 = vmatpush1.msra.mxu0 0.0
      %7842 = vmatprep.subr.mxu0 0.0
      %7843 = vmatpush1.msra.mxu0 0.0
      %7844 = vmatprep.subr.mxu0 0.0
      %7845 = vmatpush1.msra.mxu0 0.0
      %7846 = vmatprep.subr.mxu0 0.0
      %7847 = vmatpush1.msra.mxu0 0.0
      %7848 = vmatprep.subr.mxu0 0.0
      %7849 = vmatpush1.msra.mxu0 0.0
      %7850 = vmatprep.subr.mxu0 0.0
      %7851 = vmatpush1.msra.mxu0 0.0
      %7852 = vmatprep.subr.mxu0 0.0
      %7853 = vmatpush1.msra.mxu0 0.0
      %7854 = vmatprep.subr.mxu0 0.0
      %7855 = vmatpush1.msra.mxu0 0.0
      %7856 = vmatprep.subr.mxu0 0.0
      %7857 = vmatpush1.msra.mxu0 0.0
      %7858 = vmatprep.subr.mxu0 0.0
      %7859 = vmatpush1.msra.mxu0 0.0
      %7860 = vmatprep.subr.mxu0 0.0
      %7861 = vmatpush1.msra.mxu0 0.0
      %7862 = vmatprep.subr.mxu0 0.0
      %7863 = vmatpush1.msra.mxu0 0.0
      %7864 = vmatprep.mubr.f32.mxu0 0.0
      %7865 = vmatmul.mubr.f32.gmra.mrb[0].mxu0 %v7798
      %v7866 = vpop.f32.mrb[0].mxu0
      %v7867 = vadd.f32 %v7790, %v7866
      %v7868 = vpop.f32.mrb[0].mxu0
      %v7869 = vadd.f32 %v7794, %v7868
      %7870 = vdwg.mxu0
      %v7871 = vmax.f32 %v7867, 0.0
      %v7872 = vmax.f32 %v7869, 0.0
      %s7873 = scalar_lea.vmem %s6, 1792
      %v7874 = vld [vmem:[%s7873] sm:$0xff]
      %v7875 = vld [vmem:[%s7873 + $0x8] sm:$0xff]
      %v7876 = vld [vmem:[%s7873 + $0x10] sm:$0xff]
      %v7877 = vld [vmem:[%s7873 + $0x18] sm:$0xff]
      %v7878 = vld [vmem:[%s7873 + $0x20] sm:$0xff]
      %v7879 = vld [vmem:[%s7873 + $0x28] sm:$0xff]
      %v7880 = vld [vmem:[%s7873 + $0x30] sm:$0xff]
      %v7881 = vld [vmem:[%s7873 + $0x38] sm:$0xff]
      %v7882 = vld [vmem:[%s7873 + $0x40] sm:$0xff]
      %v7883 = vld [vmem:[%s7873 + $0x48] sm:$0xff]
      %v7884 = vld [vmem:[%s7873 + $0x50] sm:$0xff]
      %v7885 = vld [vmem:[%s7873 + $0x58] sm:$0xff]
      %v7886 = vld [vmem:[%s7873 + $0x60] sm:$0xff]
      %v7887 = vld [vmem:[%s7873 + $0x68] sm:$0xff]
      %v7888 = vld [vmem:[%s7873 + $0x70] sm:$0xff]
      %v7889 = vld [vmem:[%s7873 + $0x78] sm:$0xff]
      %v7890 = vld [vmem:[%s7873 + $0x80] sm:$0xff]
      %v7891 = vld [vmem:[%s7873 + $0x88] sm:$0xff]
      %v7892 = vld [vmem:[%s7873 + $0x90] sm:$0xff]
      %v7893 = vld [vmem:[%s7873 + $0x98] sm:$0xff]
      %v7894 = vld [vmem:[%s7873 + $0xa0] sm:$0xff]
      %v7895 = vld [vmem:[%s7873 + $0xa8] sm:$0xff]
      %v7896 = vld [vmem:[%s7873 + $0xb0] sm:$0xff]
      %v7897 = vld [vmem:[%s7873 + $0xb8] sm:$0xff]
      %v7898 = vld [vmem:[%s7873 + $0xc0] sm:$0xff]
      %v7899 = vld [vmem:[%s7873 + $0xc8] sm:$0xff]
      %v7900 = vld [vmem:[%s7873 + $0xd0] sm:$0xff]
      %v7901 = vld [vmem:[%s7873 + $0xd8] sm:$0xff]
      %v7902 = vld [vmem:[%s7873 + $0xe0] sm:$0xff]
      %v7903 = vld [vmem:[%s7873 + $0xe8] sm:$0xff]
      %v7904 = vld [vmem:[%s7873 + $0xf0] sm:$0xff]
      %v7905 = vld [vmem:[%s7873 + $0xf8] sm:$0xff]
      %v7906 = vlaneseq
      %v7907 = vshrl.u32 %v7906, 7
      %v7908 = vsub.s32 3, %v7907
      %v7909 = vrot.slane %v7650, %v7908
      %7910 = vmatprep.subr.mxu0 0.0
      %7911 = vmatpush1.msra.mxu0 %v7874
      %7912 = vmatprep.subr.mxu0 0.0
      %7913 = vmatpush1.msra.mxu0 %v7875
      %7914 = vmatprep.subr.mxu0 0.0
      %7915 = vmatpush1.msra.mxu0 %v7876
      %7916 = vmatprep.subr.mxu0 0.0
      %7917 = vmatpush1.msra.mxu0 %v7877
      %7918 = vmatprep.subr.mxu0 0.0
      %7919 = vmatpush1.msra.mxu0 %v7878
      %7920 = vmatprep.subr.mxu0 0.0
      %7921 = vmatpush1.msra.mxu0 %v7879
      %7922 = vmatprep.subr.mxu0 0.0
      %7923 = vmatpush1.msra.mxu0 %v7880
      %7924 = vmatprep.subr.mxu0 0.0
      %7925 = vmatpush1.msra.mxu0 %v7881
      %7926 = vmatprep.subr.mxu0 0.0
      %7927 = vmatpush1.msra.mxu0 %v7882
      %7928 = vmatprep.subr.mxu0 0.0
      %7929 = vmatpush1.msra.mxu0 %v7883
      %7930 = vmatprep.subr.mxu0 0.0
      %7931 = vmatpush1.msra.mxu0 %v7884
      %7932 = vmatprep.subr.mxu0 0.0
      %7933 = vmatpush1.msra.mxu0 %v7885
      %7934 = vmatprep.subr.mxu0 0.0
      %7935 = vmatpush1.msra.mxu0 %v7886
      %7936 = vmatprep.subr.mxu0 0.0
      %7937 = vmatpush1.msra.mxu0 %v7887
      %7938 = vmatprep.subr.mxu0 0.0
      %7939 = vmatpush1.msra.mxu0 %v7888
      %7940 = vmatprep.subr.mxu0 0.0
      %7941 = vmatpush1.msra.mxu0 %v7889
      %7942 = vmatprep.subr.mxu0 0.0
      %7943 = vmatpush1.msra.mxu0 %v7890
      %7944 = vmatprep.subr.mxu0 0.0
      %7945 = vmatpush1.msra.mxu0 %v7891
      %7946 = vmatprep.subr.mxu0 0.0
      %7947 = vmatpush1.msra.mxu0 %v7892
      %7948 = vmatprep.subr.mxu0 0.0
      %7949 = vmatpush1.msra.mxu0 %v7893
      %7950 = vmatprep.subr.mxu0 0.0
      %7951 = vmatpush1.msra.mxu0 %v7894
      %7952 = vmatprep.subr.mxu0 0.0
      %7953 = vmatpush1.msra.mxu0 %v7895
      %7954 = vmatprep.subr.mxu0 0.0
      %7955 = vmatpush1.msra.mxu0 %v7896
      %7956 = vmatprep.subr.mxu0 0.0
      %7957 = vmatpush1.msra.mxu0 %v7897
      %7958 = vmatprep.subr.mxu0 0.0
      %7959 = vmatpush1.msra.mxu0 %v7898
      %7960 = vmatprep.subr.mxu0 0.0
      %7961 = vmatpush1.msra.mxu0 %v7899
      %7962 = vmatprep.subr.mxu0 0.0
      %7963 = vmatpush1.msra.mxu0 %v7900
      %7964 = vmatprep.subr.mxu0 0.0
      %7965 = vmatpush1.msra.mxu0 %v7901
      %7966 = vmatprep.subr.mxu0 0.0
      %7967 = vmatpush1.msra.mxu0 %v7902
      %7968 = vmatprep.subr.mxu0 0.0
      %7969 = vmatpush1.msra.mxu0 %v7903
      %7970 = vmatprep.subr.mxu0 0.0
      %7971 = vmatpush1.msra.mxu0 %v7904
      %7972 = vmatprep.subr.mxu0 0.0
      %7973 = vmatpush1.msra.mxu0 %v7905
      %7974 = vmatprep.mubr.f32.mxu0 %v7872
      %7975 = vmatmul.mubr.f32.gmra.mrb[0].mxu0 %v7871
      %v7976 = vpop.f32.mrb[0].mxu0
      %v7977 = vadd.f32 %v7909, %v7976
      %v7978 = vpop.f32.mrb[0].mxu0
      %7979 = vdwg.mxu0
      %v7980 = vadd.f32 %v7766, %v7977
      %s7981 = scalar_lea.vmem %s7, 1792
      %v7982 = vld [vmem:[%s7981] sm:$0xff]
      %v7983 = vld [vmem:[%s7981 + $0x8] sm:$0xff]
      %v7984 = vld [vmem:[%s7981 + $0x10] sm:$0xff]
      %v7985 = vld [vmem:[%s7981 + $0x18] sm:$0xff]
      %v7986 = vld [vmem:[%s7981 + $0x20] sm:$0xff]
      %v7987 = vld [vmem:[%s7981 + $0x28] sm:$0xff]
      %v7988 = vld [vmem:[%s7981 + $0x30] sm:$0xff]
      %v7989 = vld [vmem:[%s7981 + $0x38] sm:$0xff]
      %v7990 = vld [vmem:[%s7981 + $0x40] sm:$0xff]
      %v7991 = vld [vmem:[%s7981 + $0x48] sm:$0xff]
      %v7992 = vld [vmem:[%s7981 + $0x50] sm:$0xff]
      %v7993 = vld [vmem:[%s7981 + $0x58] sm:$0xff]
      %v7994 = vld [vmem:[%s7981 + $0x60] sm:$0xff]
      %v7995 = vld [vmem:[%s7981 + $0x68] sm:$0xff]
      %v7996 = vld [vmem:[%s7981 + $0x70] sm:$0xff]
      %v7997 = vld [vmem:[%s7981 + $0x78] sm:$0xff]
      %v7998 = vld [vmem:[%s7981 + $0x80] sm:$0xff]
      %v7999 = vld [vmem:[%s7981 + $0x88] sm:$0xff]
      %v8000 = vld [vmem:[%s7981 + $0x90] sm:$0xff]
      %v8001 = vld [vmem:[%s7981 + $0x98] sm:$0xff]
      %v8002 = vld [vmem:[%s7981 + $0xa0] sm:$0xff]
      %v8003 = vld [vmem:[%s7981 + $0xa8] sm:$0xff]
      %v8004 = vld [vmem:[%s7981 + $0xb0] sm:$0xff]
      %v8005 = vld [vmem:[%s7981 + $0xb8] sm:$0xff]
      %v8006 = vld [vmem:[%s7981 + $0xc0] sm:$0xff]
      %v8007 = vld [vmem:[%s7981 + $0xc8] sm:$0xff]
      %v8008 = vld [vmem:[%s7981 + $0xd0] sm:$0xff]
      %v8009 = vld [vmem:[%s7981 + $0xd8] sm:$0xff]
      %v8010 = vld [vmem:[%s7981 + $0xe0] sm:$0xff]
      %v8011 = vld [vmem:[%s7981 + $0xe8] sm:$0xff]
      %v8012 = vld [vmem:[%s7981 + $0xf0] sm:$0xff]
      %v8013 = vld [vmem:[%s7981 + $0xf8] sm:$0xff]
      %s8014 = scalar_lea.vmem %s11, 1792
      %v8015 = vld [vmem:[%s8014] sm:$0xff]
      %v8016 = vld [vmem:[%s8014 + $0x8] sm:$0xff]
      %v8017 = vld [vmem:[%s8014 + $0x10] sm:$0xff]
      %v8018 = vld [vmem:[%s8014 + $0x18] sm:$0xff]
      %v8019 = vld [vmem:[%s8014 + $0x20] sm:$0xff]
      %v8020 = vld [vmem:[%s8014 + $0x28] sm:$0xff]
      %v8021 = vld [vmem:[%s8014 + $0x30] sm:$0xff]
      %v8022 = vld [vmem:[%s8014 + $0x38] sm:$0xff]
      %v8023 = vld [vmem:[%s8014 + $0x40] sm:$0xff]
      %v8024 = vld [vmem:[%s8014 + $0x48] sm:$0xff]
      %v8025 = vld [vmem:[%s8014 + $0x50] sm:$0xff]
      %v8026 = vld [vmem:[%s8014 + $0x58] sm:$0xff]
      %v8027 = vld [vmem:[%s8014 + $0x60] sm:$0xff]
      %v8028 = vld [vmem:[%s8014 + $0x68] sm:$0xff]
      %v8029 = vld [vmem:[%s8014 + $0x70] sm:$0xff]
      %v8030 = vld [vmem:[%s8014 + $0x78] sm:$0xff]
      %v8031 = vld [vmem:[%s8014 + $0x80] sm:$0xff]
      %v8032 = vld [vmem:[%s8014 + $0x88] sm:$0xff]
      %v8033 = vld [vmem:[%s8014 + $0x90] sm:$0xff]
      %v8034 = vld [vmem:[%s8014 + $0x98] sm:$0xff]
      %v8035 = vld [vmem:[%s8014 + $0xa0] sm:$0xff]
      %v8036 = vld [vmem:[%s8014 + $0xa8] sm:$0xff]
      %v8037 = vld [vmem:[%s8014 + $0xb0] sm:$0xff]
      %v8038 = vld [vmem:[%s8014 + $0xb8] sm:$0xff]
      %v8039 = vld [vmem:[%s8014 + $0xc0] sm:$0xff]
      %v8040 = vld [vmem:[%s8014 + $0xc8] sm:$0xff]
      %v8041 = vld [vmem:[%s8014 + $0xd0] sm:$0xff]
      %v8042 = vld [vmem:[%s8014 + $0xd8] sm:$0xff]
      %v8043 = vld [vmem:[%s8014 + $0xe0] sm:$0xff]
      %v8044 = vld [vmem:[%s8014 + $0xe8] sm:$0xff]
      %v8045 = vld [vmem:[%s8014 + $0xf0] sm:$0xff]
      %v8046 = vld [vmem:[%s8014 + $0xf8] sm:$0xff]
      %8048 = vset.pattern.permute.xlu0 0
      %8049 = vperm.xlu0 %8048, %v8015
      %v8050 = vpop.permute.xlu0 %8049
      %8053 = vset.pattern.permute.xlu0 0
      %8054 = vperm.xlu0 %8053, %v8016
      %v8055 = vpop.permute.xlu0 %8054
      %8058 = vset.pattern.permute.xlu0 0
      %8059 = vperm.xlu0 %8058, %v8017
      %v8060 = vpop.permute.xlu0 %8059
      %8063 = vset.pattern.permute.xlu0 0
      %8064 = vperm.xlu0 %8063, %v8018
      %v8065 = vpop.permute.xlu0 %8064
      %8068 = vset.pattern.permute.xlu0 0
      %8069 = vperm.xlu0 %8068, %v8019
      %v8070 = vpop.permute.xlu0 %8069
      %8073 = vset.pattern.permute.xlu0 0
      %8074 = vperm.xlu0 %8073, %v8020
      %v8075 = vpop.permute.xlu0 %8074
      %8078 = vset.pattern.permute.xlu0 0
      %8079 = vperm.xlu0 %8078, %v8021
      %v8080 = vpop.permute.xlu0 %8079
      %8083 = vset.pattern.permute.xlu0 0
      %8084 = vperm.xlu0 %8083, %v8022
      %v8085 = vpop.permute.xlu0 %8084
      %8088 = vset.pattern.permute.xlu0 0
      %8089 = vperm.xlu0 %8088, %v8023
      %v8090 = vpop.permute.xlu0 %8089
      %8093 = vset.pattern.permute.xlu0 0
      %8094 = vperm.xlu0 %8093, %v8024
      %v8095 = vpop.permute.xlu0 %8094
      %8098 = vset.pattern.permute.xlu0 0
      %8099 = vperm.xlu0 %8098, %v8025
      %v8100 = vpop.permute.xlu0 %8099
      %8103 = vset.pattern.permute.xlu0 0
      %8104 = vperm.xlu0 %8103, %v8026
      %v8105 = vpop.permute.xlu0 %8104
      %8108 = vset.pattern.permute.xlu0 0
      %8109 = vperm.xlu0 %8108, %v8027
      %v8110 = vpop.permute.xlu0 %8109
      %8113 = vset.pattern.permute.xlu0 0
      %8114 = vperm.xlu0 %8113, %v8028
      %v8115 = vpop.permute.xlu0 %8114
      %8118 = vset.pattern.permute.xlu0 0
      %8119 = vperm.xlu0 %8118, %v8029
      %v8120 = vpop.permute.xlu0 %8119
      %8123 = vset.pattern.permute.xlu0 0
      %8124 = vperm.xlu0 %8123, %v8030
      %v8125 = vpop.permute.xlu0 %8124
      %8128 = vset.pattern.permute.xlu0 0
      %8129 = vperm.xlu0 %8128, %v8031
      %v8130 = vpop.permute.xlu0 %8129
      %8133 = vset.pattern.permute.xlu0 0
      %8134 = vperm.xlu0 %8133, %v8032
      %v8135 = vpop.permute.xlu0 %8134
      %8138 = vset.pattern.permute.xlu0 0
      %8139 = vperm.xlu0 %8138, %v8033
      %v8140 = vpop.permute.xlu0 %8139
      %8143 = vset.pattern.permute.xlu0 0
      %8144 = vperm.xlu0 %8143, %v8034
      %v8145 = vpop.permute.xlu0 %8144
      %8148 = vset.pattern.permute.xlu0 0
      %8149 = vperm.xlu0 %8148, %v8035
      %v8150 = vpop.permute.xlu0 %8149
      %8153 = vset.pattern.permute.xlu0 0
      %8154 = vperm.xlu0 %8153, %v8036
      %v8155 = vpop.permute.xlu0 %8154
      %8158 = vset.pattern.permute.xlu0 0
      %8159 = vperm.xlu0 %8158, %v8037
      %v8160 = vpop.permute.xlu0 %8159
      %8163 = vset.pattern.permute.xlu0 0
      %8164 = vperm.xlu0 %8163, %v8038
      %v8165 = vpop.permute.xlu0 %8164
      %8168 = vset.pattern.permute.xlu0 0
      %8169 = vperm.xlu0 %8168, %v8039
      %v8170 = vpop.permute.xlu0 %8169
      %8173 = vset.pattern.permute.xlu0 0
      %8174 = vperm.xlu0 %8173, %v8040
      %v8175 = vpop.permute.xlu0 %8174
      %8178 = vset.pattern.permute.xlu0 0
      %8179 = vperm.xlu0 %8178, %v8041
      %v8180 = vpop.permute.xlu0 %8179
      %8183 = vset.pattern.permute.xlu0 0
      %8184 = vperm.xlu0 %8183, %v8042
      %v8185 = vpop.permute.xlu0 %8184
      %8188 = vset.pattern.permute.xlu0 0
      %8189 = vperm.xlu0 %8188, %v8043
      %v8190 = vpop.permute.xlu0 %8189
      %8193 = vset.pattern.permute.xlu0 0
      %8194 = vperm.xlu0 %8193, %v8044
      %v8195 = vpop.permute.xlu0 %8194
      %8198 = vset.pattern.permute.xlu0 0
      %8199 = vperm.xlu0 %8198, %v8045
      %v8200 = vpop.permute.xlu0 %8199
      %8203 = vset.pattern.permute.xlu0 0
      %8204 = vperm.xlu0 %8203, %v8046
      %v8205 = vpop.permute.xlu0 %8204
      %v8208 = vsel %vm1249, %v7982, 0
      %v8211 = vsel %vm1249, %v7983, 0
      %v8214 = vsel %vm1249, %v7984, 0
      %v8217 = vsel %vm1249, %v7985, 0
      %v8220 = vsel %vm1249, %v7986, 0
      %v8223 = vsel %vm1249, %v7987, 0
      %v8226 = vsel %vm1249, %v7988, 0
      %v8229 = vsel %vm1249, %v7989, 0
      %v8232 = vsel %vm1249, %v7990, 0
      %v8235 = vsel %vm1249, %v7991, 0
      %v8238 = vsel %vm1249, %v7992, 0
      %v8241 = vsel %vm1249, %v7993, 0
      %v8244 = vsel %vm1249, %v7994, 0
      %v8247 = vsel %vm1249, %v7995, 0
      %v8250 = vsel %vm1249, %v7996, 0
      %v8253 = vsel %vm1249, %v7997, 0
      %v8256 = vsel %vm1249, %v7998, 0
      %v8259 = vsel %vm1249, %v7999, 0
      %v8262 = vsel %vm1249, %v8000, 0
      %v8265 = vsel %vm1249, %v8001, 0
      %v8268 = vsel %vm1249, %v8002, 0
      %v8271 = vsel %vm1249, %v8003, 0
      %v8274 = vsel %vm1249, %v8004, 0
      %v8277 = vsel %vm1249, %v8005, 0
      %v8280 = vsel %vm1249, %v8006, 0
      %v8283 = vsel %vm1249, %v8007, 0
      %v8286 = vsel %vm1249, %v8008, 0
      %v8289 = vsel %vm1249, %v8009, 0
      %v8292 = vsel %vm1249, %v8010, 0
      %v8295 = vsel %vm1249, %v8011, 0
      %v8298 = vsel %vm1249, %v8012, 0
      %v8301 = vsel %vm1249, %v8013, 0
      %v8304 = vsel %vm1346, %v7980, 0
      %8306 = vmatprep.subr.mxu0 0.0
      %8307 = vmatpush1.msra.mxu0 %v8304
      %8308 = vmatprep.subr.mxu0 0.0
      %8309 = vmatpush1.msra.mxu0 0.0
      %8310 = vmatprep.subr.mxu0 0.0
      %8311 = vmatpush1.msra.mxu0 0.0
      %8312 = vmatprep.subr.mxu0 0.0
      %8313 = vmatpush1.msra.mxu0 0.0
      %8314 = vmatprep.subr.mxu0 0.0
      %8315 = vmatpush1.msra.mxu0 0.0
      %8316 = vmatprep.subr.mxu0 0.0
      %8317 = vmatpush1.msra.mxu0 0.0
      %8318 = vmatprep.subr.mxu0 0.0
      %8319 = vmatpush1.msra.mxu0 0.0
      %8320 = vmatprep.subr.mxu0 0.0
      %8321 = vmatpush1.msra.mxu0 0.0
      %8322 = vmatprep.subr.mxu0 0.0
      %8323 = vmatpush1.msra.mxu0 0.0
      %8324 = vmatprep.subr.mxu0 0.0
      %8325 = vmatpush1.msra.mxu0 0.0
      %8326 = vmatprep.subr.mxu0 0.0
      %8327 = vmatpush1.msra.mxu0 0.0
      %8328 = vmatprep.subr.mxu0 0.0
      %8329 = vmatpush1.msra.mxu0 0.0
      %8330 = vmatprep.subr.mxu0 0.0
      %8331 = vmatpush1.msra.mxu0 0.0
      %8332 = vmatprep.subr.mxu0 0.0
      %8333 = vmatpush1.msra.mxu0 0.0
      %8334 = vmatprep.subr.mxu0 0.0
      %8335 = vmatpush1.msra.mxu0 0.0
      %8336 = vmatprep.subr.mxu0 0.0
      %8337 = vmatpush1.msra.mxu0 0.0
      %8338 = vmatprep.subr.mxu0 0.0
      %8339 = vmatpush1.msra.mxu0 0.0
      %8340 = vmatprep.subr.mxu0 0.0
      %8341 = vmatpush1.msra.mxu0 0.0
      %8342 = vmatprep.subr.mxu0 0.0
      %8343 = vmatpush1.msra.mxu0 0.0
      %8344 = vmatprep.subr.mxu0 0.0
      %8345 = vmatpush1.msra.mxu0 0.0
      %8346 = vmatprep.subr.mxu0 0.0
      %8347 = vmatpush1.msra.mxu0 0.0
      %8348 = vmatprep.subr.mxu0 0.0
      %8349 = vmatpush1.msra.mxu0 0.0
      %8350 = vmatprep.subr.mxu0 0.0
      %8351 = vmatpush1.msra.mxu0 0.0
      %8352 = vmatprep.subr.mxu0 0.0
      %8353 = vmatpush1.msra.mxu0 0.0
      %8354 = vmatprep.subr.mxu0 0.0
      %8355 = vmatpush1.msra.mxu0 0.0
      %8356 = vmatprep.subr.mxu0 0.0
      %8357 = vmatpush1.msra.mxu0 0.0
      %8358 = vmatprep.subr.mxu0 0.0
      %8359 = vmatpush1.msra.mxu0 0.0
      %8360 = vmatprep.subr.mxu0 0.0
      %8361 = vmatpush1.msra.mxu0 0.0
      %8362 = vmatprep.subr.mxu0 0.0
      %8363 = vmatpush1.msra.mxu0 0.0
      %8364 = vmatprep.subr.mxu0 0.0
      %8365 = vmatpush1.msra.mxu0 0.0
      %8366 = vmatprep.subr.mxu0 0.0
      %8367 = vmatpush1.msra.mxu0 0.0
      %8368 = vmatprep.subr.mxu0 0.0
      %8369 = vmatpush1.msra.mxu0 0.0
      %8370 = vmatprep.mubr.f32.mxu0 0.0
      %8371 = vmatmul.mubr.f32.gmra.mrb[0].mxu0 %v8208
      %v8372 = vpop.f32.mrb[0].mxu0
      %v8373 = vadd.f32 %v8050, %v8372
      %v8374 = vpop.f32.mrb[0].mxu0
      %8375 = vmatprep.mubr.f32.mxu0 0.0
      %8376 = vmatmul.mubr.f32.gmra.mrb[0].mxu0 %v8211
      %v8377 = vpop.f32.mrb[0].mxu0
      %v8378 = vadd.f32 %v8055, %v8377
      %v8379 = vpop.f32.mrb[0].mxu0
      %8380 = vmatprep.mubr.f32.mxu0 0.0
      %8381 = vmatmul.mubr.f32.gmra.mrb[0].mxu0 %v8214
      %v8382 = vpop.f32.mrb[0].mxu0
      %v8383 = vadd.f32 %v8060, %v8382
      %v8384 = vpop.f32.mrb[0].mxu0
      %8385 = vmatprep.mubr.f32.mxu0 0.0
      %8386 = vmatmul.mubr.f32.gmra.mrb[0].mxu0 %v8217
      %v8387 = vpop.f32.mrb[0].mxu0
      %v8388 = vadd.f32 %v8065, %v8387
      %v8389 = vpop.f32.mrb[0].mxu0
      %8390 = vmatprep.mubr.f32.mxu0 0.0
      %8391 = vmatmul.mubr.f32.gmra.mrb[0].mxu0 %v8220
      %v8392 = vpop.f32.mrb[0].mxu0
      %v8393 = vadd.f32 %v8070, %v8392
      %v8394 = vpop.f32.mrb[0].mxu0
      %8395 = vmatprep.mubr.f32.mxu0 0.0
      %8396 = vmatmul.mubr.f32.gmra.mrb[0].mxu0 %v8223
      %v8397 = vpop.f32.mrb[0].mxu0
      %v8398 = vadd.f32 %v8075, %v8397
      %v8399 = vpop.f32.mrb[0].mxu0
      %8400 = vmatprep.mubr.f32.mxu0 0.0
      %8401 = vmatmul.mubr.f32.gmra.mrb[0].mxu0 %v8226
      %v8402 = vpop.f32.mrb[0].mxu0
      %v8403 = vadd.f32 %v8080, %v8402
      %v8404 = vpop.f32.mrb[0].mxu0
      %8405 = vmatprep.mubr.f32.mxu0 0.0
      %8406 = vmatmul.mubr.f32.gmra.mrb[0].mxu0 %v8229
      %v8407 = vpop.f32.mrb[0].mxu0
      %v8408 = vadd.f32 %v8085, %v8407
      %v8409 = vpop.f32.mrb[0].mxu0
      %8410 = vmatprep.mubr.f32.mxu0 0.0
      %8411 = vmatmul.mubr.f32.gmra.mrb[0].mxu0 %v8232
      %v8412 = vpop.f32.mrb[0].mxu0
      %v8413 = vadd.f32 %v8090, %v8412
      %v8414 = vpop.f32.mrb[0].mxu0
      %8415 = vmatprep.mubr.f32.mxu0 0.0
      %8416 = vmatmul.mubr.f32.gmra.mrb[0].mxu0 %v8235
      %v8417 = vpop.f32.mrb[0].mxu0
      %v8418 = vadd.f32 %v8095, %v8417
      %v8419 = vpop.f32.mrb[0].mxu0
      %8420 = vmatprep.mubr.f32.mxu0 0.0
      %8421 = vmatmul.mubr.f32.gmra.mrb[0].mxu0 %v8238
      %v8422 = vpop.f32.mrb[0].mxu0
      %v8423 = vadd.f32 %v8100, %v8422
      %v8424 = vpop.f32.mrb[0].mxu0
      %8425 = vmatprep.mubr.f32.mxu0 0.0
      %8426 = vmatmul.mubr.f32.gmra.mrb[0].mxu0 %v8241
      %v8427 = vpop.f32.mrb[0].mxu0
      %v8428 = vadd.f32 %v8105, %v8427
      %v8429 = vpop.f32.mrb[0].mxu0
      %8430 = vmatprep.mubr.f32.mxu0 0.0
      %8431 = vmatmul.mubr.f32.gmra.mrb[0].mxu0 %v8244
      %v8432 = vpop.f32.mrb[0].mxu0
      %v8433 = vadd.f32 %v8110, %v8432
      %v8434 = vpop.f32.mrb[0].mxu0
      %8435 = vmatprep.mubr.f32.mxu0 0.0
      %8436 = vmatmul.mubr.f32.gmra.mrb[0].mxu0 %v8247
      %v8437 = vpop.f32.mrb[0].mxu0
      %v8438 = vadd.f32 %v8115, %v8437
      %v8439 = vpop.f32.mrb[0].mxu0
      %8440 = vmatprep.mubr.f32.mxu0 0.0
      %8441 = vmatmul.mubr.f32.gmra.mrb[0].mxu0 %v8250
      %v8442 = vpop.f32.mrb[0].mxu0
      %v8443 = vadd.f32 %v8120, %v8442
      %v8444 = vpop.f32.mrb[0].mxu0
      %8445 = vmatprep.mubr.f32.mxu0 0.0
      %8446 = vmatmul.mubr.f32.gmra.mrb[0].mxu0 %v8253
      %v8447 = vpop.f32.mrb[0].mxu0
      %v8448 = vadd.f32 %v8125, %v8447
      %v8449 = vpop.f32.mrb[0].mxu0
      %8450 = vmatprep.mubr.f32.mxu0 0.0
      %8451 = vmatmul.mubr.f32.gmra.mrb[0].mxu0 %v8256
      %v8452 = vpop.f32.mrb[0].mxu0
      %v8453 = vadd.f32 %v8130, %v8452
      %v8454 = vpop.f32.mrb[0].mxu0
      %8455 = vmatprep.mubr.f32.mxu0 0.0
      %8456 = vmatmul.mubr.f32.gmra.mrb[0].mxu0 %v8259
      %v8457 = vpop.f32.mrb[0].mxu0
      %v8458 = vadd.f32 %v8135, %v8457
      %v8459 = vpop.f32.mrb[0].mxu0
      %8460 = vmatprep.mubr.f32.mxu0 0.0
      %8461 = vmatmul.mubr.f32.gmra.mrb[0].mxu0 %v8262
      %v8462 = vpop.f32.mrb[0].mxu0
      %v8463 = vadd.f32 %v8140, %v8462
      %v8464 = vpop.f32.mrb[0].mxu0
      %8465 = vmatprep.mubr.f32.mxu0 0.0
      %8466 = vmatmul.mubr.f32.gmra.mrb[0].mxu0 %v8265
      %v8467 = vpop.f32.mrb[0].mxu0
      %v8468 = vadd.f32 %v8145, %v8467
      %v8469 = vpop.f32.mrb[0].mxu0
      %8470 = vmatprep.mubr.f32.mxu0 0.0
      %8471 = vmatmul.mubr.f32.gmra.mrb[0].mxu0 %v8268
      %v8472 = vpop.f32.mrb[0].mxu0
      %v8473 = vadd.f32 %v8150, %v8472
      %v8474 = vpop.f32.mrb[0].mxu0
      %8475 = vmatprep.mubr.f32.mxu0 0.0
      %8476 = vmatmul.mubr.f32.gmra.mrb[0].mxu0 %v8271
      %v8477 = vpop.f32.mrb[0].mxu0
      %v8478 = vadd.f32 %v8155, %v8477
      %v8479 = vpop.f32.mrb[0].mxu0
      %8480 = vmatprep.mubr.f32.mxu0 0.0
      %8481 = vmatmul.mubr.f32.gmra.mrb[0].mxu0 %v8274
      %v8482 = vpop.f32.mrb[0].mxu0
      %v8483 = vadd.f32 %v8160, %v8482
      %v8484 = vpop.f32.mrb[0].mxu0
      %8485 = vmatprep.mubr.f32.mxu0 0.0
      %8486 = vmatmul.mubr.f32.gmra.mrb[0].mxu0 %v8277
      %v8487 = vpop.f32.mrb[0].mxu0
      %v8488 = vadd.f32 %v8165, %v8487
      %v8489 = vpop.f32.mrb[0].mxu0
      %8490 = vmatprep.mubr.f32.mxu0 0.0
      %8491 = vmatmul.mubr.f32.gmra.mrb[0].mxu0 %v8280
      %v8492 = vpop.f32.mrb[0].mxu0
      %v8493 = vadd.f32 %v8170, %v8492
      %v8494 = vpop.f32.mrb[0].mxu0
      %8495 = vmatprep.mubr.f32.mxu0 0.0
      %8496 = vmatmul.mubr.f32.gmra.mrb[0].mxu0 %v8283
      %v8497 = vpop.f32.mrb[0].mxu0
      %v8498 = vadd.f32 %v8175, %v8497
      %v8499 = vpop.f32.mrb[0].mxu0
      %8500 = vmatprep.mubr.f32.mxu0 0.0
      %8501 = vmatmul.mubr.f32.gmra.mrb[0].mxu0 %v8286
      %v8502 = vpop.f32.mrb[0].mxu0
      %v8503 = vadd.f32 %v8180, %v8502
      %v8504 = vpop.f32.mrb[0].mxu0
      %8505 = vmatprep.mubr.f32.mxu0 0.0
      %8506 = vmatmul.mubr.f32.gmra.mrb[0].mxu0 %v8289
      %v8507 = vpop.f32.mrb[0].mxu0
      %v8508 = vadd.f32 %v8185, %v8507
      %v8509 = vpop.f32.mrb[0].mxu0
      %8510 = vmatprep.mubr.f32.mxu0 0.0
      %8511 = vmatmul.mubr.f32.gmra.mrb[0].mxu0 %v8292
      %v8512 = vpop.f32.mrb[0].mxu0
      %v8513 = vadd.f32 %v8190, %v8512
      %v8514 = vpop.f32.mrb[0].mxu0
      %8515 = vmatprep.mubr.f32.mxu0 0.0
      %8516 = vmatmul.mubr.f32.gmra.mrb[0].mxu0 %v8295
      %v8517 = vpop.f32.mrb[0].mxu0
      %v8518 = vadd.f32 %v8195, %v8517
      %v8519 = vpop.f32.mrb[0].mxu0
      %8520 = vmatprep.mubr.f32.mxu0 0.0
      %8521 = vmatmul.mubr.f32.gmra.mrb[0].mxu0 %v8298
      %v8522 = vpop.f32.mrb[0].mxu0
      %v8523 = vadd.f32 %v8200, %v8522
      %v8524 = vpop.f32.mrb[0].mxu0
      %8525 = vmatprep.mubr.f32.mxu0 0.0
      %8526 = vmatmul.mubr.f32.gmra.mrb[0].mxu0 %v8301
      %v8527 = vpop.f32.mrb[0].mxu0
      %v8528 = vadd.f32 %v8205, %v8527
      %v8529 = vpop.f32.mrb[0].mxu0
      %8530 = vdwg.mxu0
      %v8531 = vmax.f32 %v8373, 0.0
      %v8532 = vmax.f32 %v8378, 0.0
      %v8533 = vmax.f32 %v8383, 0.0
      %v8534 = vmax.f32 %v8388, 0.0
      %v8535 = vmax.f32 %v8393, 0.0
      %v8536 = vmax.f32 %v8398, 0.0
      %v8537 = vmax.f32 %v8403, 0.0
      %v8538 = vmax.f32 %v8408, 0.0
      %v8539 = vmax.f32 %v8413, 0.0
      %v8540 = vmax.f32 %v8418, 0.0
      %v8541 = vmax.f32 %v8423, 0.0
      %v8542 = vmax.f32 %v8428, 0.0
      %v8543 = vmax.f32 %v8433, 0.0
      %v8544 = vmax.f32 %v8438, 0.0
      %v8545 = vmax.f32 %v8443, 0.0
      %v8546 = vmax.f32 %v8448, 0.0
      %v8547 = vmax.f32 %v8453, 0.0
      %v8548 = vmax.f32 %v8458, 0.0
      %v8549 = vmax.f32 %v8463, 0.0
      %v8550 = vmax.f32 %v8468, 0.0
      %v8551 = vmax.f32 %v8473, 0.0
      %v8552 = vmax.f32 %v8478, 0.0
      %v8553 = vmax.f32 %v8483, 0.0
      %v8554 = vmax.f32 %v8488, 0.0
      %v8555 = vmax.f32 %v8493, 0.0
      %v8556 = vmax.f32 %v8498, 0.0
      %v8557 = vmax.f32 %v8503, 0.0
      %v8558 = vmax.f32 %v8508, 0.0
      %v8559 = vmax.f32 %v8513, 0.0
      %v8560 = vmax.f32 %v8518, 0.0
      %v8561 = vmax.f32 %v8523, 0.0
      %v8562 = vmax.f32 %v8528, 0.0
      %s8563 = scalar_lea.vmem %s8, 112
      %v8564 = vld [vmem:[%s8563] sm:$0x3f]
      %v8565 = vld [vmem:[%s8563 + $0x8] sm:$0x3f]
      %s8566 = scalar_lea.vmem %s12, 56
      %v8567 = vld [vmem:[%s8566] sm:$0x3f]
      %8569 = vset.pattern.permute.xlu0 0
      %8570 = vperm.xlu0 %8569, %v8567
      %v8571 = vpop.permute.xlu0 %8570
      %8573 = vmatprep.subr.mxu0 0.0
      %8574 = vmatpush1.msra.mxu0 %v8531
      %8575 = vmatprep.subr.mxu0 0.0
      %8576 = vmatpush1.msra.mxu0 %v8532
      %8577 = vmatprep.subr.mxu0 0.0
      %8578 = vmatpush1.msra.mxu0 %v8533
      %8579 = vmatprep.subr.mxu0 0.0
      %8580 = vmatpush1.msra.mxu0 %v8534
      %8581 = vmatprep.subr.mxu0 0.0
      %8582 = vmatpush1.msra.mxu0 %v8535
      %8583 = vmatprep.subr.mxu0 0.0
      %8584 = vmatpush1.msra.mxu0 %v8536
      %8585 = vmatprep.subr.mxu0 0.0
      %8586 = vmatpush1.msra.mxu0 %v8537
      %8587 = vmatprep.subr.mxu0 0.0
      %8588 = vmatpush1.msra.mxu0 %v8538
      %8589 = vmatprep.subr.mxu0 0.0
      %8590 = vmatpush1.msra.mxu0 %v8539
      %8591 = vmatprep.subr.mxu0 0.0
      %8592 = vmatpush1.msra.mxu0 %v8540
      %8593 = vmatprep.subr.mxu0 0.0
      %8594 = vmatpush1.msra.mxu0 %v8541
      %8595 = vmatprep.subr.mxu0 0.0
      %8596 = vmatpush1.msra.mxu0 %v8542
      %8597 = vmatprep.subr.mxu0 0.0
      %8598 = vmatpush1.msra.mxu0 %v8543
      %8599 = vmatprep.subr.mxu0 0.0
      %8600 = vmatpush1.msra.mxu0 %v8544
      %8601 = vmatprep.subr.mxu0 0.0
      %8602 = vmatpush1.msra.mxu0 %v8545
      %8603 = vmatprep.subr.mxu0 0.0
      %8604 = vmatpush1.msra.mxu0 %v8546
      %8605 = vmatprep.subr.mxu0 0.0
      %8606 = vmatpush1.msra.mxu0 %v8547
      %8607 = vmatprep.subr.mxu0 0.0
      %8608 = vmatpush1.msra.mxu0 %v8548
      %8609 = vmatprep.subr.mxu0 0.0
      %8610 = vmatpush1.msra.mxu0 %v8549
      %8611 = vmatprep.subr.mxu0 0.0
      %8612 = vmatpush1.msra.mxu0 %v8550
      %8613 = vmatprep.subr.mxu0 0.0
      %8614 = vmatpush1.msra.mxu0 %v8551
      %8615 = vmatprep.subr.mxu0 0.0
      %8616 = vmatpush1.msra.mxu0 %v8552
      %8617 = vmatprep.subr.mxu0 0.0
      %8618 = vmatpush1.msra.mxu0 %v8553
      %8619 = vmatprep.subr.mxu0 0.0
      %8620 = vmatpush1.msra.mxu0 %v8554
      %8621 = vmatprep.subr.mxu0 0.0
      %8622 = vmatpush1.msra.mxu0 %v8555
      %8623 = vmatprep.subr.mxu0 0.0
      %8624 = vmatpush1.msra.mxu0 %v8556
      %8625 = vmatprep.subr.mxu0 0.0
      %8626 = vmatpush1.msra.mxu0 %v8557
      %8627 = vmatprep.subr.mxu0 0.0
      %8628 = vmatpush1.msra.mxu0 %v8558
      %8629 = vmatprep.subr.mxu0 0.0
      %8630 = vmatpush1.msra.mxu0 %v8559
      %8631 = vmatprep.subr.mxu0 0.0
      %8632 = vmatpush1.msra.mxu0 %v8560
      %8633 = vmatprep.subr.mxu0 0.0
      %8634 = vmatpush1.msra.mxu0 %v8561
      %8635 = vmatprep.subr.mxu0 0.0
      %8636 = vmatpush1.msra.mxu0 %v8562
      %8637 = vmatprep.mubr.f32.mxu0 %v8565
      %8638 = vmatmul.mubr.f32.gmra.mrb[0].mxu0 %v8564
      %v8639 = vpop.f32.mrb[0].mxu0
      %v8640 = vadd.f32 %v8571, %v8639
      %v8641 = vpop.f32.mrb[0].mxu0
      %8642 = vdwg.mxu0
      %8643 = vst.msk [vmem:[%s463] sm:$0x3f] %vm788, %v8640
      %p8644 = scmp.lt.s32.totalorder %s24, 1
      %s8645 = scalar_select %p8644, %s24, 1
      %s8646 = smul.addr %s8645, 8
      %s8647 = scalar_lea.vmem %s13, %s8646
      // Predicated region
      $region73: #{tpu_custom_call.1} parent=71 // pred_check
        %p8648 = pneg %p330
      $region74: #{tpu_custom_call.1} parent=71 // pred_check_branch
        %8650 = sbr.rel (%p8648) target = $region76
      $region75: #{tpu_custom_call.1} parent=71 // pred_region
        _
      $region76: #{tpu_custom_call.1} parent=71 // pred_fallthru
        _
    $region72: #{tpu_custom_call.1} parent=5 // pred_fallthru
      _
    %p8651 = scmp.le.s32.totalorder 2, %s19
    // Predicated region
    $region77: #{tpu_custom_call.1} parent=5 // pred_check
      %p8652 = pneg %p8651
    $region78: #{tpu_custom_call.1} parent=5 // pred_check_branch
      %8654 = sbr.rel (%p8652) target = $region80
    $region79: #{tpu_custom_call.1} parent=5 // pred_region
      %s8655 = ssub.s32 %s19, 2
      // Predicated region
      $region81: #{tpu_custom_call.1} parent=79 // pred_check
        %p8656 = pneg %p336
      $region82: #{tpu_custom_call.1} parent=79 // pred_check_branch
        %8658 = sbr.rel (%p8656) target = $region84
      $region83: #{tpu_custom_call.1} parent=79 // pred_region
        %p8659 = scmp.lt.s32.totalorder %s25, 1
        %s8660 = scalar_select %p8659, %s25, 1
        %s8661 = smul.addr %s8660, 8
        %s8662 = scalar_lea.vmem %s13, %s8661
      $region84: #{tpu_custom_call.1} parent=79 // pred_fallthru
        _
    $region80: #{tpu_custom_call.1} parent=5 // pred_fallthru
      _
  $region6: #{tpu_custom_call.1} parent=0 // loop_footer
    %s23 = sadd.s32 1, %s19
  $region7: #{tpu_custom_call.1} parent=0 // loop_footer_branch
    %18 = sbr.rel target = $region3
  $region8: #{tpu_custom_call.1} parent=0 // loop_exit
    _

</llo_original>
